<compile_context>
chip_gen: v6e
topology: v6e:2x2x1
jax: 0.10.0
libtpu: 0.0.40
codegen_flags: <defaults>
</compile_context>

<pallas_src>
import functools

import jax
import jax.numpy as jnp
from jax.experimental import pallas as pl
from jax.experimental.pallas import tpu as pltpu  # noqa: F401  (TPU-specific params if needed)

# Matmul compute dtype (f32 accumulation either way).  Keep f32: bf16 dot is
# not supported by the CPU/interpret executor and the kernel is not MXU-bound.
MATMUL_DTYPE = jnp.float32
# Storage dtype for k=3 conv weights shipped into the kernel (halves HBM DMA).
# Set to jnp.float32 for a bit-exact f32 validation path.
WEIGHT_DTYPE = jnp.bfloat16


# ----------------------------------------------------------------------------
# Fused UNet kernel
# ----------------------------------------------------------------------------

def _unet_fused_kernel(*refs, n, s, levels, mm_dtype):
    out_ref = refs[-1]
    it = iter(refs[:-1])

    y_ref = next(it)        # (N, S)  f32   == squeeze(y)
    g_ref = next(it)        # (S, S)  f32   == good_matrix
    upw_ref = next(it)      # (1, H)  f32
    upb_ref = next(it)      # (1, H)  f32
    contract = [(next(it), next(it), next(it), next(it)) for _ in range(levels)]
    expand = [tuple(next(it) for _ in range(7)) for _ in range(levels)]
    dw_ref = next(it)       # (H, 1)  f32
    db_ref = next(it)       # (1, 1)  f32

    def mm(a, b):
        # MXU matmul, f32 accumulation.  bf16-stored weights are upcast here.
        return jnp.dot(a.astype(mm_dtype), b.astype(mm_dtype),
                       preferred_element_type=jnp.float32)

    def leaky(v):                       # LeakyReLU(0.2)
        return jnp.where(v > 0, v, 0.2 * v)

    def relu(v):
        return jnp.maximum(v, 0.0)

    # ---- hoisted per-sample conv boundary masks (one iota/mod per length) --
    # Activations are (N*L, C) channels-last, rows laid out
    # [sample0: 0..L-1, sample1: 0..L-1, ...].  Conv1d(k=3, pad=1) neighbours
    # that fall outside the current sample are zeroed with these masks.
    masks = {}
    for lvl in range(levels):
        l_per = s // (2 ** lvl)
        rows = n * l_per
        pos = jax.lax.broadcasted_iota(jnp.int32, (rows, 1), 0) % l_per
        masks[l_per] = (pos == 0, pos == l_per - 1)

    def conv3_pre(x, w_ref, l_per):
        # Conv1d(kernel_size=3, padding=1); weights stored as (3, Cin, Cout).
        # Three tap matmuls summed into one f32 accumulator.
        first, last = masks[l_per]
        x_prev = jnp.where(first, 0.0, jnp.roll(x, 1, axis=0))
        x_next = jnp.where(last, 0.0, jnp.roll(x, -1, axis=0))
        return mm(x_prev, w_ref[0]) + mm(x, w_ref[1]) + mm(x_next, w_ref[2])

    def conv3(x, w_ref, b_ref, l_per, act=None):
        acc = conv3_pre(x, w_ref, l_per) + b_ref[...]
        return act(acc) if act is not None else acc

    def maxpool2(x):                    # k=2, stride=2; pairs never straddle samples
        rows, c = x.shape
        return jnp.max(x.reshape(rows // 2, 2, c), axis=1)

    def upsample2(x):                   # nearest, scale_factor=2 (duplicate rows)
        rows, c = x.shape
        return jnp.broadcast_to(x[:, None, :], (rows, 2, c)).reshape(2 * rows, c)

    # ---- preproc:  x_hermite = (G^H @ y1^T)^T == y1 @ G (G is real) ---------
    xh = mm(y_ref[...], g_ref[...])                 # (N, S)
    mn = jnp.min(xh)                                # global min/max (torch semantics)
    mx = jnp.max(xh)
    inv = 1.0 / (mx - mn)   # mx == mn -> inf/NaN, same as the torch reference

    # ---- upfeature (1x1 conv, Cin=1 -> H) with the normalization folded in:
    #        up((xh - mn) * inv) = xh * (inv*W) + (b - mn*inv*W)
    scale = upw_ref[...] * inv                      # (1, H)
    shift = upb_ref[...] - mn * scale               # (1, H)
    xh_t = jnp.transpose(xh)                        # (S, N): one small transpose
    xh_col = jnp.concatenate([xh_t[:, i:i + 1] for i in range(n)], axis=0)  # (N*S, 1)
    x = xh_col * scale + shift                      # (N*S, H): single broadcast FMA

    # ---- contracting path ---------------------------------------------------
    xenc = [x]
    l_cur = s
    for lvl in range(levels):
        w1, b1, w2, b2 = contract[lvl]
        x = conv3(x, w1, b1, l_cur, leaky)
        x = conv3(x, w2, b2, l_cur, leaky)
        x = maxpool2(x)
        l_cur //= 2
        xenc.append(x)

    # ---- expanding path -----------------------------------------------------
    for lvl in range(levels):
        w1, b1, w2x, w2s, b2, w3, b3 = expand[lvl]
        skip = xenc[levels - lvl - 1]
        x = upsample2(x)
        l_cur *= 2
        x = conv3(x, w1, b1, l_cur)                 # conv1: no activation
        # torch.cat([x, skip], dim=1) followed by conv2 is a split-weight conv:
        #   conv(cat, w2) == conv(x, w2_x) + conv(skip, w2_skip)   (no concat)
        x = relu(conv3_pre(x, w2x, l_cur) + conv3_pre(skip, w2s, l_cur) + b2[...])
        x = conv3(x, w3, b3, l_cur, relu)

    # ---- downfeature: 1x1 conv H -> 1, stored lane-dense as (1, N*S) --------
    res = mm(x, dw_ref[...]) + db_ref[...]          # (N*S, 1)
    out_ref[...] = jnp.transpose(res).astype(out_ref.dtype)


# ----------------------------------------------------------------------------
# Wrapper
# ----------------------------------------------------------------------------

def pack_params(params, levels=2, weight_dtype=WEIGHT_DTYPE):
    """One-time (outside jit) packing: k=3 conv weights cast to weight_dtype and
    each expanding conv2 weight split along Cin ([x | skip] order, matching
    torch.cat([x, skip], dim=1))."""
    packed = [params["up_w"], params["up_b"]]
    for lvl in range(levels):
        p = params["contract"][lvl]
        packed += [p["w1"].astype(weight_dtype), p["b1"],
                   p["w2"].astype(weight_dtype), p["b2"]]
    for lvl in range(levels):
        p = params["expand"][lvl]
        c_half = p["w2"].shape[1] // 2          # channels coming from x (vs skip)
        packed += [p["w1"].astype(weight_dtype), p["b1"],
                   p["w2"][:, :c_half, :].astype(weight_dtype),
                   p["w2"][:, c_half:, :].astype(weight_dtype), p["b2"],
                   p["w3"].astype(weight_dtype), p["b3"]]
    packed += [params["down_w"], params["down_b"]]
    return tuple(packed)


def unet_forward(packed, y1, good_matrix, levels=2):
    """Fused UNet forward.  y1: (N, S).  Returns (N, 1, S) (torch NCL layout)."""
    n, s = y1.shape
    inputs = (y1, good_matrix) + tuple(packed)
    kernel = functools.partial(_unet_fused_kernel, n=n, s=s, levels=levels,
                               mm_dtype=MATMUL_DTYPE)
    # No grid: a single invocation; every operand is one whole-array block
    # resident in VMEM (no double-buffering / pipeline bookkeeping).
    out_row = pl.pallas_call(
        kernel,
        out_shape=jax.ShapeDtypeStruct((1, n * s), jnp.float32),
    )(*inputs)
    # (1, N*S): flat index is n*S + s, so (N, 1, S) is a pure reshape.
    return out_row.reshape(n, 1, s)


# ----------------------------------------------------------------------------
# Parameter construction (deterministic, synthetic)
# ----------------------------------------------------------------------------

def init_params(key, hidden=32, levels=2, in_ch=1, out_ch=1):
    params = {}
    state = {"key": key}

    def nxt():
        state["key"], sub = jax.random.split(state["key"])
        return sub

    def conv_w(k, cin, cout):
        scale = 1.0 / jnp.sqrt(jnp.float32(cin * k))
        shape = (cin, cout) if k == 1 else (k, cin, cout)
        return jax.random.normal(nxt(), shape, jnp.float32) * scale

    def conv_b(cout):
        return jax.random.normal(nxt(), (1, cout), jnp.float32) * 0.01

    params["up_w"] = conv_w(1, in_ch, hidden)
    params["up_b"] = conv_b(hidden)

    params["contract"] = []
    for lvl in range(levels):
        cin = hidden * 2 ** lvl
        params["contract"].append({
            "w1": conv_w(3, cin, 2 * cin), "b1": conv_b(2 * cin),
            "w2": conv_w(3, 2 * cin, 2 * cin), "b2": conv_b(2 * cin),
        })

    params["expand"] = []
    for lvl in range(levels):
        cin = hidden * 2 ** (levels - lvl)
        params["expand"].append({
            "w1": conv_w(3, cin, cin // 2), "b1": conv_b(cin // 2),
            "w2": conv_w(3, cin, cin // 2), "b2": conv_b(cin // 2),
            "w3": conv_w(3, cin // 2, cin // 2), "b3": conv_b(cin // 2),
        })

    params["down_w"] = conv_w(1, hidden, out_ch)
    params["down_b"] = conv_b(out_ch)
    return params


# ----------------------------------------------------------------------------
# Main
# ----------------------------------------------------------------------------

if __name__ == "__main__":
    S = 16          # sequence length ("size"); must be divisible by 2**LEVELS
    N = 2           # batch
    HIDDEN = 32     # hidden_channels
    LEVELS = 2

    key = jax.random.PRNGKey(0)
    k_g, k_y, k_p = jax.random.split(key, 3)

    # synthetic "good_matrix", normalized like the reference (undefined there)
    good_matrix = jax.random.normal(k_g, (S, S), jnp.float32)
    good_matrix = good_matrix / jnp.linalg.norm(good_matrix)

    y = jax.random.normal(k_y, (N, 1, S), jnp.float32)      # torch-style (N, 1, S)
    params = init_params(k_p, hidden=HIDDEN, levels=LEVELS)
    packed = pack_params(params, levels=LEVELS)              # one-time, outside jit

    y1 = jnp.squeeze(y)                                      # (N, S)
    fwd = jax.jit(functools.partial(unet_forward, levels=LEVELS))
    out = jax.block_until_ready(fwd(packed, y1, good_matrix))
    assert out.shape == (N, 1, S) and out.dtype == jnp.float32
    print("KERNEL_OK")
</pallas_src>

<mosaic_0001>
module attributes {stable_mosaic.version = 11 : i64} {
  func.func @_unet_fused_kernel(%arg0: memref<2x16xf32, #tpu.memory_space<vmem>>, %arg1: memref<16x16xf32, #tpu.memory_space<vmem>>, %arg2: memref<1x32xf32, #tpu.memory_space<vmem>>, %arg3: memref<1x32xf32, #tpu.memory_space<vmem>>, %arg4: memref<3x32x64xbf16, #tpu.memory_space<vmem>>, %arg5: memref<1x64xf32, #tpu.memory_space<vmem>>, %arg6: memref<3x64x64xbf16, #tpu.memory_space<vmem>>, %arg7: memref<1x64xf32, #tpu.memory_space<vmem>>, %arg8: memref<3x64x128xbf16, #tpu.memory_space<vmem>>, %arg9: memref<1x128xf32, #tpu.memory_space<vmem>>, %arg10: memref<3x128x128xbf16, #tpu.memory_space<vmem>>, %arg11: memref<1x128xf32, #tpu.memory_space<vmem>>, %arg12: memref<3x128x64xbf16, #tpu.memory_space<vmem>>, %arg13: memref<1x64xf32, #tpu.memory_space<vmem>>, %arg14: memref<3x64x64xbf16, #tpu.memory_space<vmem>>, %arg15: memref<3x64x64xbf16, #tpu.memory_space<vmem>>, %arg16: memref<1x64xf32, #tpu.memory_space<vmem>>, %arg17: memref<3x64x64xbf16, #tpu.memory_space<vmem>>, %arg18: memref<1x64xf32, #tpu.memory_space<vmem>>, %arg19: memref<3x64x32xbf16, #tpu.memory_space<vmem>>, %arg20: memref<1x32xf32, #tpu.memory_space<vmem>>, %arg21: memref<3x32x32xbf16, #tpu.memory_space<vmem>>, %arg22: memref<3x32x32xbf16, #tpu.memory_space<vmem>>, %arg23: memref<1x32xf32, #tpu.memory_space<vmem>>, %arg24: memref<3x32x32xbf16, #tpu.memory_space<vmem>>, %arg25: memref<1x32xf32, #tpu.memory_space<vmem>>, %arg26: memref<32x1xf32, #tpu.memory_space<vmem>>, %arg27: memref<1x1xf32, #tpu.memory_space<vmem>>, %arg28: memref<1x32xf32, #tpu.memory_space<vmem>>) attributes {dimension_semantics = [], scalar_prefetch = 0 : i64, scratch_operands = 0 : i64, tpu.core_type = #tpu.core_type<tc>} {
    %0 = tpu.iota {dimensions = array<i32: 0>} : vector<32x1xi32>
    %c16_i32 = arith.constant 16 : i32
    %c0_i32 = arith.constant 0 : i32
    %1 = arith.cmpi eq, %c16_i32, %c0_i32 : i32
    %c1_i32 = arith.constant 1 : i32
    %2 = arith.select %1, %c1_i32, %c16_i32 : i32
    %3 = vector.broadcast %2 : i32 to vector<32x1xi32>
    %4 = arith.remsi %0, %3 : vector<32x1xi32>
    %c0_i32_0 = arith.constant 0 : i32
    %5 = vector.broadcast %c0_i32_0 : i32 to vector<32x1xi32>
    %6 = arith.cmpi ne, %4, %5 : vector<32x1xi32>
    %c0_i32_1 = arith.constant 0 : i32
    %7 = vector.broadcast %c0_i32_1 : i32 to vector<32x1xi32>
    %8 = arith.cmpi slt, %4, %7 : vector<32x1xi32>
    %c0_i32_2 = arith.constant 0 : i32
    %9 = arith.cmpi slt, %2, %c0_i32_2 : i32
    %10 = vector.broadcast %9 : i1 to vector<32x1xi1>
    %11 = vector.broadcast %10 : vector<32x1xi1> to vector<32x1xi1>
    %12 = arith.xori %8, %11 : vector<32x1xi1>
    %13 = arith.andi %12, %6 : vector<32x1xi1>
    %14 = vector.broadcast %2 : i32 to vector<32x1xi32>
    %15 = arith.addi %4, %14 : vector<32x1xi32>
    %16 = arith.select %13, %15, %4 : vector<32x1xi1>, vector<32x1xi32>
    %c0_i32_3 = arith.constant 0 : i32
    %17 = vector.broadcast %c0_i32_3 : i32 to vector<32x1xi32>
    %18 = arith.cmpi eq, %16, %17 : vector<32x1xi32>
    %c15_i32 = arith.constant 15 : i32
    %19 = vector.broadcast %c15_i32 : i32 to vector<32x1xi32>
    %20 = arith.cmpi eq, %16, %19 : vector<32x1xi32>
    %21 = tpu.iota {dimensions = array<i32: 0>} : vector<16x1xi32>
    %c8_i32 = arith.constant 8 : i32
    %c0_i32_4 = arith.constant 0 : i32
    %22 = arith.cmpi eq, %c8_i32, %c0_i32_4 : i32
    %c1_i32_5 = arith.constant 1 : i32
    %23 = arith.select %22, %c1_i32_5, %c8_i32 : i32
    %24 = vector.broadcast %23 : i32 to vector<16x1xi32>
    %25 = arith.remsi %21, %24 : vector<16x1xi32>
    %c0_i32_6 = arith.constant 0 : i32
    %26 = vector.broadcast %c0_i32_6 : i32 to vector<16x1xi32>
    %27 = arith.cmpi ne, %25, %26 : vector<16x1xi32>
    %c0_i32_7 = arith.constant 0 : i32
    %28 = vector.broadcast %c0_i32_7 : i32 to vector<16x1xi32>
    %29 = arith.cmpi slt, %25, %28 : vector<16x1xi32>
    %c0_i32_8 = arith.constant 0 : i32
    %30 = arith.cmpi slt, %23, %c0_i32_8 : i32
    %31 = vector.broadcast %30 : i1 to vector<16x1xi1>
    %32 = vector.broadcast %31 : vector<16x1xi1> to vector<16x1xi1>
    %33 = arith.xori %29, %32 : vector<16x1xi1>
    %34 = arith.andi %33, %27 : vector<16x1xi1>
    %35 = vector.broadcast %23 : i32 to vector<16x1xi32>
    %36 = arith.addi %25, %35 : vector<16x1xi32>
    %37 = arith.select %34, %36, %25 : vector<16x1xi1>, vector<16x1xi32>
    %c0_i32_9 = arith.constant 0 : i32
    %38 = vector.broadcast %c0_i32_9 : i32 to vector<16x1xi32>
    %39 = arith.cmpi eq, %37, %38 : vector<16x1xi32>
    %c7_i32 = arith.constant 7 : i32
    %40 = vector.broadcast %c7_i32 : i32 to vector<16x1xi32>
    %41 = arith.cmpi eq, %37, %40 : vector<16x1xi32>
    %c0 = arith.constant 0 : index
    %c0_10 = arith.constant 0 : index
    %42 = vector.load %arg0[%c0, %c0_10] : memref<2x16xf32, #tpu.memory_space<vmem>>, vector<2x16xf32>
    %c0_11 = arith.constant 0 : index
    %c0_12 = arith.constant 0 : index
    %43 = vector.load %arg1[%c0_11, %c0_12] : memref<16x16xf32, #tpu.memory_space<vmem>>, vector<16x16xf32>
    %cst = arith.constant dense<0.000000e+00> : vector<2x16xf32>
    %44 = tpu.matmul %42, %43, %cst {dimension_numbers = #tpu.dot_dimension_numbers<[1], [0], [0], [1], [0, 0, 1, 1], [], []>} : vector<2x16xf32>, vector<16x16xf32>, vector<2x16xf32> -> vector<2x16xf32>
    %45 = vector.shape_cast %44 : vector<2x16xf32> to vector<1x2x16xf32>
    %cst_13 = arith.constant dense<0x7F800000> : vector<1xf32>
    %46 = vector.multi_reduction <minimumf>, %45, %cst_13 [1, 2] : vector<1x2x16xf32> to vector<1xf32>
    %47 = vector.shape_cast %46 : vector<1xf32> to vector<1x1x1xf32>
    %48 = vector.extract %47[0, 0, 0] : f32 from vector<1x1x1xf32>
    %49 = vector.shape_cast %44 : vector<2x16xf32> to vector<1x2x16xf32>
    %cst_14 = arith.constant dense<0xFF800000> : vector<1xf32>
    %50 = vector.multi_reduction <maximumf>, %49, %cst_14 [1, 2] : vector<1x2x16xf32> to vector<1xf32>
    %51 = vector.shape_cast %50 : vector<1xf32> to vector<1x1x1xf32>
    %52 = vector.extract %51[0, 0, 0] : f32 from vector<1x1x1xf32>
    %53 = arith.subf %52, %48 : f32
    %cst_15 = arith.constant 1.000000e+00 : f32
    %54 = arith.divf %cst_15, %53 : f32
    %c0_16 = arith.constant 0 : index
    %c0_17 = arith.constant 0 : index
    %55 = vector.load %arg2[%c0_16, %c0_17] : memref<1x32xf32, #tpu.memory_space<vmem>>, vector<1x32xf32>
    %56 = vector.broadcast %54 : f32 to vector<1x32xf32>
    %57 = arith.mulf %55, %56 : vector<1x32xf32>
    %c0_18 = arith.constant 0 : index
    %c0_19 = arith.constant 0 : index
    %58 = vector.load %arg3[%c0_18, %c0_19] : memref<1x32xf32, #tpu.memory_space<vmem>>, vector<1x32xf32>
    %59 = vector.broadcast %48 : f32 to vector<1x32xf32>
    %60 = arith.mulf %59, %57 : vector<1x32xf32>
    %61 = arith.subf %58, %60 : vector<1x32xf32>
    %62 = tpu.transpose %44, [1, 0] : vector<2x16xf32> -> vector<16x2xf32>
    %63 = vector.extract_strided_slice %62 {offsets = [0, 0], sizes = [16, 1], strides = [1, 1]} : vector<16x2xf32> to vector<16x1xf32>
    %64 = vector.extract_strided_slice %62 {offsets = [0, 1], sizes = [16, 1], strides = [1, 1]} : vector<16x2xf32> to vector<16x1xf32>
    %65 = tpu.concatenate %63, %64 in 0 : vector<16x1xf32>, vector<16x1xf32> -> vector<32x1xf32>
    %66 = vector.broadcast %65 : vector<32x1xf32> to vector<32x32xf32>
    %67 = vector.broadcast %57 : vector<1x32xf32> to vector<32x32xf32>
    %68 = arith.mulf %66, %67 : vector<32x32xf32>
    %69 = vector.broadcast %61 : vector<1x32xf32> to vector<32x32xf32>
    %70 = arith.addf %68, %69 : vector<32x32xf32>
    %71 = vector.extract_strided_slice %70 {offsets = [31, 0], sizes = [1, 32], strides = [1, 1]} : vector<32x32xf32> to vector<1x32xf32>
    %72 = vector.extract_strided_slice %70 {offsets = [0, 0], sizes = [31, 32], strides = [1, 1]} : vector<32x32xf32> to vector<31x32xf32>
    %73 = tpu.concatenate %71, %72 in 0 : vector<1x32xf32>, vector<31x32xf32> -> vector<32x32xf32>
    %cst_20 = arith.constant 0.000000e+00 : f32
    %74 = vector.shape_cast %18 : vector<32x1xi1> to vector<32x1xi1>
    %75 = vector.broadcast %74 : vector<32x1xi1> to vector<32x32xi1>
    %76 = vector.broadcast %cst_20 : f32 to vector<32x32xf32>
    %77 = arith.select %75, %76, %73 : vector<32x32xi1>, vector<32x32xf32>
    %78 = vector.extract_strided_slice %70 {offsets = [1, 0], sizes = [31, 32], strides = [1, 1]} : vector<32x32xf32> to vector<31x32xf32>
    %79 = vector.extract_strided_slice %70 {offsets = [0, 0], sizes = [1, 32], strides = [1, 1]} : vector<32x32xf32> to vector<1x32xf32>
    %80 = tpu.concatenate %78, %79 in 0 : vector<31x32xf32>, vector<1x32xf32> -> vector<32x32xf32>
    %cst_21 = arith.constant 0.000000e+00 : f32
    %81 = vector.shape_cast %20 : vector<32x1xi1> to vector<32x1xi1>
    %82 = vector.broadcast %81 : vector<32x1xi1> to vector<32x32xi1>
    %83 = vector.broadcast %cst_21 : f32 to vector<32x32xf32>
    %84 = arith.select %82, %83, %80 : vector<32x32xi1>, vector<32x32xf32>
    %c0_22 = arith.constant 0 : index
    %c0_23 = arith.constant 0 : index
    %c0_24 = arith.constant 0 : index
    %85 = vector.load %arg4[%c0_22, %c0_23, %c0_24] : memref<3x32x64xbf16, #tpu.memory_space<vmem>>, vector<1x32x64xbf16>
    %86 = vector.shape_cast %85 : vector<1x32x64xbf16> to vector<32x64xbf16>
    %87 = arith.extf %86 : vector<32x64xbf16> to vector<32x64xf32>
    %cst_25 = arith.constant dense<0.000000e+00> : vector<32x64xf32>
    %88 = tpu.matmul %77, %87, %cst_25 {dimension_numbers = #tpu.dot_dimension_numbers<[1], [0], [0], [1], [0, 0, 1, 1], [], []>} : vector<32x32xf32>, vector<32x64xf32>, vector<32x64xf32> -> vector<32x64xf32>
    %c1 = arith.constant 1 : index
    %c0_26 = arith.constant 0 : index
    %c0_27 = arith.constant 0 : index
    %89 = vector.load %arg4[%c1, %c0_26, %c0_27] : memref<3x32x64xbf16, #tpu.memory_space<vmem>>, vector<1x32x64xbf16>
    %90 = vector.shape_cast %89 : vector<1x32x64xbf16> to vector<32x64xbf16>
    %91 = arith.extf %90 : vector<32x64xbf16> to vector<32x64xf32>
    %cst_28 = arith.constant dense<0.000000e+00> : vector<32x64xf32>
    %92 = tpu.matmul %70, %91, %cst_28 {dimension_numbers = #tpu.dot_dimension_numbers<[1], [0], [0], [1], [0, 0, 1, 1], [], []>} : vector<32x32xf32>, vector<32x64xf32>, vector<32x64xf32> -> vector<32x64xf32>
    %93 = arith.addf %88, %92 : vector<32x64xf32>
    %c2 = arith.constant 2 : index
    %c0_29 = arith.constant 0 : index
    %c0_30 = arith.constant 0 : index
    %94 = vector.load %arg4[%c2, %c0_29, %c0_30] : memref<3x32x64xbf16, #tpu.memory_space<vmem>>, vector<1x32x64xbf16>
    %95 = vector.shape_cast %94 : vector<1x32x64xbf16> to vector<32x64xbf16>
    %96 = arith.extf %95 : vector<32x64xbf16> to vector<32x64xf32>
    %cst_31 = arith.constant dense<0.000000e+00> : vector<32x64xf32>
    %97 = tpu.matmul %84, %96, %cst_31 {dimension_numbers = #tpu.dot_dimension_numbers<[1], [0], [0], [1], [0, 0, 1, 1], [], []>} : vector<32x32xf32>, vector<32x64xf32>, vector<32x64xf32> -> vector<32x64xf32>
    %98 = arith.addf %93, %97 : vector<32x64xf32>
    %c0_32 = arith.constant 0 : index
    %c0_33 = arith.constant 0 : index
    %99 = vector.load %arg5[%c0_32, %c0_33] : memref<1x64xf32, #tpu.memory_space<vmem>>, vector<1x64xf32>
    %100 = vector.broadcast %99 : vector<1x64xf32> to vector<32x64xf32>
    %101 = arith.addf %98, %100 : vector<32x64xf32>
    %cst_34 = arith.constant 0.000000e+00 : f32
    %102 = vector.broadcast %cst_34 : f32 to vector<32x64xf32>
    %103 = arith.cmpf ogt, %101, %102 : vector<32x64xf32>
    %cst_35 = arith.constant 2.000000e-01 : f32
    %104 = vector.broadcast %cst_35 : f32 to vector<32x64xf32>
    %105 = arith.mulf %104, %101 : vector<32x64xf32>
    %106 = arith.select %103, %101, %105 : vector<32x64xi1>, vector<32x64xf32>
    %107 = vector.extract_strided_slice %106 {offsets = [31, 0], sizes = [1, 64], strides = [1, 1]} : vector<32x64xf32> to vector<1x64xf32>
    %108 = vector.extract_strided_slice %106 {offsets = [0, 0], sizes = [31, 64], strides = [1, 1]} : vector<32x64xf32> to vector<31x64xf32>
    %109 = tpu.concatenate %107, %108 in 0 : vector<1x64xf32>, vector<31x64xf32> -> vector<32x64xf32>
    %cst_36 = arith.constant 0.000000e+00 : f32
    %110 = vector.shape_cast %18 : vector<32x1xi1> to vector<32x1xi1>
    %111 = vector.broadcast %110 : vector<32x1xi1> to vector<32x64xi1>
    %112 = vector.broadcast %cst_36 : f32 to vector<32x64xf32>
    %113 = arith.select %111, %112, %109 : vector<32x64xi1>, vector<32x64xf32>
    %114 = vector.extract_strided_slice %106 {offsets = [1, 0], sizes = [31, 64], strides = [1, 1]} : vector<32x64xf32> to vector<31x64xf32>
    %115 = vector.extract_strided_slice %106 {offsets = [0, 0], sizes = [1, 64], strides = [1, 1]} : vector<32x64xf32> to vector<1x64xf32>
    %116 = tpu.concatenate %114, %115 in 0 : vector<31x64xf32>, vector<1x64xf32> -> vector<32x64xf32>
    %cst_37 = arith.constant 0.000000e+00 : f32
    %117 = vector.shape_cast %20 : vector<32x1xi1> to vector<32x1xi1>
    %118 = vector.broadcast %117 : vector<32x1xi1> to vector<32x64xi1>
    %119 = vector.broadcast %cst_37 : f32 to vector<32x64xf32>
    %120 = arith.select %118, %119, %116 : vector<32x64xi1>, vector<32x64xf32>
    %c0_38 = arith.constant 0 : index
    %c0_39 = arith.constant 0 : index
    %c0_40 = arith.constant 0 : index
    %121 = vector.load %arg6[%c0_38, %c0_39, %c0_40] : memref<3x64x64xbf16, #tpu.memory_space<vmem>>, vector<1x64x64xbf16>
    %122 = vector.shape_cast %121 : vector<1x64x64xbf16> to vector<64x64xbf16>
    %123 = arith.extf %122 : vector<64x64xbf16> to vector<64x64xf32>
    %cst_41 = arith.constant dense<0.000000e+00> : vector<32x64xf32>
    %124 = tpu.matmul %113, %123, %cst_41 {dimension_numbers = #tpu.dot_dimension_numbers<[1], [0], [0], [1], [0, 0, 1, 1], [], []>} : vector<32x64xf32>, vector<64x64xf32>, vector<32x64xf32> -> vector<32x64xf32>
    %c1_42 = arith.constant 1 : index
    %c0_43 = arith.constant 0 : index
    %c0_44 = arith.constant 0 : index
    %125 = vector.load %arg6[%c1_42, %c0_43, %c0_44] : memref<3x64x64xbf16, #tpu.memory_space<vmem>>, vector<1x64x64xbf16>
    %126 = vector.shape_cast %125 : vector<1x64x64xbf16> to vector<64x64xbf16>
    %127 = arith.extf %126 : vector<64x64xbf16> to vector<64x64xf32>
    %cst_45 = arith.constant dense<0.000000e+00> : vector<32x64xf32>
    %128 = tpu.matmul %106, %127, %cst_45 {dimension_numbers = #tpu.dot_dimension_numbers<[1], [0], [0], [1], [0, 0, 1, 1], [], []>} : vector<32x64xf32>, vector<64x64xf32>, vector<32x64xf32> -> vector<32x64xf32>
    %129 = arith.addf %124, %128 : vector<32x64xf32>
    %c2_46 = arith.constant 2 : index
    %c0_47 = arith.constant 0 : index
    %c0_48 = arith.constant 0 : index
    %130 = vector.load %arg6[%c2_46, %c0_47, %c0_48] : memref<3x64x64xbf16, #tpu.memory_space<vmem>>, vector<1x64x64xbf16>
    %131 = vector.shape_cast %130 : vector<1x64x64xbf16> to vector<64x64xbf16>
    %132 = arith.extf %131 : vector<64x64xbf16> to vector<64x64xf32>
    %cst_49 = arith.constant dense<0.000000e+00> : vector<32x64xf32>
    %133 = tpu.matmul %120, %132, %cst_49 {dimension_numbers = #tpu.dot_dimension_numbers<[1], [0], [0], [1], [0, 0, 1, 1], [], []>} : vector<32x64xf32>, vector<64x64xf32>, vector<32x64xf32> -> vector<32x64xf32>
    %134 = arith.addf %129, %133 : vector<32x64xf32>
    %c0_50 = arith.constant 0 : index
    %c0_51 = arith.constant 0 : index
    %135 = vector.load %arg7[%c0_50, %c0_51] : memref<1x64xf32, #tpu.memory_space<vmem>>, vector<1x64xf32>
    %136 = vector.broadcast %135 : vector<1x64xf32> to vector<32x64xf32>
    %137 = arith.addf %134, %136 : vector<32x64xf32>
    %cst_52 = arith.constant 0.000000e+00 : f32
    %138 = vector.broadcast %cst_52 : f32 to vector<32x64xf32>
    %139 = arith.cmpf ogt, %137, %138 : vector<32x64xf32>
    %cst_53 = arith.constant 2.000000e-01 : f32
    %140 = vector.broadcast %cst_53 : f32 to vector<32x64xf32>
    %141 = arith.mulf %140, %137 : vector<32x64xf32>
    %142 = arith.select %139, %137, %141 : vector<32x64xi1>, vector<32x64xf32>
    %143 = vector.shape_cast %142 : vector<32x64xf32> to vector<16x2x64xf32>
    %cst_54 = arith.constant dense<0xFF800000> : vector<16x64xf32>
    %144 = vector.multi_reduction <maximumf>, %143, %cst_54 [1] : vector<16x2x64xf32> to vector<16x64xf32>
    %145 = vector.extract_strided_slice %144 {offsets = [15, 0], sizes = [1, 64], strides = [1, 1]} : vector<16x64xf32> to vector<1x64xf32>
    %146 = vector.extract_strided_slice %144 {offsets = [0, 0], sizes = [15, 64], strides = [1, 1]} : vector<16x64xf32> to vector<15x64xf32>
    %147 = tpu.concatenate %145, %146 in 0 : vector<1x64xf32>, vector<15x64xf32> -> vector<16x64xf32>
    %cst_55 = arith.constant 0.000000e+00 : f32
    %148 = vector.shape_cast %39 : vector<16x1xi1> to vector<16x1xi1>
    %149 = vector.broadcast %148 : vector<16x1xi1> to vector<16x64xi1>
    %150 = vector.broadcast %cst_55 : f32 to vector<16x64xf32>
    %151 = arith.select %149, %150, %147 : vector<16x64xi1>, vector<16x64xf32>
    %152 = vector.extract_strided_slice %144 {offsets = [1, 0], sizes = [15, 64], strides = [1, 1]} : vector<16x64xf32> to vector<15x64xf32>
    %153 = vector.extract_strided_slice %144 {offsets = [0, 0], sizes = [1, 64], strides = [1, 1]} : vector<16x64xf32> to vector<1x64xf32>
    %154 = tpu.concatenate %152, %153 in 0 : vector<15x64xf32>, vector<1x64xf32> -> vector<16x64xf32>
    %cst_56 = arith.constant 0.000000e+00 : f32
    %155 = vector.shape_cast %41 : vector<16x1xi1> to vector<16x1xi1>
    %156 = vector.broadcast %155 : vector<16x1xi1> to vector<16x64xi1>
    %157 = vector.broadcast %cst_56 : f32 to vector<16x64xf32>
    %158 = arith.select %156, %157, %154 : vector<16x64xi1>, vector<16x64xf32>
    %c0_57 = arith.constant 0 : index
    %c0_58 = arith.constant 0 : index
    %c0_59 = arith.constant 0 : index
    %159 = vector.load %arg8[%c0_57, %c0_58, %c0_59] : memref<3x64x128xbf16, #tpu.memory_space<vmem>>, vector<1x64x128xbf16>
    %160 = vector.shape_cast %159 : vector<1x64x128xbf16> to vector<64x128xbf16>
    %161 = arith.extf %160 : vector<64x128xbf16> to vector<64x128xf32>
    %cst_60 = arith.constant dense<0.000000e+00> : vector<16x128xf32>
    %162 = tpu.matmul %151, %161, %cst_60 {dimension_numbers = #tpu.dot_dimension_numbers<[1], [0], [0], [1], [0, 0, 1, 1], [], []>} : vector<16x64xf32>, vector<64x128xf32>, vector<16x128xf32> -> vector<16x128xf32>
    %c1_61 = arith.constant 1 : index
    %c0_62 = arith.constant 0 : index
    %c0_63 = arith.constant 0 : index
    %163 = vector.load %arg8[%c1_61, %c0_62, %c0_63] : memref<3x64x128xbf16, #tpu.memory_space<vmem>>, vector<1x64x128xbf16>
    %164 = vector.shape_cast %163 : vector<1x64x128xbf16> to vector<64x128xbf16>
    %165 = arith.extf %164 : vector<64x128xbf16> to vector<64x128xf32>
    %cst_64 = arith.constant dense<0.000000e+00> : vector<16x128xf32>
    %166 = tpu.matmul %144, %165, %cst_64 {dimension_numbers = #tpu.dot_dimension_numbers<[1], [0], [0], [1], [0, 0, 1, 1], [], []>} : vector<16x64xf32>, vector<64x128xf32>, vector<16x128xf32> -> vector<16x128xf32>
    %167 = arith.addf %162, %166 : vector<16x128xf32>
    %c2_65 = arith.constant 2 : index
    %c0_66 = arith.constant 0 : index
    %c0_67 = arith.constant 0 : index
    %168 = vector.load %arg8[%c2_65, %c0_66, %c0_67] : memref<3x64x128xbf16, #tpu.memory_space<vmem>>, vector<1x64x128xbf16>
    %169 = vector.shape_cast %168 : vector<1x64x128xbf16> to vector<64x128xbf16>
    %170 = arith.extf %169 : vector<64x128xbf16> to vector<64x128xf32>
    %cst_68 = arith.constant dense<0.000000e+00> : vector<16x128xf32>
    %171 = tpu.matmul %158, %170, %cst_68 {dimension_numbers = #tpu.dot_dimension_numbers<[1], [0], [0], [1], [0, 0, 1, 1], [], []>} : vector<16x64xf32>, vector<64x128xf32>, vector<16x128xf32> -> vector<16x128xf32>
    %172 = arith.addf %167, %171 : vector<16x128xf32>
    %c0_69 = arith.constant 0 : index
    %c0_70 = arith.constant 0 : index
    %173 = vector.load %arg9[%c0_69, %c0_70] : memref<1x128xf32, #tpu.memory_space<vmem>>, vector<1x128xf32>
    %174 = vector.broadcast %173 : vector<1x128xf32> to vector<16x128xf32>
    %175 = arith.addf %172, %174 : vector<16x128xf32>
    %cst_71 = arith.constant 0.000000e+00 : f32
    %176 = vector.broadcast %cst_71 : f32 to vector<16x128xf32>
    %177 = arith.cmpf ogt, %175, %176 : vector<16x128xf32>
    %cst_72 = arith.constant 2.000000e-01 : f32
    %178 = vector.broadcast %cst_72 : f32 to vector<16x128xf32>
    %179 = arith.mulf %178, %175 : vector<16x128xf32>
    %180 = arith.select %177, %175, %179 : vector<16x128xi1>, vector<16x128xf32>
    %181 = vector.extract_strided_slice %180 {offsets = [15, 0], sizes = [1, 128], strides = [1, 1]} : vector<16x128xf32> to vector<1x128xf32>
    %182 = vector.extract_strided_slice %180 {offsets = [0, 0], sizes = [15, 128], strides = [1, 1]} : vector<16x128xf32> to vector<15x128xf32>
    %183 = tpu.concatenate %181, %182 in 0 : vector<1x128xf32>, vector<15x128xf32> -> vector<16x128xf32>
    %cst_73 = arith.constant 0.000000e+00 : f32
    %184 = vector.shape_cast %39 : vector<16x1xi1> to vector<16x1xi1>
    %185 = vector.broadcast %184 : vector<16x1xi1> to vector<16x128xi1>
    %186 = vector.broadcast %cst_73 : f32 to vector<16x128xf32>
    %187 = arith.select %185, %186, %183 : vector<16x128xi1>, vector<16x128xf32>
    %188 = vector.extract_strided_slice %180 {offsets = [1, 0], sizes = [15, 128], strides = [1, 1]} : vector<16x128xf32> to vector<15x128xf32>
    %189 = vector.extract_strided_slice %180 {offsets = [0, 0], sizes = [1, 128], strides = [1, 1]} : vector<16x128xf32> to vector<1x128xf32>
    %190 = tpu.concatenate %188, %189 in 0 : vector<15x128xf32>, vector<1x128xf32> -> vector<16x128xf32>
    %cst_74 = arith.constant 0.000000e+00 : f32
    %191 = vector.shape_cast %41 : vector<16x1xi1> to vector<16x1xi1>
    %192 = vector.broadcast %191 : vector<16x1xi1> to vector<16x128xi1>
    %193 = vector.broadcast %cst_74 : f32 to vector<16x128xf32>
    %194 = arith.select %192, %193, %190 : vector<16x128xi1>, vector<16x128xf32>
    %c0_75 = arith.constant 0 : index
    %c0_76 = arith.constant 0 : index
    %c0_77 = arith.constant 0 : index
    %195 = vector.load %arg10[%c0_75, %c0_76, %c0_77] : memref<3x128x128xbf16, #tpu.memory_space<vmem>>, vector<1x128x128xbf16>
    %196 = vector.shape_cast %195 : vector<1x128x128xbf16> to vector<128x128xbf16>
    %197 = arith.extf %196 : vector<128x128xbf16> to vector<128x128xf32>
    %cst_78 = arith.constant dense<0.000000e+00> : vector<16x128xf32>
    %198 = tpu.matmul %187, %197, %cst_78 {dimension_numbers = #tpu.dot_dimension_numbers<[1], [0], [0], [1], [0, 0, 1, 1], [], []>} : vector<16x128xf32>, vector<128x128xf32>, vector<16x128xf32> -> vector<16x128xf32>
    %c1_79 = arith.constant 1 : index
    %c0_80 = arith.constant 0 : index
    %c0_81 = arith.constant 0 : index
    %199 = vector.load %arg10[%c1_79, %c0_80, %c0_81] : memref<3x128x128xbf16, #tpu.memory_space<vmem>>, vector<1x128x128xbf16>
    %200 = vector.shape_cast %199 : vector<1x128x128xbf16> to vector<128x128xbf16>
    %201 = arith.extf %200 : vector<128x128xbf16> to vector<128x128xf32>
    %cst_82 = arith.constant dense<0.000000e+00> : vector<16x128xf32>
    %202 = tpu.matmul %180, %201, %cst_82 {dimension_numbers = #tpu.dot_dimension_numbers<[1], [0], [0], [1], [0, 0, 1, 1], [], []>} : vector<16x128xf32>, vector<128x128xf32>, vector<16x128xf32> -> vector<16x128xf32>
    %203 = arith.addf %198, %202 : vector<16x128xf32>
    %c2_83 = arith.constant 2 : index
    %c0_84 = arith.constant 0 : index
    %c0_85 = arith.constant 0 : index
    %204 = vector.load %arg10[%c2_83, %c0_84, %c0_85] : memref<3x128x128xbf16, #tpu.memory_space<vmem>>, vector<1x128x128xbf16>
    %205 = vector.shape_cast %204 : vector<1x128x128xbf16> to vector<128x128xbf16>
    %206 = arith.extf %205 : vector<128x128xbf16> to vector<128x128xf32>
    %cst_86 = arith.constant dense<0.000000e+00> : vector<16x128xf32>
    %207 = tpu.matmul %194, %206, %cst_86 {dimension_numbers = #tpu.dot_dimension_numbers<[1], [0], [0], [1], [0, 0, 1, 1], [], []>} : vector<16x128xf32>, vector<128x128xf32>, vector<16x128xf32> -> vector<16x128xf32>
    %208 = arith.addf %203, %207 : vector<16x128xf32>
    %c0_87 = arith.constant 0 : index
    %c0_88 = arith.constant 0 : index
    %209 = vector.load %arg11[%c0_87, %c0_88] : memref<1x128xf32, #tpu.memory_space<vmem>>, vector<1x128xf32>
    %210 = vector.broadcast %209 : vector<1x128xf32> to vector<16x128xf32>
    %211 = arith.addf %208, %210 : vector<16x128xf32>
    %cst_89 = arith.constant 0.000000e+00 : f32
    %212 = vector.broadcast %cst_89 : f32 to vector<16x128xf32>
    %213 = arith.cmpf ogt, %211, %212 : vector<16x128xf32>
    %cst_90 = arith.constant 2.000000e-01 : f32
    %214 = vector.broadcast %cst_90 : f32 to vector<16x128xf32>
    %215 = arith.mulf %214, %211 : vector<16x128xf32>
    %216 = arith.select %213, %211, %215 : vector<16x128xi1>, vector<16x128xf32>
    %217 = vector.shape_cast %216 : vector<16x128xf32> to vector<8x2x128xf32>
    %cst_91 = arith.constant dense<0xFF800000> : vector<8x128xf32>
    %218 = vector.multi_reduction <maximumf>, %217, %cst_91 [1] : vector<8x2x128xf32> to vector<8x128xf32>
    %219 = vector.shape_cast %218 : vector<8x128xf32> to vector<8x1x128xf32>
    %220 = vector.shape_cast %219 : vector<8x1x128xf32> to vector<8x1x128xf32>
    %221 = vector.broadcast %220 : vector<8x1x128xf32> to vector<8x2x128xf32>
    %222 = vector.shape_cast %221 : vector<8x2x128xf32> to vector<16x128xf32>
    %223 = vector.extract_strided_slice %222 {offsets = [15, 0], sizes = [1, 128], strides = [1, 1]} : vector<16x128xf32> to vector<1x128xf32>
    %224 = vector.extract_strided_slice %222 {offsets = [0, 0], sizes = [15, 128], strides = [1, 1]} : vector<16x128xf32> to vector<15x128xf32>
    %225 = tpu.concatenate %223, %224 in 0 : vector<1x128xf32>, vector<15x128xf32> -> vector<16x128xf32>
    %cst_92 = arith.constant 0.000000e+00 : f32
    %226 = vector.shape_cast %39 : vector<16x1xi1> to vector<16x1xi1>
    %227 = vector.broadcast %226 : vector<16x1xi1> to vector<16x128xi1>
    %228 = vector.broadcast %cst_92 : f32 to vector<16x128xf32>
    %229 = arith.select %227, %228, %225 : vector<16x128xi1>, vector<16x128xf32>
    %230 = vector.extract_strided_slice %222 {offsets = [1, 0], sizes = [15, 128], strides = [1, 1]} : vector<16x128xf32> to vector<15x128xf32>
    %231 = vector.extract_strided_slice %222 {offsets = [0, 0], sizes = [1, 128], strides = [1, 1]} : vector<16x128xf32> to vector<1x128xf32>
    %232 = tpu.concatenate %230, %231 in 0 : vector<15x128xf32>, vector<1x128xf32> -> vector<16x128xf32>
    %cst_93 = arith.constant 0.000000e+00 : f32
    %233 = vector.shape_cast %41 : vector<16x1xi1> to vector<16x1xi1>
    %234 = vector.broadcast %233 : vector<16x1xi1> to vector<16x128xi1>
    %235 = vector.broadcast %cst_93 : f32 to vector<16x128xf32>
    %236 = arith.select %234, %235, %232 : vector<16x128xi1>, vector<16x128xf32>
    %c0_94 = arith.constant 0 : index
    %c0_95 = arith.constant 0 : index
    %c0_96 = arith.constant 0 : index
    %237 = vector.load %arg12[%c0_94, %c0_95, %c0_96] : memref<3x128x64xbf16, #tpu.memory_space<vmem>>, vector<1x128x64xbf16>
    %238 = vector.shape_cast %237 : vector<1x128x64xbf16> to vector<128x64xbf16>
    %239 = arith.extf %238 : vector<128x64xbf16> to vector<128x64xf32>
    %cst_97 = arith.constant dense<0.000000e+00> : vector<16x64xf32>
    %240 = tpu.matmul %229, %239, %cst_97 {dimension_numbers = #tpu.dot_dimension_numbers<[1], [0], [0], [1], [0, 0, 1, 1], [], []>} : vector<16x128xf32>, vector<128x64xf32>, vector<16x64xf32> -> vector<16x64xf32>
    %c1_98 = arith.constant 1 : index
    %c0_99 = arith.constant 0 : index
    %c0_100 = arith.constant 0 : index
    %241 = vector.load %arg12[%c1_98, %c0_99, %c0_100] : memref<3x128x64xbf16, #tpu.memory_space<vmem>>, vector<1x128x64xbf16>
    %242 = vector.shape_cast %241 : vector<1x128x64xbf16> to vector<128x64xbf16>
    %243 = arith.extf %242 : vector<128x64xbf16> to vector<128x64xf32>
    %cst_101 = arith.constant dense<0.000000e+00> : vector<16x64xf32>
    %244 = tpu.matmul %222, %243, %cst_101 {dimension_numbers = #tpu.dot_dimension_numbers<[1], [0], [0], [1], [0, 0, 1, 1], [], []>} : vector<16x128xf32>, vector<128x64xf32>, vector<16x64xf32> -> vector<16x64xf32>
    %245 = arith.addf %240, %244 : vector<16x64xf32>
    %c2_102 = arith.constant 2 : index
    %c0_103 = arith.constant 0 : index
    %c0_104 = arith.constant 0 : index
    %246 = vector.load %arg12[%c2_102, %c0_103, %c0_104] : memref<3x128x64xbf16, #tpu.memory_space<vmem>>, vector<1x128x64xbf16>
    %247 = vector.shape_cast %246 : vector<1x128x64xbf16> to vector<128x64xbf16>
    %248 = arith.extf %247 : vector<128x64xbf16> to vector<128x64xf32>
    %cst_105 = arith.constant dense<0.000000e+00> : vector<16x64xf32>
    %249 = tpu.matmul %236, %248, %cst_105 {dimension_numbers = #tpu.dot_dimension_numbers<[1], [0], [0], [1], [0, 0, 1, 1], [], []>} : vector<16x128xf32>, vector<128x64xf32>, vector<16x64xf32> -> vector<16x64xf32>
    %250 = arith.addf %245, %249 : vector<16x64xf32>
    %c0_106 = arith.constant 0 : index
    %c0_107 = arith.constant 0 : index
    %251 = vector.load %arg13[%c0_106, %c0_107] : memref<1x64xf32, #tpu.memory_space<vmem>>, vector<1x64xf32>
    %252 = vector.broadcast %251 : vector<1x64xf32> to vector<16x64xf32>
    %253 = arith.addf %250, %252 : vector<16x64xf32>
    %254 = vector.extract_strided_slice %253 {offsets = [15, 0], sizes = [1, 64], strides = [1, 1]} : vector<16x64xf32> to vector<1x64xf32>
    %255 = vector.extract_strided_slice %253 {offsets = [0, 0], sizes = [15, 64], strides = [1, 1]} : vector<16x64xf32> to vector<15x64xf32>
    %256 = tpu.concatenate %254, %255 in 0 : vector<1x64xf32>, vector<15x64xf32> -> vector<16x64xf32>
    %cst_108 = arith.constant 0.000000e+00 : f32
    %257 = vector.shape_cast %39 : vector<16x1xi1> to vector<16x1xi1>
    %258 = vector.broadcast %257 : vector<16x1xi1> to vector<16x64xi1>
    %259 = vector.broadcast %cst_108 : f32 to vector<16x64xf32>
    %260 = arith.select %258, %259, %256 : vector<16x64xi1>, vector<16x64xf32>
    %261 = vector.extract_strided_slice %253 {offsets = [1, 0], sizes = [15, 64], strides = [1, 1]} : vector<16x64xf32> to vector<15x64xf32>
    %262 = vector.extract_strided_slice %253 {offsets = [0, 0], sizes = [1, 64], strides = [1, 1]} : vector<16x64xf32> to vector<1x64xf32>
    %263 = tpu.concatenate %261, %262 in 0 : vector<15x64xf32>, vector<1x64xf32> -> vector<16x64xf32>
    %cst_109 = arith.constant 0.000000e+00 : f32
    %264 = vector.shape_cast %41 : vector<16x1xi1> to vector<16x1xi1>
    %265 = vector.broadcast %264 : vector<16x1xi1> to vector<16x64xi1>
    %266 = vector.broadcast %cst_109 : f32 to vector<16x64xf32>
    %267 = arith.select %265, %266, %263 : vector<16x64xi1>, vector<16x64xf32>
    %c0_110 = arith.constant 0 : index
    %c0_111 = arith.constant 0 : index
    %c0_112 = arith.constant 0 : index
    %268 = vector.load %arg14[%c0_110, %c0_111, %c0_112] : memref<3x64x64xbf16, #tpu.memory_space<vmem>>, vector<1x64x64xbf16>
    %269 = vector.shape_cast %268 : vector<1x64x64xbf16> to vector<64x64xbf16>
    %270 = arith.extf %269 : vector<64x64xbf16> to vector<64x64xf32>
    %cst_113 = arith.constant dense<0.000000e+00> : vector<16x64xf32>
    %271 = tpu.matmul %260, %270, %cst_113 {dimension_numbers = #tpu.dot_dimension_numbers<[1], [0], [0], [1], [0, 0, 1, 1], [], []>} : vector<16x64xf32>, vector<64x64xf32>, vector<16x64xf32> -> vector<16x64xf32>
    %c1_114 = arith.constant 1 : index
    %c0_115 = arith.constant 0 : index
    %c0_116 = arith.constant 0 : index
    %272 = vector.load %arg14[%c1_114, %c0_115, %c0_116] : memref<3x64x64xbf16, #tpu.memory_space<vmem>>, vector<1x64x64xbf16>
    %273 = vector.shape_cast %272 : vector<1x64x64xbf16> to vector<64x64xbf16>
    %274 = arith.extf %273 : vector<64x64xbf16> to vector<64x64xf32>
    %cst_117 = arith.constant dense<0.000000e+00> : vector<16x64xf32>
    %275 = tpu.matmul %253, %274, %cst_117 {dimension_numbers = #tpu.dot_dimension_numbers<[1], [0], [0], [1], [0, 0, 1, 1], [], []>} : vector<16x64xf32>, vector<64x64xf32>, vector<16x64xf32> -> vector<16x64xf32>
    %276 = arith.addf %271, %275 : vector<16x64xf32>
    %c2_118 = arith.constant 2 : index
    %c0_119 = arith.constant 0 : index
    %c0_120 = arith.constant 0 : index
    %277 = vector.load %arg14[%c2_118, %c0_119, %c0_120] : memref<3x64x64xbf16, #tpu.memory_space<vmem>>, vector<1x64x64xbf16>
    %278 = vector.shape_cast %277 : vector<1x64x64xbf16> to vector<64x64xbf16>
    %279 = arith.extf %278 : vector<64x64xbf16> to vector<64x64xf32>
    %cst_121 = arith.constant dense<0.000000e+00> : vector<16x64xf32>
    %280 = tpu.matmul %267, %279, %cst_121 {dimension_numbers = #tpu.dot_dimension_numbers<[1], [0], [0], [1], [0, 0, 1, 1], [], []>} : vector<16x64xf32>, vector<64x64xf32>, vector<16x64xf32> -> vector<16x64xf32>
    %281 = arith.addf %276, %280 : vector<16x64xf32>
    %282 = vector.extract_strided_slice %144 {offsets = [15, 0], sizes = [1, 64], strides = [1, 1]} : vector<16x64xf32> to vector<1x64xf32>
    %283 = vector.extract_strided_slice %144 {offsets = [0, 0], sizes = [15, 64], strides = [1, 1]} : vector<16x64xf32> to vector<15x64xf32>
    %284 = tpu.concatenate %282, %283 in 0 : vector<1x64xf32>, vector<15x64xf32> -> vector<16x64xf32>
    %cst_122 = arith.constant 0.000000e+00 : f32
    %285 = vector.shape_cast %39 : vector<16x1xi1> to vector<16x1xi1>
    %286 = vector.broadcast %285 : vector<16x1xi1> to vector<16x64xi1>
    %287 = vector.broadcast %cst_122 : f32 to vector<16x64xf32>
    %288 = arith.select %286, %287, %284 : vector<16x64xi1>, vector<16x64xf32>
    %289 = vector.extract_strided_slice %144 {offsets = [1, 0], sizes = [15, 64], strides = [1, 1]} : vector<16x64xf32> to vector<15x64xf32>
    %290 = vector.extract_strided_slice %144 {offsets = [0, 0], sizes = [1, 64], strides = [1, 1]} : vector<16x64xf32> to vector<1x64xf32>
    %291 = tpu.concatenate %289, %290 in 0 : vector<15x64xf32>, vector<1x64xf32> -> vector<16x64xf32>
    %cst_123 = arith.constant 0.000000e+00 : f32
    %292 = vector.shape_cast %41 : vector<16x1xi1> to vector<16x1xi1>
    %293 = vector.broadcast %292 : vector<16x1xi1> to vector<16x64xi1>
    %294 = vector.broadcast %cst_123 : f32 to vector<16x64xf32>
    %295 = arith.select %293, %294, %291 : vector<16x64xi1>, vector<16x64xf32>
    %c0_124 = arith.constant 0 : index
    %c0_125 = arith.constant 0 : index
    %c0_126 = arith.constant 0 : index
    %296 = vector.load %arg15[%c0_124, %c0_125, %c0_126] : memref<3x64x64xbf16, #tpu.memory_space<vmem>>, vector<1x64x64xbf16>
    %297 = vector.shape_cast %296 : vector<1x64x64xbf16> to vector<64x64xbf16>
    %298 = arith.extf %297 : vector<64x64xbf16> to vector<64x64xf32>
    %cst_127 = arith.constant dense<0.000000e+00> : vector<16x64xf32>
    %299 = tpu.matmul %288, %298, %cst_127 {dimension_numbers = #tpu.dot_dimension_numbers<[1], [0], [0], [1], [0, 0, 1, 1], [], []>} : vector<16x64xf32>, vector<64x64xf32>, vector<16x64xf32> -> vector<16x64xf32>
    %c1_128 = arith.constant 1 : index
    %c0_129 = arith.constant 0 : index
    %c0_130 = arith.constant 0 : index
    %300 = vector.load %arg15[%c1_128, %c0_129, %c0_130] : memref<3x64x64xbf16, #tpu.memory_space<vmem>>, vector<1x64x64xbf16>
    %301 = vector.shape_cast %300 : vector<1x64x64xbf16> to vector<64x64xbf16>
    %302 = arith.extf %301 : vector<64x64xbf16> to vector<64x64xf32>
    %cst_131 = arith.constant dense<0.000000e+00> : vector<16x64xf32>
    %303 = tpu.matmul %144, %302, %cst_131 {dimension_numbers = #tpu.dot_dimension_numbers<[1], [0], [0], [1], [0, 0, 1, 1], [], []>} : vector<16x64xf32>, vector<64x64xf32>, vector<16x64xf32> -> vector<16x64xf32>
    %304 = arith.addf %299, %303 : vector<16x64xf32>
    %c2_132 = arith.constant 2 : index
    %c0_133 = arith.constant 0 : index
    %c0_134 = arith.constant 0 : index
    %305 = vector.load %arg15[%c2_132, %c0_133, %c0_134] : memref<3x64x64xbf16, #tpu.memory_space<vmem>>, vector<1x64x64xbf16>
    %306 = vector.shape_cast %305 : vector<1x64x64xbf16> to vector<64x64xbf16>
    %307 = arith.extf %306 : vector<64x64xbf16> to vector<64x64xf32>
    %cst_135 = arith.constant dense<0.000000e+00> : vector<16x64xf32>
    %308 = tpu.matmul %295, %307, %cst_135 {dimension_numbers = #tpu.dot_dimension_numbers<[1], [0], [0], [1], [0, 0, 1, 1], [], []>} : vector<16x64xf32>, vector<64x64xf32>, vector<16x64xf32> -> vector<16x64xf32>
    %309 = arith.addf %304, %308 : vector<16x64xf32>
    %310 = arith.addf %281, %309 : vector<16x64xf32>
    %c0_136 = arith.constant 0 : index
    %c0_137 = arith.constant 0 : index
    %311 = vector.load %arg16[%c0_136, %c0_137] : memref<1x64xf32, #tpu.memory_space<vmem>>, vector<1x64xf32>
    %312 = vector.broadcast %311 : vector<1x64xf32> to vector<16x64xf32>
    %313 = arith.addf %310, %312 : vector<16x64xf32>
    %cst_138 = arith.constant 0.000000e+00 : f32
    %314 = vector.broadcast %cst_138 : f32 to vector<16x64xf32>
    %315 = arith.maximumf %313, %314 : vector<16x64xf32>
    %316 = vector.extract_strided_slice %315 {offsets = [15, 0], sizes = [1, 64], strides = [1, 1]} : vector<16x64xf32> to vector<1x64xf32>
    %317 = vector.extract_strided_slice %315 {offsets = [0, 0], sizes = [15, 64], strides = [1, 1]} : vector<16x64xf32> to vector<15x64xf32>
    %318 = tpu.concatenate %316, %317 in 0 : vector<1x64xf32>, vector<15x64xf32> -> vector<16x64xf32>
    %cst_139 = arith.constant 0.000000e+00 : f32
    %319 = vector.shape_cast %39 : vector<16x1xi1> to vector<16x1xi1>
    %320 = vector.broadcast %319 : vector<16x1xi1> to vector<16x64xi1>
    %321 = vector.broadcast %cst_139 : f32 to vector<16x64xf32>
    %322 = arith.select %320, %321, %318 : vector<16x64xi1>, vector<16x64xf32>
    %323 = vector.extract_strided_slice %315 {offsets = [1, 0], sizes = [15, 64], strides = [1, 1]} : vector<16x64xf32> to vector<15x64xf32>
    %324 = vector.extract_strided_slice %315 {offsets = [0, 0], sizes = [1, 64], strides = [1, 1]} : vector<16x64xf32> to vector<1x64xf32>
    %325 = tpu.concatenate %323, %324 in 0 : vector<15x64xf32>, vector<1x64xf32> -> vector<16x64xf32>
    %cst_140 = arith.constant 0.000000e+00 : f32
    %326 = vector.shape_cast %41 : vector<16x1xi1> to vector<16x1xi1>
    %327 = vector.broadcast %326 : vector<16x1xi1> to vector<16x64xi1>
    %328 = vector.broadcast %cst_140 : f32 to vector<16x64xf32>
    %329 = arith.select %327, %328, %325 : vector<16x64xi1>, vector<16x64xf32>
    %c0_141 = arith.constant 0 : index
    %c0_142 = arith.constant 0 : index
    %c0_143 = arith.constant 0 : index
    %330 = vector.load %arg17[%c0_141, %c0_142, %c0_143] : memref<3x64x64xbf16, #tpu.memory_space<vmem>>, vector<1x64x64xbf16>
    %331 = vector.shape_cast %330 : vector<1x64x64xbf16> to vector<64x64xbf16>
    %332 = arith.extf %331 : vector<64x64xbf16> to vector<64x64xf32>
    %cst_144 = arith.constant dense<0.000000e+00> : vector<16x64xf32>
    %333 = tpu.matmul %322, %332, %cst_144 {dimension_numbers = #tpu.dot_dimension_numbers<[1], [0], [0], [1], [0, 0, 1, 1], [], []>} : vector<16x64xf32>, vector<64x64xf32>, vector<16x64xf32> -> vector<16x64xf32>
    %c1_145 = arith.constant 1 : index
    %c0_146 = arith.constant 0 : index
    %c0_147 = arith.constant 0 : index
    %334 = vector.load %arg17[%c1_145, %c0_146, %c0_147] : memref<3x64x64xbf16, #tpu.memory_space<vmem>>, vector<1x64x64xbf16>
    %335 = vector.shape_cast %334 : vector<1x64x64xbf16> to vector<64x64xbf16>
    %336 = arith.extf %335 : vector<64x64xbf16> to vector<64x64xf32>
    %cst_148 = arith.constant dense<0.000000e+00> : vector<16x64xf32>
    %337 = tpu.matmul %315, %336, %cst_148 {dimension_numbers = #tpu.dot_dimension_numbers<[1], [0], [0], [1], [0, 0, 1, 1], [], []>} : vector<16x64xf32>, vector<64x64xf32>, vector<16x64xf32> -> vector<16x64xf32>
    %338 = arith.addf %333, %337 : vector<16x64xf32>
    %c2_149 = arith.constant 2 : index
    %c0_150 = arith.constant 0 : index
    %c0_151 = arith.constant 0 : index
    %339 = vector.load %arg17[%c2_149, %c0_150, %c0_151] : memref<3x64x64xbf16, #tpu.memory_space<vmem>>, vector<1x64x64xbf16>
    %340 = vector.shape_cast %339 : vector<1x64x64xbf16> to vector<64x64xbf16>
    %341 = arith.extf %340 : vector<64x64xbf16> to vector<64x64xf32>
    %cst_152 = arith.constant dense<0.000000e+00> : vector<16x64xf32>
    %342 = tpu.matmul %329, %341, %cst_152 {dimension_numbers = #tpu.dot_dimension_numbers<[1], [0], [0], [1], [0, 0, 1, 1], [], []>} : vector<16x64xf32>, vector<64x64xf32>, vector<16x64xf32> -> vector<16x64xf32>
    %343 = arith.addf %338, %342 : vector<16x64xf32>
    %c0_153 = arith.constant 0 : index
    %c0_154 = arith.constant 0 : index
    %344 = vector.load %arg18[%c0_153, %c0_154] : memref<1x64xf32, #tpu.memory_space<vmem>>, vector<1x64xf32>
    %345 = vector.broadcast %344 : vector<1x64xf32> to vector<16x64xf32>
    %346 = arith.addf %343, %345 : vector<16x64xf32>
    %cst_155 = arith.constant 0.000000e+00 : f32
    %347 = vector.broadcast %cst_155 : f32 to vector<16x64xf32>
    %348 = arith.maximumf %346, %347 : vector<16x64xf32>
    %349 = vector.shape_cast %348 : vector<16x64xf32> to vector<16x1x64xf32>
    %350 = vector.shape_cast %349 : vector<16x1x64xf32> to vector<16x1x64xf32>
    %351 = vector.broadcast %350 : vector<16x1x64xf32> to vector<16x2x64xf32>
    %352 = vector.shape_cast %351 : vector<16x2x64xf32> to vector<32x64xf32>
    %353 = vector.extract_strided_slice %352 {offsets = [31, 0], sizes = [1, 64], strides = [1, 1]} : vector<32x64xf32> to vector<1x64xf32>
    %354 = vector.extract_strided_slice %352 {offsets = [0, 0], sizes = [31, 64], strides = [1, 1]} : vector<32x64xf32> to vector<31x64xf32>
    %355 = tpu.concatenate %353, %354 in 0 : vector<1x64xf32>, vector<31x64xf32> -> vector<32x64xf32>
    %cst_156 = arith.constant 0.000000e+00 : f32
    %356 = vector.shape_cast %18 : vector<32x1xi1> to vector<32x1xi1>
    %357 = vector.broadcast %356 : vector<32x1xi1> to vector<32x64xi1>
    %358 = vector.broadcast %cst_156 : f32 to vector<32x64xf32>
    %359 = arith.select %357, %358, %355 : vector<32x64xi1>, vector<32x64xf32>
    %360 = vector.extract_strided_slice %352 {offsets = [1, 0], sizes = [31, 64], strides = [1, 1]} : vector<32x64xf32> to vector<31x64xf32>
    %361 = vector.extract_strided_slice %352 {offsets = [0, 0], sizes = [1, 64], strides = [1, 1]} : vector<32x64xf32> to vector<1x64xf32>
    %362 = tpu.concatenate %360, %361 in 0 : vector<31x64xf32>, vector<1x64xf32> -> vector<32x64xf32>
    %cst_157 = arith.constant 0.000000e+00 : f32
    %363 = vector.shape_cast %20 : vector<32x1xi1> to vector<32x1xi1>
    %364 = vector.broadcast %363 : vector<32x1xi1> to vector<32x64xi1>
    %365 = vector.broadcast %cst_157 : f32 to vector<32x64xf32>
    %366 = arith.select %364, %365, %362 : vector<32x64xi1>, vector<32x64xf32>
    %c0_158 = arith.constant 0 : index
    %c0_159 = arith.constant 0 : index
    %c0_160 = arith.constant 0 : index
    %367 = vector.load %arg19[%c0_158, %c0_159, %c0_160] : memref<3x64x32xbf16, #tpu.memory_space<vmem>>, vector<1x64x32xbf16>
    %368 = vector.shape_cast %367 : vector<1x64x32xbf16> to vector<64x32xbf16>
    %369 = arith.extf %368 : vector<64x32xbf16> to vector<64x32xf32>
    %cst_161 = arith.constant dense<0.000000e+00> : vector<32x32xf32>
    %370 = tpu.matmul %359, %369, %cst_161 {dimension_numbers = #tpu.dot_dimension_numbers<[1], [0], [0], [1], [0, 0, 1, 1], [], []>} : vector<32x64xf32>, vector<64x32xf32>, vector<32x32xf32> -> vector<32x32xf32>
    %c1_162 = arith.constant 1 : index
    %c0_163 = arith.constant 0 : index
    %c0_164 = arith.constant 0 : index
    %371 = vector.load %arg19[%c1_162, %c0_163, %c0_164] : memref<3x64x32xbf16, #tpu.memory_space<vmem>>, vector<1x64x32xbf16>
    %372 = vector.shape_cast %371 : vector<1x64x32xbf16> to vector<64x32xbf16>
    %373 = arith.extf %372 : vector<64x32xbf16> to vector<64x32xf32>
    %cst_165 = arith.constant dense<0.000000e+00> : vector<32x32xf32>
    %374 = tpu.matmul %352, %373, %cst_165 {dimension_numbers = #tpu.dot_dimension_numbers<[1], [0], [0], [1], [0, 0, 1, 1], [], []>} : vector<32x64xf32>, vector<64x32xf32>, vector<32x32xf32> -> vector<32x32xf32>
    %375 = arith.addf %370, %374 : vector<32x32xf32>
    %c2_166 = arith.constant 2 : index
    %c0_167 = arith.constant 0 : index
    %c0_168 = arith.constant 0 : index
    %376 = vector.load %arg19[%c2_166, %c0_167, %c0_168] : memref<3x64x32xbf16, #tpu.memory_space<vmem>>, vector<1x64x32xbf16>
    %377 = vector.shape_cast %376 : vector<1x64x32xbf16> to vector<64x32xbf16>
    %378 = arith.extf %377 : vector<64x32xbf16> to vector<64x32xf32>
    %cst_169 = arith.constant dense<0.000000e+00> : vector<32x32xf32>
    %379 = tpu.matmul %366, %378, %cst_169 {dimension_numbers = #tpu.dot_dimension_numbers<[1], [0], [0], [1], [0, 0, 1, 1], [], []>} : vector<32x64xf32>, vector<64x32xf32>, vector<32x32xf32> -> vector<32x32xf32>
    %380 = arith.addf %375, %379 : vector<32x32xf32>
    %c0_170 = arith.constant 0 : index
    %c0_171 = arith.constant 0 : index
    %381 = vector.load %arg20[%c0_170, %c0_171] : memref<1x32xf32, #tpu.memory_space<vmem>>, vector<1x32xf32>
    %382 = vector.broadcast %381 : vector<1x32xf32> to vector<32x32xf32>
    %383 = arith.addf %380, %382 : vector<32x32xf32>
    %384 = vector.extract_strided_slice %383 {offsets = [31, 0], sizes = [1, 32], strides = [1, 1]} : vector<32x32xf32> to vector<1x32xf32>
    %385 = vector.extract_strided_slice %383 {offsets = [0, 0], sizes = [31, 32], strides = [1, 1]} : vector<32x32xf32> to vector<31x32xf32>
    %386 = tpu.concatenate %384, %385 in 0 : vector<1x32xf32>, vector<31x32xf32> -> vector<32x32xf32>
    %cst_172 = arith.constant 0.000000e+00 : f32
    %387 = vector.shape_cast %18 : vector<32x1xi1> to vector<32x1xi1>
    %388 = vector.broadcast %387 : vector<32x1xi1> to vector<32x32xi1>
    %389 = vector.broadcast %cst_172 : f32 to vector<32x32xf32>
    %390 = arith.select %388, %389, %386 : vector<32x32xi1>, vector<32x32xf32>
    %391 = vector.extract_strided_slice %383 {offsets = [1, 0], sizes = [31, 32], strides = [1, 1]} : vector<32x32xf32> to vector<31x32xf32>
    %392 = vector.extract_strided_slice %383 {offsets = [0, 0], sizes = [1, 32], strides = [1, 1]} : vector<32x32xf32> to vector<1x32xf32>
    %393 = tpu.concatenate %391, %392 in 0 : vector<31x32xf32>, vector<1x32xf32> -> vector<32x32xf32>
    %cst_173 = arith.constant 0.000000e+00 : f32
    %394 = vector.shape_cast %20 : vector<32x1xi1> to vector<32x1xi1>
    %395 = vector.broadcast %394 : vector<32x1xi1> to vector<32x32xi1>
    %396 = vector.broadcast %cst_173 : f32 to vector<32x32xf32>
    %397 = arith.select %395, %396, %393 : vector<32x32xi1>, vector<32x32xf32>
    %c0_174 = arith.constant 0 : index
    %c0_175 = arith.constant 0 : index
    %c0_176 = arith.constant 0 : index
    %398 = vector.load %arg21[%c0_174, %c0_175, %c0_176] : memref<3x32x32xbf16, #tpu.memory_space<vmem>>, vector<1x32x32xbf16>
    %399 = vector.shape_cast %398 : vector<1x32x32xbf16> to vector<32x32xbf16>
    %400 = arith.extf %399 : vector<32x32xbf16> to vector<32x32xf32>
    %cst_177 = arith.constant dense<0.000000e+00> : vector<32x32xf32>
    %401 = tpu.matmul %390, %400, %cst_177 {dimension_numbers = #tpu.dot_dimension_numbers<[1], [0], [0], [1], [0, 0, 1, 1], [], []>} : vector<32x32xf32>, vector<32x32xf32>, vector<32x32xf32> -> vector<32x32xf32>
    %c1_178 = arith.constant 1 : index
    %c0_179 = arith.constant 0 : index
    %c0_180 = arith.constant 0 : index
    %402 = vector.load %arg21[%c1_178, %c0_179, %c0_180] : memref<3x32x32xbf16, #tpu.memory_space<vmem>>, vector<1x32x32xbf16>
    %403 = vector.shape_cast %402 : vector<1x32x32xbf16> to vector<32x32xbf16>
    %404 = arith.extf %403 : vector<32x32xbf16> to vector<32x32xf32>
    %cst_181 = arith.constant dense<0.000000e+00> : vector<32x32xf32>
    %405 = tpu.matmul %383, %404, %cst_181 {dimension_numbers = #tpu.dot_dimension_numbers<[1], [0], [0], [1], [0, 0, 1, 1], [], []>} : vector<32x32xf32>, vector<32x32xf32>, vector<32x32xf32> -> vector<32x32xf32>
    %406 = arith.addf %401, %405 : vector<32x32xf32>
    %c2_182 = arith.constant 2 : index
    %c0_183 = arith.constant 0 : index
    %c0_184 = arith.constant 0 : index
    %407 = vector.load %arg21[%c2_182, %c0_183, %c0_184] : memref<3x32x32xbf16, #tpu.memory_space<vmem>>, vector<1x32x32xbf16>
    %408 = vector.shape_cast %407 : vector<1x32x32xbf16> to vector<32x32xbf16>
    %409 = arith.extf %408 : vector<32x32xbf16> to vector<32x32xf32>
    %cst_185 = arith.constant dense<0.000000e+00> : vector<32x32xf32>
    %410 = tpu.matmul %397, %409, %cst_185 {dimension_numbers = #tpu.dot_dimension_numbers<[1], [0], [0], [1], [0, 0, 1, 1], [], []>} : vector<32x32xf32>, vector<32x32xf32>, vector<32x32xf32> -> vector<32x32xf32>
    %411 = arith.addf %406, %410 : vector<32x32xf32>
    %412 = vector.extract_strided_slice %70 {offsets = [31, 0], sizes = [1, 32], strides = [1, 1]} : vector<32x32xf32> to vector<1x32xf32>
    %413 = vector.extract_strided_slice %70 {offsets = [0, 0], sizes = [31, 32], strides = [1, 1]} : vector<32x32xf32> to vector<31x32xf32>
    %414 = tpu.concatenate %412, %413 in 0 : vector<1x32xf32>, vector<31x32xf32> -> vector<32x32xf32>
    %cst_186 = arith.constant 0.000000e+00 : f32
    %415 = vector.shape_cast %18 : vector<32x1xi1> to vector<32x1xi1>
    %416 = vector.broadcast %415 : vector<32x1xi1> to vector<32x32xi1>
    %417 = vector.broadcast %cst_186 : f32 to vector<32x32xf32>
    %418 = arith.select %416, %417, %414 : vector<32x32xi1>, vector<32x32xf32>
    %419 = vector.extract_strided_slice %70 {offsets = [1, 0], sizes = [31, 32], strides = [1, 1]} : vector<32x32xf32> to vector<31x32xf32>
    %420 = vector.extract_strided_slice %70 {offsets = [0, 0], sizes = [1, 32], strides = [1, 1]} : vector<32x32xf32> to vector<1x32xf32>
    %421 = tpu.concatenate %419, %420 in 0 : vector<31x32xf32>, vector<1x32xf32> -> vector<32x32xf32>
    %cst_187 = arith.constant 0.000000e+00 : f32
    %422 = vector.shape_cast %20 : vector<32x1xi1> to vector<32x1xi1>
    %423 = vector.broadcast %422 : vector<32x1xi1> to vector<32x32xi1>
    %424 = vector.broadcast %cst_187 : f32 to vector<32x32xf32>
    %425 = arith.select %423, %424, %421 : vector<32x32xi1>, vector<32x32xf32>
    %c0_188 = arith.constant 0 : index
    %c0_189 = arith.constant 0 : index
    %c0_190 = arith.constant 0 : index
    %426 = vector.load %arg22[%c0_188, %c0_189, %c0_190] : memref<3x32x32xbf16, #tpu.memory_space<vmem>>, vector<1x32x32xbf16>
    %427 = vector.shape_cast %426 : vector<1x32x32xbf16> to vector<32x32xbf16>
    %428 = arith.extf %427 : vector<32x32xbf16> to vector<32x32xf32>
    %cst_191 = arith.constant dense<0.000000e+00> : vector<32x32xf32>
    %429 = tpu.matmul %418, %428, %cst_191 {dimension_numbers = #tpu.dot_dimension_numbers<[1], [0], [0], [1], [0, 0, 1, 1], [], []>} : vector<32x32xf32>, vector<32x32xf32>, vector<32x32xf32> -> vector<32x32xf32>
    %c1_192 = arith.constant 1 : index
    %c0_193 = arith.constant 0 : index
    %c0_194 = arith.constant 0 : index
    %430 = vector.load %arg22[%c1_192, %c0_193, %c0_194] : memref<3x32x32xbf16, #tpu.memory_space<vmem>>, vector<1x32x32xbf16>
    %431 = vector.shape_cast %430 : vector<1x32x32xbf16> to vector<32x32xbf16>
    %432 = arith.extf %431 : vector<32x32xbf16> to vector<32x32xf32>
    %cst_195 = arith.constant dense<0.000000e+00> : vector<32x32xf32>
    %433 = tpu.matmul %70, %432, %cst_195 {dimension_numbers = #tpu.dot_dimension_numbers<[1], [0], [0], [1], [0, 0, 1, 1], [], []>} : vector<32x32xf32>, vector<32x32xf32>, vector<32x32xf32> -> vector<32x32xf32>
    %434 = arith.addf %429, %433 : vector<32x32xf32>
    %c2_196 = arith.constant 2 : index
    %c0_197 = arith.constant 0 : index
    %c0_198 = arith.constant 0 : index
    %435 = vector.load %arg22[%c2_196, %c0_197, %c0_198] : memref<3x32x32xbf16, #tpu.memory_space<vmem>>, vector<1x32x32xbf16>
    %436 = vector.shape_cast %435 : vector<1x32x32xbf16> to vector<32x32xbf16>
    %437 = arith.extf %436 : vector<32x32xbf16> to vector<32x32xf32>
    %cst_199 = arith.constant dense<0.000000e+00> : vector<32x32xf32>
    %438 = tpu.matmul %425, %437, %cst_199 {dimension_numbers = #tpu.dot_dimension_numbers<[1], [0], [0], [1], [0, 0, 1, 1], [], []>} : vector<32x32xf32>, vector<32x32xf32>, vector<32x32xf32> -> vector<32x32xf32>
    %439 = arith.addf %434, %438 : vector<32x32xf32>
    %440 = arith.addf %411, %439 : vector<32x32xf32>
    %c0_200 = arith.constant 0 : index
    %c0_201 = arith.constant 0 : index
    %441 = vector.load %arg23[%c0_200, %c0_201] : memref<1x32xf32, #tpu.memory_space<vmem>>, vector<1x32xf32>
    %442 = vector.broadcast %441 : vector<1x32xf32> to vector<32x32xf32>
    %443 = arith.addf %440, %442 : vector<32x32xf32>
    %cst_202 = arith.constant 0.000000e+00 : f32
    %444 = vector.broadcast %cst_202 : f32 to vector<32x32xf32>
    %445 = arith.maximumf %443, %444 : vector<32x32xf32>
    %446 = vector.extract_strided_slice %445 {offsets = [31, 0], sizes = [1, 32], strides = [1, 1]} : vector<32x32xf32> to vector<1x32xf32>
    %447 = vector.extract_strided_slice %445 {offsets = [0, 0], sizes = [31, 32], strides = [1, 1]} : vector<32x32xf32> to vector<31x32xf32>
    %448 = tpu.concatenate %446, %447 in 0 : vector<1x32xf32>, vector<31x32xf32> -> vector<32x32xf32>
    %cst_203 = arith.constant 0.000000e+00 : f32
    %449 = vector.shape_cast %18 : vector<32x1xi1> to vector<32x1xi1>
    %450 = vector.broadcast %449 : vector<32x1xi1> to vector<32x32xi1>
    %451 = vector.broadcast %cst_203 : f32 to vector<32x32xf32>
    %452 = arith.select %450, %451, %448 : vector<32x32xi1>, vector<32x32xf32>
    %453 = vector.extract_strided_slice %445 {offsets = [1, 0], sizes = [31, 32], strides = [1, 1]} : vector<32x32xf32> to vector<31x32xf32>
    %454 = vector.extract_strided_slice %445 {offsets = [0, 0], sizes = [1, 32], strides = [1, 1]} : vector<32x32xf32> to vector<1x32xf32>
    %455 = tpu.concatenate %453, %454 in 0 : vector<31x32xf32>, vector<1x32xf32> -> vector<32x32xf32>
    %cst_204 = arith.constant 0.000000e+00 : f32
    %456 = vector.shape_cast %20 : vector<32x1xi1> to vector<32x1xi1>
    %457 = vector.broadcast %456 : vector<32x1xi1> to vector<32x32xi1>
    %458 = vector.broadcast %cst_204 : f32 to vector<32x32xf32>
    %459 = arith.select %457, %458, %455 : vector<32x32xi1>, vector<32x32xf32>
    %c0_205 = arith.constant 0 : index
    %c0_206 = arith.constant 0 : index
    %c0_207 = arith.constant 0 : index
    %460 = vector.load %arg24[%c0_205, %c0_206, %c0_207] : memref<3x32x32xbf16, #tpu.memory_space<vmem>>, vector<1x32x32xbf16>
    %461 = vector.shape_cast %460 : vector<1x32x32xbf16> to vector<32x32xbf16>
    %462 = arith.extf %461 : vector<32x32xbf16> to vector<32x32xf32>
    %cst_208 = arith.constant dense<0.000000e+00> : vector<32x32xf32>
    %463 = tpu.matmul %452, %462, %cst_208 {dimension_numbers = #tpu.dot_dimension_numbers<[1], [0], [0], [1], [0, 0, 1, 1], [], []>} : vector<32x32xf32>, vector<32x32xf32>, vector<32x32xf32> -> vector<32x32xf32>
    %c1_209 = arith.constant 1 : index
    %c0_210 = arith.constant 0 : index
    %c0_211 = arith.constant 0 : index
    %464 = vector.load %arg24[%c1_209, %c0_210, %c0_211] : memref<3x32x32xbf16, #tpu.memory_space<vmem>>, vector<1x32x32xbf16>
    %465 = vector.shape_cast %464 : vector<1x32x32xbf16> to vector<32x32xbf16>
    %466 = arith.extf %465 : vector<32x32xbf16> to vector<32x32xf32>
    %cst_212 = arith.constant dense<0.000000e+00> : vector<32x32xf32>
    %467 = tpu.matmul %445, %466, %cst_212 {dimension_numbers = #tpu.dot_dimension_numbers<[1], [0], [0], [1], [0, 0, 1, 1], [], []>} : vector<32x32xf32>, vector<32x32xf32>, vector<32x32xf32> -> vector<32x32xf32>
    %468 = arith.addf %463, %467 : vector<32x32xf32>
    %c2_213 = arith.constant 2 : index
    %c0_214 = arith.constant 0 : index
    %c0_215 = arith.constant 0 : index
    %469 = vector.load %arg24[%c2_213, %c0_214, %c0_215] : memref<3x32x32xbf16, #tpu.memory_space<vmem>>, vector<1x32x32xbf16>
    %470 = vector.shape_cast %469 : vector<1x32x32xbf16> to vector<32x32xbf16>
    %471 = arith.extf %470 : vector<32x32xbf16> to vector<32x32xf32>
    %cst_216 = arith.constant dense<0.000000e+00> : vector<32x32xf32>
    %472 = tpu.matmul %459, %471, %cst_216 {dimension_numbers = #tpu.dot_dimension_numbers<[1], [0], [0], [1], [0, 0, 1, 1], [], []>} : vector<32x32xf32>, vector<32x32xf32>, vector<32x32xf32> -> vector<32x32xf32>
    %473 = arith.addf %468, %472 : vector<32x32xf32>
    %c0_217 = arith.constant 0 : index
    %c0_218 = arith.constant 0 : index
    %474 = vector.load %arg25[%c0_217, %c0_218] : memref<1x32xf32, #tpu.memory_space<vmem>>, vector<1x32xf32>
    %475 = vector.broadcast %474 : vector<1x32xf32> to vector<32x32xf32>
    %476 = arith.addf %473, %475 : vector<32x32xf32>
    %cst_219 = arith.constant 0.000000e+00 : f32
    %477 = vector.broadcast %cst_219 : f32 to vector<32x32xf32>
    %478 = arith.maximumf %476, %477 : vector<32x32xf32>
    %c0_220 = arith.constant 0 : index
    %c0_221 = arith.constant 0 : index
    %479 = vector.load %arg26[%c0_220, %c0_221] : memref<32x1xf32, #tpu.memory_space<vmem>>, vector<32x1xf32>
    %cst_222 = arith.constant dense<0.000000e+00> : vector<32x1xf32>
    %480 = tpu.matmul %478, %479, %cst_222 {dimension_numbers = #tpu.dot_dimension_numbers<[1], [0], [0], [1], [0, 0, 1, 1], [], []>} : vector<32x32xf32>, vector<32x1xf32>, vector<32x1xf32> -> vector<32x1xf32>
    %c0_223 = arith.constant 0 : index
    %c0_224 = arith.constant 0 : index
    %481 = vector.load %arg27[%c0_223, %c0_224] : memref<1x1xf32, #tpu.memory_space<vmem>>, vector<1x1xf32>
    %482 = vector.broadcast %481 : vector<1x1xf32> to vector<32x1xf32>
    %483 = arith.addf %480, %482 : vector<32x1xf32>
    %484 = tpu.transpose %483, [1, 0] : vector<32x1xf32> -> vector<1x32xf32>
    %c0_225 = arith.constant 0 : index
    %c0_226 = arith.constant 0 : index
    %485 = vector.load %arg28[%c0_225, %c0_226] : memref<1x32xf32, #tpu.memory_space<vmem>>, vector<1x32xf32>
    tpu.vector_store %arg28[%c0_225, %c0_226], %484 {strides = array<i32>} : memref<1x32xf32, #tpu.memory_space<vmem>>, vector<1x32xf32>,
    return
  }
}

</mosaic_0001>

<llo_original>
// kernel: unet_forward.1
$region0: #{unet_forward.1}
  #allocation0 [shape = 'u32[]', space=smem, size = 0x4, offset = 0x4, fixed_abs, tag = 'smem constant byte address 0x4 - core index']
  #allocation1 [shape = 'u32[144,128]{1,0:T(1,128)}', space=vmem, size = 0x12000, scoped, tag = 'internal scratch']
  #allocation2 [shape = 'f32[1,1]{1,0:T(1,128)S(1)}', space=vmem, size = 0x200, scoped, tag = 'scoped memory for unet_forward.1']
  %s0 = inlined_call_operand.vmem [shape: f32[2,16], index: 0, kind: input, shape index: {}]
  %s1 = inlined_call_operand.vmem [shape: f32[16,16], index: 1, kind: input, shape index: {}]
  %s2 = inlined_call_operand.vmem [shape: f32[1,32], index: 2, kind: input, shape index: {}]
  %s3 = inlined_call_operand.hbm [shape: f32[1,32], index: 3, kind: input, shape index: {}]
  %s4 = inlined_call_operand.hbm [shape: bf16[3,32,64], index: 4, kind: input, shape index: {}]
  %s5 = inlined_call_operand.hbm [shape: f32[1,64], index: 5, kind: input, shape index: {}]
  %s6 = inlined_call_operand.vmem [shape: bf16[3,64,64], index: 6, kind: input, shape index: {}]
  %s7 = inlined_call_operand.hbm [shape: f32[1,64], index: 7, kind: input, shape index: {}]
  %s8 = inlined_call_operand.vmem [shape: bf16[3,64,128], index: 8, kind: input, shape index: {}]
  %s9 = inlined_call_operand.hbm [shape: f32[1,128], index: 9, kind: input, shape index: {}]
  %s10 = inlined_call_operand.vmem [shape: bf16[3,128,128], index: 10, kind: input, shape index: {}]
  %s11 = inlined_call_operand.hbm [shape: f32[1,128], index: 11, kind: input, shape index: {}]
  %s12 = inlined_call_operand.vmem [shape: bf16[3,128,64], index: 12, kind: input, shape index: {}]
  %s13 = inlined_call_operand.vmem [shape: f32[1,64], index: 13, kind: input, shape index: {}]
  %s14 = inlined_call_operand.vmem [shape: bf16[3,64,64], index: 14, kind: input, shape index: {}]
  %s15 = inlined_call_operand.hbm [shape: bf16[3,64,64], index: 15, kind: input, shape index: {}]
  %s16 = inlined_call_operand.hbm [shape: f32[1,64], index: 16, kind: input, shape index: {}]
  %s17 = inlined_call_operand.hbm [shape: bf16[3,64,64], index: 17, kind: input, shape index: {}]
  %s18 = inlined_call_operand.hbm [shape: f32[1,64], index: 18, kind: input, shape index: {}]
  %s19 = inlined_call_operand.vmem [shape: bf16[3,64,32], index: 19, kind: input, shape index: {}]
  %s20 = inlined_call_operand.hbm [shape: f32[1,32], index: 20, kind: input, shape index: {}]
  %s21 = inlined_call_operand.hbm [shape: bf16[3,32,32], index: 21, kind: input, shape index: {}]
  %s22 = inlined_call_operand.hbm [shape: bf16[3,32,32], index: 22, kind: input, shape index: {}]
  %s23 = inlined_call_operand.hbm [shape: f32[1,32], index: 23, kind: input, shape index: {}]
  %s24 = inlined_call_operand.hbm [shape: bf16[3,32,32], index: 24, kind: input, shape index: {}]
  %s25 = inlined_call_operand.hbm [shape: f32[1,32], index: 25, kind: input, shape index: {}]
  %s26 = inlined_call_operand.vmem [shape: f32[32,1], index: 26, kind: input, shape index: {}]
  %s27 = inlined_call_operand.<no memory space> [shape: f32[1,1], index: 27, kind: input, shape index: {}]
  %s28 = inlined_call_operand.vmem [shape: f32[1,32], index: 28, kind: output, shape index: {}]
  %s29 = sld [smem:[#allocation0]]
  $region186: #{unet_forward.1} parent=0
    _
  %s31 = ssub.s32 1, %s29
  %s32 = scalar_select 0, %s31, %s29
  %v33 = vstv %s27
  %34 = vst [vmem:[#allocation2] sm:$0x1] %v33
  $region1: #{unet_forward.1} parent=0
    #allocation3 [shape = 'u8[512]{0}', space=vmem, size = 0x400, scoped, tag = 'input window, operand 3, single buffered']
    #allocation4 [shape = 's32[1]{0}', space=sflag, size = 0x4, scoped, tag = 'scoped memory for unet_forward.1']
    #allocation5 [shape = 'u8[24576]{0}', space=vmem, size = 0x6000, scoped, tag = 'input window, operand 4, single buffered']
    #allocation6 [shape = 's32[1]{0}', space=sflag, size = 0x4, scoped, tag = 'scoped memory for unet_forward.1']
    #allocation7 [shape = 'u8[512]{0}', space=vmem, size = 0x400, scoped, tag = 'input window, operand 5, single buffered']
    #allocation8 [shape = 'u8[512]{0}', space=vmem, size = 0x400, scoped, tag = 'input window, operand 7, single buffered']
    #allocation9 [shape = 's32[1]{0}', space=sflag, size = 0x4, scoped, tag = 'scoped memory for unet_forward.1']
    #allocation10 [shape = 'u8[512]{0}', space=vmem, size = 0x400, scoped, tag = 'input window, operand 9, single buffered']
    #allocation11 [shape = 'u8[512]{0}', space=vmem, size = 0x400, scoped, tag = 'input window, operand 11, single buffered']
    #allocation12 [shape = 's32[1]{0}', space=sflag, size = 0x4, scoped, tag = 'scoped memory for unet_forward.1']
    #allocation13 [shape = 'u8[49152]{0}', space=vmem, size = 0xc000, scoped, tag = 'input window, operand 15, single buffered']
    #allocation14 [shape = 'u8[512]{0}', space=vmem, size = 0x400, scoped, tag = 'input window, operand 16, single buffered']
    #allocation15 [shape = 's32[1]{0}', space=sflag, size = 0x4, scoped, tag = 'scoped memory for unet_forward.1']
    #allocation16 [shape = 'u8[49152]{0}', space=vmem, size = 0xc000, scoped, tag = 'input window, operand 17, single buffered']
    #allocation17 [shape = 'u8[512]{0}', space=vmem, size = 0x400, scoped, tag = 'input window, operand 18, single buffered']
    #allocation18 [shape = 's32[1]{0}', space=sflag, size = 0x4, scoped, tag = 'scoped memory for unet_forward.1']
    #allocation19 [shape = 'u8[512]{0}', space=vmem, size = 0x400, scoped, tag = 'input window, operand 20, single buffered']
    #allocation20 [shape = 'u8[24576]{0}', space=vmem, size = 0x6000, scoped, tag = 'input window, operand 21, single buffered']
    #allocation21 [shape = 's32[1]{0}', space=sflag, size = 0x4, scoped, tag = 'scoped memory for unet_forward.1']
    #allocation22 [shape = 'u8[24576]{0}', space=vmem, size = 0x6000, scoped, tag = 'input window, operand 22, single buffered']
    #allocation23 [shape = 'u8[512]{0}', space=vmem, size = 0x400, scoped, tag = 'input window, operand 23, single buffered']
    #allocation24 [shape = 's32[1]{0}', space=sflag, size = 0x4, scoped, tag = 'scoped memory for unet_forward.1']
    #allocation25 [shape = 'u8[24576]{0}', space=vmem, size = 0x6000, scoped, tag = 'input window, operand 24, single buffered']
    #allocation26 [shape = 'u8[512]{0}', space=vmem, size = 0x400, scoped, tag = 'input window, operand 25, single buffered']
    #allocation27 [shape = 's32[1]{0}', space=sflag, size = 0x4, scoped, tag = 'scoped memory for unet_forward.1']
    %35 = vsyncpa [#allocation4], 0
    %36 = vsyncpa [#allocation6], 0
    %37 = vsyncpa [#allocation9], 0
    %38 = vsyncpa [#allocation12], 0
    %39 = vsyncpa [#allocation15], 0
    %40 = vsyncpa [#allocation18], 0
    %41 = vsyncpa [#allocation21], 0
    %42 = vsyncpa [#allocation24], 0
    %43 = vsyncpa [#allocation27], 0
    // Predicated region
    $region2: #{unet_forward.1} parent=1 // pred_check
      _
    $region3: #{unet_forward.1} parent=1 // pred_check_branch
      %45 = sbr.rel (0) target = $region5
    $region4: #{unet_forward.1} parent=1 // pred_region
      _
    $region5: #{unet_forward.1} parent=1 // pred_fallthru
      _
    // Predicated region
    $region6: #{unet_forward.1} parent=1 // pred_check
      _
    $region7: #{unet_forward.1} parent=1 // pred_check_branch
      %47 = sbr.rel (0) target = $region9
    $region8: #{unet_forward.1} parent=1 // pred_region
      _
    $region9: #{unet_forward.1} parent=1 // pred_fallthru
      _
    // Predicated region
    $region10: #{unet_forward.1} parent=1 // pred_check
      _
    $region11: #{unet_forward.1} parent=1 // pred_check_branch
      %49 = sbr.rel (0) target = $region13
    $region12: #{unet_forward.1} parent=1 // pred_region
      _
    $region13: #{unet_forward.1} parent=1 // pred_fallthru
      _
    // Predicated region
    $region14: #{unet_forward.1} parent=1 // pred_check
      _
    $region15: #{unet_forward.1} parent=1 // pred_check_branch
      %51 = sbr.rel (0) target = $region17
    $region16: #{unet_forward.1} parent=1 // pred_region
      %s53 = ssub.s32 16, 16
      %54 = vsyncadd [#allocation4], %s53
      %s56 = sshll.u32 [#allocation3], 4
      %s57 = int_to_ptr.vmem [resolvable:$true] %s56
      %59 = dma.hbm_to_vmem [thread:$0]  %s3, 16, %s57, [#allocation4]
    $region17: #{unet_forward.1} parent=1 // pred_fallthru
      _
    // Predicated region
    $region18: #{unet_forward.1} parent=1 // pred_check
      _
    $region19: #{unet_forward.1} parent=1 // pred_check_branch
      %61 = sbr.rel (0) target = $region21
    $region20: #{unet_forward.1} parent=1 // pred_region
      %s63 = ssub.s32 768, 768
      %64 = vsyncadd [#allocation6], %s63
      %s65 = sshll.u32 [#allocation5], 4
      %s66 = int_to_ptr.vmem [resolvable:$true] %s65
      %71 = dma.hbm_to_vmem [thread:$0]  %s4, 768, %s66, [#allocation6], 64, 64, 4
    $region21: #{unet_forward.1} parent=1 // pred_fallthru
      _
    // Predicated region
    $region22: #{unet_forward.1} parent=1 // pred_check
      _
    $region23: #{unet_forward.1} parent=1 // pred_check_branch
      %73 = sbr.rel (0) target = $region25
    $region24: #{unet_forward.1} parent=1 // pred_region
      %s75 = ssub.s32 16, 16
      %76 = vsyncadd [#allocation6], %s75
      %s78 = sshll.u32 [#allocation7], 4
      %s79 = int_to_ptr.vmem [resolvable:$true] %s78
      %81 = dma.hbm_to_vmem [thread:$0]  %s5, 16, %s79, [#allocation6]
    $region25: #{unet_forward.1} parent=1 // pred_fallthru
      _
    // Predicated region
    $region26: #{unet_forward.1} parent=1 // pred_check
      _
    $region27: #{unet_forward.1} parent=1 // pred_check_branch
      %83 = sbr.rel (0) target = $region29
    $region28: #{unet_forward.1} parent=1 // pred_region
      _
    $region29: #{unet_forward.1} parent=1 // pred_fallthru
      _
    // Predicated region
    $region30: #{unet_forward.1} parent=1 // pred_check
      _
    $region31: #{unet_forward.1} parent=1 // pred_check_branch
      %85 = sbr.rel (0) target = $region33
    $region32: #{unet_forward.1} parent=1 // pred_region
      %s87 = ssub.s32 16, 16
      %88 = vsyncadd [#allocation9], %s87
      %s90 = sshll.u32 [#allocation8], 4
      %s91 = int_to_ptr.vmem [resolvable:$true] %s90
      %93 = dma.hbm_to_vmem [thread:$0]  %s7, 16, %s91, [#allocation9]
    $region33: #{unet_forward.1} parent=1 // pred_fallthru
      _
    // Predicated region
    $region34: #{unet_forward.1} parent=1 // pred_check
      _
    $region35: #{unet_forward.1} parent=1 // pred_check_branch
      %95 = sbr.rel (0) target = $region37
    $region36: #{unet_forward.1} parent=1 // pred_region
      _
    $region37: #{unet_forward.1} parent=1 // pred_fallthru
      _
    // Predicated region
    $region38: #{unet_forward.1} parent=1 // pred_check
      _
    $region39: #{unet_forward.1} parent=1 // pred_check_branch
      %97 = sbr.rel (0) target = $region41
    $region40: #{unet_forward.1} parent=1 // pred_region
      %s99 = ssub.s32 16, 16
      %100 = vsyncadd [#allocation9], %s99
      %s102 = sshll.u32 [#allocation10], 4
      %s103 = int_to_ptr.vmem [resolvable:$true] %s102
      %105 = dma.hbm_to_vmem [thread:$0]  %s9, 16, %s103, [#allocation9]
    $region41: #{unet_forward.1} parent=1 // pred_fallthru
      _
    // Predicated region
    $region42: #{unet_forward.1} parent=1 // pred_check
      _
    $region43: #{unet_forward.1} parent=1 // pred_check_branch
      %107 = sbr.rel (0) target = $region45
    $region44: #{unet_forward.1} parent=1 // pred_region
      _
    $region45: #{unet_forward.1} parent=1 // pred_fallthru
      _
    // Predicated region
    $region46: #{unet_forward.1} parent=1 // pred_check
      _
    $region47: #{unet_forward.1} parent=1 // pred_check_branch
      %109 = sbr.rel (0) target = $region49
    $region48: #{unet_forward.1} parent=1 // pred_region
      %s111 = ssub.s32 16, 16
      %112 = vsyncadd [#allocation12], %s111
      %s114 = sshll.u32 [#allocation11], 4
      %s115 = int_to_ptr.vmem [resolvable:$true] %s114
      %117 = dma.hbm_to_vmem [thread:$0]  %s11, 16, %s115, [#allocation12]
    $region49: #{unet_forward.1} parent=1 // pred_fallthru
      _
    // Predicated region
    $region50: #{unet_forward.1} parent=1 // pred_check
      _
    $region51: #{unet_forward.1} parent=1 // pred_check_branch
      %119 = sbr.rel (0) target = $region53
    $region52: #{unet_forward.1} parent=1 // pred_region
      _
    $region53: #{unet_forward.1} parent=1 // pred_fallthru
      _
    // Predicated region
    $region54: #{unet_forward.1} parent=1 // pred_check
      _
    $region55: #{unet_forward.1} parent=1 // pred_check_branch
      %121 = sbr.rel (0) target = $region57
    $region56: #{unet_forward.1} parent=1 // pred_region
      _
    $region57: #{unet_forward.1} parent=1 // pred_fallthru
      _
    // Predicated region
    $region58: #{unet_forward.1} parent=1 // pred_check
      _
    $region59: #{unet_forward.1} parent=1 // pred_check_branch
      %123 = sbr.rel (0) target = $region61
    $region60: #{unet_forward.1} parent=1 // pred_region
      _
    $region61: #{unet_forward.1} parent=1 // pred_fallthru
      _
    // Predicated region
    $region62: #{unet_forward.1} parent=1 // pred_check
      _
    $region63: #{unet_forward.1} parent=1 // pred_check_branch
      %125 = sbr.rel (0) target = $region65
    $region64: #{unet_forward.1} parent=1 // pred_region
      %s127 = ssub.s32 1536, 1536
      %128 = vsyncadd [#allocation12], %s127
      %s129 = sshll.u32 [#allocation13], 4
      %s130 = int_to_ptr.vmem [resolvable:$true] %s129
      %135 = dma.hbm_to_vmem [thread:$0]  %s15, 1536, %s130, [#allocation12], 64, 64, 4
    $region65: #{unet_forward.1} parent=1 // pred_fallthru
      _
    // Predicated region
    $region66: #{unet_forward.1} parent=1 // pred_check
      _
    $region67: #{unet_forward.1} parent=1 // pred_check_branch
      %137 = sbr.rel (0) target = $region69
    $region68: #{unet_forward.1} parent=1 // pred_region
      %s139 = ssub.s32 16, 16
      %140 = vsyncadd [#allocation15], %s139
      %s142 = sshll.u32 [#allocation14], 4
      %s143 = int_to_ptr.vmem [resolvable:$true] %s142
      %145 = dma.hbm_to_vmem [thread:$0]  %s16, 16, %s143, [#allocation15]
    $region69: #{unet_forward.1} parent=1 // pred_fallthru
      _
    // Predicated region
    $region70: #{unet_forward.1} parent=1 // pred_check
      _
    $region71: #{unet_forward.1} parent=1 // pred_check_branch
      %147 = sbr.rel (0) target = $region73
    $region72: #{unet_forward.1} parent=1 // pred_region
      %s149 = ssub.s32 1536, 1536
      %150 = vsyncadd [#allocation15], %s149
      %s151 = sshll.u32 [#allocation16], 4
      %s152 = int_to_ptr.vmem [resolvable:$true] %s151
      %157 = dma.hbm_to_vmem [thread:$0]  %s17, 1536, %s152, [#allocation15], 64, 64, 4
    $region73: #{unet_forward.1} parent=1 // pred_fallthru
      _
    // Predicated region
    $region74: #{unet_forward.1} parent=1 // pred_check
      _
    $region75: #{unet_forward.1} parent=1 // pred_check_branch
      %159 = sbr.rel (0) target = $region77
    $region76: #{unet_forward.1} parent=1 // pred_region
      %s161 = ssub.s32 16, 16
      %162 = vsyncadd [#allocation18], %s161
      %s164 = sshll.u32 [#allocation17], 4
      %s165 = int_to_ptr.vmem [resolvable:$true] %s164
      %167 = dma.hbm_to_vmem [thread:$0]  %s18, 16, %s165, [#allocation18]
    $region77: #{unet_forward.1} parent=1 // pred_fallthru
      _
    // Predicated region
    $region78: #{unet_forward.1} parent=1 // pred_check
      _
    $region79: #{unet_forward.1} parent=1 // pred_check_branch
      %169 = sbr.rel (0) target = $region81
    $region80: #{unet_forward.1} parent=1 // pred_region
      _
    $region81: #{unet_forward.1} parent=1 // pred_fallthru
      _
    // Predicated region
    $region82: #{unet_forward.1} parent=1 // pred_check
      _
    $region83: #{unet_forward.1} parent=1 // pred_check_branch
      %171 = sbr.rel (0) target = $region85
    $region84: #{unet_forward.1} parent=1 // pred_region
      %s173 = ssub.s32 16, 16
      %174 = vsyncadd [#allocation18], %s173
      %s176 = sshll.u32 [#allocation19], 4
      %s177 = int_to_ptr.vmem [resolvable:$true] %s176
      %179 = dma.hbm_to_vmem [thread:$0]  %s20, 16, %s177, [#allocation18]
    $region85: #{unet_forward.1} parent=1 // pred_fallthru
      _
    // Predicated region
    $region86: #{unet_forward.1} parent=1 // pred_check
      _
    $region87: #{unet_forward.1} parent=1 // pred_check_branch
      %181 = sbr.rel (0) target = $region89
    $region88: #{unet_forward.1} parent=1 // pred_region
      %s183 = ssub.s32 768, 768
      %184 = vsyncadd [#allocation21], %s183
      %s185 = sshll.u32 [#allocation20], 4
      %s186 = int_to_ptr.vmem [resolvable:$true] %s185
      %191 = dma.hbm_to_vmem [thread:$0]  %s21, 768, %s186, [#allocation21], 64, 64, 4
    $region89: #{unet_forward.1} parent=1 // pred_fallthru
      _
    // Predicated region
    $region90: #{unet_forward.1} parent=1 // pred_check
      _
    $region91: #{unet_forward.1} parent=1 // pred_check_branch
      %193 = sbr.rel (0) target = $region93
    $region92: #{unet_forward.1} parent=1 // pred_region
      %s195 = ssub.s32 768, 768
      %196 = vsyncadd [#allocation21], %s195
      %s197 = sshll.u32 [#allocation22], 4
      %s198 = int_to_ptr.vmem [resolvable:$true] %s197
      %203 = dma.hbm_to_vmem [thread:$0]  %s22, 768, %s198, [#allocation21], 64, 64, 4
    $region93: #{unet_forward.1} parent=1 // pred_fallthru
      _
    // Predicated region
    $region94: #{unet_forward.1} parent=1 // pred_check
      _
    $region95: #{unet_forward.1} parent=1 // pred_check_branch
      %205 = sbr.rel (0) target = $region97
    $region96: #{unet_forward.1} parent=1 // pred_region
      %s207 = ssub.s32 16, 16
      %208 = vsyncadd [#allocation24], %s207
      %s210 = sshll.u32 [#allocation23], 4
      %s211 = int_to_ptr.vmem [resolvable:$true] %s210
      %213 = dma.hbm_to_vmem [thread:$0]  %s23, 16, %s211, [#allocation24]
    $region97: #{unet_forward.1} parent=1 // pred_fallthru
      _
    // Predicated region
    $region98: #{unet_forward.1} parent=1 // pred_check
      _
    $region99: #{unet_forward.1} parent=1 // pred_check_branch
      %215 = sbr.rel (0) target = $region101
    $region100: #{unet_forward.1} parent=1 // pred_region
      %s217 = ssub.s32 768, 768
      %218 = vsyncadd [#allocation24], %s217
      %s219 = sshll.u32 [#allocation25], 4
      %s220 = int_to_ptr.vmem [resolvable:$true] %s219
      %225 = dma.hbm_to_vmem [thread:$0]  %s24, 768, %s220, [#allocation24], 64, 64, 4
    $region101: #{unet_forward.1} parent=1 // pred_fallthru
      _
    // Predicated region
    $region102: #{unet_forward.1} parent=1 // pred_check
      _
    $region103: #{unet_forward.1} parent=1 // pred_check_branch
      %227 = sbr.rel (0) target = $region105
    $region104: #{unet_forward.1} parent=1 // pred_region
      %s229 = ssub.s32 16, 16
      %230 = vsyncadd [#allocation27], %s229
      %s232 = sshll.u32 [#allocation26], 4
      %s233 = int_to_ptr.vmem [resolvable:$true] %s232
      %235 = dma.hbm_to_vmem [thread:$0]  %s25, 16, %s233, [#allocation27]
    $region105: #{unet_forward.1} parent=1 // pred_fallthru
      _
    // Predicated region
    $region106: #{unet_forward.1} parent=1 // pred_check
      _
    $region107: #{unet_forward.1} parent=1 // pred_check_branch
      %237 = sbr.rel (0) target = $region109
    $region108: #{unet_forward.1} parent=1 // pred_region
      _
    $region109: #{unet_forward.1} parent=1 // pred_fallthru
      _
    // Predicated region
    $region110: #{unet_forward.1} parent=1 // pred_check
      _
    $region111: #{unet_forward.1} parent=1 // pred_check_branch
      %239 = sbr.rel (0) target = $region113
    $region112: #{unet_forward.1} parent=1 // pred_region
      _
    $region113: #{unet_forward.1} parent=1 // pred_fallthru
      _
    // Predicated region
    $region114: #{unet_forward.1} parent=1 // pred_check
      _
    $region115: #{unet_forward.1} parent=1 // pred_check_branch
      %241 = sbr.rel (0) target = $region117
    $region116: #{unet_forward.1} parent=1 // pred_region
      %242 = dma.done [#allocation4], 16
    $region117: #{unet_forward.1} parent=1 // pred_fallthru
      _
    // Predicated region
    $region118: #{unet_forward.1} parent=1 // pred_check
      _
    $region119: #{unet_forward.1} parent=1 // pred_check_branch
      %244 = sbr.rel (0) target = $region121
    $region120: #{unet_forward.1} parent=1 // pred_region
      %245 = dma.done [#allocation6], 768
    $region121: #{unet_forward.1} parent=1 // pred_fallthru
      _
    // Predicated region
    $region122: #{unet_forward.1} parent=1 // pred_check
      _
    $region123: #{unet_forward.1} parent=1 // pred_check_branch
      %247 = sbr.rel (0) target = $region125
    $region124: #{unet_forward.1} parent=1 // pred_region
      %248 = dma.done [#allocation6], 16
    $region125: #{unet_forward.1} parent=1 // pred_fallthru
      _
    // Predicated region
    $region126: #{unet_forward.1} parent=1 // pred_check
      _
    $region127: #{unet_forward.1} parent=1 // pred_check_branch
      %250 = sbr.rel (0) target = $region129
    $region128: #{unet_forward.1} parent=1 // pred_region
      %251 = dma.done [#allocation9], 16
    $region129: #{unet_forward.1} parent=1 // pred_fallthru
      _
    // Predicated region
    $region130: #{unet_forward.1} parent=1 // pred_check
      _
    $region131: #{unet_forward.1} parent=1 // pred_check_branch
      %253 = sbr.rel (0) target = $region133
    $region132: #{unet_forward.1} parent=1 // pred_region
      %254 = dma.done [#allocation9], 16
    $region133: #{unet_forward.1} parent=1 // pred_fallthru
      _
    // Predicated region
    $region134: #{unet_forward.1} parent=1 // pred_check
      _
    $region135: #{unet_forward.1} parent=1 // pred_check_branch
      %256 = sbr.rel (0) target = $region137
    $region136: #{unet_forward.1} parent=1 // pred_region
      %257 = dma.done [#allocation12], 16
    $region137: #{unet_forward.1} parent=1 // pred_fallthru
      _
    // Predicated region
    $region138: #{unet_forward.1} parent=1 // pred_check
      _
    $region139: #{unet_forward.1} parent=1 // pred_check_branch
      %259 = sbr.rel (0) target = $region141
    $region140: #{unet_forward.1} parent=1 // pred_region
      %260 = dma.done [#allocation12], 1536
    $region141: #{unet_forward.1} parent=1 // pred_fallthru
      _
    // Predicated region
    $region142: #{unet_forward.1} parent=1 // pred_check
      _
    $region143: #{unet_forward.1} parent=1 // pred_check_branch
      %262 = sbr.rel (0) target = $region145
    $region144: #{unet_forward.1} parent=1 // pred_region
      %263 = dma.done [#allocation15], 16
    $region145: #{unet_forward.1} parent=1 // pred_fallthru
      _
    // Predicated region
    $region146: #{unet_forward.1} parent=1 // pred_check
      _
    $region147: #{unet_forward.1} parent=1 // pred_check_branch
      %265 = sbr.rel (0) target = $region149
    $region148: #{unet_forward.1} parent=1 // pred_region
      %266 = dma.done [#allocation15], 1536
    $region149: #{unet_forward.1} parent=1 // pred_fallthru
      _
    // Predicated region
    $region150: #{unet_forward.1} parent=1 // pred_check
      _
    $region151: #{unet_forward.1} parent=1 // pred_check_branch
      %268 = sbr.rel (0) target = $region153
    $region152: #{unet_forward.1} parent=1 // pred_region
      %269 = dma.done [#allocation18], 16
    $region153: #{unet_forward.1} parent=1 // pred_fallthru
      _
    // Predicated region
    $region154: #{unet_forward.1} parent=1 // pred_check
      _
    $region155: #{unet_forward.1} parent=1 // pred_check_branch
      %271 = sbr.rel (0) target = $region157
    $region156: #{unet_forward.1} parent=1 // pred_region
      %272 = dma.done [#allocation18], 16
    $region157: #{unet_forward.1} parent=1 // pred_fallthru
      _
    // Predicated region
    $region158: #{unet_forward.1} parent=1 // pred_check
      _
    $region159: #{unet_forward.1} parent=1 // pred_check_branch
      %274 = sbr.rel (0) target = $region161
    $region160: #{unet_forward.1} parent=1 // pred_region
      %275 = dma.done [#allocation21], 768
    $region161: #{unet_forward.1} parent=1 // pred_fallthru
      _
    // Predicated region
    $region162: #{unet_forward.1} parent=1 // pred_check
      _
    $region163: #{unet_forward.1} parent=1 // pred_check_branch
      %277 = sbr.rel (0) target = $region165
    $region164: #{unet_forward.1} parent=1 // pred_region
      %278 = dma.done [#allocation21], 768
    $region165: #{unet_forward.1} parent=1 // pred_fallthru
      _
    // Predicated region
    $region166: #{unet_forward.1} parent=1 // pred_check
      _
    $region167: #{unet_forward.1} parent=1 // pred_check_branch
      %280 = sbr.rel (0) target = $region169
    $region168: #{unet_forward.1} parent=1 // pred_region
      %281 = dma.done [#allocation24], 16
    $region169: #{unet_forward.1} parent=1 // pred_fallthru
      _
    // Predicated region
    $region170: #{unet_forward.1} parent=1 // pred_check
      _
    $region171: #{unet_forward.1} parent=1 // pred_check_branch
      %283 = sbr.rel (0) target = $region173
    $region172: #{unet_forward.1} parent=1 // pred_region
      %284 = dma.done [#allocation24], 768
    $region173: #{unet_forward.1} parent=1 // pred_fallthru
      _
    // Predicated region
    $region174: #{unet_forward.1} parent=1 // pred_check
      _
    $region175: #{unet_forward.1} parent=1 // pred_check_branch
      %286 = sbr.rel (0) target = $region177
    $region176: #{unet_forward.1} parent=1 // pred_region
      %287 = dma.done [#allocation27], 16
    $region177: #{unet_forward.1} parent=1 // pred_fallthru
      _
    %v288 = vlaneseq
    %v289 = vshrl.u32 %v288, 7
    %v290 = vadd.s32 %v289, 8
    %v291 = vadd.s32 %v289, 16
    %v292 = vadd.s32 %v289, 24
    %vm293 = vcmp.lt.s32.totalorder %v289, 0
    %v294 = vsub.s32 0, %v289
    %v295 = vsel %vm293, %v294, %v289
    %v296 = vshrl.u32 %v295, 4
    %v297 = vand.u32 %v295, 15
    %v298 = vsub.s32 0, %v297
    %v299 = vsel %vm293, %v298, %v297
    %vm300 = vcmp.lt.s32.totalorder %v290, 0
    %v301 = vsub.s32 0, %v290
    %v302 = vsel %vm300, %v301, %v290
    %v303 = vshrl.u32 %v302, 4
    %v304 = vand.u32 %v302, 15
    %v305 = vsub.s32 0, %v304
    %v306 = vsel %vm300, %v305, %v304
    %vm307 = vcmp.lt.s32.totalorder %v291, 0
    %v308 = vsub.s32 0, %v291
    %v309 = vsel %vm307, %v308, %v291
    %v310 = vshrl.u32 %v309, 4
    %v311 = vand.u32 %v309, 15
    %v312 = vsub.s32 0, %v311
    %v313 = vsel %vm307, %v312, %v311
    %vm314 = vcmp.lt.s32.totalorder %v292, 0
    %v315 = vsub.s32 0, %v292
    %v316 = vsel %vm314, %v315, %v292
    %v317 = vshrl.u32 %v316, 4
    %v318 = vand.u32 %v316, 15
    %v319 = vsub.s32 0, %v318
    %v320 = vsel %vm314, %v319, %v318
    %vm321 = vcmp.ne.s32.totalorder %v299, 0
    %vm322 = vcmp.ne.s32.totalorder %v306, 0
    %vm323 = vcmp.ne.s32.totalorder %v313, 0
    %vm324 = vcmp.ne.s32.totalorder %v320, 0
    %vm325 = vcmp.lt.s32.totalorder %v299, 0
    %vm326 = vcmp.lt.s32.totalorder %v306, 0
    %vm327 = vcmp.lt.s32.totalorder %v313, 0
    %vm328 = vcmp.lt.s32.totalorder %v320, 0
    %vm329 = vmand %vm325, %vm321
    %vm330 = vmand %vm326, %vm322
    %vm331 = vmand %vm327, %vm323
    %vm332 = vmand %vm328, %vm324
    %v333 = vadd.s32 %v299, 16
    %v334 = vadd.s32 %v306, 16
    %v335 = vadd.s32 %v313, 16
    %v336 = vadd.s32 %v320, 16
    %v337 = vsel %vm329, %v333, %v299
    %v338 = vsel %vm330, %v334, %v306
    %v339 = vsel %vm331, %v335, %v313
    %v340 = vsel %vm332, %v336, %v320
    %vm341 = vcmp.eq.s32.totalorder %v337, 0
    %vm342 = vcmp.eq.s32.totalorder %v338, 0
    %vm343 = vcmp.eq.s32.totalorder %v339, 0
    %vm344 = vcmp.eq.s32.totalorder %v340, 0
    %vm345 = vcmp.eq.s32.totalorder %v337, 15
    %vm346 = vcmp.eq.s32.totalorder %v338, 15
    %vm347 = vcmp.eq.s32.totalorder %v339, 15
    %vm348 = vcmp.eq.s32.totalorder %v340, 15
    %vm349 = vcmp.lt.s32.totalorder %v289, 0
    %v350 = vsub.s32 0, %v289
    %v351 = vsel %vm349, %v350, %v289
    %v352 = vshrl.u32 %v351, 3
    %v353 = vand.u32 %v351, 7
    %v354 = vsub.s32 0, %v353
    %v355 = vsel %vm349, %v354, %v353
    %vm356 = vcmp.lt.s32.totalorder %v290, 0
    %v357 = vsub.s32 0, %v290
    %v358 = vsel %vm356, %v357, %v290
    %v359 = vshrl.u32 %v358, 3
    %v360 = vand.u32 %v358, 7
    %v361 = vsub.s32 0, %v360
    %v362 = vsel %vm356, %v361, %v360
    %vm363 = vcmp.ne.s32.totalorder %v355, 0
    %vm364 = vcmp.ne.s32.totalorder %v362, 0
    %vm365 = vcmp.lt.s32.totalorder %v355, 0
    %vm366 = vcmp.lt.s32.totalorder %v362, 0
    %vm367 = vmand %vm365, %vm363
    %vm368 = vmand %vm366, %vm364
    %v369 = vadd.s32 %v355, 8
    %v370 = vadd.s32 %v362, 8
    %v371 = vsel %vm367, %v369, %v355
    %v372 = vsel %vm368, %v370, %v362
    %vm373 = vcmp.eq.s32.totalorder %v371, 0
    %vm374 = vcmp.eq.s32.totalorder %v372, 0
    %vm375 = vcmp.eq.s32.totalorder %v371, 7
    %vm376 = vcmp.eq.s32.totalorder %v372, 7
    %v377 = vld [vmem:[%s0] sm:$0x3]
    %v378 = vld [vmem:[%s1] sm:$0xff]
    %v379 = vld [vmem:[%s1 + $0x8] sm:$0xff]
    %vm380 = vcmask 130048
    %v382 = vsel %vm380, %v377, 0
    %384 = vmatprep.subr.mxu0 0.0
    %385 = vmatpush1.msra.mxu0 0.0
    %386 = vmatprep.subr.mxu0 0.0
    %387 = vmatpush1.msra.mxu0 0.0
    %388 = vmatprep.subr.mxu0 0.0
    %389 = vmatpush1.msra.mxu0 0.0
    %390 = vmatprep.subr.mxu0 0.0
    %391 = vmatpush1.msra.mxu0 0.0
    %392 = vmatprep.subr.mxu0 0.0
    %393 = vmatpush1.msra.mxu0 0.0
    %394 = vmatprep.subr.mxu0 0.0
    %395 = vmatpush1.msra.mxu0 0.0
    %396 = vmatprep.subr.mxu0 0.0
    %397 = vmatpush1.msra.mxu0 0.0
    %398 = vmatprep.subr.mxu0 0.0
    %399 = vmatpush1.msra.mxu0 0.0
    %400 = vmatprep.subr.mxu0 0.0
    %401 = vmatpush1.msra.mxu0 0.0
    %402 = vmatprep.subr.mxu0 0.0
    %403 = vmatpush1.msra.mxu0 0.0
    %404 = vmatprep.subr.mxu0 0.0
    %405 = vmatpush1.msra.mxu0 0.0
    %406 = vmatprep.subr.mxu0 0.0
    %407 = vmatpush1.msra.mxu0 0.0
    %408 = vmatprep.subr.mxu0 0.0
    %409 = vmatpush1.msra.mxu0 0.0
    %410 = vmatprep.subr.mxu0 0.0
    %411 = vmatpush1.msra.mxu0 0.0
    %412 = vmatprep.subr.mxu0 0.0
    %413 = vmatpush1.msra.mxu0 %v379
    %414 = vmatprep.subr.mxu0 0.0
    %415 = vmatpush1.msra.mxu0 %v378
    %416 = vmatprep.subr.mxu0 0.0
    %417 = vmatpush2.msra.mxu0 0.0
    %418 = vmatprep.subr.mxu0 0.0
    %419 = vmatpush2.msra.mxu0 0.0
    %420 = vmatprep.subr.mxu0 0.0
    %421 = vmatpush2.msra.mxu0 0.0
    %422 = vmatprep.subr.mxu0 0.0
    %423 = vmatpush2.msra.mxu0 0.0
    %424 = vmatprep.subr.mxu0 0.0
    %425 = vmatpush2.msra.mxu0 0.0
    %426 = vmatprep.subr.mxu0 0.0
    %427 = vmatpush2.msra.mxu0 0.0
    %428 = vmatprep.subr.mxu0 0.0
    %429 = vmatpush2.msra.mxu0 0.0
    %430 = vmatprep.subr.mxu0 0.0
    %431 = vmatpush2.msra.mxu0 0.0
    %432 = vmatprep.subr.mxu0 0.0
    %433 = vmatpush2.msra.mxu0 0.0
    %434 = vmatprep.subr.mxu0 0.0
    %435 = vmatpush2.msra.mxu0 0.0
    %436 = vmatprep.subr.mxu0 0.0
    %437 = vmatpush2.msra.mxu0 0.0
    %438 = vmatprep.subr.mxu0 0.0
    %439 = vmatpush2.msra.mxu0 0.0
    %440 = vmatprep.subr.mxu0 0.0
    %441 = vmatpush2.msra.mxu0 0.0
    %442 = vmatprep.subr.mxu0 0.0
    %443 = vmatpush2.msra.mxu0 0.0
    %444 = vmatprep.subr.mxu0 0.0
    %445 = vmatpush2.msra.mxu0 0.0
    %446 = vmatprep.subr.mxu0 0.0
    %447 = vmatpush2.msra.mxu0 0.0
    %448 = vmatprep.mubr.f32.mxu0 0.0
    %449 = vmatmul.mubr.f32.gmra.mxu0 %v382
    %v450 = vpop.f32.mrf.mxu0
    %v451 = vadd.f32 0.0, %v450
    %v452 = vpop.f32.mrf.mxu0
    %453 = vdwg.mxu0
    %vm454 = vcmask 123904
    %v455 = vsel %vm454, %v451, inf
    %456 = vmin.xlane.f32.xlu0 %v455
    %v457 = vpop.xlane.xlu0 %456
    %v458 = vrot.slane %v457, 4
    %v459 = vmin.f32 %v457, %v458
    %v460 = vrot.slane %v459, 2
    %v461 = vmin.f32 %v459, %v460
    %v462 = vrot.slane %v461, 1
    %v463 = vmin.f32 %v461, %v462
    %s464 = vtos %v463
    %v465 = vsel %vm454, %v451, -inf
    %466 = vmax.xlane.f32.xlu0 %v465
    %v467 = vpop.xlane.xlu0 %466
    %v468 = vrot.slane %v467, 4
    %v469 = vmax.f32 %v467, %v468
    %v470 = vrot.slane %v469, 2
    %v471 = vmax.f32 %v469, %v470
    %v472 = vrot.slane %v471, 1
    %v473 = vmax.f32 %v471, %v472
    %s474 = vtos %v473
    %s475 = ssub.f32 %s474, %s464
    %v476 = vstv %s475
    %v477 = vrcp.pop %v476
    %s478 = vtos %v477
    %v479 = vld [vmem:[%s2] sm:$0x1]
    %v480 = vstv %s478
    %v481 = vmul.f32 %v479, %v480
    %v482 = vld [vmem:[#allocation3] sm:$0x1]
    %v483 = vstv %s464
    %v484 = vmul.f32 %v483, %v481
    %v485 = vsub.f32 %v482, %v484
    %486 = vxpose.xlu0.b32.start [1/16] %v451, 128
    %487 = vxpose.xlu0.b32.cont [2/16] 0.0, 128
    %488 = vxpose.xlu0.b32.cont [3/16] 0.0, 128
    %489 = vxpose.xlu0.b32.cont [4/16] 0.0, 128
    %490 = vxpose.xlu0.b32.cont [5/16] 0.0, 128
    %491 = vxpose.xlu0.b32.cont [6/16] 0.0, 128
    %492 = vxpose.xlu0.b32.cont [7/16] 0.0, 128
    %493 = vxpose.xlu0.b32.cont [8/16] 0.0, 128
    %494 = vxpose.xlu0.b32.cont [9/16] 0.0, 128
    %495 = vxpose.xlu0.b32.cont [10/16] 0.0, 128
    %496 = vxpose.xlu0.b32.cont [11/16] 0.0, 128
    %497 = vxpose.xlu0.b32.cont [12/16] 0.0, 128
    %498 = vxpose.xlu0.b32.cont [13/16] 0.0, 128
    %499 = vxpose.xlu0.b32.cont [14/16] 0.0, 128
    %500 = vxpose.xlu0.b32.cont [15/16] 0.0, 128
    %501 = vxpose.xlu0.b32.end [16/16] 0.0, 128
    %v502 = vpop.trf.xlu0
    %v503 = vpop.trf.xlu0
    %v504 = vpop.trf.xlu0
    %v505 = vpop.trf.xlu0
    %v506 = vpop.trf.xlu0
    %v507 = vpop.trf.xlu0
    %v508 = vpop.trf.xlu0
    %v509 = vpop.trf.xlu0
    %v510 = vpop.trf.xlu0
    %v511 = vpop.trf.xlu0
    %v512 = vpop.trf.xlu0
    %v513 = vpop.trf.xlu0
    %v514 = vpop.trf.xlu0
    %v515 = vpop.trf.xlu0
    %v516 = vpop.trf.xlu0
    %v517 = vpop.trf.xlu0
    %520 = vrot.lane.b32.xlu0 %v502, 127
    %v521 = vpop.permute.xlu0 %520
    %522 = vrot.lane.b32.xlu0 %v503, 127
    %v523 = vpop.permute.xlu0 %522
    %524 = vset.pattern.permute.xlu0 0
    %525 = vperm.xlu0 %524, %v502
    %v526 = vpop.permute.xlu0 %525
    %528 = vset.pattern.permute.xlu0 0
    %529 = vperm.xlu0 %528, %v503
    %v530 = vpop.permute.xlu0 %529
    %532 = vset.pattern.permute.xlu0 0
    %533 = vperm.xlu0 %532, %v521
    %v534 = vpop.permute.xlu0 %533
    %536 = vset.pattern.permute.xlu0 0
    %537 = vperm.xlu0 %536, %v523
    %v538 = vpop.permute.xlu0 %537
    %v541 = vlaneseq
    %v542 = vshrl.u32 %v541, 7
    %v543 = vsub.s32 0, %v542
    %v544 = vrot.slane %v481, %v543
    %v546 = vmul.f32 %v526, %v544
    %v547 = vmul.f32 %v530, %v544
    %v548 = vmul.f32 %v534, %v544
    %v549 = vmul.f32 %v538, %v544
    %v551 = vlaneseq
    %v552 = vshrl.u32 %v551, 7
    %v553 = vsub.s32 0, %v552
    %v554 = vrot.slane %v485, %v553
    %v556 = vadd.f32 %v546, %v554
    %v557 = vadd.f32 %v547, %v554
    %v558 = vadd.f32 %v548, %v554
    %v559 = vadd.f32 %v549, %v554
    %v561 = vrot.slane %v559, 7
    %vm566 = vcmask 1040384
    %v567 = vrot.slane %v556, 7
    %v568 = vrot.slane %v557, 7
    %v569 = vsel %vm566, %v567, %v568
    %v570 = vrot.slane %v558, 7
    %v571 = vsel %vm566, %v568, %v570
    %v572 = vsel %vm566, %v570, %v561
    %v577 = vsel %vm566, %v561, %v567
    %v578 = vsel %vm341, 1, 0
    %v579 = vsel %vm342, 1, 0
    %v580 = vsel %vm343, 1, 0
    %v581 = vsel %vm344, 1, 0
    %vm582 = vcmp.eq.s32.totalorder %v578, 1
    %vm583 = vcmp.eq.s32.totalorder %v579, 1
    %vm584 = vcmp.eq.s32.totalorder %v580, 1
    %vm585 = vcmp.eq.s32.totalorder %v581, 1
    %v586 = vsel %vm582, 0.0, %v577
    %v587 = vsel %vm583, 0.0, %v569
    %v588 = vsel %vm584, 0.0, %v571
    %v589 = vsel %vm585, 0.0, %v572
    %vm590 = vcmask 1046528
    %v591 = vrot.slane %v556, 1
    %v592 = vrot.slane %v557, 1
    %v593 = vsel %vm590, %v591, %v592
    %v594 = vrot.slane %v558, 1
    %v595 = vsel %vm590, %v592, %v594
    %v596 = vrot.slane %v559, 1
    %v597 = vsel %vm590, %v594, %v596
    %v603 = vsel %vm590, %v596, %v591
    %v604 = vsel %vm345, 1, 0
    %v605 = vsel %vm346, 1, 0
    %v606 = vsel %vm347, 1, 0
    %v607 = vsel %vm348, 1, 0
    %vm608 = vcmp.eq.s32.totalorder %v604, 1
    %vm609 = vcmp.eq.s32.totalorder %v605, 1
    %vm610 = vcmp.eq.s32.totalorder %v606, 1
    %vm611 = vcmp.eq.s32.totalorder %v607, 1
    %v612 = vsel %vm608, 0.0, %v593
    %v613 = vsel %vm609, 0.0, %v595
    %v614 = vsel %vm610, 0.0, %v597
    %v615 = vsel %vm611, 0.0, %v603
    %v616 = vld [vmem:[#allocation5] sm:$0xf]
    %v617 = vld [vmem:[#allocation5 + $0x4] sm:$0xf]
    %v618 = vld [vmem:[#allocation5 + $0x8] sm:$0xf]
    %v619 = vld [vmem:[#allocation5 + $0xc] sm:$0xf]
    %v620 = vunpack.c.l.bf16 %v616
    %v621 = vunpack.c.l.bf16 %v617
    %v622 = vunpack.c.l.bf16 %v618
    %v623 = vunpack.c.l.bf16 %v619
    %s624 = scalar_lea.vmem [#allocation5], 16
    %v625 = vld [vmem:[%s624] sm:$0xf]
    %v626 = vld [vmem:[%s624 + $0x4] sm:$0xf]
    %v627 = vld [vmem:[%s624 + $0x8] sm:$0xf]
    %v628 = vld [vmem:[%s624 + $0xc] sm:$0xf]
    %v629 = vunpack.c.l.bf16 %v625
    %v630 = vunpack.c.l.bf16 %v626
    %v631 = vunpack.c.l.bf16 %v627
    %v632 = vunpack.c.l.bf16 %v628
    %vm633 = vcmask 261120
    %v634 = vsel %vm633, %v556, 0
    %v636 = vsel %vm633, %v557, 0
    %v638 = vsel %vm633, %v558, 0
    %v640 = vsel %vm633, %v559, 0
    %642 = vmatprep.subr.mxu0 0.0
    %643 = vmatpush1.msra.mxu0 0.0
    %644 = vmatprep.subr.mxu0 0.0
    %645 = vmatpush1.msra.mxu0 0.0
    %646 = vmatprep.subr.mxu0 0.0
    %647 = vmatpush1.msra.mxu0 0.0
    %648 = vmatprep.subr.mxu0 0.0
    %649 = vmatpush1.msra.mxu0 0.0
    %650 = vmatprep.subr.mxu0 0.0
    %651 = vmatpush1.msra.mxu0 0.0
    %652 = vmatprep.subr.mxu0 0.0
    %653 = vmatpush1.msra.mxu0 0.0
    %654 = vmatprep.subr.mxu0 0.0
    %655 = vmatpush1.msra.mxu0 0.0
    %656 = vmatprep.subr.mxu0 0.0
    %657 = vmatpush1.msra.mxu0 0.0
    %658 = vmatprep.subr.mxu0 0.0
    %659 = vmatpush1.msra.mxu0 0.0
    %660 = vmatprep.subr.mxu0 0.0
    %661 = vmatpush1.msra.mxu0 0.0
    %662 = vmatprep.subr.mxu0 0.0
    %663 = vmatpush1.msra.mxu0 0.0
    %664 = vmatprep.subr.mxu0 0.0
    %665 = vmatpush1.msra.mxu0 0.0
    %666 = vmatprep.subr.mxu0 0.0
    %667 = vmatpush1.msra.mxu0 %v632
    %668 = vmatprep.subr.mxu0 0.0
    %669 = vmatpush1.msra.mxu0 %v631
    %670 = vmatprep.subr.mxu0 0.0
    %671 = vmatpush1.msra.mxu0 %v630
    %672 = vmatprep.subr.mxu0 0.0
    %673 = vmatpush1.msra.mxu0 %v629
    %674 = vmatprep.subr.mxu0 0.0
    %675 = vmatpush2.msra.mxu0 0.0
    %676 = vmatprep.subr.mxu0 0.0
    %677 = vmatpush2.msra.mxu0 0.0
    %678 = vmatprep.subr.mxu0 0.0
    %679 = vmatpush2.msra.mxu0 0.0
    %680 = vmatprep.subr.mxu0 0.0
    %681 = vmatpush2.msra.mxu0 0.0
    %682 = vmatprep.subr.mxu0 0.0
    %683 = vmatpush2.msra.mxu0 0.0
    %684 = vmatprep.subr.mxu0 0.0
    %685 = vmatpush2.msra.mxu0 0.0
    %686 = vmatprep.subr.mxu0 0.0
    %687 = vmatpush2.msra.mxu0 0.0
    %688 = vmatprep.subr.mxu0 0.0
    %689 = vmatpush2.msra.mxu0 0.0
    %690 = vmatprep.subr.mxu0 0.0
    %691 = vmatpush2.msra.mxu0 0.0
    %692 = vmatprep.subr.mxu0 0.0
    %693 = vmatpush2.msra.mxu0 0.0
    %694 = vmatprep.subr.mxu0 0.0
    %695 = vmatpush2.msra.mxu0 0.0
    %696 = vmatprep.subr.mxu0 0.0
    %697 = vmatpush2.msra.mxu0 0.0
    %698 = vmatprep.subr.mxu0 0.0
    %699 = vmatpush2.msra.mxu0 0.0
    %700 = vmatprep.subr.mxu0 0.0
    %701 = vmatpush2.msra.mxu0 0.0
    %702 = vmatprep.subr.mxu0 0.0
    %703 = vmatpush2.msra.mxu0 0.0
    %704 = vmatprep.subr.mxu0 0.0
    %705 = vmatpush2.msra.mxu0 0.0
    %706 = vmatprep.mubr.f32.mxu0 0.0
    %707 = vmatmul.mubr.f32.gmra.mxu0 %v634
    %v708 = vpop.f32.mrf.mxu0
    %v709 = vadd.f32 0.0, %v708
    %v710 = vpop.f32.mrf.mxu0
    %711 = vmatprep.mubr.f32.mxu0 0.0
    %712 = vmatmul.mubr.f32.gmra.mxu0 %v636
    %v713 = vpop.f32.mrf.mxu0
    %v714 = vadd.f32 0.0, %v713
    %v715 = vpop.f32.mrf.mxu0
    %716 = vmatprep.mubr.f32.mxu0 0.0
    %717 = vmatmul.mubr.f32.gmra.mxu0 %v638
    %v718 = vpop.f32.mrf.mxu0
    %v719 = vadd.f32 0.0, %v718
    %v720 = vpop.f32.mrf.mxu0
    %721 = vmatprep.mubr.f32.mxu0 0.0
    %722 = vmatmul.mubr.f32.gmra.mxu0 %v640
    %v723 = vpop.f32.mrf.mxu0
    %v724 = vadd.f32 0.0, %v723
    %v725 = vpop.f32.mrf.mxu0
    %726 = vdwg.mxu0
    %v728 = vsel %vm633, %v586, 0
    %v731 = vsel %vm633, %v587, 0
    %v734 = vsel %vm633, %v588, 0
    %v737 = vsel %vm633, %v589, 0
    %739 = vmatprep.subr.mxu0 0.0
    %740 = vmatpush1.msra.mxu0 0.0
    %741 = vmatprep.subr.mxu0 0.0
    %742 = vmatpush1.msra.mxu0 0.0
    %743 = vmatprep.subr.mxu0 0.0
    %744 = vmatpush1.msra.mxu0 0.0
    %745 = vmatprep.subr.mxu0 0.0
    %746 = vmatpush1.msra.mxu0 0.0
    %747 = vmatprep.subr.mxu0 0.0
    %748 = vmatpush1.msra.mxu0 0.0
    %749 = vmatprep.subr.mxu0 0.0
    %750 = vmatpush1.msra.mxu0 0.0
    %751 = vmatprep.subr.mxu0 0.0
    %752 = vmatpush1.msra.mxu0 0.0
    %753 = vmatprep.subr.mxu0 0.0
    %754 = vmatpush1.msra.mxu0 0.0
    %755 = vmatprep.subr.mxu0 0.0
    %756 = vmatpush1.msra.mxu0 0.0
    %757 = vmatprep.subr.mxu0 0.0
    %758 = vmatpush1.msra.mxu0 0.0
    %759 = vmatprep.subr.mxu0 0.0
    %760 = vmatpush1.msra.mxu0 0.0
    %761 = vmatprep.subr.mxu0 0.0
    %762 = vmatpush1.msra.mxu0 0.0
    %763 = vmatprep.subr.mxu0 0.0
    %764 = vmatpush1.msra.mxu0 %v623
    %765 = vmatprep.subr.mxu0 0.0
    %766 = vmatpush1.msra.mxu0 %v622
    %767 = vmatprep.subr.mxu0 0.0
    %768 = vmatpush1.msra.mxu0 %v621
    %769 = vmatprep.subr.mxu0 0.0
    %770 = vmatpush1.msra.mxu0 %v620
    %771 = vmatprep.subr.mxu0 0.0
    %772 = vmatpush2.msra.mxu0 0.0
    %773 = vmatprep.subr.mxu0 0.0
    %774 = vmatpush2.msra.mxu0 0.0
    %775 = vmatprep.subr.mxu0 0.0
    %776 = vmatpush2.msra.mxu0 0.0
    %777 = vmatprep.subr.mxu0 0.0
    %778 = vmatpush2.msra.mxu0 0.0
    %779 = vmatprep.subr.mxu0 0.0
    %780 = vmatpush2.msra.mxu0 0.0
    %781 = vmatprep.subr.mxu0 0.0
    %782 = vmatpush2.msra.mxu0 0.0
    %783 = vmatprep.subr.mxu0 0.0
    %784 = vmatpush2.msra.mxu0 0.0
    %785 = vmatprep.subr.mxu0 0.0
    %786 = vmatpush2.msra.mxu0 0.0
    %787 = vmatprep.subr.mxu0 0.0
    %788 = vmatpush2.msra.mxu0 0.0
    %789 = vmatprep.subr.mxu0 0.0
    %790 = vmatpush2.msra.mxu0 0.0
    %791 = vmatprep.subr.mxu0 0.0
    %792 = vmatpush2.msra.mxu0 0.0
    %793 = vmatprep.subr.mxu0 0.0
    %794 = vmatpush2.msra.mxu0 0.0
    %795 = vmatprep.subr.mxu0 0.0
    %796 = vmatpush2.msra.mxu0 0.0
    %797 = vmatprep.subr.mxu0 0.0
    %798 = vmatpush2.msra.mxu0 0.0
    %799 = vmatprep.subr.mxu0 0.0
    %800 = vmatpush2.msra.mxu0 0.0
    %801 = vmatprep.subr.mxu0 0.0
    %802 = vmatpush2.msra.mxu0 0.0
    %803 = vmatprep.mubr.f32.mxu0 0.0
    %804 = vmatmul.mubr.f32.gmra.mxu0 %v728
    %v805 = vpop.f32.mrf.mxu0
    %v806 = vadd.f32 %v709, %v805
    %v807 = vpop.f32.mrf.mxu0
    %808 = vmatprep.mubr.f32.mxu0 0.0
    %809 = vmatmul.mubr.f32.gmra.mxu0 %v731
    %v810 = vpop.f32.mrf.mxu0
    %v811 = vadd.f32 %v714, %v810
    %v812 = vpop.f32.mrf.mxu0
    %813 = vmatprep.mubr.f32.mxu0 0.0
    %814 = vmatmul.mubr.f32.gmra.mxu0 %v734
    %v815 = vpop.f32.mrf.mxu0
    %v816 = vadd.f32 %v719, %v815
    %v817 = vpop.f32.mrf.mxu0
    %818 = vmatprep.mubr.f32.mxu0 0.0
    %819 = vmatmul.mubr.f32.gmra.mxu0 %v737
    %v820 = vpop.f32.mrf.mxu0
    %v821 = vadd.f32 %v724, %v820
    %v822 = vpop.f32.mrf.mxu0
    %823 = vdwg.mxu0
    %s824 = scalar_lea.vmem [#allocation5], 32
    %v825 = vld [vmem:[%s824] sm:$0xf]
    %v826 = vld [vmem:[%s824 + $0x4] sm:$0xf]
    %v827 = vld [vmem:[%s824 + $0x8] sm:$0xf]
    %v828 = vld [vmem:[%s824 + $0xc] sm:$0xf]
    %v829 = vunpack.c.l.bf16 %v825
    %v830 = vunpack.c.l.bf16 %v826
    %v831 = vunpack.c.l.bf16 %v827
    %v832 = vunpack.c.l.bf16 %v828
    %v834 = vsel %vm633, %v612, 0
    %v837 = vsel %vm633, %v613, 0
    %v840 = vsel %vm633, %v614, 0
    %v843 = vsel %vm633, %v615, 0
    %845 = vmatprep.subr.mxu0 0.0
    %846 = vmatpush1.msra.mxu0 0.0
    %847 = vmatprep.subr.mxu0 0.0
    %848 = vmatpush1.msra.mxu0 0.0
    %849 = vmatprep.subr.mxu0 0.0
    %850 = vmatpush1.msra.mxu0 0.0
    %851 = vmatprep.subr.mxu0 0.0
    %852 = vmatpush1.msra.mxu0 0.0
    %853 = vmatprep.subr.mxu0 0.0
    %854 = vmatpush1.msra.mxu0 0.0
    %855 = vmatprep.subr.mxu0 0.0
    %856 = vmatpush1.msra.mxu0 0.0
    %857 = vmatprep.subr.mxu0 0.0
    %858 = vmatpush1.msra.mxu0 0.0
    %859 = vmatprep.subr.mxu0 0.0
    %860 = vmatpush1.msra.mxu0 0.0
    %861 = vmatprep.subr.mxu0 0.0
    %862 = vmatpush1.msra.mxu0 0.0
    %863 = vmatprep.subr.mxu0 0.0
    %864 = vmatpush1.msra.mxu0 0.0
    %865 = vmatprep.subr.mxu0 0.0
    %866 = vmatpush1.msra.mxu0 0.0
    %867 = vmatprep.subr.mxu0 0.0
    %868 = vmatpush1.msra.mxu0 0.0
    %869 = vmatprep.subr.mxu0 0.0
    %870 = vmatpush1.msra.mxu0 %v832
    %871 = vmatprep.subr.mxu0 0.0
    %872 = vmatpush1.msra.mxu0 %v831
    %873 = vmatprep.subr.mxu0 0.0
    %874 = vmatpush1.msra.mxu0 %v830
    %875 = vmatprep.subr.mxu0 0.0
    %876 = vmatpush1.msra.mxu0 %v829
    %877 = vmatprep.subr.mxu0 0.0
    %878 = vmatpush2.msra.mxu0 0.0
    %879 = vmatprep.subr.mxu0 0.0
    %880 = vmatpush2.msra.mxu0 0.0
    %881 = vmatprep.subr.mxu0 0.0
    %882 = vmatpush2.msra.mxu0 0.0
    %883 = vmatprep.subr.mxu0 0.0
    %884 = vmatpush2.msra.mxu0 0.0
    %885 = vmatprep.subr.mxu0 0.0
    %886 = vmatpush2.msra.mxu0 0.0
    %887 = vmatprep.subr.mxu0 0.0
    %888 = vmatpush2.msra.mxu0 0.0
    %889 = vmatprep.subr.mxu0 0.0
    %890 = vmatpush2.msra.mxu0 0.0
    %891 = vmatprep.subr.mxu0 0.0
    %892 = vmatpush2.msra.mxu0 0.0
    %893 = vmatprep.subr.mxu0 0.0
    %894 = vmatpush2.msra.mxu0 0.0
    %895 = vmatprep.subr.mxu0 0.0
    %896 = vmatpush2.msra.mxu0 0.0
    %897 = vmatprep.subr.mxu0 0.0
    %898 = vmatpush2.msra.mxu0 0.0
    %899 = vmatprep.subr.mxu0 0.0
    %900 = vmatpush2.msra.mxu0 0.0
    %901 = vmatprep.subr.mxu0 0.0
    %902 = vmatpush2.msra.mxu0 0.0
    %903 = vmatprep.subr.mxu0 0.0
    %904 = vmatpush2.msra.mxu0 0.0
    %905 = vmatprep.subr.mxu0 0.0
    %906 = vmatpush2.msra.mxu0 0.0
    %907 = vmatprep.subr.mxu0 0.0
    %908 = vmatpush2.msra.mxu0 0.0
    %909 = vmatprep.mubr.f32.mxu0 0.0
    %910 = vmatmul.mubr.f32.gmra.mxu0 %v834
    %v911 = vpop.f32.mrf.mxu0
    %v912 = vadd.f32 0.0, %v911
    %v913 = vpop.f32.mrf.mxu0
    %914 = vmatprep.mubr.f32.mxu0 0.0
    %915 = vmatmul.mubr.f32.gmra.mxu0 %v837
    %v916 = vpop.f32.mrf.mxu0
    %v917 = vadd.f32 0.0, %v916
    %v918 = vpop.f32.mrf.mxu0
    %919 = vmatprep.mubr.f32.mxu0 0.0
    %920 = vmatmul.mubr.f32.gmra.mxu0 %v840
    %v921 = vpop.f32.mrf.mxu0
    %v922 = vadd.f32 0.0, %v921
    %v923 = vpop.f32.mrf.mxu0
    %924 = vmatprep.mubr.f32.mxu0 0.0
    %925 = vmatmul.mubr.f32.gmra.mxu0 %v843
    %v926 = vpop.f32.mrf.mxu0
    %v927 = vadd.f32 0.0, %v926
    %v928 = vpop.f32.mrf.mxu0
    %929 = vdwg.mxu0
    %v930 = vadd.f32 %v806, %v912
    %v931 = vadd.f32 %v811, %v917
    %v932 = vadd.f32 %v816, %v922
    %v933 = vadd.f32 %v821, %v927
    %v934 = vld [vmem:[#allocation7] sm:$0x1]
    %v936 = vlaneseq
    %v937 = vshrl.u32 %v936, 7
    %v938 = vsub.s32 0, %v937
    %v939 = vrot.slane %v934, %v938
    %v941 = vadd.f32 %v930, %v939
    %v942 = vadd.f32 %v931, %v939
    %v943 = vadd.f32 %v932, %v939
    %v944 = vadd.f32 %v933, %v939
    %vm945 = vcmp.gt.f32.partialorder %v941, 0.0
    %vm946 = vcmp.gt.f32.partialorder %v942, 0.0
    %vm947 = vcmp.gt.f32.partialorder %v943, 0.0
    %vm948 = vcmp.gt.f32.partialorder %v944, 0.0
    %v949 = vmul.f32 %v941, 0.2
    %v950 = vmul.f32 %v942, 0.2
    %v951 = vmul.f32 %v943, 0.2
    %v952 = vmul.f32 %v944, 0.2
    %v953 = vsel %vm945, %v941, %v949
    %v954 = vsel %vm946, %v942, %v950
    %v955 = vsel %vm947, %v943, %v951
    %v956 = vsel %vm948, %v944, %v952
    %v958 = vrot.slane %v956, 7
    %v963 = vrot.slane %v953, 7
    %v964 = vrot.slane %v954, 7
    %v965 = vsel %vm566, %v963, %v964
    %v966 = vrot.slane %v955, 7
    %v967 = vsel %vm566, %v964, %v966
    %v968 = vsel %vm566, %v966, %v958
    %v973 = vsel %vm566, %v958, %v963
    %v974 = vsel %vm582, 0.0, %v973
    %v975 = vsel %vm583, 0.0, %v965
    %v976 = vsel %vm584, 0.0, %v967
    %v977 = vsel %vm585, 0.0, %v968
    %v978 = vrot.slane %v953, 1
    %v979 = vrot.slane %v954, 1
    %v980 = vsel %vm590, %v978, %v979
    %v981 = vrot.slane %v955, 1
    %v982 = vsel %vm590, %v979, %v981
    %v983 = vrot.slane %v956, 1
    %v984 = vsel %vm590, %v981, %v983
    %v990 = vsel %vm590, %v983, %v978
    %v991 = vsel %vm608, 0.0, %v980
    %v992 = vsel %vm609, 0.0, %v982
    %v993 = vsel %vm610, 0.0, %v984
    %v994 = vsel %vm611, 0.0, %v990
    %v995 = vld [vmem:[%s6] sm:$0xf]
    %v996 = vld [vmem:[%s6 + $0x4] sm:$0xf]
    %v997 = vld [vmem:[%s6 + $0x8] sm:$0xf]
    %v998 = vld [vmem:[%s6 + $0xc] sm:$0xf]
    %v999 = vld [vmem:[%s6 + $0x10] sm:$0xf]
    %v1000 = vld [vmem:[%s6 + $0x14] sm:$0xf]
    %v1001 = vld [vmem:[%s6 + $0x18] sm:$0xf]
    %v1002 = vld [vmem:[%s6 + $0x1c] sm:$0xf]
    %v1003 = vunpack.c.l.bf16 %v995
    %v1004 = vunpack.c.l.bf16 %v996
    %v1005 = vunpack.c.l.bf16 %v997
    %v1006 = vunpack.c.l.bf16 %v998
    %v1007 = vunpack.c.l.bf16 %v999
    %v1008 = vunpack.c.l.bf16 %v1000
    %v1009 = vunpack.c.l.bf16 %v1001
    %v1010 = vunpack.c.l.bf16 %v1002
    %s1011 = scalar_lea.vmem %s6, 32
    %v1012 = vld [vmem:[%s1011] sm:$0xf]
    %v1013 = vld [vmem:[%s1011 + $0x4] sm:$0xf]
    %v1014 = vld [vmem:[%s1011 + $0x8] sm:$0xf]
    %v1015 = vld [vmem:[%s1011 + $0xc] sm:$0xf]
    %v1016 = vld [vmem:[%s1011 + $0x10] sm:$0xf]
    %v1017 = vld [vmem:[%s1011 + $0x14] sm:$0xf]
    %v1018 = vld [vmem:[%s1011 + $0x18] sm:$0xf]
    %v1019 = vld [vmem:[%s1011 + $0x1c] sm:$0xf]
    %v1020 = vunpack.c.l.bf16 %v1012
    %v1021 = vunpack.c.l.bf16 %v1013
    %v1022 = vunpack.c.l.bf16 %v1014
    %v1023 = vunpack.c.l.bf16 %v1015
    %v1024 = vunpack.c.l.bf16 %v1016
    %v1025 = vunpack.c.l.bf16 %v1017
    %v1026 = vunpack.c.l.bf16 %v1018
    %v1027 = vunpack.c.l.bf16 %v1019
    %vm1028 = vcmask 523264
    %v1029 = vsel %vm1028, %v953, 0
    %v1031 = vsel %vm1028, %v954, 0
    %v1033 = vsel %vm1028, %v955, 0
    %v1035 = vsel %vm1028, %v956, 0
    %1037 = vmatprep.subr.mxu0 0.0
    %1038 = vmatpush1.msra.mxu0 0.0
    %1039 = vmatprep.subr.mxu0 0.0
    %1040 = vmatpush1.msra.mxu0 0.0
    %1041 = vmatprep.subr.mxu0 0.0
    %1042 = vmatpush1.msra.mxu0 0.0
    %1043 = vmatprep.subr.mxu0 0.0
    %1044 = vmatpush1.msra.mxu0 0.0
    %1045 = vmatprep.subr.mxu0 0.0
    %1046 = vmatpush1.msra.mxu0 0.0
    %1047 = vmatprep.subr.mxu0 0.0
    %1048 = vmatpush1.msra.mxu0 0.0
    %1049 = vmatprep.subr.mxu0 0.0
    %1050 = vmatpush1.msra.mxu0 0.0
    %1051 = vmatprep.subr.mxu0 0.0
    %1052 = vmatpush1.msra.mxu0 0.0
    %1053 = vmatprep.subr.mxu0 0.0
    %1054 = vmatpush1.msra.mxu0 %v1027
    %1055 = vmatprep.subr.mxu0 0.0
    %1056 = vmatpush1.msra.mxu0 %v1026
    %1057 = vmatprep.subr.mxu0 0.0
    %1058 = vmatpush1.msra.mxu0 %v1025
    %1059 = vmatprep.subr.mxu0 0.0
    %1060 = vmatpush1.msra.mxu0 %v1024
    %1061 = vmatprep.subr.mxu0 0.0
    %1062 = vmatpush1.msra.mxu0 %v1023
    %1063 = vmatprep.subr.mxu0 0.0
    %1064 = vmatpush1.msra.mxu0 %v1022
    %1065 = vmatprep.subr.mxu0 0.0
    %1066 = vmatpush1.msra.mxu0 %v1021
    %1067 = vmatprep.subr.mxu0 0.0
    %1068 = vmatpush1.msra.mxu0 %v1020
    %1069 = vmatprep.subr.mxu0 0.0
    %1070 = vmatpush2.msra.mxu0 0.0
    %1071 = vmatprep.subr.mxu0 0.0
    %1072 = vmatpush2.msra.mxu0 0.0
    %1073 = vmatprep.subr.mxu0 0.0
    %1074 = vmatpush2.msra.mxu0 0.0
    %1075 = vmatprep.subr.mxu0 0.0
    %1076 = vmatpush2.msra.mxu0 0.0
    %1077 = vmatprep.subr.mxu0 0.0
    %1078 = vmatpush2.msra.mxu0 0.0
    %1079 = vmatprep.subr.mxu0 0.0
    %1080 = vmatpush2.msra.mxu0 0.0
    %1081 = vmatprep.subr.mxu0 0.0
    %1082 = vmatpush2.msra.mxu0 0.0
    %1083 = vmatprep.subr.mxu0 0.0
    %1084 = vmatpush2.msra.mxu0 0.0
    %1085 = vmatprep.subr.mxu0 0.0
    %1086 = vmatpush2.msra.mxu0 0.0
    %1087 = vmatprep.subr.mxu0 0.0
    %1088 = vmatpush2.msra.mxu0 0.0
    %1089 = vmatprep.subr.mxu0 0.0
    %1090 = vmatpush2.msra.mxu0 0.0
    %1091 = vmatprep.subr.mxu0 0.0
    %1092 = vmatpush2.msra.mxu0 0.0
    %1093 = vmatprep.subr.mxu0 0.0
    %1094 = vmatpush2.msra.mxu0 0.0
    %1095 = vmatprep.subr.mxu0 0.0
    %1096 = vmatpush2.msra.mxu0 0.0
    %1097 = vmatprep.subr.mxu0 0.0
    %1098 = vmatpush2.msra.mxu0 0.0
    %1099 = vmatprep.subr.mxu0 0.0
    %1100 = vmatpush2.msra.mxu0 0.0
    %1101 = vmatprep.mubr.f32.mxu0 0.0
    %1102 = vmatmul.mubr.f32.gmra.mxu0 %v1029
    %v1103 = vpop.f32.mrf.mxu0
    %v1104 = vadd.f32 0.0, %v1103
    %v1105 = vpop.f32.mrf.mxu0
    %1106 = vmatprep.mubr.f32.mxu0 0.0
    %1107 = vmatmul.mubr.f32.gmra.mxu0 %v1031
    %v1108 = vpop.f32.mrf.mxu0
    %v1109 = vadd.f32 0.0, %v1108
    %v1110 = vpop.f32.mrf.mxu0
    %1111 = vmatprep.mubr.f32.mxu0 0.0
    %1112 = vmatmul.mubr.f32.gmra.mxu0 %v1033
    %v1113 = vpop.f32.mrf.mxu0
    %v1114 = vadd.f32 0.0, %v1113
    %v1115 = vpop.f32.mrf.mxu0
    %1116 = vmatprep.mubr.f32.mxu0 0.0
    %1117 = vmatmul.mubr.f32.gmra.mxu0 %v1035
    %v1118 = vpop.f32.mrf.mxu0
    %v1119 = vadd.f32 0.0, %v1118
    %v1120 = vpop.f32.mrf.mxu0
    %1121 = vdwg.mxu0
    %v1123 = vsel %vm1028, %v974, 0
    %v1126 = vsel %vm1028, %v975, 0
    %v1129 = vsel %vm1028, %v976, 0
    %v1132 = vsel %vm1028, %v977, 0
    %1134 = vmatprep.subr.mxu0 0.0
    %1135 = vmatpush1.msra.mxu0 0.0
    %1136 = vmatprep.subr.mxu0 0.0
    %1137 = vmatpush1.msra.mxu0 0.0
    %1138 = vmatprep.subr.mxu0 0.0
    %1139 = vmatpush1.msra.mxu0 0.0
    %1140 = vmatprep.subr.mxu0 0.0
    %1141 = vmatpush1.msra.mxu0 0.0
    %1142 = vmatprep.subr.mxu0 0.0
    %1143 = vmatpush1.msra.mxu0 0.0
    %1144 = vmatprep.subr.mxu0 0.0
    %1145 = vmatpush1.msra.mxu0 0.0
    %1146 = vmatprep.subr.mxu0 0.0
    %1147 = vmatpush1.msra.mxu0 0.0
    %1148 = vmatprep.subr.mxu0 0.0
    %1149 = vmatpush1.msra.mxu0 0.0
    %1150 = vmatprep.subr.mxu0 0.0
    %1151 = vmatpush1.msra.mxu0 %v1010
    %1152 = vmatprep.subr.mxu0 0.0
    %1153 = vmatpush1.msra.mxu0 %v1009
    %1154 = vmatprep.subr.mxu0 0.0
    %1155 = vmatpush1.msra.mxu0 %v1008
    %1156 = vmatprep.subr.mxu0 0.0
    %1157 = vmatpush1.msra.mxu0 %v1007
    %1158 = vmatprep.subr.mxu0 0.0
    %1159 = vmatpush1.msra.mxu0 %v1006
    %1160 = vmatprep.subr.mxu0 0.0
    %1161 = vmatpush1.msra.mxu0 %v1005
    %1162 = vmatprep.subr.mxu0 0.0
    %1163 = vmatpush1.msra.mxu0 %v1004
    %1164 = vmatprep.subr.mxu0 0.0
    %1165 = vmatpush1.msra.mxu0 %v1003
    %1166 = vmatprep.subr.mxu0 0.0
    %1167 = vmatpush2.msra.mxu0 0.0
    %1168 = vmatprep.subr.mxu0 0.0
    %1169 = vmatpush2.msra.mxu0 0.0
    %1170 = vmatprep.subr.mxu0 0.0
    %1171 = vmatpush2.msra.mxu0 0.0
    %1172 = vmatprep.subr.mxu0 0.0
    %1173 = vmatpush2.msra.mxu0 0.0
    %1174 = vmatprep.subr.mxu0 0.0
    %1175 = vmatpush2.msra.mxu0 0.0
    %1176 = vmatprep.subr.mxu0 0.0
    %1177 = vmatpush2.msra.mxu0 0.0
    %1178 = vmatprep.subr.mxu0 0.0
    %1179 = vmatpush2.msra.mxu0 0.0
    %1180 = vmatprep.subr.mxu0 0.0
    %1181 = vmatpush2.msra.mxu0 0.0
    %1182 = vmatprep.subr.mxu0 0.0
    %1183 = vmatpush2.msra.mxu0 0.0
    %1184 = vmatprep.subr.mxu0 0.0
    %1185 = vmatpush2.msra.mxu0 0.0
    %1186 = vmatprep.subr.mxu0 0.0
    %1187 = vmatpush2.msra.mxu0 0.0
    %1188 = vmatprep.subr.mxu0 0.0
    %1189 = vmatpush2.msra.mxu0 0.0
    %1190 = vmatprep.subr.mxu0 0.0
    %1191 = vmatpush2.msra.mxu0 0.0
    %1192 = vmatprep.subr.mxu0 0.0
    %1193 = vmatpush2.msra.mxu0 0.0
    %1194 = vmatprep.subr.mxu0 0.0
    %1195 = vmatpush2.msra.mxu0 0.0
    %1196 = vmatprep.subr.mxu0 0.0
    %1197 = vmatpush2.msra.mxu0 0.0
    %1198 = vmatprep.mubr.f32.mxu0 0.0
    %1199 = vmatmul.mubr.f32.gmra.mxu0 %v1123
    %v1200 = vpop.f32.mrf.mxu0
    %v1201 = vadd.f32 %v1104, %v1200
    %v1202 = vpop.f32.mrf.mxu0
    %1203 = vmatprep.mubr.f32.mxu0 0.0
    %1204 = vmatmul.mubr.f32.gmra.mxu0 %v1126
    %v1205 = vpop.f32.mrf.mxu0
    %v1206 = vadd.f32 %v1109, %v1205
    %v1207 = vpop.f32.mrf.mxu0
    %1208 = vmatprep.mubr.f32.mxu0 0.0
    %1209 = vmatmul.mubr.f32.gmra.mxu0 %v1129
    %v1210 = vpop.f32.mrf.mxu0
    %v1211 = vadd.f32 %v1114, %v1210
    %v1212 = vpop.f32.mrf.mxu0
    %1213 = vmatprep.mubr.f32.mxu0 0.0
    %1214 = vmatmul.mubr.f32.gmra.mxu0 %v1132
    %v1215 = vpop.f32.mrf.mxu0
    %v1216 = vadd.f32 %v1119, %v1215
    %v1217 = vpop.f32.mrf.mxu0
    %1218 = vdwg.mxu0
    %s1219 = scalar_lea.vmem %s6, 64
    %v1220 = vld [vmem:[%s1219] sm:$0xf]
    %v1221 = vld [vmem:[%s1219 + $0x4] sm:$0xf]
    %v1222 = vld [vmem:[%s1219 + $0x8] sm:$0xf]
    %v1223 = vld [vmem:[%s1219 + $0xc] sm:$0xf]
    %v1224 = vld [vmem:[%s1219 + $0x10] sm:$0xf]
    %v1225 = vld [vmem:[%s1219 + $0x14] sm:$0xf]
    %v1226 = vld [vmem:[%s1219 + $0x18] sm:$0xf]
    %v1227 = vld [vmem:[%s1219 + $0x1c] sm:$0xf]
    %v1228 = vunpack.c.l.bf16 %v1220
    %v1229 = vunpack.c.l.bf16 %v1221
    %v1230 = vunpack.c.l.bf16 %v1222
    %v1231 = vunpack.c.l.bf16 %v1223
    %v1232 = vunpack.c.l.bf16 %v1224
    %v1233 = vunpack.c.l.bf16 %v1225
    %v1234 = vunpack.c.l.bf16 %v1226
    %v1235 = vunpack.c.l.bf16 %v1227
    %v1237 = vsel %vm1028, %v991, 0
    %v1240 = vsel %vm1028, %v992, 0
    %v1243 = vsel %vm1028, %v993, 0
    %v1246 = vsel %vm1028, %v994, 0
    %1248 = vmatprep.subr.mxu0 0.0
    %1249 = vmatpush1.msra.mxu0 0.0
    %1250 = vmatprep.subr.mxu0 0.0
    %1251 = vmatpush1.msra.mxu0 0.0
    %1252 = vmatprep.subr.mxu0 0.0
    %1253 = vmatpush1.msra.mxu0 0.0
    %1254 = vmatprep.subr.mxu0 0.0
    %1255 = vmatpush1.msra.mxu0 0.0
    %1256 = vmatprep.subr.mxu0 0.0
    %1257 = vmatpush1.msra.mxu0 0.0
    %1258 = vmatprep.subr.mxu0 0.0
    %1259 = vmatpush1.msra.mxu0 0.0
    %1260 = vmatprep.subr.mxu0 0.0
    %1261 = vmatpush1.msra.mxu0 0.0
    %1262 = vmatprep.subr.mxu0 0.0
    %1263 = vmatpush1.msra.mxu0 0.0
    %1264 = vmatprep.subr.mxu0 0.0
    %1265 = vmatpush1.msra.mxu0 %v1235
    %1266 = vmatprep.subr.mxu0 0.0
    %1267 = vmatpush1.msra.mxu0 %v1234
    %1268 = vmatprep.subr.mxu0 0.0
    %1269 = vmatpush1.msra.mxu0 %v1233
    %1270 = vmatprep.subr.mxu0 0.0
    %1271 = vmatpush1.msra.mxu0 %v1232
    %1272 = vmatprep.subr.mxu0 0.0
    %1273 = vmatpush1.msra.mxu0 %v1231
    %1274 = vmatprep.subr.mxu0 0.0
    %1275 = vmatpush1.msra.mxu0 %v1230
    %1276 = vmatprep.subr.mxu0 0.0
    %1277 = vmatpush1.msra.mxu0 %v1229
    %1278 = vmatprep.subr.mxu0 0.0
    %1279 = vmatpush1.msra.mxu0 %v1228
    %1280 = vmatprep.subr.mxu0 0.0
    %1281 = vmatpush2.msra.mxu0 0.0
    %1282 = vmatprep.subr.mxu0 0.0
    %1283 = vmatpush2.msra.mxu0 0.0
    %1284 = vmatprep.subr.mxu0 0.0
    %1285 = vmatpush2.msra.mxu0 0.0
    %1286 = vmatprep.subr.mxu0 0.0
    %1287 = vmatpush2.msra.mxu0 0.0
    %1288 = vmatprep.subr.mxu0 0.0
    %1289 = vmatpush2.msra.mxu0 0.0
    %1290 = vmatprep.subr.mxu0 0.0
    %1291 = vmatpush2.msra.mxu0 0.0
    %1292 = vmatprep.subr.mxu0 0.0
    %1293 = vmatpush2.msra.mxu0 0.0
    %1294 = vmatprep.subr.mxu0 0.0
    %1295 = vmatpush2.msra.mxu0 0.0
    %1296 = vmatprep.subr.mxu0 0.0
    %1297 = vmatpush2.msra.mxu0 0.0
    %1298 = vmatprep.subr.mxu0 0.0
    %1299 = vmatpush2.msra.mxu0 0.0
    %1300 = vmatprep.subr.mxu0 0.0
    %1301 = vmatpush2.msra.mxu0 0.0
    %1302 = vmatprep.subr.mxu0 0.0
    %1303 = vmatpush2.msra.mxu0 0.0
    %1304 = vmatprep.subr.mxu0 0.0
    %1305 = vmatpush2.msra.mxu0 0.0
    %1306 = vmatprep.subr.mxu0 0.0
    %1307 = vmatpush2.msra.mxu0 0.0
    %1308 = vmatprep.subr.mxu0 0.0
    %1309 = vmatpush2.msra.mxu0 0.0
    %1310 = vmatprep.subr.mxu0 0.0
    %1311 = vmatpush2.msra.mxu0 0.0
    %1312 = vmatprep.mubr.f32.mxu0 0.0
    %1313 = vmatmul.mubr.f32.gmra.mxu0 %v1237
    %v1314 = vpop.f32.mrf.mxu0
    %v1315 = vadd.f32 0.0, %v1314
    %v1316 = vpop.f32.mrf.mxu0
    %1317 = vmatprep.mubr.f32.mxu0 0.0
    %1318 = vmatmul.mubr.f32.gmra.mxu0 %v1240
    %v1319 = vpop.f32.mrf.mxu0
    %v1320 = vadd.f32 0.0, %v1319
    %v1321 = vpop.f32.mrf.mxu0
    %1322 = vmatprep.mubr.f32.mxu0 0.0
    %1323 = vmatmul.mubr.f32.gmra.mxu0 %v1243
    %v1324 = vpop.f32.mrf.mxu0
    %v1325 = vadd.f32 0.0, %v1324
    %v1326 = vpop.f32.mrf.mxu0
    %1327 = vmatprep.mubr.f32.mxu0 0.0
    %1328 = vmatmul.mubr.f32.gmra.mxu0 %v1246
    %v1329 = vpop.f32.mrf.mxu0
    %v1330 = vadd.f32 0.0, %v1329
    %v1331 = vpop.f32.mrf.mxu0
    %1332 = vdwg.mxu0
    %v1333 = vadd.f32 %v1201, %v1315
    %v1334 = vadd.f32 %v1206, %v1320
    %v1335 = vadd.f32 %v1211, %v1325
    %v1336 = vadd.f32 %v1216, %v1330
    %v1337 = vld [vmem:[#allocation8] sm:$0x1]
    %v1339 = vlaneseq
    %v1340 = vshrl.u32 %v1339, 7
    %v1341 = vsub.s32 0, %v1340
    %v1342 = vrot.slane %v1337, %v1341
    %v1344 = vadd.f32 %v1333, %v1342
    %v1345 = vadd.f32 %v1334, %v1342
    %v1346 = vadd.f32 %v1335, %v1342
    %v1347 = vadd.f32 %v1336, %v1342
    %vm1348 = vcmp.gt.f32.partialorder %v1344, 0.0
    %vm1349 = vcmp.gt.f32.partialorder %v1345, 0.0
    %vm1350 = vcmp.gt.f32.partialorder %v1346, 0.0
    %vm1351 = vcmp.gt.f32.partialorder %v1347, 0.0
    %v1352 = vmul.f32 %v1344, 0.2
    %v1353 = vmul.f32 %v1345, 0.2
    %v1354 = vmul.f32 %v1346, 0.2
    %v1355 = vmul.f32 %v1347, 0.2
    %v1356 = vsel %vm1348, %v1344, %v1352
    %v1357 = vsel %vm1349, %v1345, %v1353
    %v1358 = vsel %vm1350, %v1346, %v1354
    %v1359 = vsel %vm1351, %v1347, %v1355
    %v1364 = vcombine.high %v1356, %v1356
    %v1366 = vunpack.c.l.s4 1983009808
    %v1367 = vunpack.c.0.s8 %v1366
    %v1368 = vlaneseq
    %v1369 = vshrl.u32 %v1368, 7
    %v1370 = vsub.s32 %v1367, %v1369
    %v1371 = vrot.slane %v1356, %v1370
    %v1373 = vunpack.c.l.s4 1983009808
    %v1374 = vunpack.c.0.s8 %v1373
    %v1375 = vlaneseq
    %v1376 = vshrl.u32 %v1375, 7
    %v1377 = vsub.s32 %v1374, %v1376
    %v1378 = vrot.slane %v1364, %v1377
    %v1379 = vcombine.high %v1371, %v1371
    %v1380 = vcombine.high %v1378, %v1378
    %v1381 = vcombine.high %v1357, %v1357
    %v1383 = vunpack.c.l.s4 1983009808
    %v1384 = vunpack.c.0.s8 %v1383
    %v1385 = vlaneseq
    %v1386 = vshrl.u32 %v1385, 7
    %v1387 = vsub.s32 %v1384, %v1386
    %v1388 = vrot.slane %v1357, %v1387
    %v1390 = vunpack.c.l.s4 1983009808
    %v1391 = vunpack.c.0.s8 %v1390
    %v1392 = vlaneseq
    %v1393 = vshrl.u32 %v1392, 7
    %v1394 = vsub.s32 %v1391, %v1393
    %v1395 = vrot.slane %v1381, %v1394
    %v1396 = vcombine.high %v1388, %v1388
    %v1397 = vcombine.high %v1395, %v1395
    %v1398 = vcombine.high %v1358, %v1358
    %v1400 = vunpack.c.l.s4 1983009808
    %v1401 = vunpack.c.0.s8 %v1400
    %v1402 = vlaneseq
    %v1403 = vshrl.u32 %v1402, 7
    %v1404 = vsub.s32 %v1401, %v1403
    %v1405 = vrot.slane %v1358, %v1404
    %v1407 = vunpack.c.l.s4 1983009808
    %v1408 = vunpack.c.0.s8 %v1407
    %v1409 = vlaneseq
    %v1410 = vshrl.u32 %v1409, 7
    %v1411 = vsub.s32 %v1408, %v1410
    %v1412 = vrot.slane %v1398, %v1411
    %v1413 = vcombine.high %v1405, %v1405
    %v1414 = vcombine.high %v1412, %v1412
    %v1415 = vcombine.high %v1359, %v1359
    %v1417 = vunpack.c.l.s4 1983009808
    %v1418 = vunpack.c.0.s8 %v1417
    %v1419 = vlaneseq
    %v1420 = vshrl.u32 %v1419, 7
    %v1421 = vsub.s32 %v1418, %v1420
    %v1422 = vrot.slane %v1359, %v1421
    %v1424 = vunpack.c.l.s4 1983009808
    %v1425 = vunpack.c.0.s8 %v1424
    %v1426 = vlaneseq
    %v1427 = vshrl.u32 %v1426, 7
    %v1428 = vsub.s32 %v1425, %v1427
    %v1429 = vrot.slane %v1415, %v1428
    %v1430 = vcombine.high %v1422, %v1422
    %v1431 = vcombine.high %v1429, %v1429
    %vm1448 = vcmask 517120
    %v1449 = vsel %vm1448, %v1371, -inf
    %v1450 = vrot.slane %v1449, 4
    %v1451 = vmax.f32 %v1449, %v1450
    %v1452 = vrot.slane %v1451, 2
    %v1453 = vmax.f32 %v1451, %v1452
    %v1454 = vrot.slane %v1453, 1
    %v1455 = vmax.f32 %v1453, %v1454
    %v1456 = vsel %vm1448, %v1379, -inf
    %v1457 = vrot.slane %v1456, 4
    %v1458 = vmax.f32 %v1456, %v1457
    %v1459 = vrot.slane %v1458, 2
    %v1460 = vmax.f32 %v1458, %v1459
    %v1461 = vrot.slane %v1460, 1
    %v1462 = vmax.f32 %v1460, %v1461
    %v1463 = vsel %vm1448, %v1378, -inf
    %v1464 = vrot.slane %v1463, 4
    %v1465 = vmax.f32 %v1463, %v1464
    %v1466 = vrot.slane %v1465, 2
    %v1467 = vmax.f32 %v1465, %v1466
    %v1468 = vrot.slane %v1467, 1
    %v1469 = vmax.f32 %v1467, %v1468
    %v1470 = vsel %vm1448, %v1380, -inf
    %v1471 = vrot.slane %v1470, 4
    %v1472 = vmax.f32 %v1470, %v1471
    %v1473 = vrot.slane %v1472, 2
    %v1474 = vmax.f32 %v1472, %v1473
    %v1475 = vrot.slane %v1474, 1
    %v1476 = vmax.f32 %v1474, %v1475
    %v1477 = vsel %vm1448, %v1388, -inf
    %v1478 = vrot.slane %v1477, 4
    %v1479 = vmax.f32 %v1477, %v1478
    %v1480 = vrot.slane %v1479, 2
    %v1481 = vmax.f32 %v1479, %v1480
    %v1482 = vrot.slane %v1481, 1
    %v1483 = vmax.f32 %v1481, %v1482
    %v1484 = vsel %vm1448, %v1396, -inf
    %v1485 = vrot.slane %v1484, 4
    %v1486 = vmax.f32 %v1484, %v1485
    %v1487 = vrot.slane %v1486, 2
    %v1488 = vmax.f32 %v1486, %v1487
    %v1489 = vrot.slane %v1488, 1
    %v1490 = vmax.f32 %v1488, %v1489
    %v1491 = vsel %vm1448, %v1395, -inf
    %v1492 = vrot.slane %v1491, 4
    %v1493 = vmax.f32 %v1491, %v1492
    %v1494 = vrot.slane %v1493, 2
    %v1495 = vmax.f32 %v1493, %v1494
    %v1496 = vrot.slane %v1495, 1
    %v1497 = vmax.f32 %v1495, %v1496
    %v1498 = vsel %vm1448, %v1397, -inf
    %v1499 = vrot.slane %v1498, 4
    %v1500 = vmax.f32 %v1498, %v1499
    %v1501 = vrot.slane %v1500, 2
    %v1502 = vmax.f32 %v1500, %v1501
    %v1503 = vrot.slane %v1502, 1
    %v1504 = vmax.f32 %v1502, %v1503
    %v1505 = vsel %vm1448, %v1405, -inf
    %v1506 = vrot.slane %v1505, 4
    %v1507 = vmax.f32 %v1505, %v1506
    %v1508 = vrot.slane %v1507, 2
    %v1509 = vmax.f32 %v1507, %v1508
    %v1510 = vrot.slane %v1509, 1
    %v1511 = vmax.f32 %v1509, %v1510
    %v1512 = vsel %vm1448, %v1413, -inf
    %v1513 = vrot.slane %v1512, 4
    %v1514 = vmax.f32 %v1512, %v1513
    %v1515 = vrot.slane %v1514, 2
    %v1516 = vmax.f32 %v1514, %v1515
    %v1517 = vrot.slane %v1516, 1
    %v1518 = vmax.f32 %v1516, %v1517
    %v1519 = vsel %vm1448, %v1412, -inf
    %v1520 = vrot.slane %v1519, 4
    %v1521 = vmax.f32 %v1519, %v1520
    %v1522 = vrot.slane %v1521, 2
    %v1523 = vmax.f32 %v1521, %v1522
    %v1524 = vrot.slane %v1523, 1
    %v1525 = vmax.f32 %v1523, %v1524
    %v1526 = vsel %vm1448, %v1414, -inf
    %v1527 = vrot.slane %v1526, 4
    %v1528 = vmax.f32 %v1526, %v1527
    %v1529 = vrot.slane %v1528, 2
    %v1530 = vmax.f32 %v1528, %v1529
    %v1531 = vrot.slane %v1530, 1
    %v1532 = vmax.f32 %v1530, %v1531
    %v1533 = vsel %vm1448, %v1422, -inf
    %v1534 = vrot.slane %v1533, 4
    %v1535 = vmax.f32 %v1533, %v1534
    %v1536 = vrot.slane %v1535, 2
    %v1537 = vmax.f32 %v1535, %v1536
    %v1538 = vrot.slane %v1537, 1
    %v1539 = vmax.f32 %v1537, %v1538
    %v1540 = vsel %vm1448, %v1430, -inf
    %v1541 = vrot.slane %v1540, 4
    %v1542 = vmax.f32 %v1540, %v1541
    %v1543 = vrot.slane %v1542, 2
    %v1544 = vmax.f32 %v1542, %v1543
    %v1545 = vrot.slane %v1544, 1
    %v1546 = vmax.f32 %v1544, %v1545
    %v1547 = vsel %vm1448, %v1429, -inf
    %v1548 = vrot.slane %v1547, 4
    %v1549 = vmax.f32 %v1547, %v1548
    %v1550 = vrot.slane %v1549, 2
    %v1551 = vmax.f32 %v1549, %v1550
    %v1552 = vrot.slane %v1551, 1
    %v1553 = vmax.f32 %v1551, %v1552
    %v1554 = vsel %vm1448, %v1431, -inf
    %v1555 = vrot.slane %v1554, 4
    %v1556 = vmax.f32 %v1554, %v1555
    %v1557 = vrot.slane %v1556, 2
    %v1558 = vmax.f32 %v1556, %v1557
    %v1559 = vrot.slane %v1558, 1
    %v1560 = vmax.f32 %v1558, %v1559
    %vm1576 = vcmask 1042434
    %v1577 = vsel %vm1576, %v1462, %v1455
    %vm1578 = vcmask 1043459
    %v1579 = vsel %vm1578, %v1469, %v1577
    %vm1580 = vcmask 1044484
    %v1581 = vsel %vm1580, %v1476, %v1579
    %vm1582 = vcmask 1045509
    %v1583 = vsel %vm1582, %v1483, %v1581
    %vm1584 = vcmask 1046534
    %v1585 = vsel %vm1584, %v1490, %v1583
    %vm1586 = vcmask 1047559
    %v1587 = vsel %vm1586, %v1497, %v1585
    %vm1588 = vcmask 1041409
    %v1589 = vsel %vm1588, %v1511, %v1504
    %v1590 = vsel %vm1576, %v1518, %v1589
    %v1591 = vsel %vm1578, %v1525, %v1590
    %v1592 = vsel %vm1580, %v1532, %v1591
    %v1593 = vsel %vm1582, %v1539, %v1592
    %v1594 = vsel %vm1584, %v1546, %v1593
    %v1595 = vsel %vm1586, %v1553, %v1594
    %v1598 = vsel %vm566, %v1560, %v1587
    %v1599 = vsel %vm373, 1, 0
    %v1600 = vsel %vm374, 1, 0
    %vm1601 = vcmp.eq.s32.totalorder %v1599, 1
    %vm1602 = vcmp.eq.s32.totalorder %v1600, 1
    %v1603 = vsel %vm1601, 0.0, %v1598
    %v1604 = vsel %vm1602, 0.0, %v1595
    %v1606 = vsel %vm1588, %v1469, %v1462
    %v1607 = vsel %vm1576, %v1476, %v1606
    %v1608 = vsel %vm1578, %v1483, %v1607
    %v1609 = vsel %vm1580, %v1490, %v1608
    %v1610 = vsel %vm1582, %v1497, %v1609
    %v1611 = vsel %vm1584, %v1504, %v1610
    %v1612 = vsel %vm1586, %v1511, %v1611
    %v1613 = vsel %vm1588, %v1525, %v1518
    %v1614 = vsel %vm1576, %v1532, %v1613
    %v1615 = vsel %vm1578, %v1539, %v1614
    %v1616 = vsel %vm1580, %v1546, %v1615
    %v1617 = vsel %vm1582, %v1553, %v1616
    %v1618 = vsel %vm1584, %v1560, %v1617
    %v1621 = vsel %vm590, %v1618, %v1455
    %v1622 = vsel %vm375, 1, 0
    %v1623 = vsel %vm376, 1, 0
    %vm1624 = vcmp.eq.s32.totalorder %v1622, 1
    %vm1625 = vcmp.eq.s32.totalorder %v1623, 1
    %v1626 = vsel %vm1624, 0.0, %v1612
    %v1627 = vsel %vm1625, 0.0, %v1621
    %v1628 = vld [vmem:[%s8] sm:$0xf]
    %v1629 = vld [vmem:[%s8 + $0x4] sm:$0xf]
    %v1630 = vld [vmem:[%s8 + $0x8] sm:$0xf]
    %v1631 = vld [vmem:[%s8 + $0xc] sm:$0xf]
    %v1632 = vld [vmem:[%s8 + $0x10] sm:$0xf]
    %v1633 = vld [vmem:[%s8 + $0x14] sm:$0xf]
    %v1634 = vld [vmem:[%s8 + $0x18] sm:$0xf]
    %v1635 = vld [vmem:[%s8 + $0x1c] sm:$0xf]
    %v1636 = vunpack.c.l.bf16 %v1628
    %v1637 = vunpack.c.l.bf16 %v1629
    %v1638 = vunpack.c.l.bf16 %v1630
    %v1639 = vunpack.c.l.bf16 %v1631
    %v1640 = vunpack.c.l.bf16 %v1632
    %v1641 = vunpack.c.l.bf16 %v1633
    %v1642 = vunpack.c.l.bf16 %v1634
    %v1643 = vunpack.c.l.bf16 %v1635
    %s1644 = scalar_lea.vmem %s8, 32
    %v1645 = vld [vmem:[%s1644] sm:$0xf]
    %v1646 = vld [vmem:[%s1644 + $0x4] sm:$0xf]
    %v1647 = vld [vmem:[%s1644 + $0x8] sm:$0xf]
    %v1648 = vld [vmem:[%s1644 + $0xc] sm:$0xf]
    %v1649 = vld [vmem:[%s1644 + $0x10] sm:$0xf]
    %v1650 = vld [vmem:[%s1644 + $0x14] sm:$0xf]
    %v1651 = vld [vmem:[%s1644 + $0x18] sm:$0xf]
    %v1652 = vld [vmem:[%s1644 + $0x1c] sm:$0xf]
    %v1653 = vunpack.c.l.bf16 %v1645
    %v1654 = vunpack.c.l.bf16 %v1646
    %v1655 = vunpack.c.l.bf16 %v1647
    %v1656 = vunpack.c.l.bf16 %v1648
    %v1657 = vunpack.c.l.bf16 %v1649
    %v1658 = vunpack.c.l.bf16 %v1650
    %v1659 = vunpack.c.l.bf16 %v1651
    %v1660 = vunpack.c.l.bf16 %v1652
    %v1661 = vsel %vm1588, %v1462, %v1455
    %v1662 = vsel %vm1576, %v1469, %v1661
    %v1663 = vsel %vm1578, %v1476, %v1662
    %v1664 = vsel %vm1580, %v1483, %v1663
    %v1665 = vsel %vm1582, %v1490, %v1664
    %v1666 = vsel %vm1584, %v1497, %v1665
    %v1667 = vsel %vm1586, %v1504, %v1666
    %v1668 = vsel %vm1588, %v1518, %v1511
    %v1669 = vsel %vm1576, %v1525, %v1668
    %v1670 = vsel %vm1578, %v1532, %v1669
    %v1671 = vsel %vm1580, %v1539, %v1670
    %v1672 = vsel %vm1582, %v1546, %v1671
    %v1673 = vsel %vm1584, %v1553, %v1672
    %v1674 = vsel %vm1586, %v1560, %v1673
    %v1675 = vsel %vm1028, %v1667, 0
    %v1677 = vsel %vm1028, %v1674, 0
    %1679 = vmatprep.subr.mxu0 0.0
    %1680 = vmatpush1.msra.mxu0 0.0
    %1681 = vmatprep.subr.mxu0 0.0
    %1682 = vmatpush1.msra.mxu0 0.0
    %1683 = vmatprep.subr.mxu0 0.0
    %1684 = vmatpush1.msra.mxu0 0.0
    %1685 = vmatprep.subr.mxu0 0.0
    %1686 = vmatpush1.msra.mxu0 0.0
    %1687 = vmatprep.subr.mxu0 0.0
    %1688 = vmatpush1.msra.mxu0 0.0
    %1689 = vmatprep.subr.mxu0 0.0
    %1690 = vmatpush1.msra.mxu0 0.0
    %1691 = vmatprep.subr.mxu0 0.0
    %1692 = vmatpush1.msra.mxu0 0.0
    %1693 = vmatprep.subr.mxu0 0.0
    %1694 = vmatpush1.msra.mxu0 0.0
    %1695 = vmatprep.subr.mxu0 0.0
    %1696 = vmatpush1.msra.mxu0 %v1660
    %1697 = vmatprep.subr.mxu0 0.0
    %1698 = vmatpush1.msra.mxu0 %v1659
    %1699 = vmatprep.subr.mxu0 0.0
    %1700 = vmatpush1.msra.mxu0 %v1658
    %1701 = vmatprep.subr.mxu0 0.0
    %1702 = vmatpush1.msra.mxu0 %v1657
    %1703 = vmatprep.subr.mxu0 0.0
    %1704 = vmatpush1.msra.mxu0 %v1656
    %1705 = vmatprep.subr.mxu0 0.0
    %1706 = vmatpush1.msra.mxu0 %v1655
    %1707 = vmatprep.subr.mxu0 0.0
    %1708 = vmatpush1.msra.mxu0 %v1654
    %1709 = vmatprep.subr.mxu0 0.0
    %1710 = vmatpush1.msra.mxu0 %v1653
    %1711 = vmatprep.subr.mxu0 0.0
    %1712 = vmatpush2.msra.mxu0 0.0
    %1713 = vmatprep.subr.mxu0 0.0
    %1714 = vmatpush2.msra.mxu0 0.0
    %1715 = vmatprep.subr.mxu0 0.0
    %1716 = vmatpush2.msra.mxu0 0.0
    %1717 = vmatprep.subr.mxu0 0.0
    %1718 = vmatpush2.msra.mxu0 0.0
    %1719 = vmatprep.subr.mxu0 0.0
    %1720 = vmatpush2.msra.mxu0 0.0
    %1721 = vmatprep.subr.mxu0 0.0
    %1722 = vmatpush2.msra.mxu0 0.0
    %1723 = vmatprep.subr.mxu0 0.0
    %1724 = vmatpush2.msra.mxu0 0.0
    %1725 = vmatprep.subr.mxu0 0.0
    %1726 = vmatpush2.msra.mxu0 0.0
    %1727 = vmatprep.subr.mxu0 0.0
    %1728 = vmatpush2.msra.mxu0 0.0
    %1729 = vmatprep.subr.mxu0 0.0
    %1730 = vmatpush2.msra.mxu0 0.0
    %1731 = vmatprep.subr.mxu0 0.0
    %1732 = vmatpush2.msra.mxu0 0.0
    %1733 = vmatprep.subr.mxu0 0.0
    %1734 = vmatpush2.msra.mxu0 0.0
    %1735 = vmatprep.subr.mxu0 0.0
    %1736 = vmatpush2.msra.mxu0 0.0
    %1737 = vmatprep.subr.mxu0 0.0
    %1738 = vmatpush2.msra.mxu0 0.0
    %1739 = vmatprep.subr.mxu0 0.0
    %1740 = vmatpush2.msra.mxu0 0.0
    %1741 = vmatprep.subr.mxu0 0.0
    %1742 = vmatpush2.msra.mxu0 0.0
    %1743 = vmatprep.mubr.f32.mxu0 0.0
    %1744 = vmatmul.mubr.f32.gmra.mxu0 %v1675
    %v1745 = vpop.f32.mrf.mxu0
    %v1746 = vadd.f32 0.0, %v1745
    %v1747 = vpop.f32.mrf.mxu0
    %1748 = vmatprep.mubr.f32.mxu0 0.0
    %1749 = vmatmul.mubr.f32.gmra.mxu0 %v1677
    %v1750 = vpop.f32.mrf.mxu0
    %v1751 = vadd.f32 0.0, %v1750
    %v1752 = vpop.f32.mrf.mxu0
    %1753 = vdwg.mxu0
    %v1755 = vsel %vm1028, %v1603, 0
    %v1758 = vsel %vm1028, %v1604, 0
    %1760 = vmatprep.subr.mxu0 0.0
    %1761 = vmatpush1.msra.mxu0 0.0
    %1762 = vmatprep.subr.mxu0 0.0
    %1763 = vmatpush1.msra.mxu0 0.0
    %1764 = vmatprep.subr.mxu0 0.0
    %1765 = vmatpush1.msra.mxu0 0.0
    %1766 = vmatprep.subr.mxu0 0.0
    %1767 = vmatpush1.msra.mxu0 0.0
    %1768 = vmatprep.subr.mxu0 0.0
    %1769 = vmatpush1.msra.mxu0 0.0
    %1770 = vmatprep.subr.mxu0 0.0
    %1771 = vmatpush1.msra.mxu0 0.0
    %1772 = vmatprep.subr.mxu0 0.0
    %1773 = vmatpush1.msra.mxu0 0.0
    %1774 = vmatprep.subr.mxu0 0.0
    %1775 = vmatpush1.msra.mxu0 0.0
    %1776 = vmatprep.subr.mxu0 0.0
    %1777 = vmatpush1.msra.mxu0 %v1643
    %1778 = vmatprep.subr.mxu0 0.0
    %1779 = vmatpush1.msra.mxu0 %v1642
    %1780 = vmatprep.subr.mxu0 0.0
    %1781 = vmatpush1.msra.mxu0 %v1641
    %1782 = vmatprep.subr.mxu0 0.0
    %1783 = vmatpush1.msra.mxu0 %v1640
    %1784 = vmatprep.subr.mxu0 0.0
    %1785 = vmatpush1.msra.mxu0 %v1639
    %1786 = vmatprep.subr.mxu0 0.0
    %1787 = vmatpush1.msra.mxu0 %v1638
    %1788 = vmatprep.subr.mxu0 0.0
    %1789 = vmatpush1.msra.mxu0 %v1637
    %1790 = vmatprep.subr.mxu0 0.0
    %1791 = vmatpush1.msra.mxu0 %v1636
    %1792 = vmatprep.subr.mxu0 0.0
    %1793 = vmatpush2.msra.mxu0 0.0
    %1794 = vmatprep.subr.mxu0 0.0
    %1795 = vmatpush2.msra.mxu0 0.0
    %1796 = vmatprep.subr.mxu0 0.0
    %1797 = vmatpush2.msra.mxu0 0.0
    %1798 = vmatprep.subr.mxu0 0.0
    %1799 = vmatpush2.msra.mxu0 0.0
    %1800 = vmatprep.subr.mxu0 0.0
    %1801 = vmatpush2.msra.mxu0 0.0
    %1802 = vmatprep.subr.mxu0 0.0
    %1803 = vmatpush2.msra.mxu0 0.0
    %1804 = vmatprep.subr.mxu0 0.0
    %1805 = vmatpush2.msra.mxu0 0.0
    %1806 = vmatprep.subr.mxu0 0.0
    %1807 = vmatpush2.msra.mxu0 0.0
    %1808 = vmatprep.subr.mxu0 0.0
    %1809 = vmatpush2.msra.mxu0 0.0
    %1810 = vmatprep.subr.mxu0 0.0
    %1811 = vmatpush2.msra.mxu0 0.0
    %1812 = vmatprep.subr.mxu0 0.0
    %1813 = vmatpush2.msra.mxu0 0.0
    %1814 = vmatprep.subr.mxu0 0.0
    %1815 = vmatpush2.msra.mxu0 0.0
    %1816 = vmatprep.subr.mxu0 0.0
    %1817 = vmatpush2.msra.mxu0 0.0
    %1818 = vmatprep.subr.mxu0 0.0
    %1819 = vmatpush2.msra.mxu0 0.0
    %1820 = vmatprep.subr.mxu0 0.0
    %1821 = vmatpush2.msra.mxu0 0.0
    %1822 = vmatprep.subr.mxu0 0.0
    %1823 = vmatpush2.msra.mxu0 0.0
    %1824 = vmatprep.mubr.f32.mxu0 0.0
    %1825 = vmatmul.mubr.f32.gmra.mxu0 %v1755
    %v1826 = vpop.f32.mrf.mxu0
    %v1827 = vadd.f32 %v1746, %v1826
    %v1828 = vpop.f32.mrf.mxu0
    %1829 = vmatprep.mubr.f32.mxu0 0.0
    %1830 = vmatmul.mubr.f32.gmra.mxu0 %v1758
    %v1831 = vpop.f32.mrf.mxu0
    %v1832 = vadd.f32 %v1751, %v1831
    %v1833 = vpop.f32.mrf.mxu0
    %1834 = vdwg.mxu0
    %s1835 = scalar_lea.vmem %s8, 64
    %v1836 = vld [vmem:[%s1835] sm:$0xf]
    %v1837 = vld [vmem:[%s1835 + $0x4] sm:$0xf]
    %v1838 = vld [vmem:[%s1835 + $0x8] sm:$0xf]
    %v1839 = vld [vmem:[%s1835 + $0xc] sm:$0xf]
    %v1840 = vld [vmem:[%s1835 + $0x10] sm:$0xf]
    %v1841 = vld [vmem:[%s1835 + $0x14] sm:$0xf]
    %v1842 = vld [vmem:[%s1835 + $0x18] sm:$0xf]
    %v1843 = vld [vmem:[%s1835 + $0x1c] sm:$0xf]
    %v1844 = vunpack.c.l.bf16 %v1836
    %v1845 = vunpack.c.l.bf16 %v1837
    %v1846 = vunpack.c.l.bf16 %v1838
    %v1847 = vunpack.c.l.bf16 %v1839
    %v1848 = vunpack.c.l.bf16 %v1840
    %v1849 = vunpack.c.l.bf16 %v1841
    %v1850 = vunpack.c.l.bf16 %v1842
    %v1851 = vunpack.c.l.bf16 %v1843
    %v1853 = vsel %vm1028, %v1626, 0
    %v1856 = vsel %vm1028, %v1627, 0
    %1858 = vmatprep.subr.mxu0 0.0
    %1859 = vmatpush1.msra.mxu0 0.0
    %1860 = vmatprep.subr.mxu0 0.0
    %1861 = vmatpush1.msra.mxu0 0.0
    %1862 = vmatprep.subr.mxu0 0.0
    %1863 = vmatpush1.msra.mxu0 0.0
    %1864 = vmatprep.subr.mxu0 0.0
    %1865 = vmatpush1.msra.mxu0 0.0
    %1866 = vmatprep.subr.mxu0 0.0
    %1867 = vmatpush1.msra.mxu0 0.0
    %1868 = vmatprep.subr.mxu0 0.0
    %1869 = vmatpush1.msra.mxu0 0.0
    %1870 = vmatprep.subr.mxu0 0.0
    %1871 = vmatpush1.msra.mxu0 0.0
    %1872 = vmatprep.subr.mxu0 0.0
    %1873 = vmatpush1.msra.mxu0 0.0
    %1874 = vmatprep.subr.mxu0 0.0
    %1875 = vmatpush1.msra.mxu0 %v1851
    %1876 = vmatprep.subr.mxu0 0.0
    %1877 = vmatpush1.msra.mxu0 %v1850
    %1878 = vmatprep.subr.mxu0 0.0
    %1879 = vmatpush1.msra.mxu0 %v1849
    %1880 = vmatprep.subr.mxu0 0.0
    %1881 = vmatpush1.msra.mxu0 %v1848
    %1882 = vmatprep.subr.mxu0 0.0
    %1883 = vmatpush1.msra.mxu0 %v1847
    %1884 = vmatprep.subr.mxu0 0.0
    %1885 = vmatpush1.msra.mxu0 %v1846
    %1886 = vmatprep.subr.mxu0 0.0
    %1887 = vmatpush1.msra.mxu0 %v1845
    %1888 = vmatprep.subr.mxu0 0.0
    %1889 = vmatpush1.msra.mxu0 %v1844
    %1890 = vmatprep.subr.mxu0 0.0
    %1891 = vmatpush2.msra.mxu0 0.0
    %1892 = vmatprep.subr.mxu0 0.0
    %1893 = vmatpush2.msra.mxu0 0.0
    %1894 = vmatprep.subr.mxu0 0.0
    %1895 = vmatpush2.msra.mxu0 0.0
    %1896 = vmatprep.subr.mxu0 0.0
    %1897 = vmatpush2.msra.mxu0 0.0
    %1898 = vmatprep.subr.mxu0 0.0
    %1899 = vmatpush2.msra.mxu0 0.0
    %1900 = vmatprep.subr.mxu0 0.0
    %1901 = vmatpush2.msra.mxu0 0.0
    %1902 = vmatprep.subr.mxu0 0.0
    %1903 = vmatpush2.msra.mxu0 0.0
    %1904 = vmatprep.subr.mxu0 0.0
    %1905 = vmatpush2.msra.mxu0 0.0
    %1906 = vmatprep.subr.mxu0 0.0
    %1907 = vmatpush2.msra.mxu0 0.0
    %1908 = vmatprep.subr.mxu0 0.0
    %1909 = vmatpush2.msra.mxu0 0.0
    %1910 = vmatprep.subr.mxu0 0.0
    %1911 = vmatpush2.msra.mxu0 0.0
    %1912 = vmatprep.subr.mxu0 0.0
    %1913 = vmatpush2.msra.mxu0 0.0
    %1914 = vmatprep.subr.mxu0 0.0
    %1915 = vmatpush2.msra.mxu0 0.0
    %1916 = vmatprep.subr.mxu0 0.0
    %1917 = vmatpush2.msra.mxu0 0.0
    %1918 = vmatprep.subr.mxu0 0.0
    %1919 = vmatpush2.msra.mxu0 0.0
    %1920 = vmatprep.subr.mxu0 0.0
    %1921 = vmatpush2.msra.mxu0 0.0
    %1922 = vmatprep.mubr.f32.mxu0 0.0
    %1923 = vmatmul.mubr.f32.gmra.mxu0 %v1853
    %v1924 = vpop.f32.mrf.mxu0
    %v1925 = vadd.f32 0.0, %v1924
    %v1926 = vpop.f32.mrf.mxu0
    %1927 = vmatprep.mubr.f32.mxu0 0.0
    %1928 = vmatmul.mubr.f32.gmra.mxu0 %v1856
    %v1929 = vpop.f32.mrf.mxu0
    %v1930 = vadd.f32 0.0, %v1929
    %v1931 = vpop.f32.mrf.mxu0
    %1932 = vdwg.mxu0
    %v1933 = vadd.f32 %v1827, %v1925
    %v1934 = vadd.f32 %v1832, %v1930
    %v1935 = vld [vmem:[#allocation10] sm:$0x1]
    %v1937 = vlaneseq
    %v1938 = vshrl.u32 %v1937, 7
    %v1939 = vsub.s32 0, %v1938
    %v1940 = vrot.slane %v1935, %v1939
    %v1942 = vadd.f32 %v1933, %v1940
    %v1943 = vadd.f32 %v1934, %v1940
    %vm1944 = vcmp.gt.f32.partialorder %v1942, 0.0
    %vm1945 = vcmp.gt.f32.partialorder %v1943, 0.0
    %v1946 = vmul.f32 %v1942, 0.2
    %v1947 = vmul.f32 %v1943, 0.2
    %v1948 = vsel %vm1944, %v1942, %v1946
    %v1949 = vsel %vm1945, %v1943, %v1947
    %v1951 = vrot.slane %v1949, 7
    %v1954 = vrot.slane %v1948, 7
    %v1955 = vsel %vm566, %v1954, %v1951
    %v1958 = vsel %vm566, %v1951, %v1954
    %v1959 = vsel %vm1601, 0.0, %v1958
    %v1960 = vsel %vm1602, 0.0, %v1955
    %v1961 = vrot.slane %v1948, 1
    %v1962 = vrot.slane %v1949, 1
    %v1963 = vsel %vm590, %v1961, %v1962
    %v1967 = vsel %vm590, %v1962, %v1961
    %v1968 = vsel %vm1624, 0.0, %v1963
    %v1969 = vsel %vm1625, 0.0, %v1967
    %v1970 = vld [vmem:[%s10] sm:$0xf]
    %v1971 = vld [vmem:[%s10 + $0x4] sm:$0xf]
    %v1972 = vld [vmem:[%s10 + $0x8] sm:$0xf]
    %v1973 = vld [vmem:[%s10 + $0xc] sm:$0xf]
    %v1974 = vld [vmem:[%s10 + $0x10] sm:$0xf]
    %v1975 = vld [vmem:[%s10 + $0x14] sm:$0xf]
    %v1976 = vld [vmem:[%s10 + $0x18] sm:$0xf]
    %v1977 = vld [vmem:[%s10 + $0x1c] sm:$0xf]
    %v1978 = vld [vmem:[%s10 + $0x20] sm:$0xf]
    %v1979 = vld [vmem:[%s10 + $0x24] sm:$0xf]
    %v1980 = vld [vmem:[%s10 + $0x28] sm:$0xf]
    %v1981 = vld [vmem:[%s10 + $0x2c] sm:$0xf]
    %v1982 = vld [vmem:[%s10 + $0x30] sm:$0xf]
    %v1983 = vld [vmem:[%s10 + $0x34] sm:$0xf]
    %v1984 = vld [vmem:[%s10 + $0x38] sm:$0xf]
    %v1985 = vld [vmem:[%s10 + $0x3c] sm:$0xf]
    %v1986 = vunpack.c.l.bf16 %v1970
    %v1987 = vunpack.c.l.bf16 %v1971
    %v1988 = vunpack.c.l.bf16 %v1972
    %v1989 = vunpack.c.l.bf16 %v1973
    %v1990 = vunpack.c.l.bf16 %v1974
    %v1991 = vunpack.c.l.bf16 %v1975
    %v1992 = vunpack.c.l.bf16 %v1976
    %v1993 = vunpack.c.l.bf16 %v1977
    %v1994 = vunpack.c.l.bf16 %v1978
    %v1995 = vunpack.c.l.bf16 %v1979
    %v1996 = vunpack.c.l.bf16 %v1980
    %v1997 = vunpack.c.l.bf16 %v1981
    %v1998 = vunpack.c.l.bf16 %v1982
    %v1999 = vunpack.c.l.bf16 %v1983
    %v2000 = vunpack.c.l.bf16 %v1984
    %v2001 = vunpack.c.l.bf16 %v1985
    %s2002 = scalar_lea.vmem %s10, 64
    %v2003 = vld [vmem:[%s2002] sm:$0xf]
    %v2004 = vld [vmem:[%s2002 + $0x4] sm:$0xf]
    %v2005 = vld [vmem:[%s2002 + $0x8] sm:$0xf]
    %v2006 = vld [vmem:[%s2002 + $0xc] sm:$0xf]
    %v2007 = vld [vmem:[%s2002 + $0x10] sm:$0xf]
    %v2008 = vld [vmem:[%s2002 + $0x14] sm:$0xf]
    %v2009 = vld [vmem:[%s2002 + $0x18] sm:$0xf]
    %v2010 = vld [vmem:[%s2002 + $0x1c] sm:$0xf]
    %v2011 = vld [vmem:[%s2002 + $0x20] sm:$0xf]
    %v2012 = vld [vmem:[%s2002 + $0x24] sm:$0xf]
    %v2013 = vld [vmem:[%s2002 + $0x28] sm:$0xf]
    %v2014 = vld [vmem:[%s2002 + $0x2c] sm:$0xf]
    %v2015 = vld [vmem:[%s2002 + $0x30] sm:$0xf]
    %v2016 = vld [vmem:[%s2002 + $0x34] sm:$0xf]
    %v2017 = vld [vmem:[%s2002 + $0x38] sm:$0xf]
    %v2018 = vld [vmem:[%s2002 + $0x3c] sm:$0xf]
    %v2019 = vunpack.c.l.bf16 %v2003
    %v2020 = vunpack.c.l.bf16 %v2004
    %v2021 = vunpack.c.l.bf16 %v2005
    %v2022 = vunpack.c.l.bf16 %v2006
    %v2023 = vunpack.c.l.bf16 %v2007
    %v2024 = vunpack.c.l.bf16 %v2008
    %v2025 = vunpack.c.l.bf16 %v2009
    %v2026 = vunpack.c.l.bf16 %v2010
    %v2027 = vunpack.c.l.bf16 %v2011
    %v2028 = vunpack.c.l.bf16 %v2012
    %v2029 = vunpack.c.l.bf16 %v2013
    %v2030 = vunpack.c.l.bf16 %v2014
    %v2031 = vunpack.c.l.bf16 %v2015
    %v2032 = vunpack.c.l.bf16 %v2016
    %v2033 = vunpack.c.l.bf16 %v2017
    %v2034 = vunpack.c.l.bf16 %v2018
    %2035 = vmatprep.subr.mxu0 0.0
    %2036 = vmatpush1.msra.mxu0 %v2034
    %2037 = vmatprep.subr.mxu0 0.0
    %2038 = vmatpush1.msra.mxu0 %v2033
    %2039 = vmatprep.subr.mxu0 0.0
    %2040 = vmatpush1.msra.mxu0 %v2032
    %2041 = vmatprep.subr.mxu0 0.0
    %2042 = vmatpush1.msra.mxu0 %v2031
    %2043 = vmatprep.subr.mxu0 0.0
    %2044 = vmatpush1.msra.mxu0 %v2030
    %2045 = vmatprep.subr.mxu0 0.0
    %2046 = vmatpush1.msra.mxu0 %v2029
    %2047 = vmatprep.subr.mxu0 0.0
    %2048 = vmatpush1.msra.mxu0 %v2028
    %2049 = vmatprep.subr.mxu0 0.0
    %2050 = vmatpush1.msra.mxu0 %v2027
    %2051 = vmatprep.subr.mxu0 0.0
    %2052 = vmatpush1.msra.mxu0 %v2026
    %2053 = vmatprep.subr.mxu0 0.0
    %2054 = vmatpush1.msra.mxu0 %v2025
    %2055 = vmatprep.subr.mxu0 0.0
    %2056 = vmatpush1.msra.mxu0 %v2024
    %2057 = vmatprep.subr.mxu0 0.0
    %2058 = vmatpush1.msra.mxu0 %v2023
    %2059 = vmatprep.subr.mxu0 0.0
    %2060 = vmatpush1.msra.mxu0 %v2022
    %2061 = vmatprep.subr.mxu0 0.0
    %2062 = vmatpush1.msra.mxu0 %v2021
    %2063 = vmatprep.subr.mxu0 0.0
    %2064 = vmatpush1.msra.mxu0 %v2020
    %2065 = vmatprep.subr.mxu0 0.0
    %2066 = vmatpush1.msra.mxu0 %v2019
    %2067 = vmatprep.subr.mxu0 0.0
    %2068 = vmatpush2.msra.mxu0 0.0
    %2069 = vmatprep.subr.mxu0 0.0
    %2070 = vmatpush2.msra.mxu0 0.0
    %2071 = vmatprep.subr.mxu0 0.0
    %2072 = vmatpush2.msra.mxu0 0.0
    %2073 = vmatprep.subr.mxu0 0.0
    %2074 = vmatpush2.msra.mxu0 0.0
    %2075 = vmatprep.subr.mxu0 0.0
    %2076 = vmatpush2.msra.mxu0 0.0
    %2077 = vmatprep.subr.mxu0 0.0
    %2078 = vmatpush2.msra.mxu0 0.0
    %2079 = vmatprep.subr.mxu0 0.0
    %2080 = vmatpush2.msra.mxu0 0.0
    %2081 = vmatprep.subr.mxu0 0.0
    %2082 = vmatpush2.msra.mxu0 0.0
    %2083 = vmatprep.subr.mxu0 0.0
    %2084 = vmatpush2.msra.mxu0 0.0
    %2085 = vmatprep.subr.mxu0 0.0
    %2086 = vmatpush2.msra.mxu0 0.0
    %2087 = vmatprep.subr.mxu0 0.0
    %2088 = vmatpush2.msra.mxu0 0.0
    %2089 = vmatprep.subr.mxu0 0.0
    %2090 = vmatpush2.msra.mxu0 0.0
    %2091 = vmatprep.subr.mxu0 0.0
    %2092 = vmatpush2.msra.mxu0 0.0
    %2093 = vmatprep.subr.mxu0 0.0
    %2094 = vmatpush2.msra.mxu0 0.0
    %2095 = vmatprep.subr.mxu0 0.0
    %2096 = vmatpush2.msra.mxu0 0.0
    %2097 = vmatprep.subr.mxu0 0.0
    %2098 = vmatpush2.msra.mxu0 0.0
    %2099 = vmatprep.mubr.f32.mxu0 0.0
    %2100 = vmatmul.mubr.f32.gmra.mxu0 %v1948
    %v2101 = vpop.f32.mrf.mxu0
    %v2102 = vadd.f32 0.0, %v2101
    %v2103 = vpop.f32.mrf.mxu0
    %2104 = vmatprep.mubr.f32.mxu0 0.0
    %2105 = vmatmul.mubr.f32.gmra.mxu0 %v1949
    %v2106 = vpop.f32.mrf.mxu0
    %v2107 = vadd.f32 0.0, %v2106
    %v2108 = vpop.f32.mrf.mxu0
    %2109 = vdwg.mxu0
    %2110 = vmatprep.subr.mxu0 0.0
    %2111 = vmatpush1.msra.mxu0 %v2001
    %2112 = vmatprep.subr.mxu0 0.0
    %2113 = vmatpush1.msra.mxu0 %v2000
    %2114 = vmatprep.subr.mxu0 0.0
    %2115 = vmatpush1.msra.mxu0 %v1999
    %2116 = vmatprep.subr.mxu0 0.0
    %2117 = vmatpush1.msra.mxu0 %v1998
    %2118 = vmatprep.subr.mxu0 0.0
    %2119 = vmatpush1.msra.mxu0 %v1997
    %2120 = vmatprep.subr.mxu0 0.0
    %2121 = vmatpush1.msra.mxu0 %v1996
    %2122 = vmatprep.subr.mxu0 0.0
    %2123 = vmatpush1.msra.mxu0 %v1995
    %2124 = vmatprep.subr.mxu0 0.0
    %2125 = vmatpush1.msra.mxu0 %v1994
    %2126 = vmatprep.subr.mxu0 0.0
    %2127 = vmatpush1.msra.mxu0 %v1993
    %2128 = vmatprep.subr.mxu0 0.0
    %2129 = vmatpush1.msra.mxu0 %v1992
    %2130 = vmatprep.subr.mxu0 0.0
    %2131 = vmatpush1.msra.mxu0 %v1991
    %2132 = vmatprep.subr.mxu0 0.0
    %2133 = vmatpush1.msra.mxu0 %v1990
    %2134 = vmatprep.subr.mxu0 0.0
    %2135 = vmatpush1.msra.mxu0 %v1989
    %2136 = vmatprep.subr.mxu0 0.0
    %2137 = vmatpush1.msra.mxu0 %v1988
    %2138 = vmatprep.subr.mxu0 0.0
    %2139 = vmatpush1.msra.mxu0 %v1987
    %2140 = vmatprep.subr.mxu0 0.0
    %2141 = vmatpush1.msra.mxu0 %v1986
    %2142 = vmatprep.subr.mxu0 0.0
    %2143 = vmatpush2.msra.mxu0 0.0
    %2144 = vmatprep.subr.mxu0 0.0
    %2145 = vmatpush2.msra.mxu0 0.0
    %2146 = vmatprep.subr.mxu0 0.0
    %2147 = vmatpush2.msra.mxu0 0.0
    %2148 = vmatprep.subr.mxu0 0.0
    %2149 = vmatpush2.msra.mxu0 0.0
    %2150 = vmatprep.subr.mxu0 0.0
    %2151 = vmatpush2.msra.mxu0 0.0
    %2152 = vmatprep.subr.mxu0 0.0
    %2153 = vmatpush2.msra.mxu0 0.0
    %2154 = vmatprep.subr.mxu0 0.0
    %2155 = vmatpush2.msra.mxu0 0.0
    %2156 = vmatprep.subr.mxu0 0.0
    %2157 = vmatpush2.msra.mxu0 0.0
    %2158 = vmatprep.subr.mxu0 0.0
    %2159 = vmatpush2.msra.mxu0 0.0
    %2160 = vmatprep.subr.mxu0 0.0
    %2161 = vmatpush2.msra.mxu0 0.0
    %2162 = vmatprep.subr.mxu0 0.0
    %2163 = vmatpush2.msra.mxu0 0.0
    %2164 = vmatprep.subr.mxu0 0.0
    %2165 = vmatpush2.msra.mxu0 0.0
    %2166 = vmatprep.subr.mxu0 0.0
    %2167 = vmatpush2.msra.mxu0 0.0
    %2168 = vmatprep.subr.mxu0 0.0
    %2169 = vmatpush2.msra.mxu0 0.0
    %2170 = vmatprep.subr.mxu0 0.0
    %2171 = vmatpush2.msra.mxu0 0.0
    %2172 = vmatprep.subr.mxu0 0.0
    %2173 = vmatpush2.msra.mxu0 0.0
    %2174 = vmatprep.mubr.f32.mxu0 0.0
    %2175 = vmatmul.mubr.f32.gmra.mxu0 %v1959
    %v2176 = vpop.f32.mrf.mxu0
    %v2177 = vadd.f32 %v2102, %v2176
    %v2178 = vpop.f32.mrf.mxu0
    %2179 = vmatprep.mubr.f32.mxu0 0.0
    %2180 = vmatmul.mubr.f32.gmra.mxu0 %v1960
    %v2181 = vpop.f32.mrf.mxu0
    %v2182 = vadd.f32 %v2107, %v2181
    %v2183 = vpop.f32.mrf.mxu0
    %2184 = vdwg.mxu0
    %s2185 = scalar_lea.vmem %s10, 128
    %v2186 = vld [vmem:[%s2185] sm:$0xf]
    %v2187 = vld [vmem:[%s2185 + $0x4] sm:$0xf]
    %v2188 = vld [vmem:[%s2185 + $0x8] sm:$0xf]
    %v2189 = vld [vmem:[%s2185 + $0xc] sm:$0xf]
    %v2190 = vld [vmem:[%s2185 + $0x10] sm:$0xf]
    %v2191 = vld [vmem:[%s2185 + $0x14] sm:$0xf]
    %v2192 = vld [vmem:[%s2185 + $0x18] sm:$0xf]
    %v2193 = vld [vmem:[%s2185 + $0x1c] sm:$0xf]
    %v2194 = vld [vmem:[%s2185 + $0x20] sm:$0xf]
    %v2195 = vld [vmem:[%s2185 + $0x24] sm:$0xf]
    %v2196 = vld [vmem:[%s2185 + $0x28] sm:$0xf]
    %v2197 = vld [vmem:[%s2185 + $0x2c] sm:$0xf]
    %v2198 = vld [vmem:[%s2185 + $0x30] sm:$0xf]
    %v2199 = vld [vmem:[%s2185 + $0x34] sm:$0xf]
    %v2200 = vld [vmem:[%s2185 + $0x38] sm:$0xf]
    %v2201 = vld [vmem:[%s2185 + $0x3c] sm:$0xf]
    %v2202 = vunpack.c.l.bf16 %v2186
    %v2203 = vunpack.c.l.bf16 %v2187
    %v2204 = vunpack.c.l.bf16 %v2188
    %v2205 = vunpack.c.l.bf16 %v2189
    %v2206 = vunpack.c.l.bf16 %v2190
    %v2207 = vunpack.c.l.bf16 %v2191
    %v2208 = vunpack.c.l.bf16 %v2192
    %v2209 = vunpack.c.l.bf16 %v2193
    %v2210 = vunpack.c.l.bf16 %v2194
    %v2211 = vunpack.c.l.bf16 %v2195
    %v2212 = vunpack.c.l.bf16 %v2196
    %v2213 = vunpack.c.l.bf16 %v2197
    %v2214 = vunpack.c.l.bf16 %v2198
    %v2215 = vunpack.c.l.bf16 %v2199
    %v2216 = vunpack.c.l.bf16 %v2200
    %v2217 = vunpack.c.l.bf16 %v2201
    %2218 = vmatprep.subr.mxu0 0.0
    %2219 = vmatpush1.msra.mxu0 %v2217
    %2220 = vmatprep.subr.mxu0 0.0
    %2221 = vmatpush1.msra.mxu0 %v2216
    %2222 = vmatprep.subr.mxu0 0.0
    %2223 = vmatpush1.msra.mxu0 %v2215
    %2224 = vmatprep.subr.mxu0 0.0
    %2225 = vmatpush1.msra.mxu0 %v2214
    %2226 = vmatprep.subr.mxu0 0.0
    %2227 = vmatpush1.msra.mxu0 %v2213
    %2228 = vmatprep.subr.mxu0 0.0
    %2229 = vmatpush1.msra.mxu0 %v2212
    %2230 = vmatprep.subr.mxu0 0.0
    %2231 = vmatpush1.msra.mxu0 %v2211
    %2232 = vmatprep.subr.mxu0 0.0
    %2233 = vmatpush1.msra.mxu0 %v2210
    %2234 = vmatprep.subr.mxu0 0.0
    %2235 = vmatpush1.msra.mxu0 %v2209
    %2236 = vmatprep.subr.mxu0 0.0
    %2237 = vmatpush1.msra.mxu0 %v2208
    %2238 = vmatprep.subr.mxu0 0.0
    %2239 = vmatpush1.msra.mxu0 %v2207
    %2240 = vmatprep.subr.mxu0 0.0
    %2241 = vmatpush1.msra.mxu0 %v2206
    %2242 = vmatprep.subr.mxu0 0.0
    %2243 = vmatpush1.msra.mxu0 %v2205
    %2244 = vmatprep.subr.mxu0 0.0
    %2245 = vmatpush1.msra.mxu0 %v2204
    %2246 = vmatprep.subr.mxu0 0.0
    %2247 = vmatpush1.msra.mxu0 %v2203
    %2248 = vmatprep.subr.mxu0 0.0
    %2249 = vmatpush1.msra.mxu0 %v2202
    %2250 = vmatprep.subr.mxu0 0.0
    %2251 = vmatpush2.msra.mxu0 0.0
    %2252 = vmatprep.subr.mxu0 0.0
    %2253 = vmatpush2.msra.mxu0 0.0
    %2254 = vmatprep.subr.mxu0 0.0
    %2255 = vmatpush2.msra.mxu0 0.0
    %2256 = vmatprep.subr.mxu0 0.0
    %2257 = vmatpush2.msra.mxu0 0.0
    %2258 = vmatprep.subr.mxu0 0.0
    %2259 = vmatpush2.msra.mxu0 0.0
    %2260 = vmatprep.subr.mxu0 0.0
    %2261 = vmatpush2.msra.mxu0 0.0
    %2262 = vmatprep.subr.mxu0 0.0
    %2263 = vmatpush2.msra.mxu0 0.0
    %2264 = vmatprep.subr.mxu0 0.0
    %2265 = vmatpush2.msra.mxu0 0.0
    %2266 = vmatprep.subr.mxu0 0.0
    %2267 = vmatpush2.msra.mxu0 0.0
    %2268 = vmatprep.subr.mxu0 0.0
    %2269 = vmatpush2.msra.mxu0 0.0
    %2270 = vmatprep.subr.mxu0 0.0
    %2271 = vmatpush2.msra.mxu0 0.0
    %2272 = vmatprep.subr.mxu0 0.0
    %2273 = vmatpush2.msra.mxu0 0.0
    %2274 = vmatprep.subr.mxu0 0.0
    %2275 = vmatpush2.msra.mxu0 0.0
    %2276 = vmatprep.subr.mxu0 0.0
    %2277 = vmatpush2.msra.mxu0 0.0
    %2278 = vmatprep.subr.mxu0 0.0
    %2279 = vmatpush2.msra.mxu0 0.0
    %2280 = vmatprep.subr.mxu0 0.0
    %2281 = vmatpush2.msra.mxu0 0.0
    %2282 = vmatprep.mubr.f32.mxu0 0.0
    %2283 = vmatmul.mubr.f32.gmra.mxu0 %v1968
    %v2284 = vpop.f32.mrf.mxu0
    %v2285 = vadd.f32 0.0, %v2284
    %v2286 = vpop.f32.mrf.mxu0
    %2287 = vmatprep.mubr.f32.mxu0 0.0
    %2288 = vmatmul.mubr.f32.gmra.mxu0 %v1969
    %v2289 = vpop.f32.mrf.mxu0
    %v2290 = vadd.f32 0.0, %v2289
    %v2291 = vpop.f32.mrf.mxu0
    %2292 = vdwg.mxu0
    %v2293 = vadd.f32 %v2177, %v2285
    %v2294 = vadd.f32 %v2182, %v2290
    %v2295 = vld [vmem:[#allocation11] sm:$0x1]
    %v2297 = vlaneseq
    %v2298 = vshrl.u32 %v2297, 7
    %v2299 = vsub.s32 0, %v2298
    %v2300 = vrot.slane %v2295, %v2299
    %v2302 = vadd.f32 %v2293, %v2300
    %v2303 = vadd.f32 %v2294, %v2300
    %vm2304 = vcmp.gt.f32.partialorder %v2302, 0.0
    %vm2305 = vcmp.gt.f32.partialorder %v2303, 0.0
    %v2306 = vmul.f32 %v2302, 0.2
    %v2307 = vmul.f32 %v2303, 0.2
    %v2308 = vsel %vm2304, %v2302, %v2306
    %v2309 = vsel %vm2305, %v2303, %v2307
    %v2312 = vcombine.high %v2308, %v2308
    %v2314 = vunpack.c.l.s4 1983009808
    %v2315 = vunpack.c.0.s8 %v2314
    %v2316 = vlaneseq
    %v2317 = vshrl.u32 %v2316, 7
    %v2318 = vsub.s32 %v2315, %v2317
    %v2319 = vrot.slane %v2308, %v2318
    %v2321 = vunpack.c.l.s4 1983009808
    %v2322 = vunpack.c.0.s8 %v2321
    %v2323 = vlaneseq
    %v2324 = vshrl.u32 %v2323, 7
    %v2325 = vsub.s32 %v2322, %v2324
    %v2326 = vrot.slane %v2312, %v2325
    %v2327 = vcombine.high %v2319, %v2319
    %v2328 = vcombine.high %v2326, %v2326
    %v2329 = vcombine.high %v2309, %v2309
    %v2331 = vunpack.c.l.s4 1983009808
    %v2332 = vunpack.c.0.s8 %v2331
    %v2333 = vlaneseq
    %v2334 = vshrl.u32 %v2333, 7
    %v2335 = vsub.s32 %v2332, %v2334
    %v2336 = vrot.slane %v2309, %v2335
    %v2338 = vunpack.c.l.s4 1983009808
    %v2339 = vunpack.c.0.s8 %v2338
    %v2340 = vlaneseq
    %v2341 = vshrl.u32 %v2340, 7
    %v2342 = vsub.s32 %v2339, %v2341
    %v2343 = vrot.slane %v2329, %v2342
    %v2344 = vcombine.high %v2336, %v2336
    %v2345 = vcombine.high %v2343, %v2343
    %vm2354 = vcmask 1041408
    %v2355 = vsel %vm2354, %v2319, -inf
    %v2356 = vrot.slane %v2355, 4
    %v2357 = vmax.f32 %v2355, %v2356
    %v2358 = vrot.slane %v2357, 2
    %v2359 = vmax.f32 %v2357, %v2358
    %v2360 = vrot.slane %v2359, 1
    %v2361 = vmax.f32 %v2359, %v2360
    %v2362 = vsel %vm2354, %v2327, -inf
    %v2363 = vrot.slane %v2362, 4
    %v2364 = vmax.f32 %v2362, %v2363
    %v2365 = vrot.slane %v2364, 2
    %v2366 = vmax.f32 %v2364, %v2365
    %v2367 = vrot.slane %v2366, 1
    %v2368 = vmax.f32 %v2366, %v2367
    %v2369 = vsel %vm2354, %v2326, -inf
    %v2370 = vrot.slane %v2369, 4
    %v2371 = vmax.f32 %v2369, %v2370
    %v2372 = vrot.slane %v2371, 2
    %v2373 = vmax.f32 %v2371, %v2372
    %v2374 = vrot.slane %v2373, 1
    %v2375 = vmax.f32 %v2373, %v2374
    %v2376 = vsel %vm2354, %v2328, -inf
    %v2377 = vrot.slane %v2376, 4
    %v2378 = vmax.f32 %v2376, %v2377
    %v2379 = vrot.slane %v2378, 2
    %v2380 = vmax.f32 %v2378, %v2379
    %v2381 = vrot.slane %v2380, 1
    %v2382 = vmax.f32 %v2380, %v2381
    %v2383 = vsel %vm2354, %v2336, -inf
    %v2384 = vrot.slane %v2383, 4
    %v2385 = vmax.f32 %v2383, %v2384
    %v2386 = vrot.slane %v2385, 2
    %v2387 = vmax.f32 %v2385, %v2386
    %v2388 = vrot.slane %v2387, 1
    %v2389 = vmax.f32 %v2387, %v2388
    %v2390 = vsel %vm2354, %v2344, -inf
    %v2391 = vrot.slane %v2390, 4
    %v2392 = vmax.f32 %v2390, %v2391
    %v2393 = vrot.slane %v2392, 2
    %v2394 = vmax.f32 %v2392, %v2393
    %v2395 = vrot.slane %v2394, 1
    %v2396 = vmax.f32 %v2394, %v2395
    %v2397 = vsel %vm2354, %v2343, -inf
    %v2398 = vrot.slane %v2397, 4
    %v2399 = vmax.f32 %v2397, %v2398
    %v2400 = vrot.slane %v2399, 2
    %v2401 = vmax.f32 %v2399, %v2400
    %v2402 = vrot.slane %v2401, 1
    %v2403 = vmax.f32 %v2401, %v2402
    %v2404 = vsel %vm2354, %v2345, -inf
    %v2405 = vrot.slane %v2404, 4
    %v2406 = vmax.f32 %v2404, %v2405
    %v2407 = vrot.slane %v2406, 2
    %v2408 = vmax.f32 %v2406, %v2407
    %v2409 = vrot.slane %v2408, 1
    %v2410 = vmax.f32 %v2408, %v2409
    %v2419 = vcombine.low %v2361, %v2368
    %v2420 = vcombine.low %v2375, %v2382
    %v2422 = vunpack.c.l.s4 1983009808
    %v2423 = vunpack.c.0.s8 %v2422
    %v2424 = vlaneseq
    %v2425 = vshrl.u32 %v2424, 7
    %v2426 = vsub.s32 %v2423, %v2425
    %v2427 = vrot.slane %v2419, %v2426
    %v2429 = vunpack.c.l.s4 1983009808
    %v2430 = vunpack.c.0.s8 %v2429
    %v2431 = vlaneseq
    %v2432 = vshrl.u32 %v2431, 7
    %v2433 = vsub.s32 %v2430, %v2432
    %v2434 = vrot.slane %v2420, %v2433
    %v2435 = vcombine.low %v2427, %v2434
    %v2436 = vcombine.low %v2389, %v2396
    %v2437 = vcombine.low %v2403, %v2410
    %v2439 = vunpack.c.l.s4 1983009808
    %v2440 = vunpack.c.0.s8 %v2439
    %v2441 = vlaneseq
    %v2442 = vshrl.u32 %v2441, 7
    %v2443 = vsub.s32 %v2440, %v2442
    %v2444 = vrot.slane %v2436, %v2443
    %v2446 = vunpack.c.l.s4 1983009808
    %v2447 = vunpack.c.0.s8 %v2446
    %v2448 = vlaneseq
    %v2449 = vshrl.u32 %v2448, 7
    %v2450 = vsub.s32 %v2447, %v2449
    %v2451 = vrot.slane %v2437, %v2450
    %v2452 = vcombine.low %v2444, %v2451
    %v2453 = vrot.slane %v2435, 7
    %v2454 = vrot.slane %v2452, 7
    %v2455 = vsel %vm566, %v2453, %v2454
    %v2458 = vsel %vm566, %v2410, %v2453
    %v2459 = vsel %vm1601, 0.0, %v2458
    %v2460 = vsel %vm1602, 0.0, %v2455
    %v2461 = vrot.slane %v2435, 1
    %v2462 = vrot.slane %v2452, 1
    %v2463 = vsel %vm590, %v2461, %v2462
    %v2466 = vsel %vm590, %v2462, %v2361
    %v2467 = vsel %vm1624, 0.0, %v2463
    %v2468 = vsel %vm1625, 0.0, %v2466
    %v2469 = vld [vmem:[%s12] sm:$0xf]
    %v2470 = vld [vmem:[%s12 + $0x4] sm:$0xf]
    %v2471 = vld [vmem:[%s12 + $0x8] sm:$0xf]
    %v2472 = vld [vmem:[%s12 + $0xc] sm:$0xf]
    %v2473 = vld [vmem:[%s12 + $0x10] sm:$0xf]
    %v2474 = vld [vmem:[%s12 + $0x14] sm:$0xf]
    %v2475 = vld [vmem:[%s12 + $0x18] sm:$0xf]
    %v2476 = vld [vmem:[%s12 + $0x1c] sm:$0xf]
    %v2477 = vld [vmem:[%s12 + $0x20] sm:$0xf]
    %v2478 = vld [vmem:[%s12 + $0x24] sm:$0xf]
    %v2479 = vld [vmem:[%s12 + $0x28] sm:$0xf]
    %v2480 = vld [vmem:[%s12 + $0x2c] sm:$0xf]
    %v2481 = vld [vmem:[%s12 + $0x30] sm:$0xf]
    %v2482 = vld [vmem:[%s12 + $0x34] sm:$0xf]
    %v2483 = vld [vmem:[%s12 + $0x38] sm:$0xf]
    %v2484 = vld [vmem:[%s12 + $0x3c] sm:$0xf]
    %v2485 = vunpack.c.l.bf16 %v2469
    %v2486 = vunpack.c.l.bf16 %v2470
    %v2487 = vunpack.c.l.bf16 %v2471
    %v2488 = vunpack.c.l.bf16 %v2472
    %v2489 = vunpack.c.l.bf16 %v2473
    %v2490 = vunpack.c.l.bf16 %v2474
    %v2491 = vunpack.c.l.bf16 %v2475
    %v2492 = vunpack.c.l.bf16 %v2476
    %v2493 = vunpack.c.l.bf16 %v2477
    %v2494 = vunpack.c.l.bf16 %v2478
    %v2495 = vunpack.c.l.bf16 %v2479
    %v2496 = vunpack.c.l.bf16 %v2480
    %v2497 = vunpack.c.l.bf16 %v2481
    %v2498 = vunpack.c.l.bf16 %v2482
    %v2499 = vunpack.c.l.bf16 %v2483
    %v2500 = vunpack.c.l.bf16 %v2484
    %s2501 = scalar_lea.vmem %s12, 64
    %v2502 = vld [vmem:[%s2501] sm:$0xf]
    %v2503 = vld [vmem:[%s2501 + $0x4] sm:$0xf]
    %v2504 = vld [vmem:[%s2501 + $0x8] sm:$0xf]
    %v2505 = vld [vmem:[%s2501 + $0xc] sm:$0xf]
    %v2506 = vld [vmem:[%s2501 + $0x10] sm:$0xf]
    %v2507 = vld [vmem:[%s2501 + $0x14] sm:$0xf]
    %v2508 = vld [vmem:[%s2501 + $0x18] sm:$0xf]
    %v2509 = vld [vmem:[%s2501 + $0x1c] sm:$0xf]
    %v2510 = vld [vmem:[%s2501 + $0x20] sm:$0xf]
    %v2511 = vld [vmem:[%s2501 + $0x24] sm:$0xf]
    %v2512 = vld [vmem:[%s2501 + $0x28] sm:$0xf]
    %v2513 = vld [vmem:[%s2501 + $0x2c] sm:$0xf]
    %v2514 = vld [vmem:[%s2501 + $0x30] sm:$0xf]
    %v2515 = vld [vmem:[%s2501 + $0x34] sm:$0xf]
    %v2516 = vld [vmem:[%s2501 + $0x38] sm:$0xf]
    %v2517 = vld [vmem:[%s2501 + $0x3c] sm:$0xf]
    %v2518 = vunpack.c.l.bf16 %v2502
    %v2519 = vunpack.c.l.bf16 %v2503
    %v2520 = vunpack.c.l.bf16 %v2504
    %v2521 = vunpack.c.l.bf16 %v2505
    %v2522 = vunpack.c.l.bf16 %v2506
    %v2523 = vunpack.c.l.bf16 %v2507
    %v2524 = vunpack.c.l.bf16 %v2508
    %v2525 = vunpack.c.l.bf16 %v2509
    %v2526 = vunpack.c.l.bf16 %v2510
    %v2527 = vunpack.c.l.bf16 %v2511
    %v2528 = vunpack.c.l.bf16 %v2512
    %v2529 = vunpack.c.l.bf16 %v2513
    %v2530 = vunpack.c.l.bf16 %v2514
    %v2531 = vunpack.c.l.bf16 %v2515
    %v2532 = vunpack.c.l.bf16 %v2516
    %v2533 = vunpack.c.l.bf16 %v2517
    %2536 = vmatprep.subr.mxu0 0.0
    %2537 = vmatpush1.msra.mxu0 %v2533
    %2538 = vmatprep.subr.mxu0 0.0
    %2539 = vmatpush1.msra.mxu0 %v2532
    %2540 = vmatprep.subr.mxu0 0.0
    %2541 = vmatpush1.msra.mxu0 %v2531
    %2542 = vmatprep.subr.mxu0 0.0
    %2543 = vmatpush1.msra.mxu0 %v2530
    %2544 = vmatprep.subr.mxu0 0.0
    %2545 = vmatpush1.msra.mxu0 %v2529
    %2546 = vmatprep.subr.mxu0 0.0
    %2547 = vmatpush1.msra.mxu0 %v2528
    %2548 = vmatprep.subr.mxu0 0.0
    %2549 = vmatpush1.msra.mxu0 %v2527
    %2550 = vmatprep.subr.mxu0 0.0
    %2551 = vmatpush1.msra.mxu0 %v2526
    %2552 = vmatprep.subr.mxu0 0.0
    %2553 = vmatpush1.msra.mxu0 %v2525
    %2554 = vmatprep.subr.mxu0 0.0
    %2555 = vmatpush1.msra.mxu0 %v2524
    %2556 = vmatprep.subr.mxu0 0.0
    %2557 = vmatpush1.msra.mxu0 %v2523
    %2558 = vmatprep.subr.mxu0 0.0
    %2559 = vmatpush1.msra.mxu0 %v2522
    %2560 = vmatprep.subr.mxu0 0.0
    %2561 = vmatpush1.msra.mxu0 %v2521
    %2562 = vmatprep.subr.mxu0 0.0
    %2563 = vmatpush1.msra.mxu0 %v2520
    %2564 = vmatprep.subr.mxu0 0.0
    %2565 = vmatpush1.msra.mxu0 %v2519
    %2566 = vmatprep.subr.mxu0 0.0
    %2567 = vmatpush1.msra.mxu0 %v2518
    %2568 = vmatprep.subr.mxu0 0.0
    %2569 = vmatpush2.msra.mxu0 0.0
    %2570 = vmatprep.subr.mxu0 0.0
    %2571 = vmatpush2.msra.mxu0 0.0
    %2572 = vmatprep.subr.mxu0 0.0
    %2573 = vmatpush2.msra.mxu0 0.0
    %2574 = vmatprep.subr.mxu0 0.0
    %2575 = vmatpush2.msra.mxu0 0.0
    %2576 = vmatprep.subr.mxu0 0.0
    %2577 = vmatpush2.msra.mxu0 0.0
    %2578 = vmatprep.subr.mxu0 0.0
    %2579 = vmatpush2.msra.mxu0 0.0
    %2580 = vmatprep.subr.mxu0 0.0
    %2581 = vmatpush2.msra.mxu0 0.0
    %2582 = vmatprep.subr.mxu0 0.0
    %2583 = vmatpush2.msra.mxu0 0.0
    %2584 = vmatprep.subr.mxu0 0.0
    %2585 = vmatpush2.msra.mxu0 0.0
    %2586 = vmatprep.subr.mxu0 0.0
    %2587 = vmatpush2.msra.mxu0 0.0
    %2588 = vmatprep.subr.mxu0 0.0
    %2589 = vmatpush2.msra.mxu0 0.0
    %2590 = vmatprep.subr.mxu0 0.0
    %2591 = vmatpush2.msra.mxu0 0.0
    %2592 = vmatprep.subr.mxu0 0.0
    %2593 = vmatpush2.msra.mxu0 0.0
    %2594 = vmatprep.subr.mxu0 0.0
    %2595 = vmatpush2.msra.mxu0 0.0
    %2596 = vmatprep.subr.mxu0 0.0
    %2597 = vmatpush2.msra.mxu0 0.0
    %2598 = vmatprep.subr.mxu0 0.0
    %2599 = vmatpush2.msra.mxu0 0.0
    %2600 = vmatprep.mubr.f32.mxu0 0.0
    %2601 = vmatmul.mubr.f32.gmra.mxu0 %v2435
    %v2602 = vpop.f32.mrf.mxu0
    %v2603 = vadd.f32 0.0, %v2602
    %v2604 = vpop.f32.mrf.mxu0
    %2605 = vmatprep.mubr.f32.mxu0 0.0
    %2606 = vmatmul.mubr.f32.gmra.mxu0 %v2452
    %v2607 = vpop.f32.mrf.mxu0
    %v2608 = vadd.f32 0.0, %v2607
    %v2609 = vpop.f32.mrf.mxu0
    %2610 = vdwg.mxu0
    %2611 = vmatprep.subr.mxu0 0.0
    %2612 = vmatpush1.msra.mxu0 %v2500
    %2613 = vmatprep.subr.mxu0 0.0
    %2614 = vmatpush1.msra.mxu0 %v2499
    %2615 = vmatprep.subr.mxu0 0.0
    %2616 = vmatpush1.msra.mxu0 %v2498
    %2617 = vmatprep.subr.mxu0 0.0
    %2618 = vmatpush1.msra.mxu0 %v2497
    %2619 = vmatprep.subr.mxu0 0.0
    %2620 = vmatpush1.msra.mxu0 %v2496
    %2621 = vmatprep.subr.mxu0 0.0
    %2622 = vmatpush1.msra.mxu0 %v2495
    %2623 = vmatprep.subr.mxu0 0.0
    %2624 = vmatpush1.msra.mxu0 %v2494
    %2625 = vmatprep.subr.mxu0 0.0
    %2626 = vmatpush1.msra.mxu0 %v2493
    %2627 = vmatprep.subr.mxu0 0.0
    %2628 = vmatpush1.msra.mxu0 %v2492
    %2629 = vmatprep.subr.mxu0 0.0
    %2630 = vmatpush1.msra.mxu0 %v2491
    %2631 = vmatprep.subr.mxu0 0.0
    %2632 = vmatpush1.msra.mxu0 %v2490
    %2633 = vmatprep.subr.mxu0 0.0
    %2634 = vmatpush1.msra.mxu0 %v2489
    %2635 = vmatprep.subr.mxu0 0.0
    %2636 = vmatpush1.msra.mxu0 %v2488
    %2637 = vmatprep.subr.mxu0 0.0
    %2638 = vmatpush1.msra.mxu0 %v2487
    %2639 = vmatprep.subr.mxu0 0.0
    %2640 = vmatpush1.msra.mxu0 %v2486
    %2641 = vmatprep.subr.mxu0 0.0
    %2642 = vmatpush1.msra.mxu0 %v2485
    %2643 = vmatprep.subr.mxu0 0.0
    %2644 = vmatpush2.msra.mxu0 0.0
    %2645 = vmatprep.subr.mxu0 0.0
    %2646 = vmatpush2.msra.mxu0 0.0
    %2647 = vmatprep.subr.mxu0 0.0
    %2648 = vmatpush2.msra.mxu0 0.0
    %2649 = vmatprep.subr.mxu0 0.0
    %2650 = vmatpush2.msra.mxu0 0.0
    %2651 = vmatprep.subr.mxu0 0.0
    %2652 = vmatpush2.msra.mxu0 0.0
    %2653 = vmatprep.subr.mxu0 0.0
    %2654 = vmatpush2.msra.mxu0 0.0
    %2655 = vmatprep.subr.mxu0 0.0
    %2656 = vmatpush2.msra.mxu0 0.0
    %2657 = vmatprep.subr.mxu0 0.0
    %2658 = vmatpush2.msra.mxu0 0.0
    %2659 = vmatprep.subr.mxu0 0.0
    %2660 = vmatpush2.msra.mxu0 0.0
    %2661 = vmatprep.subr.mxu0 0.0
    %2662 = vmatpush2.msra.mxu0 0.0
    %2663 = vmatprep.subr.mxu0 0.0
    %2664 = vmatpush2.msra.mxu0 0.0
    %2665 = vmatprep.subr.mxu0 0.0
    %2666 = vmatpush2.msra.mxu0 0.0
    %2667 = vmatprep.subr.mxu0 0.0
    %2668 = vmatpush2.msra.mxu0 0.0
    %2669 = vmatprep.subr.mxu0 0.0
    %2670 = vmatpush2.msra.mxu0 0.0
    %2671 = vmatprep.subr.mxu0 0.0
    %2672 = vmatpush2.msra.mxu0 0.0
    %2673 = vmatprep.subr.mxu0 0.0
    %2674 = vmatpush2.msra.mxu0 0.0
    %2675 = vmatprep.mubr.f32.mxu0 0.0
    %2676 = vmatmul.mubr.f32.gmra.mxu0 %v2459
    %v2677 = vpop.f32.mrf.mxu0
    %v2678 = vadd.f32 %v2603, %v2677
    %v2679 = vpop.f32.mrf.mxu0
    %2680 = vmatprep.mubr.f32.mxu0 0.0
    %2681 = vmatmul.mubr.f32.gmra.mxu0 %v2460
    %v2682 = vpop.f32.mrf.mxu0
    %v2683 = vadd.f32 %v2608, %v2682
    %v2684 = vpop.f32.mrf.mxu0
    %2685 = vdwg.mxu0
    %s2686 = scalar_lea.vmem %s12, 128
    %v2687 = vld [vmem:[%s2686] sm:$0xf]
    %v2688 = vld [vmem:[%s2686 + $0x4] sm:$0xf]
    %v2689 = vld [vmem:[%s2686 + $0x8] sm:$0xf]
    %v2690 = vld [vmem:[%s2686 + $0xc] sm:$0xf]
    %v2691 = vld [vmem:[%s2686 + $0x10] sm:$0xf]
    %v2692 = vld [vmem:[%s2686 + $0x14] sm:$0xf]
    %v2693 = vld [vmem:[%s2686 + $0x18] sm:$0xf]
    %v2694 = vld [vmem:[%s2686 + $0x1c] sm:$0xf]
    %v2695 = vld [vmem:[%s2686 + $0x20] sm:$0xf]
    %v2696 = vld [vmem:[%s2686 + $0x24] sm:$0xf]
    %v2697 = vld [vmem:[%s2686 + $0x28] sm:$0xf]
    %v2698 = vld [vmem:[%s2686 + $0x2c] sm:$0xf]
    %v2699 = vld [vmem:[%s2686 + $0x30] sm:$0xf]
    %v2700 = vld [vmem:[%s2686 + $0x34] sm:$0xf]
    %v2701 = vld [vmem:[%s2686 + $0x38] sm:$0xf]
    %v2702 = vld [vmem:[%s2686 + $0x3c] sm:$0xf]
    %v2703 = vunpack.c.l.bf16 %v2687
    %v2704 = vunpack.c.l.bf16 %v2688
    %v2705 = vunpack.c.l.bf16 %v2689
    %v2706 = vunpack.c.l.bf16 %v2690
    %v2707 = vunpack.c.l.bf16 %v2691
    %v2708 = vunpack.c.l.bf16 %v2692
    %v2709 = vunpack.c.l.bf16 %v2693
    %v2710 = vunpack.c.l.bf16 %v2694
    %v2711 = vunpack.c.l.bf16 %v2695
    %v2712 = vunpack.c.l.bf16 %v2696
    %v2713 = vunpack.c.l.bf16 %v2697
    %v2714 = vunpack.c.l.bf16 %v2698
    %v2715 = vunpack.c.l.bf16 %v2699
    %v2716 = vunpack.c.l.bf16 %v2700
    %v2717 = vunpack.c.l.bf16 %v2701
    %v2718 = vunpack.c.l.bf16 %v2702
    %2719 = vmatprep.subr.mxu0 0.0
    %2720 = vmatpush1.msra.mxu0 %v2718
    %2721 = vmatprep.subr.mxu0 0.0
    %2722 = vmatpush1.msra.mxu0 %v2717
    %2723 = vmatprep.subr.mxu0 0.0
    %2724 = vmatpush1.msra.mxu0 %v2716
    %2725 = vmatprep.subr.mxu0 0.0
    %2726 = vmatpush1.msra.mxu0 %v2715
    %2727 = vmatprep.subr.mxu0 0.0
    %2728 = vmatpush1.msra.mxu0 %v2714
    %2729 = vmatprep.subr.mxu0 0.0
    %2730 = vmatpush1.msra.mxu0 %v2713
    %2731 = vmatprep.subr.mxu0 0.0
    %2732 = vmatpush1.msra.mxu0 %v2712
    %2733 = vmatprep.subr.mxu0 0.0
    %2734 = vmatpush1.msra.mxu0 %v2711
    %2735 = vmatprep.subr.mxu0 0.0
    %2736 = vmatpush1.msra.mxu0 %v2710
    %2737 = vmatprep.subr.mxu0 0.0
    %2738 = vmatpush1.msra.mxu0 %v2709
    %2739 = vmatprep.subr.mxu0 0.0
    %2740 = vmatpush1.msra.mxu0 %v2708
    %2741 = vmatprep.subr.mxu0 0.0
    %2742 = vmatpush1.msra.mxu0 %v2707
    %2743 = vmatprep.subr.mxu0 0.0
    %2744 = vmatpush1.msra.mxu0 %v2706
    %2745 = vmatprep.subr.mxu0 0.0
    %2746 = vmatpush1.msra.mxu0 %v2705
    %2747 = vmatprep.subr.mxu0 0.0
    %2748 = vmatpush1.msra.mxu0 %v2704
    %2749 = vmatprep.subr.mxu0 0.0
    %2750 = vmatpush1.msra.mxu0 %v2703
    %2751 = vmatprep.subr.mxu0 0.0
    %2752 = vmatpush2.msra.mxu0 0.0
    %2753 = vmatprep.subr.mxu0 0.0
    %2754 = vmatpush2.msra.mxu0 0.0
    %2755 = vmatprep.subr.mxu0 0.0
    %2756 = vmatpush2.msra.mxu0 0.0
    %2757 = vmatprep.subr.mxu0 0.0
    %2758 = vmatpush2.msra.mxu0 0.0
    %2759 = vmatprep.subr.mxu0 0.0
    %2760 = vmatpush2.msra.mxu0 0.0
    %2761 = vmatprep.subr.mxu0 0.0
    %2762 = vmatpush2.msra.mxu0 0.0
    %2763 = vmatprep.subr.mxu0 0.0
    %2764 = vmatpush2.msra.mxu0 0.0
    %2765 = vmatprep.subr.mxu0 0.0
    %2766 = vmatpush2.msra.mxu0 0.0
    %2767 = vmatprep.subr.mxu0 0.0
    %2768 = vmatpush2.msra.mxu0 0.0
    %2769 = vmatprep.subr.mxu0 0.0
    %2770 = vmatpush2.msra.mxu0 0.0
    %2771 = vmatprep.subr.mxu0 0.0
    %2772 = vmatpush2.msra.mxu0 0.0
    %2773 = vmatprep.subr.mxu0 0.0
    %2774 = vmatpush2.msra.mxu0 0.0
    %2775 = vmatprep.subr.mxu0 0.0
    %2776 = vmatpush2.msra.mxu0 0.0
    %2777 = vmatprep.subr.mxu0 0.0
    %2778 = vmatpush2.msra.mxu0 0.0
    %2779 = vmatprep.subr.mxu0 0.0
    %2780 = vmatpush2.msra.mxu0 0.0
    %2781 = vmatprep.subr.mxu0 0.0
    %2782 = vmatpush2.msra.mxu0 0.0
    %2783 = vmatprep.mubr.f32.mxu0 0.0
    %2784 = vmatmul.mubr.f32.gmra.mxu0 %v2467
    %v2785 = vpop.f32.mrf.mxu0
    %v2786 = vadd.f32 0.0, %v2785
    %v2787 = vpop.f32.mrf.mxu0
    %2788 = vmatprep.mubr.f32.mxu0 0.0
    %2789 = vmatmul.mubr.f32.gmra.mxu0 %v2468
    %v2790 = vpop.f32.mrf.mxu0
    %v2791 = vadd.f32 0.0, %v2790
    %v2792 = vpop.f32.mrf.mxu0
    %2793 = vdwg.mxu0
    %v2794 = vadd.f32 %v2678, %v2786
    %v2795 = vadd.f32 %v2683, %v2791
    %v2796 = vld [vmem:[%s13] sm:$0x1]
    %v2798 = vlaneseq
    %v2799 = vshrl.u32 %v2798, 7
    %v2800 = vsub.s32 0, %v2799
    %v2801 = vrot.slane %v2796, %v2800
    %v2803 = vadd.f32 %v2794, %v2801
    %v2804 = vadd.f32 %v2795, %v2801
    %v2806 = vrot.slane %v2804, 7
    %v2809 = vrot.slane %v2803, 7
    %v2810 = vsel %vm566, %v2809, %v2806
    %v2813 = vsel %vm566, %v2806, %v2809
    %v2814 = vsel %vm1601, 0.0, %v2813
    %v2815 = vsel %vm1602, 0.0, %v2810
    %v2816 = vrot.slane %v2803, 1
    %v2817 = vrot.slane %v2804, 1
    %v2818 = vsel %vm590, %v2816, %v2817
    %v2822 = vsel %vm590, %v2817, %v2816
    %v2823 = vsel %vm1624, 0.0, %v2818
    %v2824 = vsel %vm1625, 0.0, %v2822
    %v2825 = vld [vmem:[%s14] sm:$0xf]
    %v2826 = vld [vmem:[%s14 + $0x4] sm:$0xf]
    %v2827 = vld [vmem:[%s14 + $0x8] sm:$0xf]
    %v2828 = vld [vmem:[%s14 + $0xc] sm:$0xf]
    %v2829 = vld [vmem:[%s14 + $0x10] sm:$0xf]
    %v2830 = vld [vmem:[%s14 + $0x14] sm:$0xf]
    %v2831 = vld [vmem:[%s14 + $0x18] sm:$0xf]
    %v2832 = vld [vmem:[%s14 + $0x1c] sm:$0xf]
    %v2833 = vunpack.c.l.bf16 %v2825
    %v2834 = vunpack.c.l.bf16 %v2826
    %v2835 = vunpack.c.l.bf16 %v2827
    %v2836 = vunpack.c.l.bf16 %v2828
    %v2837 = vunpack.c.l.bf16 %v2829
    %v2838 = vunpack.c.l.bf16 %v2830
    %v2839 = vunpack.c.l.bf16 %v2831
    %v2840 = vunpack.c.l.bf16 %v2832
    %s2841 = scalar_lea.vmem %s14, 32
    %v2842 = vld [vmem:[%s2841] sm:$0xf]
    %v2843 = vld [vmem:[%s2841 + $0x4] sm:$0xf]
    %v2844 = vld [vmem:[%s2841 + $0x8] sm:$0xf]
    %v2845 = vld [vmem:[%s2841 + $0xc] sm:$0xf]
    %v2846 = vld [vmem:[%s2841 + $0x10] sm:$0xf]
    %v2847 = vld [vmem:[%s2841 + $0x14] sm:$0xf]
    %v2848 = vld [vmem:[%s2841 + $0x18] sm:$0xf]
    %v2849 = vld [vmem:[%s2841 + $0x1c] sm:$0xf]
    %v2850 = vunpack.c.l.bf16 %v2842
    %v2851 = vunpack.c.l.bf16 %v2843
    %v2852 = vunpack.c.l.bf16 %v2844
    %v2853 = vunpack.c.l.bf16 %v2845
    %v2854 = vunpack.c.l.bf16 %v2846
    %v2855 = vunpack.c.l.bf16 %v2847
    %v2856 = vunpack.c.l.bf16 %v2848
    %v2857 = vunpack.c.l.bf16 %v2849
    %v2858 = vsel %vm1028, %v2803, 0
    %v2860 = vsel %vm1028, %v2804, 0
    %2862 = vmatprep.subr.mxu0 0.0
    %2863 = vmatpush1.msra.mxu0 0.0
    %2864 = vmatprep.subr.mxu0 0.0
    %2865 = vmatpush1.msra.mxu0 0.0
    %2866 = vmatprep.subr.mxu0 0.0
    %2867 = vmatpush1.msra.mxu0 0.0
    %2868 = vmatprep.subr.mxu0 0.0
    %2869 = vmatpush1.msra.mxu0 0.0
    %2870 = vmatprep.subr.mxu0 0.0
    %2871 = vmatpush1.msra.mxu0 0.0
    %2872 = vmatprep.subr.mxu0 0.0
    %2873 = vmatpush1.msra.mxu0 0.0
    %2874 = vmatprep.subr.mxu0 0.0
    %2875 = vmatpush1.msra.mxu0 0.0
    %2876 = vmatprep.subr.mxu0 0.0
    %2877 = vmatpush1.msra.mxu0 0.0
    %2878 = vmatprep.subr.mxu0 0.0
    %2879 = vmatpush1.msra.mxu0 %v2857
    %2880 = vmatprep.subr.mxu0 0.0
    %2881 = vmatpush1.msra.mxu0 %v2856
    %2882 = vmatprep.subr.mxu0 0.0
    %2883 = vmatpush1.msra.mxu0 %v2855
    %2884 = vmatprep.subr.mxu0 0.0
    %2885 = vmatpush1.msra.mxu0 %v2854
    %2886 = vmatprep.subr.mxu0 0.0
    %2887 = vmatpush1.msra.mxu0 %v2853
    %2888 = vmatprep.subr.mxu0 0.0
    %2889 = vmatpush1.msra.mxu0 %v2852
    %2890 = vmatprep.subr.mxu0 0.0
    %2891 = vmatpush1.msra.mxu0 %v2851
    %2892 = vmatprep.subr.mxu0 0.0
    %2893 = vmatpush1.msra.mxu0 %v2850
    %2894 = vmatprep.subr.mxu0 0.0
    %2895 = vmatpush2.msra.mxu0 0.0
    %2896 = vmatprep.subr.mxu0 0.0
    %2897 = vmatpush2.msra.mxu0 0.0
    %2898 = vmatprep.subr.mxu0 0.0
    %2899 = vmatpush2.msra.mxu0 0.0
    %2900 = vmatprep.subr.mxu0 0.0
    %2901 = vmatpush2.msra.mxu0 0.0
    %2902 = vmatprep.subr.mxu0 0.0
    %2903 = vmatpush2.msra.mxu0 0.0
    %2904 = vmatprep.subr.mxu0 0.0
    %2905 = vmatpush2.msra.mxu0 0.0
    %2906 = vmatprep.subr.mxu0 0.0
    %2907 = vmatpush2.msra.mxu0 0.0
    %2908 = vmatprep.subr.mxu0 0.0
    %2909 = vmatpush2.msra.mxu0 0.0
    %2910 = vmatprep.subr.mxu0 0.0
    %2911 = vmatpush2.msra.mxu0 0.0
    %2912 = vmatprep.subr.mxu0 0.0
    %2913 = vmatpush2.msra.mxu0 0.0
    %2914 = vmatprep.subr.mxu0 0.0
    %2915 = vmatpush2.msra.mxu0 0.0
    %2916 = vmatprep.subr.mxu0 0.0
    %2917 = vmatpush2.msra.mxu0 0.0
    %2918 = vmatprep.subr.mxu0 0.0
    %2919 = vmatpush2.msra.mxu0 0.0
    %2920 = vmatprep.subr.mxu0 0.0
    %2921 = vmatpush2.msra.mxu0 0.0
    %2922 = vmatprep.subr.mxu0 0.0
    %2923 = vmatpush2.msra.mxu0 0.0
    %2924 = vmatprep.subr.mxu0 0.0
    %2925 = vmatpush2.msra.mxu0 0.0
    %2926 = vmatprep.mubr.f32.mxu0 0.0
    %2927 = vmatmul.mubr.f32.gmra.mxu0 %v2858
    %v2928 = vpop.f32.mrf.mxu0
    %v2929 = vadd.f32 0.0, %v2928
    %v2930 = vpop.f32.mrf.mxu0
    %2931 = vmatprep.mubr.f32.mxu0 0.0
    %2932 = vmatmul.mubr.f32.gmra.mxu0 %v2860
    %v2933 = vpop.f32.mrf.mxu0
    %v2934 = vadd.f32 0.0, %v2933
    %v2935 = vpop.f32.mrf.mxu0
    %2936 = vdwg.mxu0
    %v2938 = vsel %vm1028, %v2814, 0
    %v2941 = vsel %vm1028, %v2815, 0
    %2943 = vmatprep.subr.mxu0 0.0
    %2944 = vmatpush1.msra.mxu0 0.0
    %2945 = vmatprep.subr.mxu0 0.0
    %2946 = vmatpush1.msra.mxu0 0.0
    %2947 = vmatprep.subr.mxu0 0.0
    %2948 = vmatpush1.msra.mxu0 0.0
    %2949 = vmatprep.subr.mxu0 0.0
    %2950 = vmatpush1.msra.mxu0 0.0
    %2951 = vmatprep.subr.mxu0 0.0
    %2952 = vmatpush1.msra.mxu0 0.0
    %2953 = vmatprep.subr.mxu0 0.0
    %2954 = vmatpush1.msra.mxu0 0.0
    %2955 = vmatprep.subr.mxu0 0.0
    %2956 = vmatpush1.msra.mxu0 0.0
    %2957 = vmatprep.subr.mxu0 0.0
    %2958 = vmatpush1.msra.mxu0 0.0
    %2959 = vmatprep.subr.mxu0 0.0
    %2960 = vmatpush1.msra.mxu0 %v2840
    %2961 = vmatprep.subr.mxu0 0.0
    %2962 = vmatpush1.msra.mxu0 %v2839
    %2963 = vmatprep.subr.mxu0 0.0
    %2964 = vmatpush1.msra.mxu0 %v2838
    %2965 = vmatprep.subr.mxu0 0.0
    %2966 = vmatpush1.msra.mxu0 %v2837
    %2967 = vmatprep.subr.mxu0 0.0
    %2968 = vmatpush1.msra.mxu0 %v2836
    %2969 = vmatprep.subr.mxu0 0.0
    %2970 = vmatpush1.msra.mxu0 %v2835
    %2971 = vmatprep.subr.mxu0 0.0
    %2972 = vmatpush1.msra.mxu0 %v2834
    %2973 = vmatprep.subr.mxu0 0.0
    %2974 = vmatpush1.msra.mxu0 %v2833
    %2975 = vmatprep.subr.mxu0 0.0
    %2976 = vmatpush2.msra.mxu0 0.0
    %2977 = vmatprep.subr.mxu0 0.0
    %2978 = vmatpush2.msra.mxu0 0.0
    %2979 = vmatprep.subr.mxu0 0.0
    %2980 = vmatpush2.msra.mxu0 0.0
    %2981 = vmatprep.subr.mxu0 0.0
    %2982 = vmatpush2.msra.mxu0 0.0
    %2983 = vmatprep.subr.mxu0 0.0
    %2984 = vmatpush2.msra.mxu0 0.0
    %2985 = vmatprep.subr.mxu0 0.0
    %2986 = vmatpush2.msra.mxu0 0.0
    %2987 = vmatprep.subr.mxu0 0.0
    %2988 = vmatpush2.msra.mxu0 0.0
    %2989 = vmatprep.subr.mxu0 0.0
    %2990 = vmatpush2.msra.mxu0 0.0
    %2991 = vmatprep.subr.mxu0 0.0
    %2992 = vmatpush2.msra.mxu0 0.0
    %2993 = vmatprep.subr.mxu0 0.0
    %2994 = vmatpush2.msra.mxu0 0.0
    %2995 = vmatprep.subr.mxu0 0.0
    %2996 = vmatpush2.msra.mxu0 0.0
    %2997 = vmatprep.subr.mxu0 0.0
    %2998 = vmatpush2.msra.mxu0 0.0
    %2999 = vmatprep.subr.mxu0 0.0
    %3000 = vmatpush2.msra.mxu0 0.0
    %3001 = vmatprep.subr.mxu0 0.0
    %3002 = vmatpush2.msra.mxu0 0.0
    %3003 = vmatprep.subr.mxu0 0.0
    %3004 = vmatpush2.msra.mxu0 0.0
    %3005 = vmatprep.subr.mxu0 0.0
    %3006 = vmatpush2.msra.mxu0 0.0
    %3007 = vmatprep.mubr.f32.mxu0 0.0
    %3008 = vmatmul.mubr.f32.gmra.mxu0 %v2938
    %v3009 = vpop.f32.mrf.mxu0
    %v3010 = vadd.f32 %v2929, %v3009
    %v3011 = vpop.f32.mrf.mxu0
    %3012 = vmatprep.mubr.f32.mxu0 0.0
    %3013 = vmatmul.mubr.f32.gmra.mxu0 %v2941
    %v3014 = vpop.f32.mrf.mxu0
    %v3015 = vadd.f32 %v2934, %v3014
    %v3016 = vpop.f32.mrf.mxu0
    %3017 = vdwg.mxu0
    %s3018 = scalar_lea.vmem %s14, 64
    %v3019 = vld [vmem:[%s3018] sm:$0xf]
    %v3020 = vld [vmem:[%s3018 + $0x4] sm:$0xf]
    %v3021 = vld [vmem:[%s3018 + $0x8] sm:$0xf]
    %v3022 = vld [vmem:[%s3018 + $0xc] sm:$0xf]
    %v3023 = vld [vmem:[%s3018 + $0x10] sm:$0xf]
    %v3024 = vld [vmem:[%s3018 + $0x14] sm:$0xf]
    %v3025 = vld [vmem:[%s3018 + $0x18] sm:$0xf]
    %v3026 = vld [vmem:[%s3018 + $0x1c] sm:$0xf]
    %v3027 = vunpack.c.l.bf16 %v3019
    %v3028 = vunpack.c.l.bf16 %v3020
    %v3029 = vunpack.c.l.bf16 %v3021
    %v3030 = vunpack.c.l.bf16 %v3022
    %v3031 = vunpack.c.l.bf16 %v3023
    %v3032 = vunpack.c.l.bf16 %v3024
    %v3033 = vunpack.c.l.bf16 %v3025
    %v3034 = vunpack.c.l.bf16 %v3026
    %v3036 = vsel %vm1028, %v2823, 0
    %v3039 = vsel %vm1028, %v2824, 0
    %3041 = vmatprep.subr.mxu0 0.0
    %3042 = vmatpush1.msra.mxu0 0.0
    %3043 = vmatprep.subr.mxu0 0.0
    %3044 = vmatpush1.msra.mxu0 0.0
    %3045 = vmatprep.subr.mxu0 0.0
    %3046 = vmatpush1.msra.mxu0 0.0
    %3047 = vmatprep.subr.mxu0 0.0
    %3048 = vmatpush1.msra.mxu0 0.0
    %3049 = vmatprep.subr.mxu0 0.0
    %3050 = vmatpush1.msra.mxu0 0.0
    %3051 = vmatprep.subr.mxu0 0.0
    %3052 = vmatpush1.msra.mxu0 0.0
    %3053 = vmatprep.subr.mxu0 0.0
    %3054 = vmatpush1.msra.mxu0 0.0
    %3055 = vmatprep.subr.mxu0 0.0
    %3056 = vmatpush1.msra.mxu0 0.0
    %3057 = vmatprep.subr.mxu0 0.0
    %3058 = vmatpush1.msra.mxu0 %v3034
    %3059 = vmatprep.subr.mxu0 0.0
    %3060 = vmatpush1.msra.mxu0 %v3033
    %3061 = vmatprep.subr.mxu0 0.0
    %3062 = vmatpush1.msra.mxu0 %v3032
    %3063 = vmatprep.subr.mxu0 0.0
    %3064 = vmatpush1.msra.mxu0 %v3031
    %3065 = vmatprep.subr.mxu0 0.0
    %3066 = vmatpush1.msra.mxu0 %v3030
    %3067 = vmatprep.subr.mxu0 0.0
    %3068 = vmatpush1.msra.mxu0 %v3029
    %3069 = vmatprep.subr.mxu0 0.0
    %3070 = vmatpush1.msra.mxu0 %v3028
    %3071 = vmatprep.subr.mxu0 0.0
    %3072 = vmatpush1.msra.mxu0 %v3027
    %3073 = vmatprep.subr.mxu0 0.0
    %3074 = vmatpush2.msra.mxu0 0.0
    %3075 = vmatprep.subr.mxu0 0.0
    %3076 = vmatpush2.msra.mxu0 0.0
    %3077 = vmatprep.subr.mxu0 0.0
    %3078 = vmatpush2.msra.mxu0 0.0
    %3079 = vmatprep.subr.mxu0 0.0
    %3080 = vmatpush2.msra.mxu0 0.0
    %3081 = vmatprep.subr.mxu0 0.0
    %3082 = vmatpush2.msra.mxu0 0.0
    %3083 = vmatprep.subr.mxu0 0.0
    %3084 = vmatpush2.msra.mxu0 0.0
    %3085 = vmatprep.subr.mxu0 0.0
    %3086 = vmatpush2.msra.mxu0 0.0
    %3087 = vmatprep.subr.mxu0 0.0
    %3088 = vmatpush2.msra.mxu0 0.0
    %3089 = vmatprep.subr.mxu0 0.0
    %3090 = vmatpush2.msra.mxu0 0.0
    %3091 = vmatprep.subr.mxu0 0.0
    %3092 = vmatpush2.msra.mxu0 0.0
    %3093 = vmatprep.subr.mxu0 0.0
    %3094 = vmatpush2.msra.mxu0 0.0
    %3095 = vmatprep.subr.mxu0 0.0
    %3096 = vmatpush2.msra.mxu0 0.0
    %3097 = vmatprep.subr.mxu0 0.0
    %3098 = vmatpush2.msra.mxu0 0.0
    %3099 = vmatprep.subr.mxu0 0.0
    %3100 = vmatpush2.msra.mxu0 0.0
    %3101 = vmatprep.subr.mxu0 0.0
    %3102 = vmatpush2.msra.mxu0 0.0
    %3103 = vmatprep.subr.mxu0 0.0
    %3104 = vmatpush2.msra.mxu0 0.0
    %3105 = vmatprep.mubr.f32.mxu0 0.0
    %3106 = vmatmul.mubr.f32.gmra.mxu0 %v3036
    %v3107 = vpop.f32.mrf.mxu0
    %v3108 = vadd.f32 0.0, %v3107
    %v3109 = vpop.f32.mrf.mxu0
    %3110 = vmatprep.mubr.f32.mxu0 0.0
    %3111 = vmatmul.mubr.f32.gmra.mxu0 %v3039
    %v3112 = vpop.f32.mrf.mxu0
    %v3113 = vadd.f32 0.0, %v3112
    %v3114 = vpop.f32.mrf.mxu0
    %3115 = vdwg.mxu0
    %v3116 = vadd.f32 %v3010, %v3108
    %v3117 = vadd.f32 %v3015, %v3113
    %v3118 = vld [vmem:[#allocation13] sm:$0xf]
    %v3119 = vld [vmem:[#allocation13 + $0x4] sm:$0xf]
    %v3120 = vld [vmem:[#allocation13 + $0x8] sm:$0xf]
    %v3121 = vld [vmem:[#allocation13 + $0xc] sm:$0xf]
    %v3122 = vld [vmem:[#allocation13 + $0x10] sm:$0xf]
    %v3123 = vld [vmem:[#allocation13 + $0x14] sm:$0xf]
    %v3124 = vld [vmem:[#allocation13 + $0x18] sm:$0xf]
    %v3125 = vld [vmem:[#allocation13 + $0x1c] sm:$0xf]
    %v3126 = vunpack.c.l.bf16 %v3118
    %v3127 = vunpack.c.l.bf16 %v3119
    %v3128 = vunpack.c.l.bf16 %v3120
    %v3129 = vunpack.c.l.bf16 %v3121
    %v3130 = vunpack.c.l.bf16 %v3122
    %v3131 = vunpack.c.l.bf16 %v3123
    %v3132 = vunpack.c.l.bf16 %v3124
    %v3133 = vunpack.c.l.bf16 %v3125
    %s3134 = scalar_lea.vmem [#allocation13], 32
    %v3135 = vld [vmem:[%s3134] sm:$0xf]
    %v3136 = vld [vmem:[%s3134 + $0x4] sm:$0xf]
    %v3137 = vld [vmem:[%s3134 + $0x8] sm:$0xf]
    %v3138 = vld [vmem:[%s3134 + $0xc] sm:$0xf]
    %v3139 = vld [vmem:[%s3134 + $0x10] sm:$0xf]
    %v3140 = vld [vmem:[%s3134 + $0x14] sm:$0xf]
    %v3141 = vld [vmem:[%s3134 + $0x18] sm:$0xf]
    %v3142 = vld [vmem:[%s3134 + $0x1c] sm:$0xf]
    %v3143 = vunpack.c.l.bf16 %v3135
    %v3144 = vunpack.c.l.bf16 %v3136
    %v3145 = vunpack.c.l.bf16 %v3137
    %v3146 = vunpack.c.l.bf16 %v3138
    %v3147 = vunpack.c.l.bf16 %v3139
    %v3148 = vunpack.c.l.bf16 %v3140
    %v3149 = vunpack.c.l.bf16 %v3141
    %v3150 = vunpack.c.l.bf16 %v3142
    %3151 = vmatprep.subr.mxu0 0.0
    %3152 = vmatpush1.msra.mxu0 0.0
    %3153 = vmatprep.subr.mxu0 0.0
    %3154 = vmatpush1.msra.mxu0 0.0
    %3155 = vmatprep.subr.mxu0 0.0
    %3156 = vmatpush1.msra.mxu0 0.0
    %3157 = vmatprep.subr.mxu0 0.0
    %3158 = vmatpush1.msra.mxu0 0.0
    %3159 = vmatprep.subr.mxu0 0.0
    %3160 = vmatpush1.msra.mxu0 0.0
    %3161 = vmatprep.subr.mxu0 0.0
    %3162 = vmatpush1.msra.mxu0 0.0
    %3163 = vmatprep.subr.mxu0 0.0
    %3164 = vmatpush1.msra.mxu0 0.0
    %3165 = vmatprep.subr.mxu0 0.0
    %3166 = vmatpush1.msra.mxu0 0.0
    %3167 = vmatprep.subr.mxu0 0.0
    %3168 = vmatpush1.msra.mxu0 %v3150
    %3169 = vmatprep.subr.mxu0 0.0
    %3170 = vmatpush1.msra.mxu0 %v3149
    %3171 = vmatprep.subr.mxu0 0.0
    %3172 = vmatpush1.msra.mxu0 %v3148
    %3173 = vmatprep.subr.mxu0 0.0
    %3174 = vmatpush1.msra.mxu0 %v3147
    %3175 = vmatprep.subr.mxu0 0.0
    %3176 = vmatpush1.msra.mxu0 %v3146
    %3177 = vmatprep.subr.mxu0 0.0
    %3178 = vmatpush1.msra.mxu0 %v3145
    %3179 = vmatprep.subr.mxu0 0.0
    %3180 = vmatpush1.msra.mxu0 %v3144
    %3181 = vmatprep.subr.mxu0 0.0
    %3182 = vmatpush1.msra.mxu0 %v3143
    %3183 = vmatprep.subr.mxu0 0.0
    %3184 = vmatpush2.msra.mxu0 0.0
    %3185 = vmatprep.subr.mxu0 0.0
    %3186 = vmatpush2.msra.mxu0 0.0
    %3187 = vmatprep.subr.mxu0 0.0
    %3188 = vmatpush2.msra.mxu0 0.0
    %3189 = vmatprep.subr.mxu0 0.0
    %3190 = vmatpush2.msra.mxu0 0.0
    %3191 = vmatprep.subr.mxu0 0.0
    %3192 = vmatpush2.msra.mxu0 0.0
    %3193 = vmatprep.subr.mxu0 0.0
    %3194 = vmatpush2.msra.mxu0 0.0
    %3195 = vmatprep.subr.mxu0 0.0
    %3196 = vmatpush2.msra.mxu0 0.0
    %3197 = vmatprep.subr.mxu0 0.0
    %3198 = vmatpush2.msra.mxu0 0.0
    %3199 = vmatprep.subr.mxu0 0.0
    %3200 = vmatpush2.msra.mxu0 0.0
    %3201 = vmatprep.subr.mxu0 0.0
    %3202 = vmatpush2.msra.mxu0 0.0
    %3203 = vmatprep.subr.mxu0 0.0
    %3204 = vmatpush2.msra.mxu0 0.0
    %3205 = vmatprep.subr.mxu0 0.0
    %3206 = vmatpush2.msra.mxu0 0.0
    %3207 = vmatprep.subr.mxu0 0.0
    %3208 = vmatpush2.msra.mxu0 0.0
    %3209 = vmatprep.subr.mxu0 0.0
    %3210 = vmatpush2.msra.mxu0 0.0
    %3211 = vmatprep.subr.mxu0 0.0
    %3212 = vmatpush2.msra.mxu0 0.0
    %3213 = vmatprep.subr.mxu0 0.0
    %3214 = vmatpush2.msra.mxu0 0.0
    %3215 = vmatprep.mubr.f32.mxu0 0.0
    %3216 = vmatmul.mubr.f32.gmra.mxu0 %v1675
    %v3217 = vpop.f32.mrf.mxu0
    %v3218 = vadd.f32 0.0, %v3217
    %v3219 = vpop.f32.mrf.mxu0
    %3220 = vmatprep.mubr.f32.mxu0 0.0
    %3221 = vmatmul.mubr.f32.gmra.mxu0 %v1677
    %v3222 = vpop.f32.mrf.mxu0
    %v3223 = vadd.f32 0.0, %v3222
    %v3224 = vpop.f32.mrf.mxu0
    %3225 = vdwg.mxu0
    %3226 = vmatprep.subr.mxu0 0.0
    %3227 = vmatpush1.msra.mxu0 0.0
    %3228 = vmatprep.subr.mxu0 0.0
    %3229 = vmatpush1.msra.mxu0 0.0
    %3230 = vmatprep.subr.mxu0 0.0
    %3231 = vmatpush1.msra.mxu0 0.0
    %3232 = vmatprep.subr.mxu0 0.0
    %3233 = vmatpush1.msra.mxu0 0.0
    %3234 = vmatprep.subr.mxu0 0.0
    %3235 = vmatpush1.msra.mxu0 0.0
    %3236 = vmatprep.subr.mxu0 0.0
    %3237 = vmatpush1.msra.mxu0 0.0
    %3238 = vmatprep.subr.mxu0 0.0
    %3239 = vmatpush1.msra.mxu0 0.0
    %3240 = vmatprep.subr.mxu0 0.0
    %3241 = vmatpush1.msra.mxu0 0.0
    %3242 = vmatprep.subr.mxu0 0.0
    %3243 = vmatpush1.msra.mxu0 %v3133
    %3244 = vmatprep.subr.mxu0 0.0
    %3245 = vmatpush1.msra.mxu0 %v3132
    %3246 = vmatprep.subr.mxu0 0.0
    %3247 = vmatpush1.msra.mxu0 %v3131
    %3248 = vmatprep.subr.mxu0 0.0
    %3249 = vmatpush1.msra.mxu0 %v3130
    %3250 = vmatprep.subr.mxu0 0.0
    %3251 = vmatpush1.msra.mxu0 %v3129
    %3252 = vmatprep.subr.mxu0 0.0
    %3253 = vmatpush1.msra.mxu0 %v3128
    %3254 = vmatprep.subr.mxu0 0.0
    %3255 = vmatpush1.msra.mxu0 %v3127
    %3256 = vmatprep.subr.mxu0 0.0
    %3257 = vmatpush1.msra.mxu0 %v3126
    %3258 = vmatprep.subr.mxu0 0.0
    %3259 = vmatpush2.msra.mxu0 0.0
    %3260 = vmatprep.subr.mxu0 0.0
    %3261 = vmatpush2.msra.mxu0 0.0
    %3262 = vmatprep.subr.mxu0 0.0
    %3263 = vmatpush2.msra.mxu0 0.0
    %3264 = vmatprep.subr.mxu0 0.0
    %3265 = vmatpush2.msra.mxu0 0.0
    %3266 = vmatprep.subr.mxu0 0.0
    %3267 = vmatpush2.msra.mxu0 0.0
    %3268 = vmatprep.subr.mxu0 0.0
    %3269 = vmatpush2.msra.mxu0 0.0
    %3270 = vmatprep.subr.mxu0 0.0
    %3271 = vmatpush2.msra.mxu0 0.0
    %3272 = vmatprep.subr.mxu0 0.0
    %3273 = vmatpush2.msra.mxu0 0.0
    %3274 = vmatprep.subr.mxu0 0.0
    %3275 = vmatpush2.msra.mxu0 0.0
    %3276 = vmatprep.subr.mxu0 0.0
    %3277 = vmatpush2.msra.mxu0 0.0
    %3278 = vmatprep.subr.mxu0 0.0
    %3279 = vmatpush2.msra.mxu0 0.0
    %3280 = vmatprep.subr.mxu0 0.0
    %3281 = vmatpush2.msra.mxu0 0.0
    %3282 = vmatprep.subr.mxu0 0.0
    %3283 = vmatpush2.msra.mxu0 0.0
    %3284 = vmatprep.subr.mxu0 0.0
    %3285 = vmatpush2.msra.mxu0 0.0
    %3286 = vmatprep.subr.mxu0 0.0
    %3287 = vmatpush2.msra.mxu0 0.0
    %3288 = vmatprep.subr.mxu0 0.0
    %3289 = vmatpush2.msra.mxu0 0.0
    %3290 = vmatprep.mubr.f32.mxu0 0.0
    %3291 = vmatmul.mubr.f32.gmra.mxu0 %v1755
    %v3292 = vpop.f32.mrf.mxu0
    %v3293 = vadd.f32 %v3218, %v3292
    %v3294 = vpop.f32.mrf.mxu0
    %3295 = vmatprep.mubr.f32.mxu0 0.0
    %3296 = vmatmul.mubr.f32.gmra.mxu0 %v1758
    %v3297 = vpop.f32.mrf.mxu0
    %v3298 = vadd.f32 %v3223, %v3297
    %v3299 = vpop.f32.mrf.mxu0
    %3300 = vdwg.mxu0
    %s3301 = scalar_lea.vmem [#allocation13], 64
    %v3302 = vld [vmem:[%s3301] sm:$0xf]
    %v3303 = vld [vmem:[%s3301 + $0x4] sm:$0xf]
    %v3304 = vld [vmem:[%s3301 + $0x8] sm:$0xf]
    %v3305 = vld [vmem:[%s3301 + $0xc] sm:$0xf]
    %v3306 = vld [vmem:[%s3301 + $0x10] sm:$0xf]
    %v3307 = vld [vmem:[%s3301 + $0x14] sm:$0xf]
    %v3308 = vld [vmem:[%s3301 + $0x18] sm:$0xf]
    %v3309 = vld [vmem:[%s3301 + $0x1c] sm:$0xf]
    %v3310 = vunpack.c.l.bf16 %v3302
    %v3311 = vunpack.c.l.bf16 %v3303
    %v3312 = vunpack.c.l.bf16 %v3304
    %v3313 = vunpack.c.l.bf16 %v3305
    %v3314 = vunpack.c.l.bf16 %v3306
    %v3315 = vunpack.c.l.bf16 %v3307
    %v3316 = vunpack.c.l.bf16 %v3308
    %v3317 = vunpack.c.l.bf16 %v3309
    %3318 = vmatprep.subr.mxu0 0.0
    %3319 = vmatpush1.msra.mxu0 0.0
    %3320 = vmatprep.subr.mxu0 0.0
    %3321 = vmatpush1.msra.mxu0 0.0
    %3322 = vmatprep.subr.mxu0 0.0
    %3323 = vmatpush1.msra.mxu0 0.0
    %3324 = vmatprep.subr.mxu0 0.0
    %3325 = vmatpush1.msra.mxu0 0.0
    %3326 = vmatprep.subr.mxu0 0.0
    %3327 = vmatpush1.msra.mxu0 0.0
    %3328 = vmatprep.subr.mxu0 0.0
    %3329 = vmatpush1.msra.mxu0 0.0
    %3330 = vmatprep.subr.mxu0 0.0
    %3331 = vmatpush1.msra.mxu0 0.0
    %3332 = vmatprep.subr.mxu0 0.0
    %3333 = vmatpush1.msra.mxu0 0.0
    %3334 = vmatprep.subr.mxu0 0.0
    %3335 = vmatpush1.msra.mxu0 %v3317
    %3336 = vmatprep.subr.mxu0 0.0
    %3337 = vmatpush1.msra.mxu0 %v3316
    %3338 = vmatprep.subr.mxu0 0.0
    %3339 = vmatpush1.msra.mxu0 %v3315
    %3340 = vmatprep.subr.mxu0 0.0
    %3341 = vmatpush1.msra.mxu0 %v3314
    %3342 = vmatprep.subr.mxu0 0.0
    %3343 = vmatpush1.msra.mxu0 %v3313
    %3344 = vmatprep.subr.mxu0 0.0
    %3345 = vmatpush1.msra.mxu0 %v3312
    %3346 = vmatprep.subr.mxu0 0.0
    %3347 = vmatpush1.msra.mxu0 %v3311
    %3348 = vmatprep.subr.mxu0 0.0
    %3349 = vmatpush1.msra.mxu0 %v3310
    %3350 = vmatprep.subr.mxu0 0.0
    %3351 = vmatpush2.msra.mxu0 0.0
    %3352 = vmatprep.subr.mxu0 0.0
    %3353 = vmatpush2.msra.mxu0 0.0
    %3354 = vmatprep.subr.mxu0 0.0
    %3355 = vmatpush2.msra.mxu0 0.0
    %3356 = vmatprep.subr.mxu0 0.0
    %3357 = vmatpush2.msra.mxu0 0.0
    %3358 = vmatprep.subr.mxu0 0.0
    %3359 = vmatpush2.msra.mxu0 0.0
    %3360 = vmatprep.subr.mxu0 0.0
    %3361 = vmatpush2.msra.mxu0 0.0
    %3362 = vmatprep.subr.mxu0 0.0
    %3363 = vmatpush2.msra.mxu0 0.0
    %3364 = vmatprep.subr.mxu0 0.0
    %3365 = vmatpush2.msra.mxu0 0.0
    %3366 = vmatprep.subr.mxu0 0.0
    %3367 = vmatpush2.msra.mxu0 0.0
    %3368 = vmatprep.subr.mxu0 0.0
    %3369 = vmatpush2.msra.mxu0 0.0
    %3370 = vmatprep.subr.mxu0 0.0
    %3371 = vmatpush2.msra.mxu0 0.0
    %3372 = vmatprep.subr.mxu0 0.0
    %3373 = vmatpush2.msra.mxu0 0.0
    %3374 = vmatprep.subr.mxu0 0.0
    %3375 = vmatpush2.msra.mxu0 0.0
    %3376 = vmatprep.subr.mxu0 0.0
    %3377 = vmatpush2.msra.mxu0 0.0
    %3378 = vmatprep.subr.mxu0 0.0
    %3379 = vmatpush2.msra.mxu0 0.0
    %3380 = vmatprep.subr.mxu0 0.0
    %3381 = vmatpush2.msra.mxu0 0.0
    %3382 = vmatprep.mubr.f32.mxu0 0.0
    %3383 = vmatmul.mubr.f32.gmra.mxu0 %v1853
    %v3384 = vpop.f32.mrf.mxu0
    %v3385 = vadd.f32 0.0, %v3384
    %v3386 = vpop.f32.mrf.mxu0
    %3387 = vmatprep.mubr.f32.mxu0 0.0
    %3388 = vmatmul.mubr.f32.gmra.mxu0 %v1856
    %v3389 = vpop.f32.mrf.mxu0
    %v3390 = vadd.f32 0.0, %v3389
    %v3391 = vpop.f32.mrf.mxu0
    %3392 = vdwg.mxu0
    %v3393 = vadd.f32 %v3293, %v3385
    %v3394 = vadd.f32 %v3298, %v3390
    %v3395 = vadd.f32 %v3116, %v3393
    %v3396 = vadd.f32 %v3117, %v3394
    %v3397 = vld [vmem:[#allocation14] sm:$0x1]
    %v3399 = vlaneseq
    %v3400 = vshrl.u32 %v3399, 7
    %v3401 = vsub.s32 0, %v3400
    %v3402 = vrot.slane %v3397, %v3401
    %v3404 = vadd.f32 %v3395, %v3402
    %v3405 = vadd.f32 %v3396, %v3402
    %v3406 = vmax.f32 %v3404, 0.0
    %v3407 = vmax.f32 %v3405, 0.0
    %v3409 = vrot.slane %v3407, 7
    %v3412 = vrot.slane %v3406, 7
    %v3413 = vsel %vm566, %v3412, %v3409
    %v3416 = vsel %vm566, %v3409, %v3412
    %v3417 = vsel %vm1601, 0.0, %v3416
    %v3418 = vsel %vm1602, 0.0, %v3413
    %v3419 = vrot.slane %v3406, 1
    %v3420 = vrot.slane %v3407, 1
    %v3421 = vsel %vm590, %v3419, %v3420
    %v3425 = vsel %vm590, %v3420, %v3419
    %v3426 = vsel %vm1624, 0.0, %v3421
    %v3427 = vsel %vm1625, 0.0, %v3425
    %v3428 = vld [vmem:[#allocation16] sm:$0xf]
    %v3429 = vld [vmem:[#allocation16 + $0x4] sm:$0xf]
    %v3430 = vld [vmem:[#allocation16 + $0x8] sm:$0xf]
    %v3431 = vld [vmem:[#allocation16 + $0xc] sm:$0xf]
    %v3432 = vld [vmem:[#allocation16 + $0x10] sm:$0xf]
    %v3433 = vld [vmem:[#allocation16 + $0x14] sm:$0xf]
    %v3434 = vld [vmem:[#allocation16 + $0x18] sm:$0xf]
    %v3435 = vld [vmem:[#allocation16 + $0x1c] sm:$0xf]
    %v3436 = vunpack.c.l.bf16 %v3428
    %v3437 = vunpack.c.l.bf16 %v3429
    %v3438 = vunpack.c.l.bf16 %v3430
    %v3439 = vunpack.c.l.bf16 %v3431
    %v3440 = vunpack.c.l.bf16 %v3432
    %v3441 = vunpack.c.l.bf16 %v3433
    %v3442 = vunpack.c.l.bf16 %v3434
    %v3443 = vunpack.c.l.bf16 %v3435
    %s3444 = scalar_lea.vmem [#allocation16], 32
    %v3445 = vld [vmem:[%s3444] sm:$0xf]
    %v3446 = vld [vmem:[%s3444 + $0x4] sm:$0xf]
    %v3447 = vld [vmem:[%s3444 + $0x8] sm:$0xf]
    %v3448 = vld [vmem:[%s3444 + $0xc] sm:$0xf]
    %v3449 = vld [vmem:[%s3444 + $0x10] sm:$0xf]
    %v3450 = vld [vmem:[%s3444 + $0x14] sm:$0xf]
    %v3451 = vld [vmem:[%s3444 + $0x18] sm:$0xf]
    %v3452 = vld [vmem:[%s3444 + $0x1c] sm:$0xf]
    %v3453 = vunpack.c.l.bf16 %v3445
    %v3454 = vunpack.c.l.bf16 %v3446
    %v3455 = vunpack.c.l.bf16 %v3447
    %v3456 = vunpack.c.l.bf16 %v3448
    %v3457 = vunpack.c.l.bf16 %v3449
    %v3458 = vunpack.c.l.bf16 %v3450
    %v3459 = vunpack.c.l.bf16 %v3451
    %v3460 = vunpack.c.l.bf16 %v3452
    %v3461 = vsel %vm1028, %v3406, 0
    %v3463 = vsel %vm1028, %v3407, 0
    %3465 = vmatprep.subr.mxu0 0.0
    %3466 = vmatpush1.msra.mxu0 0.0
    %3467 = vmatprep.subr.mxu0 0.0
    %3468 = vmatpush1.msra.mxu0 0.0
    %3469 = vmatprep.subr.mxu0 0.0
    %3470 = vmatpush1.msra.mxu0 0.0
    %3471 = vmatprep.subr.mxu0 0.0
    %3472 = vmatpush1.msra.mxu0 0.0
    %3473 = vmatprep.subr.mxu0 0.0
    %3474 = vmatpush1.msra.mxu0 0.0
    %3475 = vmatprep.subr.mxu0 0.0
    %3476 = vmatpush1.msra.mxu0 0.0
    %3477 = vmatprep.subr.mxu0 0.0
    %3478 = vmatpush1.msra.mxu0 0.0
    %3479 = vmatprep.subr.mxu0 0.0
    %3480 = vmatpush1.msra.mxu0 0.0
    %3481 = vmatprep.subr.mxu0 0.0
    %3482 = vmatpush1.msra.mxu0 %v3460
    %3483 = vmatprep.subr.mxu0 0.0
    %3484 = vmatpush1.msra.mxu0 %v3459
    %3485 = vmatprep.subr.mxu0 0.0
    %3486 = vmatpush1.msra.mxu0 %v3458
    %3487 = vmatprep.subr.mxu0 0.0
    %3488 = vmatpush1.msra.mxu0 %v3457
    %3489 = vmatprep.subr.mxu0 0.0
    %3490 = vmatpush1.msra.mxu0 %v3456
    %3491 = vmatprep.subr.mxu0 0.0
    %3492 = vmatpush1.msra.mxu0 %v3455
    %3493 = vmatprep.subr.mxu0 0.0
    %3494 = vmatpush1.msra.mxu0 %v3454
    %3495 = vmatprep.subr.mxu0 0.0
    %3496 = vmatpush1.msra.mxu0 %v3453
    %3497 = vmatprep.subr.mxu0 0.0
    %3498 = vmatpush2.msra.mxu0 0.0
    %3499 = vmatprep.subr.mxu0 0.0
    %3500 = vmatpush2.msra.mxu0 0.0
    %3501 = vmatprep.subr.mxu0 0.0
    %3502 = vmatpush2.msra.mxu0 0.0
    %3503 = vmatprep.subr.mxu0 0.0
    %3504 = vmatpush2.msra.mxu0 0.0
    %3505 = vmatprep.subr.mxu0 0.0
    %3506 = vmatpush2.msra.mxu0 0.0
    %3507 = vmatprep.subr.mxu0 0.0
    %3508 = vmatpush2.msra.mxu0 0.0
    %3509 = vmatprep.subr.mxu0 0.0
    %3510 = vmatpush2.msra.mxu0 0.0
    %3511 = vmatprep.subr.mxu0 0.0
    %3512 = vmatpush2.msra.mxu0 0.0
    %3513 = vmatprep.subr.mxu0 0.0
    %3514 = vmatpush2.msra.mxu0 0.0
    %3515 = vmatprep.subr.mxu0 0.0
    %3516 = vmatpush2.msra.mxu0 0.0
    %3517 = vmatprep.subr.mxu0 0.0
    %3518 = vmatpush2.msra.mxu0 0.0
    %3519 = vmatprep.subr.mxu0 0.0
    %3520 = vmatpush2.msra.mxu0 0.0
    %3521 = vmatprep.subr.mxu0 0.0
    %3522 = vmatpush2.msra.mxu0 0.0
    %3523 = vmatprep.subr.mxu0 0.0
    %3524 = vmatpush2.msra.mxu0 0.0
    %3525 = vmatprep.subr.mxu0 0.0
    %3526 = vmatpush2.msra.mxu0 0.0
    %3527 = vmatprep.subr.mxu0 0.0
    %3528 = vmatpush2.msra.mxu0 0.0
    %3529 = vmatprep.mubr.f32.mxu0 0.0
    %3530 = vmatmul.mubr.f32.gmra.mxu0 %v3461
    %v3531 = vpop.f32.mrf.mxu0
    %v3532 = vadd.f32 0.0, %v3531
    %v3533 = vpop.f32.mrf.mxu0
    %3534 = vmatprep.mubr.f32.mxu0 0.0
    %3535 = vmatmul.mubr.f32.gmra.mxu0 %v3463
    %v3536 = vpop.f32.mrf.mxu0
    %v3537 = vadd.f32 0.0, %v3536
    %v3538 = vpop.f32.mrf.mxu0
    %3539 = vdwg.mxu0
    %v3541 = vsel %vm1028, %v3417, 0
    %v3544 = vsel %vm1028, %v3418, 0
    %3546 = vmatprep.subr.mxu0 0.0
    %3547 = vmatpush1.msra.mxu0 0.0
    %3548 = vmatprep.subr.mxu0 0.0
    %3549 = vmatpush1.msra.mxu0 0.0
    %3550 = vmatprep.subr.mxu0 0.0
    %3551 = vmatpush1.msra.mxu0 0.0
    %3552 = vmatprep.subr.mxu0 0.0
    %3553 = vmatpush1.msra.mxu0 0.0
    %3554 = vmatprep.subr.mxu0 0.0
    %3555 = vmatpush1.msra.mxu0 0.0
    %3556 = vmatprep.subr.mxu0 0.0
    %3557 = vmatpush1.msra.mxu0 0.0
    %3558 = vmatprep.subr.mxu0 0.0
    %3559 = vmatpush1.msra.mxu0 0.0
    %3560 = vmatprep.subr.mxu0 0.0
    %3561 = vmatpush1.msra.mxu0 0.0
    %3562 = vmatprep.subr.mxu0 0.0
    %3563 = vmatpush1.msra.mxu0 %v3443
    %3564 = vmatprep.subr.mxu0 0.0
    %3565 = vmatpush1.msra.mxu0 %v3442
    %3566 = vmatprep.subr.mxu0 0.0
    %3567 = vmatpush1.msra.mxu0 %v3441
    %3568 = vmatprep.subr.mxu0 0.0
    %3569 = vmatpush1.msra.mxu0 %v3440
    %3570 = vmatprep.subr.mxu0 0.0
    %3571 = vmatpush1.msra.mxu0 %v3439
    %3572 = vmatprep.subr.mxu0 0.0
    %3573 = vmatpush1.msra.mxu0 %v3438
    %3574 = vmatprep.subr.mxu0 0.0
    %3575 = vmatpush1.msra.mxu0 %v3437
    %3576 = vmatprep.subr.mxu0 0.0
    %3577 = vmatpush1.msra.mxu0 %v3436
    %3578 = vmatprep.subr.mxu0 0.0
    %3579 = vmatpush2.msra.mxu0 0.0
    %3580 = vmatprep.subr.mxu0 0.0
    %3581 = vmatpush2.msra.mxu0 0.0
    %3582 = vmatprep.subr.mxu0 0.0
    %3583 = vmatpush2.msra.mxu0 0.0
    %3584 = vmatprep.subr.mxu0 0.0
    %3585 = vmatpush2.msra.mxu0 0.0
    %3586 = vmatprep.subr.mxu0 0.0
    %3587 = vmatpush2.msra.mxu0 0.0
    %3588 = vmatprep.subr.mxu0 0.0
    %3589 = vmatpush2.msra.mxu0 0.0
    %3590 = vmatprep.subr.mxu0 0.0
    %3591 = vmatpush2.msra.mxu0 0.0
    %3592 = vmatprep.subr.mxu0 0.0
    %3593 = vmatpush2.msra.mxu0 0.0
    %3594 = vmatprep.subr.mxu0 0.0
    %3595 = vmatpush2.msra.mxu0 0.0
    %3596 = vmatprep.subr.mxu0 0.0
    %3597 = vmatpush2.msra.mxu0 0.0
    %3598 = vmatprep.subr.mxu0 0.0
    %3599 = vmatpush2.msra.mxu0 0.0
    %3600 = vmatprep.subr.mxu0 0.0
    %3601 = vmatpush2.msra.mxu0 0.0
    %3602 = vmatprep.subr.mxu0 0.0
    %3603 = vmatpush2.msra.mxu0 0.0
    %3604 = vmatprep.subr.mxu0 0.0
    %3605 = vmatpush2.msra.mxu0 0.0
    %3606 = vmatprep.subr.mxu0 0.0
    %3607 = vmatpush2.msra.mxu0 0.0
    %3608 = vmatprep.subr.mxu0 0.0
    %3609 = vmatpush2.msra.mxu0 0.0
    %3610 = vmatprep.mubr.f32.mxu0 0.0
    %3611 = vmatmul.mubr.f32.gmra.mxu0 %v3541
    %v3612 = vpop.f32.mrf.mxu0
    %v3613 = vadd.f32 %v3532, %v3612
    %v3614 = vpop.f32.mrf.mxu0
    %3615 = vmatprep.mubr.f32.mxu0 0.0
    %3616 = vmatmul.mubr.f32.gmra.mxu0 %v3544
    %v3617 = vpop.f32.mrf.mxu0
    %v3618 = vadd.f32 %v3537, %v3617
    %v3619 = vpop.f32.mrf.mxu0
    %3620 = vdwg.mxu0
    %s3621 = scalar_lea.vmem [#allocation16], 64
    %v3622 = vld [vmem:[%s3621] sm:$0xf]
    %v3623 = vld [vmem:[%s3621 + $0x4] sm:$0xf]
    %v3624 = vld [vmem:[%s3621 + $0x8] sm:$0xf]
    %v3625 = vld [vmem:[%s3621 + $0xc] sm:$0xf]
    %v3626 = vld [vmem:[%s3621 + $0x10] sm:$0xf]
    %v3627 = vld [vmem:[%s3621 + $0x14] sm:$0xf]
    %v3628 = vld [vmem:[%s3621 + $0x18] sm:$0xf]
    %v3629 = vld [vmem:[%s3621 + $0x1c] sm:$0xf]
    %v3630 = vunpack.c.l.bf16 %v3622
    %v3631 = vunpack.c.l.bf16 %v3623
    %v3632 = vunpack.c.l.bf16 %v3624
    %v3633 = vunpack.c.l.bf16 %v3625
    %v3634 = vunpack.c.l.bf16 %v3626
    %v3635 = vunpack.c.l.bf16 %v3627
    %v3636 = vunpack.c.l.bf16 %v3628
    %v3637 = vunpack.c.l.bf16 %v3629
    %v3639 = vsel %vm1028, %v3426, 0
    %v3642 = vsel %vm1028, %v3427, 0
    %3644 = vmatprep.subr.mxu0 0.0
    %3645 = vmatpush1.msra.mxu0 0.0
    %3646 = vmatprep.subr.mxu0 0.0
    %3647 = vmatpush1.msra.mxu0 0.0
    %3648 = vmatprep.subr.mxu0 0.0
    %3649 = vmatpush1.msra.mxu0 0.0
    %3650 = vmatprep.subr.mxu0 0.0
    %3651 = vmatpush1.msra.mxu0 0.0
    %3652 = vmatprep.subr.mxu0 0.0
    %3653 = vmatpush1.msra.mxu0 0.0
    %3654 = vmatprep.subr.mxu0 0.0
    %3655 = vmatpush1.msra.mxu0 0.0
    %3656 = vmatprep.subr.mxu0 0.0
    %3657 = vmatpush1.msra.mxu0 0.0
    %3658 = vmatprep.subr.mxu0 0.0
    %3659 = vmatpush1.msra.mxu0 0.0
    %3660 = vmatprep.subr.mxu0 0.0
    %3661 = vmatpush1.msra.mxu0 %v3637
    %3662 = vmatprep.subr.mxu0 0.0
    %3663 = vmatpush1.msra.mxu0 %v3636
    %3664 = vmatprep.subr.mxu0 0.0
    %3665 = vmatpush1.msra.mxu0 %v3635
    %3666 = vmatprep.subr.mxu0 0.0
    %3667 = vmatpush1.msra.mxu0 %v3634
    %3668 = vmatprep.subr.mxu0 0.0
    %3669 = vmatpush1.msra.mxu0 %v3633
    %3670 = vmatprep.subr.mxu0 0.0
    %3671 = vmatpush1.msra.mxu0 %v3632
    %3672 = vmatprep.subr.mxu0 0.0
    %3673 = vmatpush1.msra.mxu0 %v3631
    %3674 = vmatprep.subr.mxu0 0.0
    %3675 = vmatpush1.msra.mxu0 %v3630
    %3676 = vmatprep.subr.mxu0 0.0
    %3677 = vmatpush2.msra.mxu0 0.0
    %3678 = vmatprep.subr.mxu0 0.0
    %3679 = vmatpush2.msra.mxu0 0.0
    %3680 = vmatprep.subr.mxu0 0.0
    %3681 = vmatpush2.msra.mxu0 0.0
    %3682 = vmatprep.subr.mxu0 0.0
    %3683 = vmatpush2.msra.mxu0 0.0
    %3684 = vmatprep.subr.mxu0 0.0
    %3685 = vmatpush2.msra.mxu0 0.0
    %3686 = vmatprep.subr.mxu0 0.0
    %3687 = vmatpush2.msra.mxu0 0.0
    %3688 = vmatprep.subr.mxu0 0.0
    %3689 = vmatpush2.msra.mxu0 0.0
    %3690 = vmatprep.subr.mxu0 0.0
    %3691 = vmatpush2.msra.mxu0 0.0
    %3692 = vmatprep.subr.mxu0 0.0
    %3693 = vmatpush2.msra.mxu0 0.0
    %3694 = vmatprep.subr.mxu0 0.0
    %3695 = vmatpush2.msra.mxu0 0.0
    %3696 = vmatprep.subr.mxu0 0.0
    %3697 = vmatpush2.msra.mxu0 0.0
    %3698 = vmatprep.subr.mxu0 0.0
    %3699 = vmatpush2.msra.mxu0 0.0
    %3700 = vmatprep.subr.mxu0 0.0
    %3701 = vmatpush2.msra.mxu0 0.0
    %3702 = vmatprep.subr.mxu0 0.0
    %3703 = vmatpush2.msra.mxu0 0.0
    %3704 = vmatprep.subr.mxu0 0.0
    %3705 = vmatpush2.msra.mxu0 0.0
    %3706 = vmatprep.subr.mxu0 0.0
    %3707 = vmatpush2.msra.mxu0 0.0
    %3708 = vmatprep.mubr.f32.mxu0 0.0
    %3709 = vmatmul.mubr.f32.gmra.mxu0 %v3639
    %v3710 = vpop.f32.mrf.mxu0
    %v3711 = vadd.f32 0.0, %v3710
    %v3712 = vpop.f32.mrf.mxu0
    %3713 = vmatprep.mubr.f32.mxu0 0.0
    %3714 = vmatmul.mubr.f32.gmra.mxu0 %v3642
    %v3715 = vpop.f32.mrf.mxu0
    %v3716 = vadd.f32 0.0, %v3715
    %v3717 = vpop.f32.mrf.mxu0
    %3718 = vdwg.mxu0
    %v3719 = vadd.f32 %v3613, %v3711
    %v3720 = vadd.f32 %v3618, %v3716
    %v3721 = vld [vmem:[#allocation17] sm:$0x1]
    %v3723 = vlaneseq
    %v3724 = vshrl.u32 %v3723, 7
    %v3725 = vsub.s32 0, %v3724
    %v3726 = vrot.slane %v3721, %v3725
    %v3728 = vadd.f32 %v3719, %v3726
    %v3729 = vadd.f32 %v3720, %v3726
    %v3730 = vmax.f32 %v3728, 0.0
    %v3731 = vmax.f32 %v3729, 0.0
    %v3734 = vcombine.high %v3730, %v3730
    %v3736 = vunpack.c.l.s4 1966171168
    %v3737 = vunpack.c.0.s8 %v3736
    %v3738 = vlaneseq
    %v3739 = vshrl.u32 %v3738, 7
    %v3740 = vsub.s32 %v3737, %v3739
    %v3741 = vrot.slane %v3730, %v3740
    %v3743 = vunpack.c.l.s4 1966171168
    %v3744 = vunpack.c.0.s8 %v3743
    %v3745 = vlaneseq
    %v3746 = vshrl.u32 %v3745, 7
    %v3747 = vsub.s32 %v3744, %v3746
    %v3748 = vrot.slane %v3734, %v3747
    %v3749 = vcombine.high %v3741, %v3741
    %v3750 = vcombine.high %v3748, %v3748
    %v3752 = vunpack.c.l.s4 1966171168
    %v3753 = vunpack.c.0.s8 %v3752
    %v3754 = vlaneseq
    %v3755 = vshrl.u32 %v3754, 7
    %v3756 = vsub.s32 %v3753, %v3755
    %v3757 = vrot.slane %v3741, %v3756
    %v3759 = vunpack.c.l.s4 1966171168
    %v3760 = vunpack.c.0.s8 %v3759
    %v3761 = vlaneseq
    %v3762 = vshrl.u32 %v3761, 7
    %v3763 = vsub.s32 %v3760, %v3762
    %v3764 = vrot.slane %v3748, %v3763
    %v3766 = vunpack.c.l.s4 1966171168
    %v3767 = vunpack.c.0.s8 %v3766
    %v3768 = vlaneseq
    %v3769 = vshrl.u32 %v3768, 7
    %v3770 = vsub.s32 %v3767, %v3769
    %v3771 = vrot.slane %v3749, %v3770
    %v3773 = vunpack.c.l.s4 1966171168
    %v3774 = vunpack.c.0.s8 %v3773
    %v3775 = vlaneseq
    %v3776 = vshrl.u32 %v3775, 7
    %v3777 = vsub.s32 %v3774, %v3776
    %v3778 = vrot.slane %v3750, %v3777
    %v3779 = vcombine.high %v3757, %v3757
    %v3780 = vcombine.high %v3764, %v3764
    %v3781 = vcombine.high %v3771, %v3771
    %v3782 = vcombine.high %v3778, %v3778
    %v3783 = vcombine.high %v3731, %v3731
    %v3785 = vunpack.c.l.s4 1966171168
    %v3786 = vunpack.c.0.s8 %v3785
    %v3787 = vlaneseq
    %v3788 = vshrl.u32 %v3787, 7
    %v3789 = vsub.s32 %v3786, %v3788
    %v3790 = vrot.slane %v3731, %v3789
    %v3792 = vunpack.c.l.s4 1966171168
    %v3793 = vunpack.c.0.s8 %v3792
    %v3794 = vlaneseq
    %v3795 = vshrl.u32 %v3794, 7
    %v3796 = vsub.s32 %v3793, %v3795
    %v3797 = vrot.slane %v3783, %v3796
    %v3798 = vcombine.high %v3790, %v3790
    %v3799 = vcombine.high %v3797, %v3797
    %v3801 = vunpack.c.l.s4 1966171168
    %v3802 = vunpack.c.0.s8 %v3801
    %v3803 = vlaneseq
    %v3804 = vshrl.u32 %v3803, 7
    %v3805 = vsub.s32 %v3802, %v3804
    %v3806 = vrot.slane %v3790, %v3805
    %v3808 = vunpack.c.l.s4 1966171168
    %v3809 = vunpack.c.0.s8 %v3808
    %v3810 = vlaneseq
    %v3811 = vshrl.u32 %v3810, 7
    %v3812 = vsub.s32 %v3809, %v3811
    %v3813 = vrot.slane %v3797, %v3812
    %v3815 = vunpack.c.l.s4 1966171168
    %v3816 = vunpack.c.0.s8 %v3815
    %v3817 = vlaneseq
    %v3818 = vshrl.u32 %v3817, 7
    %v3819 = vsub.s32 %v3816, %v3818
    %v3820 = vrot.slane %v3798, %v3819
    %v3822 = vunpack.c.l.s4 1966171168
    %v3823 = vunpack.c.0.s8 %v3822
    %v3824 = vlaneseq
    %v3825 = vshrl.u32 %v3824, 7
    %v3826 = vsub.s32 %v3823, %v3825
    %v3827 = vrot.slane %v3799, %v3826
    %v3828 = vcombine.high %v3806, %v3806
    %v3829 = vcombine.high %v3813, %v3813
    %v3830 = vcombine.high %v3820, %v3820
    %v3831 = vcombine.high %v3827, %v3827
    %v3832 = vlaneseq
    %v3833 = vshrl.u32 %v3832, 7
    %v3834 = vsub.s32 0, %v3833
    %v3835 = vrot.slane %v3757, %v3834
    %v3836 = vlaneseq
    %v3837 = vshrl.u32 %v3836, 7
    %v3838 = vsub.s32 0, %v3837
    %v3839 = vrot.slane %v3771, %v3838
    %v3840 = vlaneseq
    %v3841 = vshrl.u32 %v3840, 7
    %v3842 = vsub.s32 0, %v3841
    %v3843 = vrot.slane %v3779, %v3842
    %v3844 = vlaneseq
    %v3845 = vshrl.u32 %v3844, 7
    %v3846 = vsub.s32 0, %v3845
    %v3847 = vrot.slane %v3781, %v3846
    %v3848 = vlaneseq
    %v3849 = vshrl.u32 %v3848, 7
    %v3850 = vsub.s32 0, %v3849
    %v3851 = vrot.slane %v3764, %v3850
    %v3852 = vlaneseq
    %v3853 = vshrl.u32 %v3852, 7
    %v3854 = vsub.s32 0, %v3853
    %v3855 = vrot.slane %v3778, %v3854
    %v3856 = vlaneseq
    %v3857 = vshrl.u32 %v3856, 7
    %v3858 = vsub.s32 0, %v3857
    %v3859 = vrot.slane %v3780, %v3858
    %v3860 = vlaneseq
    %v3861 = vshrl.u32 %v3860, 7
    %v3862 = vsub.s32 0, %v3861
    %v3863 = vrot.slane %v3782, %v3862
    %v3864 = vlaneseq
    %v3865 = vshrl.u32 %v3864, 7
    %v3866 = vsub.s32 0, %v3865
    %v3867 = vrot.slane %v3806, %v3866
    %v3868 = vlaneseq
    %v3869 = vshrl.u32 %v3868, 7
    %v3870 = vsub.s32 0, %v3869
    %v3871 = vrot.slane %v3820, %v3870
    %v3872 = vlaneseq
    %v3873 = vshrl.u32 %v3872, 7
    %v3874 = vsub.s32 0, %v3873
    %v3875 = vrot.slane %v3828, %v3874
    %v3876 = vlaneseq
    %v3877 = vshrl.u32 %v3876, 7
    %v3878 = vsub.s32 0, %v3877
    %v3879 = vrot.slane %v3830, %v3878
    %v3880 = vlaneseq
    %v3881 = vshrl.u32 %v3880, 7
    %v3882 = vsub.s32 0, %v3881
    %v3883 = vrot.slane %v3813, %v3882
    %v3884 = vlaneseq
    %v3885 = vshrl.u32 %v3884, 7
    %v3886 = vsub.s32 0, %v3885
    %v3887 = vrot.slane %v3827, %v3886
    %v3888 = vlaneseq
    %v3889 = vshrl.u32 %v3888, 7
    %v3890 = vsub.s32 0, %v3889
    %v3891 = vrot.slane %v3829, %v3890
    %v3892 = vlaneseq
    %v3893 = vshrl.u32 %v3892, 7
    %v3894 = vsub.s32 0, %v3893
    %v3895 = vrot.slane %v3831, %v3894
    %v3896 = vrot.slane %v3731, 7
    %v3898 = vcombine.low %v3835, %v3839
    %v3899 = vcombine.low %v3843, %v3847
    %v3901 = vunpack.c.l.s4 1983009808
    %v3902 = vunpack.c.0.s8 %v3901
    %v3903 = vlaneseq
    %v3904 = vshrl.u32 %v3903, 7
    %v3905 = vsub.s32 %v3902, %v3904
    %v3906 = vrot.slane %v3898, %v3905
    %v3908 = vunpack.c.l.s4 1983009808
    %v3909 = vunpack.c.0.s8 %v3908
    %v3910 = vlaneseq
    %v3911 = vshrl.u32 %v3910, 7
    %v3912 = vsub.s32 %v3909, %v3911
    %v3913 = vrot.slane %v3899, %v3912
    %v3914 = vcombine.low %v3906, %v3913
    %v3915 = vcombine.low %v3851, %v3855
    %v3916 = vcombine.low %v3859, %v3863
    %v3918 = vunpack.c.l.s4 1983009808
    %v3919 = vunpack.c.0.s8 %v3918
    %v3920 = vlaneseq
    %v3921 = vshrl.u32 %v3920, 7
    %v3922 = vsub.s32 %v3919, %v3921
    %v3923 = vrot.slane %v3915, %v3922
    %v3925 = vunpack.c.l.s4 1983009808
    %v3926 = vunpack.c.0.s8 %v3925
    %v3927 = vlaneseq
    %v3928 = vshrl.u32 %v3927, 7
    %v3929 = vsub.s32 %v3926, %v3928
    %v3930 = vrot.slane %v3916, %v3929
    %v3931 = vcombine.low %v3923, %v3930
    %v3932 = vcombine.low %v3867, %v3871
    %v3933 = vcombine.low %v3875, %v3879
    %v3935 = vunpack.c.l.s4 1983009808
    %v3936 = vunpack.c.0.s8 %v3935
    %v3937 = vlaneseq
    %v3938 = vshrl.u32 %v3937, 7
    %v3939 = vsub.s32 %v3936, %v3938
    %v3940 = vrot.slane %v3932, %v3939
    %v3942 = vunpack.c.l.s4 1983009808
    %v3943 = vunpack.c.0.s8 %v3942
    %v3944 = vlaneseq
    %v3945 = vshrl.u32 %v3944, 7
    %v3946 = vsub.s32 %v3943, %v3945
    %v3947 = vrot.slane %v3933, %v3946
    %v3948 = vcombine.low %v3940, %v3947
    %v3949 = vcombine.low %v3883, %v3887
    %v3950 = vcombine.low %v3891, %v3895
    %v3952 = vunpack.c.l.s4 1983009808
    %v3953 = vunpack.c.0.s8 %v3952
    %v3954 = vlaneseq
    %v3955 = vshrl.u32 %v3954, 7
    %v3956 = vsub.s32 %v3953, %v3955
    %v3957 = vrot.slane %v3949, %v3956
    %v3959 = vunpack.c.l.s4 1983009808
    %v3960 = vunpack.c.0.s8 %v3959
    %v3961 = vlaneseq
    %v3962 = vshrl.u32 %v3961, 7
    %v3963 = vsub.s32 %v3960, %v3962
    %v3964 = vrot.slane %v3950, %v3963
    %v3965 = vcombine.low %v3957, %v3964
    %v3966 = vrot.slane %v3914, 7
    %v3967 = vrot.slane %v3931, 7
    %v3968 = vsel %vm566, %v3966, %v3967
    %v3969 = vrot.slane %v3948, 7
    %v3970 = vsel %vm566, %v3967, %v3969
    %v3971 = vrot.slane %v3965, 7
    %v3972 = vsel %vm566, %v3969, %v3971
    %v3977 = vsel %vm566, %v3896, %v3966
    %v3978 = vsel %vm582, 0.0, %v3977
    %v3979 = vsel %vm583, 0.0, %v3968
    %v3980 = vsel %vm584, 0.0, %v3970
    %v3981 = vsel %vm585, 0.0, %v3972
    %v3982 = vrot.slane %v3914, 1
    %v3983 = vrot.slane %v3931, 1
    %v3984 = vsel %vm590, %v3982, %v3983
    %v3985 = vrot.slane %v3948, 1
    %v3986 = vsel %vm590, %v3983, %v3985
    %v3987 = vrot.slane %v3965, 1
    %v3988 = vsel %vm590, %v3985, %v3987
    %v3993 = vrot.slane %v3730, 1
    %v3995 = vsel %vm590, %v3987, %v3993
    %v3996 = vsel %vm608, 0.0, %v3984
    %v3997 = vsel %vm609, 0.0, %v3986
    %v3998 = vsel %vm610, 0.0, %v3988
    %v3999 = vsel %vm611, 0.0, %v3995
    %v4000 = vld [vmem:[%s19] sm:$0xf]
    %v4001 = vld [vmem:[%s19 + $0x4] sm:$0xf]
    %v4002 = vld [vmem:[%s19 + $0x8] sm:$0xf]
    %v4003 = vld [vmem:[%s19 + $0xc] sm:$0xf]
    %v4004 = vld [vmem:[%s19 + $0x10] sm:$0xf]
    %v4005 = vld [vmem:[%s19 + $0x14] sm:$0xf]
    %v4006 = vld [vmem:[%s19 + $0x18] sm:$0xf]
    %v4007 = vld [vmem:[%s19 + $0x1c] sm:$0xf]
    %v4008 = vunpack.c.l.bf16 %v4000
    %v4009 = vunpack.c.l.bf16 %v4001
    %v4010 = vunpack.c.l.bf16 %v4002
    %v4011 = vunpack.c.l.bf16 %v4003
    %v4012 = vunpack.c.l.bf16 %v4004
    %v4013 = vunpack.c.l.bf16 %v4005
    %v4014 = vunpack.c.l.bf16 %v4006
    %v4015 = vunpack.c.l.bf16 %v4007
    %s4016 = scalar_lea.vmem %s19, 32
    %v4017 = vld [vmem:[%s4016] sm:$0xf]
    %v4018 = vld [vmem:[%s4016 + $0x4] sm:$0xf]
    %v4019 = vld [vmem:[%s4016 + $0x8] sm:$0xf]
    %v4020 = vld [vmem:[%s4016 + $0xc] sm:$0xf]
    %v4021 = vld [vmem:[%s4016 + $0x10] sm:$0xf]
    %v4022 = vld [vmem:[%s4016 + $0x14] sm:$0xf]
    %v4023 = vld [vmem:[%s4016 + $0x18] sm:$0xf]
    %v4024 = vld [vmem:[%s4016 + $0x1c] sm:$0xf]
    %v4025 = vunpack.c.l.bf16 %v4017
    %v4026 = vunpack.c.l.bf16 %v4018
    %v4027 = vunpack.c.l.bf16 %v4019
    %v4028 = vunpack.c.l.bf16 %v4020
    %v4029 = vunpack.c.l.bf16 %v4021
    %v4030 = vunpack.c.l.bf16 %v4022
    %v4031 = vunpack.c.l.bf16 %v4023
    %v4032 = vunpack.c.l.bf16 %v4024
    %v4033 = vsel %vm1028, %v3914, 0
    %v4035 = vsel %vm1028, %v3931, 0
    %v4037 = vsel %vm1028, %v3948, 0
    %v4039 = vsel %vm1028, %v3965, 0
    %4041 = vmatprep.subr.mxu0 0.0
    %4042 = vmatpush1.msra.mxu0 0.0
    %4043 = vmatprep.subr.mxu0 0.0
    %4044 = vmatpush1.msra.mxu0 0.0
    %4045 = vmatprep.subr.mxu0 0.0
    %4046 = vmatpush1.msra.mxu0 0.0
    %4047 = vmatprep.subr.mxu0 0.0
    %4048 = vmatpush1.msra.mxu0 0.0
    %4049 = vmatprep.subr.mxu0 0.0
    %4050 = vmatpush1.msra.mxu0 0.0
    %4051 = vmatprep.subr.mxu0 0.0
    %4052 = vmatpush1.msra.mxu0 0.0
    %4053 = vmatprep.subr.mxu0 0.0
    %4054 = vmatpush1.msra.mxu0 0.0
    %4055 = vmatprep.subr.mxu0 0.0
    %4056 = vmatpush1.msra.mxu0 0.0
    %4057 = vmatprep.subr.mxu0 0.0
    %4058 = vmatpush1.msra.mxu0 %v4032
    %4059 = vmatprep.subr.mxu0 0.0
    %4060 = vmatpush1.msra.mxu0 %v4031
    %4061 = vmatprep.subr.mxu0 0.0
    %4062 = vmatpush1.msra.mxu0 %v4030
    %4063 = vmatprep.subr.mxu0 0.0
    %4064 = vmatpush1.msra.mxu0 %v4029
    %4065 = vmatprep.subr.mxu0 0.0
    %4066 = vmatpush1.msra.mxu0 %v4028
    %4067 = vmatprep.subr.mxu0 0.0
    %4068 = vmatpush1.msra.mxu0 %v4027
    %4069 = vmatprep.subr.mxu0 0.0
    %4070 = vmatpush1.msra.mxu0 %v4026
    %4071 = vmatprep.subr.mxu0 0.0
    %4072 = vmatpush1.msra.mxu0 %v4025
    %4073 = vmatprep.subr.mxu0 0.0
    %4074 = vmatpush2.msra.mxu0 0.0
    %4075 = vmatprep.subr.mxu0 0.0
    %4076 = vmatpush2.msra.mxu0 0.0
    %4077 = vmatprep.subr.mxu0 0.0
    %4078 = vmatpush2.msra.mxu0 0.0
    %4079 = vmatprep.subr.mxu0 0.0
    %4080 = vmatpush2.msra.mxu0 0.0
    %4081 = vmatprep.subr.mxu0 0.0
    %4082 = vmatpush2.msra.mxu0 0.0
    %4083 = vmatprep.subr.mxu0 0.0
    %4084 = vmatpush2.msra.mxu0 0.0
    %4085 = vmatprep.subr.mxu0 0.0
    %4086 = vmatpush2.msra.mxu0 0.0
    %4087 = vmatprep.subr.mxu0 0.0
    %4088 = vmatpush2.msra.mxu0 0.0
    %4089 = vmatprep.subr.mxu0 0.0
    %4090 = vmatpush2.msra.mxu0 0.0
    %4091 = vmatprep.subr.mxu0 0.0
    %4092 = vmatpush2.msra.mxu0 0.0
    %4093 = vmatprep.subr.mxu0 0.0
    %4094 = vmatpush2.msra.mxu0 0.0
    %4095 = vmatprep.subr.mxu0 0.0
    %4096 = vmatpush2.msra.mxu0 0.0
    %4097 = vmatprep.subr.mxu0 0.0
    %4098 = vmatpush2.msra.mxu0 0.0
    %4099 = vmatprep.subr.mxu0 0.0
    %4100 = vmatpush2.msra.mxu0 0.0
    %4101 = vmatprep.subr.mxu0 0.0
    %4102 = vmatpush2.msra.mxu0 0.0
    %4103 = vmatprep.subr.mxu0 0.0
    %4104 = vmatpush2.msra.mxu0 0.0
    %4105 = vmatprep.mubr.f32.mxu0 0.0
    %4106 = vmatmul.mubr.f32.gmra.mxu0 %v4033
    %v4107 = vpop.f32.mrf.mxu0
    %v4108 = vadd.f32 0.0, %v4107
    %v4109 = vpop.f32.mrf.mxu0
    %4110 = vmatprep.mubr.f32.mxu0 0.0
    %4111 = vmatmul.mubr.f32.gmra.mxu0 %v4035
    %v4112 = vpop.f32.mrf.mxu0
    %v4113 = vadd.f32 0.0, %v4112
    %v4114 = vpop.f32.mrf.mxu0
    %4115 = vmatprep.mubr.f32.mxu0 0.0
    %4116 = vmatmul.mubr.f32.gmra.mxu0 %v4037
    %v4117 = vpop.f32.mrf.mxu0
    %v4118 = vadd.f32 0.0, %v4117
    %v4119 = vpop.f32.mrf.mxu0
    %4120 = vmatprep.mubr.f32.mxu0 0.0
    %4121 = vmatmul.mubr.f32.gmra.mxu0 %v4039
    %v4122 = vpop.f32.mrf.mxu0
    %v4123 = vadd.f32 0.0, %v4122
    %v4124 = vpop.f32.mrf.mxu0
    %4125 = vdwg.mxu0
    %v4127 = vsel %vm1028, %v3978, 0
    %v4130 = vsel %vm1028, %v3979, 0
    %v4133 = vsel %vm1028, %v3980, 0
    %v4136 = vsel %vm1028, %v3981, 0
    %4138 = vmatprep.subr.mxu0 0.0
    %4139 = vmatpush1.msra.mxu0 0.0
    %4140 = vmatprep.subr.mxu0 0.0
    %4141 = vmatpush1.msra.mxu0 0.0
    %4142 = vmatprep.subr.mxu0 0.0
    %4143 = vmatpush1.msra.mxu0 0.0
    %4144 = vmatprep.subr.mxu0 0.0
    %4145 = vmatpush1.msra.mxu0 0.0
    %4146 = vmatprep.subr.mxu0 0.0
    %4147 = vmatpush1.msra.mxu0 0.0
    %4148 = vmatprep.subr.mxu0 0.0
    %4149 = vmatpush1.msra.mxu0 0.0
    %4150 = vmatprep.subr.mxu0 0.0
    %4151 = vmatpush1.msra.mxu0 0.0
    %4152 = vmatprep.subr.mxu0 0.0
    %4153 = vmatpush1.msra.mxu0 0.0
    %4154 = vmatprep.subr.mxu0 0.0
    %4155 = vmatpush1.msra.mxu0 %v4015
    %4156 = vmatprep.subr.mxu0 0.0
    %4157 = vmatpush1.msra.mxu0 %v4014
    %4158 = vmatprep.subr.mxu0 0.0
    %4159 = vmatpush1.msra.mxu0 %v4013
    %4160 = vmatprep.subr.mxu0 0.0
    %4161 = vmatpush1.msra.mxu0 %v4012
    %4162 = vmatprep.subr.mxu0 0.0
    %4163 = vmatpush1.msra.mxu0 %v4011
    %4164 = vmatprep.subr.mxu0 0.0
    %4165 = vmatpush1.msra.mxu0 %v4010
    %4166 = vmatprep.subr.mxu0 0.0
    %4167 = vmatpush1.msra.mxu0 %v4009
    %4168 = vmatprep.subr.mxu0 0.0
    %4169 = vmatpush1.msra.mxu0 %v4008
    %4170 = vmatprep.subr.mxu0 0.0
    %4171 = vmatpush2.msra.mxu0 0.0
    %4172 = vmatprep.subr.mxu0 0.0
    %4173 = vmatpush2.msra.mxu0 0.0
    %4174 = vmatprep.subr.mxu0 0.0
    %4175 = vmatpush2.msra.mxu0 0.0
    %4176 = vmatprep.subr.mxu0 0.0
    %4177 = vmatpush2.msra.mxu0 0.0
    %4178 = vmatprep.subr.mxu0 0.0
    %4179 = vmatpush2.msra.mxu0 0.0
    %4180 = vmatprep.subr.mxu0 0.0
    %4181 = vmatpush2.msra.mxu0 0.0
    %4182 = vmatprep.subr.mxu0 0.0
    %4183 = vmatpush2.msra.mxu0 0.0
    %4184 = vmatprep.subr.mxu0 0.0
    %4185 = vmatpush2.msra.mxu0 0.0
    %4186 = vmatprep.subr.mxu0 0.0
    %4187 = vmatpush2.msra.mxu0 0.0
    %4188 = vmatprep.subr.mxu0 0.0
    %4189 = vmatpush2.msra.mxu0 0.0
    %4190 = vmatprep.subr.mxu0 0.0
    %4191 = vmatpush2.msra.mxu0 0.0
    %4192 = vmatprep.subr.mxu0 0.0
    %4193 = vmatpush2.msra.mxu0 0.0
    %4194 = vmatprep.subr.mxu0 0.0
    %4195 = vmatpush2.msra.mxu0 0.0
    %4196 = vmatprep.subr.mxu0 0.0
    %4197 = vmatpush2.msra.mxu0 0.0
    %4198 = vmatprep.subr.mxu0 0.0
    %4199 = vmatpush2.msra.mxu0 0.0
    %4200 = vmatprep.subr.mxu0 0.0
    %4201 = vmatpush2.msra.mxu0 0.0
    %4202 = vmatprep.mubr.f32.mxu0 0.0
    %4203 = vmatmul.mubr.f32.gmra.mxu0 %v4127
    %v4204 = vpop.f32.mrf.mxu0
    %v4205 = vadd.f32 %v4108, %v4204
    %v4206 = vpop.f32.mrf.mxu0
    %4207 = vmatprep.mubr.f32.mxu0 0.0
    %4208 = vmatmul.mubr.f32.gmra.mxu0 %v4130
    %v4209 = vpop.f32.mrf.mxu0
    %v4210 = vadd.f32 %v4113, %v4209
    %v4211 = vpop.f32.mrf.mxu0
    %4212 = vmatprep.mubr.f32.mxu0 0.0
    %4213 = vmatmul.mubr.f32.gmra.mxu0 %v4133
    %v4214 = vpop.f32.mrf.mxu0
    %v4215 = vadd.f32 %v4118, %v4214
    %v4216 = vpop.f32.mrf.mxu0
    %4217 = vmatprep.mubr.f32.mxu0 0.0
    %4218 = vmatmul.mubr.f32.gmra.mxu0 %v4136
    %v4219 = vpop.f32.mrf.mxu0
    %v4220 = vadd.f32 %v4123, %v4219
    %v4221 = vpop.f32.mrf.mxu0
    %4222 = vdwg.mxu0
    %s4223 = scalar_lea.vmem %s19, 64
    %v4224 = vld [vmem:[%s4223] sm:$0xf]
    %v4225 = vld [vmem:[%s4223 + $0x4] sm:$0xf]
    %v4226 = vld [vmem:[%s4223 + $0x8] sm:$0xf]
    %v4227 = vld [vmem:[%s4223 + $0xc] sm:$0xf]
    %v4228 = vld [vmem:[%s4223 + $0x10] sm:$0xf]
    %v4229 = vld [vmem:[%s4223 + $0x14] sm:$0xf]
    %v4230 = vld [vmem:[%s4223 + $0x18] sm:$0xf]
    %v4231 = vld [vmem:[%s4223 + $0x1c] sm:$0xf]
    %v4232 = vunpack.c.l.bf16 %v4224
    %v4233 = vunpack.c.l.bf16 %v4225
    %v4234 = vunpack.c.l.bf16 %v4226
    %v4235 = vunpack.c.l.bf16 %v4227
    %v4236 = vunpack.c.l.bf16 %v4228
    %v4237 = vunpack.c.l.bf16 %v4229
    %v4238 = vunpack.c.l.bf16 %v4230
    %v4239 = vunpack.c.l.bf16 %v4231
    %v4241 = vsel %vm1028, %v3996, 0
    %v4244 = vsel %vm1028, %v3997, 0
    %v4247 = vsel %vm1028, %v3998, 0
    %v4250 = vsel %vm1028, %v3999, 0
    %4252 = vmatprep.subr.mxu0 0.0
    %4253 = vmatpush1.msra.mxu0 0.0
    %4254 = vmatprep.subr.mxu0 0.0
    %4255 = vmatpush1.msra.mxu0 0.0
    %4256 = vmatprep.subr.mxu0 0.0
    %4257 = vmatpush1.msra.mxu0 0.0
    %4258 = vmatprep.subr.mxu0 0.0
    %4259 = vmatpush1.msra.mxu0 0.0
    %4260 = vmatprep.subr.mxu0 0.0
    %4261 = vmatpush1.msra.mxu0 0.0
    %4262 = vmatprep.subr.mxu0 0.0
    %4263 = vmatpush1.msra.mxu0 0.0
    %4264 = vmatprep.subr.mxu0 0.0
    %4265 = vmatpush1.msra.mxu0 0.0
    %4266 = vmatprep.subr.mxu0 0.0
    %4267 = vmatpush1.msra.mxu0 0.0
    %4268 = vmatprep.subr.mxu0 0.0
    %4269 = vmatpush1.msra.mxu0 %v4239
    %4270 = vmatprep.subr.mxu0 0.0
    %4271 = vmatpush1.msra.mxu0 %v4238
    %4272 = vmatprep.subr.mxu0 0.0
    %4273 = vmatpush1.msra.mxu0 %v4237
    %4274 = vmatprep.subr.mxu0 0.0
    %4275 = vmatpush1.msra.mxu0 %v4236
    %4276 = vmatprep.subr.mxu0 0.0
    %4277 = vmatpush1.msra.mxu0 %v4235
    %4278 = vmatprep.subr.mxu0 0.0
    %4279 = vmatpush1.msra.mxu0 %v4234
    %4280 = vmatprep.subr.mxu0 0.0
    %4281 = vmatpush1.msra.mxu0 %v4233
    %4282 = vmatprep.subr.mxu0 0.0
    %4283 = vmatpush1.msra.mxu0 %v4232
    %4284 = vmatprep.subr.mxu0 0.0
    %4285 = vmatpush2.msra.mxu0 0.0
    %4286 = vmatprep.subr.mxu0 0.0
    %4287 = vmatpush2.msra.mxu0 0.0
    %4288 = vmatprep.subr.mxu0 0.0
    %4289 = vmatpush2.msra.mxu0 0.0
    %4290 = vmatprep.subr.mxu0 0.0
    %4291 = vmatpush2.msra.mxu0 0.0
    %4292 = vmatprep.subr.mxu0 0.0
    %4293 = vmatpush2.msra.mxu0 0.0
    %4294 = vmatprep.subr.mxu0 0.0
    %4295 = vmatpush2.msra.mxu0 0.0
    %4296 = vmatprep.subr.mxu0 0.0
    %4297 = vmatpush2.msra.mxu0 0.0
    %4298 = vmatprep.subr.mxu0 0.0
    %4299 = vmatpush2.msra.mxu0 0.0
    %4300 = vmatprep.subr.mxu0 0.0
    %4301 = vmatpush2.msra.mxu0 0.0
    %4302 = vmatprep.subr.mxu0 0.0
    %4303 = vmatpush2.msra.mxu0 0.0
    %4304 = vmatprep.subr.mxu0 0.0
    %4305 = vmatpush2.msra.mxu0 0.0
    %4306 = vmatprep.subr.mxu0 0.0
    %4307 = vmatpush2.msra.mxu0 0.0
    %4308 = vmatprep.subr.mxu0 0.0
    %4309 = vmatpush2.msra.mxu0 0.0
    %4310 = vmatprep.subr.mxu0 0.0
    %4311 = vmatpush2.msra.mxu0 0.0
    %4312 = vmatprep.subr.mxu0 0.0
    %4313 = vmatpush2.msra.mxu0 0.0
    %4314 = vmatprep.subr.mxu0 0.0
    %4315 = vmatpush2.msra.mxu0 0.0
    %4316 = vmatprep.mubr.f32.mxu0 0.0
    %4317 = vmatmul.mubr.f32.gmra.mxu0 %v4241
    %v4318 = vpop.f32.mrf.mxu0
    %v4319 = vadd.f32 0.0, %v4318
    %v4320 = vpop.f32.mrf.mxu0
    %4321 = vmatprep.mubr.f32.mxu0 0.0
    %4322 = vmatmul.mubr.f32.gmra.mxu0 %v4244
    %v4323 = vpop.f32.mrf.mxu0
    %v4324 = vadd.f32 0.0, %v4323
    %v4325 = vpop.f32.mrf.mxu0
    %4326 = vmatprep.mubr.f32.mxu0 0.0
    %4327 = vmatmul.mubr.f32.gmra.mxu0 %v4247
    %v4328 = vpop.f32.mrf.mxu0
    %v4329 = vadd.f32 0.0, %v4328
    %v4330 = vpop.f32.mrf.mxu0
    %4331 = vmatprep.mubr.f32.mxu0 0.0
    %4332 = vmatmul.mubr.f32.gmra.mxu0 %v4250
    %v4333 = vpop.f32.mrf.mxu0
    %v4334 = vadd.f32 0.0, %v4333
    %v4335 = vpop.f32.mrf.mxu0
    %4336 = vdwg.mxu0
    %v4337 = vadd.f32 %v4205, %v4319
    %v4338 = vadd.f32 %v4210, %v4324
    %v4339 = vadd.f32 %v4215, %v4329
    %v4340 = vadd.f32 %v4220, %v4334
    %v4341 = vld [vmem:[#allocation19] sm:$0x1]
    %v4343 = vlaneseq
    %v4344 = vshrl.u32 %v4343, 7
    %v4345 = vsub.s32 0, %v4344
    %v4346 = vrot.slane %v4341, %v4345
    %v4348 = vadd.f32 %v4337, %v4346
    %v4349 = vadd.f32 %v4338, %v4346
    %v4350 = vadd.f32 %v4339, %v4346
    %v4351 = vadd.f32 %v4340, %v4346
    %v4353 = vrot.slane %v4351, 7
    %v4358 = vrot.slane %v4348, 7
    %v4359 = vrot.slane %v4349, 7
    %v4360 = vsel %vm566, %v4358, %v4359
    %v4361 = vrot.slane %v4350, 7
    %v4362 = vsel %vm566, %v4359, %v4361
    %v4363 = vsel %vm566, %v4361, %v4353
    %v4368 = vsel %vm566, %v4353, %v4358
    %v4369 = vsel %vm582, 0.0, %v4368
    %v4370 = vsel %vm583, 0.0, %v4360
    %v4371 = vsel %vm584, 0.0, %v4362
    %v4372 = vsel %vm585, 0.0, %v4363
    %v4373 = vrot.slane %v4348, 1
    %v4374 = vrot.slane %v4349, 1
    %v4375 = vsel %vm590, %v4373, %v4374
    %v4376 = vrot.slane %v4350, 1
    %v4377 = vsel %vm590, %v4374, %v4376
    %v4378 = vrot.slane %v4351, 1
    %v4379 = vsel %vm590, %v4376, %v4378
    %v4385 = vsel %vm590, %v4378, %v4373
    %v4386 = vsel %vm608, 0.0, %v4375
    %v4387 = vsel %vm609, 0.0, %v4377
    %v4388 = vsel %vm610, 0.0, %v4379
    %v4389 = vsel %vm611, 0.0, %v4385
    %v4390 = vld [vmem:[#allocation20] sm:$0xf]
    %v4391 = vld [vmem:[#allocation20 + $0x4] sm:$0xf]
    %v4392 = vld [vmem:[#allocation20 + $0x8] sm:$0xf]
    %v4393 = vld [vmem:[#allocation20 + $0xc] sm:$0xf]
    %v4394 = vunpack.c.l.bf16 %v4390
    %v4395 = vunpack.c.l.bf16 %v4391
    %v4396 = vunpack.c.l.bf16 %v4392
    %v4397 = vunpack.c.l.bf16 %v4393
    %s4398 = scalar_lea.vmem [#allocation20], 16
    %v4399 = vld [vmem:[%s4398] sm:$0xf]
    %v4400 = vld [vmem:[%s4398 + $0x4] sm:$0xf]
    %v4401 = vld [vmem:[%s4398 + $0x8] sm:$0xf]
    %v4402 = vld [vmem:[%s4398 + $0xc] sm:$0xf]
    %v4403 = vunpack.c.l.bf16 %v4399
    %v4404 = vunpack.c.l.bf16 %v4400
    %v4405 = vunpack.c.l.bf16 %v4401
    %v4406 = vunpack.c.l.bf16 %v4402
    %v4407 = vsel %vm633, %v4348, 0
    %v4409 = vsel %vm633, %v4349, 0
    %v4411 = vsel %vm633, %v4350, 0
    %v4413 = vsel %vm633, %v4351, 0
    %4415 = vmatprep.subr.mxu0 0.0
    %4416 = vmatpush1.msra.mxu0 0.0
    %4417 = vmatprep.subr.mxu0 0.0
    %4418 = vmatpush1.msra.mxu0 0.0
    %4419 = vmatprep.subr.mxu0 0.0
    %4420 = vmatpush1.msra.mxu0 0.0
    %4421 = vmatprep.subr.mxu0 0.0
    %4422 = vmatpush1.msra.mxu0 0.0
    %4423 = vmatprep.subr.mxu0 0.0
    %4424 = vmatpush1.msra.mxu0 0.0
    %4425 = vmatprep.subr.mxu0 0.0
    %4426 = vmatpush1.msra.mxu0 0.0
    %4427 = vmatprep.subr.mxu0 0.0
    %4428 = vmatpush1.msra.mxu0 0.0
    %4429 = vmatprep.subr.mxu0 0.0
    %4430 = vmatpush1.msra.mxu0 0.0
    %4431 = vmatprep.subr.mxu0 0.0
    %4432 = vmatpush1.msra.mxu0 0.0
    %4433 = vmatprep.subr.mxu0 0.0
    %4434 = vmatpush1.msra.mxu0 0.0
    %4435 = vmatprep.subr.mxu0 0.0
    %4436 = vmatpush1.msra.mxu0 0.0
    %4437 = vmatprep.subr.mxu0 0.0
    %4438 = vmatpush1.msra.mxu0 0.0
    %4439 = vmatprep.subr.mxu0 0.0
    %4440 = vmatpush1.msra.mxu0 %v4406
    %4441 = vmatprep.subr.mxu0 0.0
    %4442 = vmatpush1.msra.mxu0 %v4405
    %4443 = vmatprep.subr.mxu0 0.0
    %4444 = vmatpush1.msra.mxu0 %v4404
    %4445 = vmatprep.subr.mxu0 0.0
    %4446 = vmatpush1.msra.mxu0 %v4403
    %4447 = vmatprep.subr.mxu0 0.0
    %4448 = vmatpush2.msra.mxu0 0.0
    %4449 = vmatprep.subr.mxu0 0.0
    %4450 = vmatpush2.msra.mxu0 0.0
    %4451 = vmatprep.subr.mxu0 0.0
    %4452 = vmatpush2.msra.mxu0 0.0
    %4453 = vmatprep.subr.mxu0 0.0
    %4454 = vmatpush2.msra.mxu0 0.0
    %4455 = vmatprep.subr.mxu0 0.0
    %4456 = vmatpush2.msra.mxu0 0.0
    %4457 = vmatprep.subr.mxu0 0.0
    %4458 = vmatpush2.msra.mxu0 0.0
    %4459 = vmatprep.subr.mxu0 0.0
    %4460 = vmatpush2.msra.mxu0 0.0
    %4461 = vmatprep.subr.mxu0 0.0
    %4462 = vmatpush2.msra.mxu0 0.0
    %4463 = vmatprep.subr.mxu0 0.0
    %4464 = vmatpush2.msra.mxu0 0.0
    %4465 = vmatprep.subr.mxu0 0.0
    %4466 = vmatpush2.msra.mxu0 0.0
    %4467 = vmatprep.subr.mxu0 0.0
    %4468 = vmatpush2.msra.mxu0 0.0
    %4469 = vmatprep.subr.mxu0 0.0
    %4470 = vmatpush2.msra.mxu0 0.0
    %4471 = vmatprep.subr.mxu0 0.0
    %4472 = vmatpush2.msra.mxu0 0.0
    %4473 = vmatprep.subr.mxu0 0.0
    %4474 = vmatpush2.msra.mxu0 0.0
    %4475 = vmatprep.subr.mxu0 0.0
    %4476 = vmatpush2.msra.mxu0 0.0
    %4477 = vmatprep.subr.mxu0 0.0
    %4478 = vmatpush2.msra.mxu0 0.0
    %4479 = vmatprep.mubr.f32.mxu0 0.0
    %4480 = vmatmul.mubr.f32.gmra.mxu0 %v4407
    %v4481 = vpop.f32.mrf.mxu0
    %v4482 = vadd.f32 0.0, %v4481
    %v4483 = vpop.f32.mrf.mxu0
    %4484 = vmatprep.mubr.f32.mxu0 0.0
    %4485 = vmatmul.mubr.f32.gmra.mxu0 %v4409
    %v4486 = vpop.f32.mrf.mxu0
    %v4487 = vadd.f32 0.0, %v4486
    %v4488 = vpop.f32.mrf.mxu0
    %4489 = vmatprep.mubr.f32.mxu0 0.0
    %4490 = vmatmul.mubr.f32.gmra.mxu0 %v4411
    %v4491 = vpop.f32.mrf.mxu0
    %v4492 = vadd.f32 0.0, %v4491
    %v4493 = vpop.f32.mrf.mxu0
    %4494 = vmatprep.mubr.f32.mxu0 0.0
    %4495 = vmatmul.mubr.f32.gmra.mxu0 %v4413
    %v4496 = vpop.f32.mrf.mxu0
    %v4497 = vadd.f32 0.0, %v4496
    %v4498 = vpop.f32.mrf.mxu0
    %4499 = vdwg.mxu0
    %v4501 = vsel %vm633, %v4369, 0
    %v4504 = vsel %vm633, %v4370, 0
    %v4507 = vsel %vm633, %v4371, 0
    %v4510 = vsel %vm633, %v4372, 0
    %4512 = vmatprep.subr.mxu0 0.0
    %4513 = vmatpush1.msra.mxu0 0.0
    %4514 = vmatprep.subr.mxu0 0.0
    %4515 = vmatpush1.msra.mxu0 0.0
    %4516 = vmatprep.subr.mxu0 0.0
    %4517 = vmatpush1.msra.mxu0 0.0
    %4518 = vmatprep.subr.mxu0 0.0
    %4519 = vmatpush1.msra.mxu0 0.0
    %4520 = vmatprep.subr.mxu0 0.0
    %4521 = vmatpush1.msra.mxu0 0.0
    %4522 = vmatprep.subr.mxu0 0.0
    %4523 = vmatpush1.msra.mxu0 0.0
    %4524 = vmatprep.subr.mxu0 0.0
    %4525 = vmatpush1.msra.mxu0 0.0
    %4526 = vmatprep.subr.mxu0 0.0
    %4527 = vmatpush1.msra.mxu0 0.0
    %4528 = vmatprep.subr.mxu0 0.0
    %4529 = vmatpush1.msra.mxu0 0.0
    %4530 = vmatprep.subr.mxu0 0.0
    %4531 = vmatpush1.msra.mxu0 0.0
    %4532 = vmatprep.subr.mxu0 0.0
    %4533 = vmatpush1.msra.mxu0 0.0
    %4534 = vmatprep.subr.mxu0 0.0
    %4535 = vmatpush1.msra.mxu0 0.0
    %4536 = vmatprep.subr.mxu0 0.0
    %4537 = vmatpush1.msra.mxu0 %v4397
    %4538 = vmatprep.subr.mxu0 0.0
    %4539 = vmatpush1.msra.mxu0 %v4396
    %4540 = vmatprep.subr.mxu0 0.0
    %4541 = vmatpush1.msra.mxu0 %v4395
    %4542 = vmatprep.subr.mxu0 0.0
    %4543 = vmatpush1.msra.mxu0 %v4394
    %4544 = vmatprep.subr.mxu0 0.0
    %4545 = vmatpush2.msra.mxu0 0.0
    %4546 = vmatprep.subr.mxu0 0.0
    %4547 = vmatpush2.msra.mxu0 0.0
    %4548 = vmatprep.subr.mxu0 0.0
    %4549 = vmatpush2.msra.mxu0 0.0
    %4550 = vmatprep.subr.mxu0 0.0
    %4551 = vmatpush2.msra.mxu0 0.0
    %4552 = vmatprep.subr.mxu0 0.0
    %4553 = vmatpush2.msra.mxu0 0.0
    %4554 = vmatprep.subr.mxu0 0.0
    %4555 = vmatpush2.msra.mxu0 0.0
    %4556 = vmatprep.subr.mxu0 0.0
    %4557 = vmatpush2.msra.mxu0 0.0
    %4558 = vmatprep.subr.mxu0 0.0
    %4559 = vmatpush2.msra.mxu0 0.0
    %4560 = vmatprep.subr.mxu0 0.0
    %4561 = vmatpush2.msra.mxu0 0.0
    %4562 = vmatprep.subr.mxu0 0.0
    %4563 = vmatpush2.msra.mxu0 0.0
    %4564 = vmatprep.subr.mxu0 0.0
    %4565 = vmatpush2.msra.mxu0 0.0
    %4566 = vmatprep.subr.mxu0 0.0
    %4567 = vmatpush2.msra.mxu0 0.0
    %4568 = vmatprep.subr.mxu0 0.0
    %4569 = vmatpush2.msra.mxu0 0.0
    %4570 = vmatprep.subr.mxu0 0.0
    %4571 = vmatpush2.msra.mxu0 0.0
    %4572 = vmatprep.subr.mxu0 0.0
    %4573 = vmatpush2.msra.mxu0 0.0
    %4574 = vmatprep.subr.mxu0 0.0
    %4575 = vmatpush2.msra.mxu0 0.0
    %4576 = vmatprep.mubr.f32.mxu0 0.0
    %4577 = vmatmul.mubr.f32.gmra.mxu0 %v4501
    %v4578 = vpop.f32.mrf.mxu0
    %v4579 = vadd.f32 %v4482, %v4578
    %v4580 = vpop.f32.mrf.mxu0
    %4581 = vmatprep.mubr.f32.mxu0 0.0
    %4582 = vmatmul.mubr.f32.gmra.mxu0 %v4504
    %v4583 = vpop.f32.mrf.mxu0
    %v4584 = vadd.f32 %v4487, %v4583
    %v4585 = vpop.f32.mrf.mxu0
    %4586 = vmatprep.mubr.f32.mxu0 0.0
    %4587 = vmatmul.mubr.f32.gmra.mxu0 %v4507
    %v4588 = vpop.f32.mrf.mxu0
    %v4589 = vadd.f32 %v4492, %v4588
    %v4590 = vpop.f32.mrf.mxu0
    %4591 = vmatprep.mubr.f32.mxu0 0.0
    %4592 = vmatmul.mubr.f32.gmra.mxu0 %v4510
    %v4593 = vpop.f32.mrf.mxu0
    %v4594 = vadd.f32 %v4497, %v4593
    %v4595 = vpop.f32.mrf.mxu0
    %4596 = vdwg.mxu0
    %s4597 = scalar_lea.vmem [#allocation20], 32
    %v4598 = vld [vmem:[%s4597] sm:$0xf]
    %v4599 = vld [vmem:[%s4597 + $0x4] sm:$0xf]
    %v4600 = vld [vmem:[%s4597 + $0x8] sm:$0xf]
    %v4601 = vld [vmem:[%s4597 + $0xc] sm:$0xf]
    %v4602 = vunpack.c.l.bf16 %v4598
    %v4603 = vunpack.c.l.bf16 %v4599
    %v4604 = vunpack.c.l.bf16 %v4600
    %v4605 = vunpack.c.l.bf16 %v4601
    %v4607 = vsel %vm633, %v4386, 0
    %v4610 = vsel %vm633, %v4387, 0
    %v4613 = vsel %vm633, %v4388, 0
    %v4616 = vsel %vm633, %v4389, 0
    %4618 = vmatprep.subr.mxu0 0.0
    %4619 = vmatpush1.msra.mxu0 0.0
    %4620 = vmatprep.subr.mxu0 0.0
    %4621 = vmatpush1.msra.mxu0 0.0
    %4622 = vmatprep.subr.mxu0 0.0
    %4623 = vmatpush1.msra.mxu0 0.0
    %4624 = vmatprep.subr.mxu0 0.0
    %4625 = vmatpush1.msra.mxu0 0.0
    %4626 = vmatprep.subr.mxu0 0.0
    %4627 = vmatpush1.msra.mxu0 0.0
    %4628 = vmatprep.subr.mxu0 0.0
    %4629 = vmatpush1.msra.mxu0 0.0
    %4630 = vmatprep.subr.mxu0 0.0
    %4631 = vmatpush1.msra.mxu0 0.0
    %4632 = vmatprep.subr.mxu0 0.0
    %4633 = vmatpush1.msra.mxu0 0.0
    %4634 = vmatprep.subr.mxu0 0.0
    %4635 = vmatpush1.msra.mxu0 0.0
    %4636 = vmatprep.subr.mxu0 0.0
    %4637 = vmatpush1.msra.mxu0 0.0
    %4638 = vmatprep.subr.mxu0 0.0
    %4639 = vmatpush1.msra.mxu0 0.0
    %4640 = vmatprep.subr.mxu0 0.0
    %4641 = vmatpush1.msra.mxu0 0.0
    %4642 = vmatprep.subr.mxu0 0.0
    %4643 = vmatpush1.msra.mxu0 %v4605
    %4644 = vmatprep.subr.mxu0 0.0
    %4645 = vmatpush1.msra.mxu0 %v4604
    %4646 = vmatprep.subr.mxu0 0.0
    %4647 = vmatpush1.msra.mxu0 %v4603
    %4648 = vmatprep.subr.mxu0 0.0
    %4649 = vmatpush1.msra.mxu0 %v4602
    %4650 = vmatprep.subr.mxu0 0.0
    %4651 = vmatpush2.msra.mxu0 0.0
    %4652 = vmatprep.subr.mxu0 0.0
    %4653 = vmatpush2.msra.mxu0 0.0
    %4654 = vmatprep.subr.mxu0 0.0
    %4655 = vmatpush2.msra.mxu0 0.0
    %4656 = vmatprep.subr.mxu0 0.0
    %4657 = vmatpush2.msra.mxu0 0.0
    %4658 = vmatprep.subr.mxu0 0.0
    %4659 = vmatpush2.msra.mxu0 0.0
    %4660 = vmatprep.subr.mxu0 0.0
    %4661 = vmatpush2.msra.mxu0 0.0
    %4662 = vmatprep.subr.mxu0 0.0
    %4663 = vmatpush2.msra.mxu0 0.0
    %4664 = vmatprep.subr.mxu0 0.0
    %4665 = vmatpush2.msra.mxu0 0.0
    %4666 = vmatprep.subr.mxu0 0.0
    %4667 = vmatpush2.msra.mxu0 0.0
    %4668 = vmatprep.subr.mxu0 0.0
    %4669 = vmatpush2.msra.mxu0 0.0
    %4670 = vmatprep.subr.mxu0 0.0
    %4671 = vmatpush2.msra.mxu0 0.0
    %4672 = vmatprep.subr.mxu0 0.0
    %4673 = vmatpush2.msra.mxu0 0.0
    %4674 = vmatprep.subr.mxu0 0.0
    %4675 = vmatpush2.msra.mxu0 0.0
    %4676 = vmatprep.subr.mxu0 0.0
    %4677 = vmatpush2.msra.mxu0 0.0
    %4678 = vmatprep.subr.mxu0 0.0
    %4679 = vmatpush2.msra.mxu0 0.0
    %4680 = vmatprep.subr.mxu0 0.0
    %4681 = vmatpush2.msra.mxu0 0.0
    %4682 = vmatprep.mubr.f32.mxu0 0.0
    %4683 = vmatmul.mubr.f32.gmra.mxu0 %v4607
    %v4684 = vpop.f32.mrf.mxu0
    %v4685 = vadd.f32 0.0, %v4684
    %v4686 = vpop.f32.mrf.mxu0
    %4687 = vmatprep.mubr.f32.mxu0 0.0
    %4688 = vmatmul.mubr.f32.gmra.mxu0 %v4610
    %v4689 = vpop.f32.mrf.mxu0
    %v4690 = vadd.f32 0.0, %v4689
    %v4691 = vpop.f32.mrf.mxu0
    %4692 = vmatprep.mubr.f32.mxu0 0.0
    %4693 = vmatmul.mubr.f32.gmra.mxu0 %v4613
    %v4694 = vpop.f32.mrf.mxu0
    %v4695 = vadd.f32 0.0, %v4694
    %v4696 = vpop.f32.mrf.mxu0
    %4697 = vmatprep.mubr.f32.mxu0 0.0
    %4698 = vmatmul.mubr.f32.gmra.mxu0 %v4616
    %v4699 = vpop.f32.mrf.mxu0
    %v4700 = vadd.f32 0.0, %v4699
    %v4701 = vpop.f32.mrf.mxu0
    %4702 = vdwg.mxu0
    %v4703 = vadd.f32 %v4579, %v4685
    %v4704 = vadd.f32 %v4584, %v4690
    %v4705 = vadd.f32 %v4589, %v4695
    %v4706 = vadd.f32 %v4594, %v4700
    %v4707 = vld [vmem:[#allocation22] sm:$0xf]
    %v4708 = vld [vmem:[#allocation22 + $0x4] sm:$0xf]
    %v4709 = vld [vmem:[#allocation22 + $0x8] sm:$0xf]
    %v4710 = vld [vmem:[#allocation22 + $0xc] sm:$0xf]
    %v4711 = vunpack.c.l.bf16 %v4707
    %v4712 = vunpack.c.l.bf16 %v4708
    %v4713 = vunpack.c.l.bf16 %v4709
    %v4714 = vunpack.c.l.bf16 %v4710
    %s4715 = scalar_lea.vmem [#allocation22], 16
    %v4716 = vld [vmem:[%s4715] sm:$0xf]
    %v4717 = vld [vmem:[%s4715 + $0x4] sm:$0xf]
    %v4718 = vld [vmem:[%s4715 + $0x8] sm:$0xf]
    %v4719 = vld [vmem:[%s4715 + $0xc] sm:$0xf]
    %v4720 = vunpack.c.l.bf16 %v4716
    %v4721 = vunpack.c.l.bf16 %v4717
    %v4722 = vunpack.c.l.bf16 %v4718
    %v4723 = vunpack.c.l.bf16 %v4719
    %4724 = vmatprep.subr.mxu0 0.0
    %4725 = vmatpush1.msra.mxu0 0.0
    %4726 = vmatprep.subr.mxu0 0.0
    %4727 = vmatpush1.msra.mxu0 0.0
    %4728 = vmatprep.subr.mxu0 0.0
    %4729 = vmatpush1.msra.mxu0 0.0
    %4730 = vmatprep.subr.mxu0 0.0
    %4731 = vmatpush1.msra.mxu0 0.0
    %4732 = vmatprep.subr.mxu0 0.0
    %4733 = vmatpush1.msra.mxu0 0.0
    %4734 = vmatprep.subr.mxu0 0.0
    %4735 = vmatpush1.msra.mxu0 0.0
    %4736 = vmatprep.subr.mxu0 0.0
    %4737 = vmatpush1.msra.mxu0 0.0
    %4738 = vmatprep.subr.mxu0 0.0
    %4739 = vmatpush1.msra.mxu0 0.0
    %4740 = vmatprep.subr.mxu0 0.0
    %4741 = vmatpush1.msra.mxu0 0.0
    %4742 = vmatprep.subr.mxu0 0.0
    %4743 = vmatpush1.msra.mxu0 0.0
    %4744 = vmatprep.subr.mxu0 0.0
    %4745 = vmatpush1.msra.mxu0 0.0
    %4746 = vmatprep.subr.mxu0 0.0
    %4747 = vmatpush1.msra.mxu0 0.0
    %4748 = vmatprep.subr.mxu0 0.0
    %4749 = vmatpush1.msra.mxu0 %v4723
    %4750 = vmatprep.subr.mxu0 0.0
    %4751 = vmatpush1.msra.mxu0 %v4722
    %4752 = vmatprep.subr.mxu0 0.0
    %4753 = vmatpush1.msra.mxu0 %v4721
    %4754 = vmatprep.subr.mxu0 0.0
    %4755 = vmatpush1.msra.mxu0 %v4720
    %4756 = vmatprep.subr.mxu0 0.0
    %4757 = vmatpush2.msra.mxu0 0.0
    %4758 = vmatprep.subr.mxu0 0.0
    %4759 = vmatpush2.msra.mxu0 0.0
    %4760 = vmatprep.subr.mxu0 0.0
    %4761 = vmatpush2.msra.mxu0 0.0
    %4762 = vmatprep.subr.mxu0 0.0
    %4763 = vmatpush2.msra.mxu0 0.0
    %4764 = vmatprep.subr.mxu0 0.0
    %4765 = vmatpush2.msra.mxu0 0.0
    %4766 = vmatprep.subr.mxu0 0.0
    %4767 = vmatpush2.msra.mxu0 0.0
    %4768 = vmatprep.subr.mxu0 0.0
    %4769 = vmatpush2.msra.mxu0 0.0
    %4770 = vmatprep.subr.mxu0 0.0
    %4771 = vmatpush2.msra.mxu0 0.0
    %4772 = vmatprep.subr.mxu0 0.0
    %4773 = vmatpush2.msra.mxu0 0.0
    %4774 = vmatprep.subr.mxu0 0.0
    %4775 = vmatpush2.msra.mxu0 0.0
    %4776 = vmatprep.subr.mxu0 0.0
    %4777 = vmatpush2.msra.mxu0 0.0
    %4778 = vmatprep.subr.mxu0 0.0
    %4779 = vmatpush2.msra.mxu0 0.0
    %4780 = vmatprep.subr.mxu0 0.0
    %4781 = vmatpush2.msra.mxu0 0.0
    %4782 = vmatprep.subr.mxu0 0.0
    %4783 = vmatpush2.msra.mxu0 0.0
    %4784 = vmatprep.subr.mxu0 0.0
    %4785 = vmatpush2.msra.mxu0 0.0
    %4786 = vmatprep.subr.mxu0 0.0
    %4787 = vmatpush2.msra.mxu0 0.0
    %4788 = vmatprep.mubr.f32.mxu0 0.0
    %4789 = vmatmul.mubr.f32.gmra.mxu0 %v634
    %v4790 = vpop.f32.mrf.mxu0
    %v4791 = vadd.f32 0.0, %v4790
    %v4792 = vpop.f32.mrf.mxu0
    %4793 = vmatprep.mubr.f32.mxu0 0.0
    %4794 = vmatmul.mubr.f32.gmra.mxu0 %v636
    %v4795 = vpop.f32.mrf.mxu0
    %v4796 = vadd.f32 0.0, %v4795
    %v4797 = vpop.f32.mrf.mxu0
    %4798 = vmatprep.mubr.f32.mxu0 0.0
    %4799 = vmatmul.mubr.f32.gmra.mxu0 %v638
    %v4800 = vpop.f32.mrf.mxu0
    %v4801 = vadd.f32 0.0, %v4800
    %v4802 = vpop.f32.mrf.mxu0
    %4803 = vmatprep.mubr.f32.mxu0 0.0
    %4804 = vmatmul.mubr.f32.gmra.mxu0 %v640
    %v4805 = vpop.f32.mrf.mxu0
    %v4806 = vadd.f32 0.0, %v4805
    %v4807 = vpop.f32.mrf.mxu0
    %4808 = vdwg.mxu0
    %4809 = vmatprep.subr.mxu0 0.0
    %4810 = vmatpush1.msra.mxu0 0.0
    %4811 = vmatprep.subr.mxu0 0.0
    %4812 = vmatpush1.msra.mxu0 0.0
    %4813 = vmatprep.subr.mxu0 0.0
    %4814 = vmatpush1.msra.mxu0 0.0
    %4815 = vmatprep.subr.mxu0 0.0
    %4816 = vmatpush1.msra.mxu0 0.0
    %4817 = vmatprep.subr.mxu0 0.0
    %4818 = vmatpush1.msra.mxu0 0.0
    %4819 = vmatprep.subr.mxu0 0.0
    %4820 = vmatpush1.msra.mxu0 0.0
    %4821 = vmatprep.subr.mxu0 0.0
    %4822 = vmatpush1.msra.mxu0 0.0
    %4823 = vmatprep.subr.mxu0 0.0
    %4824 = vmatpush1.msra.mxu0 0.0
    %4825 = vmatprep.subr.mxu0 0.0
    %4826 = vmatpush1.msra.mxu0 0.0
    %4827 = vmatprep.subr.mxu0 0.0
    %4828 = vmatpush1.msra.mxu0 0.0
    %4829 = vmatprep.subr.mxu0 0.0
    %4830 = vmatpush1.msra.mxu0 0.0
    %4831 = vmatprep.subr.mxu0 0.0
    %4832 = vmatpush1.msra.mxu0 0.0
    %4833 = vmatprep.subr.mxu0 0.0
    %4834 = vmatpush1.msra.mxu0 %v4714
    %4835 = vmatprep.subr.mxu0 0.0
    %4836 = vmatpush1.msra.mxu0 %v4713
    %4837 = vmatprep.subr.mxu0 0.0
    %4838 = vmatpush1.msra.mxu0 %v4712
    %4839 = vmatprep.subr.mxu0 0.0
    %4840 = vmatpush1.msra.mxu0 %v4711
    %4841 = vmatprep.subr.mxu0 0.0
    %4842 = vmatpush2.msra.mxu0 0.0
    %4843 = vmatprep.subr.mxu0 0.0
    %4844 = vmatpush2.msra.mxu0 0.0
    %4845 = vmatprep.subr.mxu0 0.0
    %4846 = vmatpush2.msra.mxu0 0.0
    %4847 = vmatprep.subr.mxu0 0.0
    %4848 = vmatpush2.msra.mxu0 0.0
    %4849 = vmatprep.subr.mxu0 0.0
    %4850 = vmatpush2.msra.mxu0 0.0
    %4851 = vmatprep.subr.mxu0 0.0
    %4852 = vmatpush2.msra.mxu0 0.0
    %4853 = vmatprep.subr.mxu0 0.0
    %4854 = vmatpush2.msra.mxu0 0.0
    %4855 = vmatprep.subr.mxu0 0.0
    %4856 = vmatpush2.msra.mxu0 0.0
    %4857 = vmatprep.subr.mxu0 0.0
    %4858 = vmatpush2.msra.mxu0 0.0
    %4859 = vmatprep.subr.mxu0 0.0
    %4860 = vmatpush2.msra.mxu0 0.0
    %4861 = vmatprep.subr.mxu0 0.0
    %4862 = vmatpush2.msra.mxu0 0.0
    %4863 = vmatprep.subr.mxu0 0.0
    %4864 = vmatpush2.msra.mxu0 0.0
    %4865 = vmatprep.subr.mxu0 0.0
    %4866 = vmatpush2.msra.mxu0 0.0
    %4867 = vmatprep.subr.mxu0 0.0
    %4868 = vmatpush2.msra.mxu0 0.0
    %4869 = vmatprep.subr.mxu0 0.0
    %4870 = vmatpush2.msra.mxu0 0.0
    %4871 = vmatprep.subr.mxu0 0.0
    %4872 = vmatpush2.msra.mxu0 0.0
    %4873 = vmatprep.mubr.f32.mxu0 0.0
    %4874 = vmatmul.mubr.f32.gmra.mxu0 %v728
    %v4875 = vpop.f32.mrf.mxu0
    %v4876 = vadd.f32 %v4791, %v4875
    %v4877 = vpop.f32.mrf.mxu0
    %4878 = vmatprep.mubr.f32.mxu0 0.0
    %4879 = vmatmul.mubr.f32.gmra.mxu0 %v731
    %v4880 = vpop.f32.mrf.mxu0
    %v4881 = vadd.f32 %v4796, %v4880
    %v4882 = vpop.f32.mrf.mxu0
    %4883 = vmatprep.mubr.f32.mxu0 0.0
    %4884 = vmatmul.mubr.f32.gmra.mxu0 %v734
    %v4885 = vpop.f32.mrf.mxu0
    %v4886 = vadd.f32 %v4801, %v4885
    %v4887 = vpop.f32.mrf.mxu0
    %4888 = vmatprep.mubr.f32.mxu0 0.0
    %4889 = vmatmul.mubr.f32.gmra.mxu0 %v737
    %v4890 = vpop.f32.mrf.mxu0
    %v4891 = vadd.f32 %v4806, %v4890
    %v4892 = vpop.f32.mrf.mxu0
    %4893 = vdwg.mxu0
    %s4894 = scalar_lea.vmem [#allocation22], 32
    %v4895 = vld [vmem:[%s4894] sm:$0xf]
    %v4896 = vld [vmem:[%s4894 + $0x4] sm:$0xf]
    %v4897 = vld [vmem:[%s4894 + $0x8] sm:$0xf]
    %v4898 = vld [vmem:[%s4894 + $0xc] sm:$0xf]
    %v4899 = vunpack.c.l.bf16 %v4895
    %v4900 = vunpack.c.l.bf16 %v4896
    %v4901 = vunpack.c.l.bf16 %v4897
    %v4902 = vunpack.c.l.bf16 %v4898
    %4903 = vmatprep.subr.mxu0 0.0
    %4904 = vmatpush1.msra.mxu0 0.0
    %4905 = vmatprep.subr.mxu0 0.0
    %4906 = vmatpush1.msra.mxu0 0.0
    %4907 = vmatprep.subr.mxu0 0.0
    %4908 = vmatpush1.msra.mxu0 0.0
    %4909 = vmatprep.subr.mxu0 0.0
    %4910 = vmatpush1.msra.mxu0 0.0
    %4911 = vmatprep.subr.mxu0 0.0
    %4912 = vmatpush1.msra.mxu0 0.0
    %4913 = vmatprep.subr.mxu0 0.0
    %4914 = vmatpush1.msra.mxu0 0.0
    %4915 = vmatprep.subr.mxu0 0.0
    %4916 = vmatpush1.msra.mxu0 0.0
    %4917 = vmatprep.subr.mxu0 0.0
    %4918 = vmatpush1.msra.mxu0 0.0
    %4919 = vmatprep.subr.mxu0 0.0
    %4920 = vmatpush1.msra.mxu0 0.0
    %4921 = vmatprep.subr.mxu0 0.0
    %4922 = vmatpush1.msra.mxu0 0.0
    %4923 = vmatprep.subr.mxu0 0.0
    %4924 = vmatpush1.msra.mxu0 0.0
    %4925 = vmatprep.subr.mxu0 0.0
    %4926 = vmatpush1.msra.mxu0 0.0
    %4927 = vmatprep.subr.mxu0 0.0
    %4928 = vmatpush1.msra.mxu0 %v4902
    %4929 = vmatprep.subr.mxu0 0.0
    %4930 = vmatpush1.msra.mxu0 %v4901
    %4931 = vmatprep.subr.mxu0 0.0
    %4932 = vmatpush1.msra.mxu0 %v4900
    %4933 = vmatprep.subr.mxu0 0.0
    %4934 = vmatpush1.msra.mxu0 %v4899
    %4935 = vmatprep.subr.mxu0 0.0
    %4936 = vmatpush2.msra.mxu0 0.0
    %4937 = vmatprep.subr.mxu0 0.0
    %4938 = vmatpush2.msra.mxu0 0.0
    %4939 = vmatprep.subr.mxu0 0.0
    %4940 = vmatpush2.msra.mxu0 0.0
    %4941 = vmatprep.subr.mxu0 0.0
    %4942 = vmatpush2.msra.mxu0 0.0
    %4943 = vmatprep.subr.mxu0 0.0
    %4944 = vmatpush2.msra.mxu0 0.0
    %4945 = vmatprep.subr.mxu0 0.0
    %4946 = vmatpush2.msra.mxu0 0.0
    %4947 = vmatprep.subr.mxu0 0.0
    %4948 = vmatpush2.msra.mxu0 0.0
    %4949 = vmatprep.subr.mxu0 0.0
    %4950 = vmatpush2.msra.mxu0 0.0
    %4951 = vmatprep.subr.mxu0 0.0
    %4952 = vmatpush2.msra.mxu0 0.0
    %4953 = vmatprep.subr.mxu0 0.0
    %4954 = vmatpush2.msra.mxu0 0.0
    %4955 = vmatprep.subr.mxu0 0.0
    %4956 = vmatpush2.msra.mxu0 0.0
    %4957 = vmatprep.subr.mxu0 0.0
    %4958 = vmatpush2.msra.mxu0 0.0
    %4959 = vmatprep.subr.mxu0 0.0
    %4960 = vmatpush2.msra.mxu0 0.0
    %4961 = vmatprep.subr.mxu0 0.0
    %4962 = vmatpush2.msra.mxu0 0.0
    %4963 = vmatprep.subr.mxu0 0.0
    %4964 = vmatpush2.msra.mxu0 0.0
    %4965 = vmatprep.subr.mxu0 0.0
    %4966 = vmatpush2.msra.mxu0 0.0
    %4967 = vmatprep.mubr.f32.mxu0 0.0
    %4968 = vmatmul.mubr.f32.gmra.mxu0 %v834
    %v4969 = vpop.f32.mrf.mxu0
    %v4970 = vadd.f32 0.0, %v4969
    %v4971 = vpop.f32.mrf.mxu0
    %4972 = vmatprep.mubr.f32.mxu0 0.0
    %4973 = vmatmul.mubr.f32.gmra.mxu0 %v837
    %v4974 = vpop.f32.mrf.mxu0
    %v4975 = vadd.f32 0.0, %v4974
    %v4976 = vpop.f32.mrf.mxu0
    %4977 = vmatprep.mubr.f32.mxu0 0.0
    %4978 = vmatmul.mubr.f32.gmra.mxu0 %v840
    %v4979 = vpop.f32.mrf.mxu0
    %v4980 = vadd.f32 0.0, %v4979
    %v4981 = vpop.f32.mrf.mxu0
    %4982 = vmatprep.mubr.f32.mxu0 0.0
    %4983 = vmatmul.mubr.f32.gmra.mxu0 %v843
    %v4984 = vpop.f32.mrf.mxu0
    %v4985 = vadd.f32 0.0, %v4984
    %v4986 = vpop.f32.mrf.mxu0
    %4987 = vdwg.mxu0
    %v4988 = vadd.f32 %v4876, %v4970
    %v4989 = vadd.f32 %v4881, %v4975
    %v4990 = vadd.f32 %v4886, %v4980
    %v4991 = vadd.f32 %v4891, %v4985
    %v4992 = vadd.f32 %v4703, %v4988
    %v4993 = vadd.f32 %v4704, %v4989
    %v4994 = vadd.f32 %v4705, %v4990
    %v4995 = vadd.f32 %v4706, %v4991
    %v4996 = vld [vmem:[#allocation23] sm:$0x1]
    %v4998 = vlaneseq
    %v4999 = vshrl.u32 %v4998, 7
    %v5000 = vsub.s32 0, %v4999
    %v5001 = vrot.slane %v4996, %v5000
    %v5003 = vadd.f32 %v4992, %v5001
    %v5004 = vadd.f32 %v4993, %v5001
    %v5005 = vadd.f32 %v4994, %v5001
    %v5006 = vadd.f32 %v4995, %v5001
    %v5007 = vmax.f32 %v5003, 0.0
    %v5008 = vmax.f32 %v5004, 0.0
    %v5009 = vmax.f32 %v5005, 0.0
    %v5010 = vmax.f32 %v5006, 0.0
    %v5012 = vrot.slane %v5010, 7
    %v5017 = vrot.slane %v5007, 7
    %v5018 = vrot.slane %v5008, 7
    %v5019 = vsel %vm566, %v5017, %v5018
    %v5020 = vrot.slane %v5009, 7
    %v5021 = vsel %vm566, %v5018, %v5020
    %v5022 = vsel %vm566, %v5020, %v5012
    %v5027 = vsel %vm566, %v5012, %v5017
    %v5028 = vsel %vm582, 0.0, %v5027
    %v5029 = vsel %vm583, 0.0, %v5019
    %v5030 = vsel %vm584, 0.0, %v5021
    %v5031 = vsel %vm585, 0.0, %v5022
    %v5032 = vrot.slane %v5007, 1
    %v5033 = vrot.slane %v5008, 1
    %v5034 = vsel %vm590, %v5032, %v5033
    %v5035 = vrot.slane %v5009, 1
    %v5036 = vsel %vm590, %v5033, %v5035
    %v5037 = vrot.slane %v5010, 1
    %v5038 = vsel %vm590, %v5035, %v5037
    %v5044 = vsel %vm590, %v5037, %v5032
    %v5045 = vsel %vm608, 0.0, %v5034
    %v5046 = vsel %vm609, 0.0, %v5036
    %v5047 = vsel %vm610, 0.0, %v5038
    %v5048 = vsel %vm611, 0.0, %v5044
    %v5049 = vld [vmem:[#allocation25] sm:$0xf]
    %v5050 = vld [vmem:[#allocation25 + $0x4] sm:$0xf]
    %v5051 = vld [vmem:[#allocation25 + $0x8] sm:$0xf]
    %v5052 = vld [vmem:[#allocation25 + $0xc] sm:$0xf]
    %v5053 = vunpack.c.l.bf16 %v5049
    %v5054 = vunpack.c.l.bf16 %v5050
    %v5055 = vunpack.c.l.bf16 %v5051
    %v5056 = vunpack.c.l.bf16 %v5052
    %s5057 = scalar_lea.vmem [#allocation25], 16
    %v5058 = vld [vmem:[%s5057] sm:$0xf]
    %v5059 = vld [vmem:[%s5057 + $0x4] sm:$0xf]
    %v5060 = vld [vmem:[%s5057 + $0x8] sm:$0xf]
    %v5061 = vld [vmem:[%s5057 + $0xc] sm:$0xf]
    %v5062 = vunpack.c.l.bf16 %v5058
    %v5063 = vunpack.c.l.bf16 %v5059
    %v5064 = vunpack.c.l.bf16 %v5060
    %v5065 = vunpack.c.l.bf16 %v5061
    %v5066 = vsel %vm633, %v5007, 0
    %v5068 = vsel %vm633, %v5008, 0
    %v5070 = vsel %vm633, %v5009, 0
    %v5072 = vsel %vm633, %v5010, 0
    %5074 = vmatprep.subr.mxu0 0.0
    %5075 = vmatpush1.msra.mxu0 0.0
    %5076 = vmatprep.subr.mxu0 0.0
    %5077 = vmatpush1.msra.mxu0 0.0
    %5078 = vmatprep.subr.mxu0 0.0
    %5079 = vmatpush1.msra.mxu0 0.0
    %5080 = vmatprep.subr.mxu0 0.0
    %5081 = vmatpush1.msra.mxu0 0.0
    %5082 = vmatprep.subr.mxu0 0.0
    %5083 = vmatpush1.msra.mxu0 0.0
    %5084 = vmatprep.subr.mxu0 0.0
    %5085 = vmatpush1.msra.mxu0 0.0
    %5086 = vmatprep.subr.mxu0 0.0
    %5087 = vmatpush1.msra.mxu0 0.0
    %5088 = vmatprep.subr.mxu0 0.0
    %5089 = vmatpush1.msra.mxu0 0.0
    %5090 = vmatprep.subr.mxu0 0.0
    %5091 = vmatpush1.msra.mxu0 0.0
    %5092 = vmatprep.subr.mxu0 0.0
    %5093 = vmatpush1.msra.mxu0 0.0
    %5094 = vmatprep.subr.mxu0 0.0
    %5095 = vmatpush1.msra.mxu0 0.0
    %5096 = vmatprep.subr.mxu0 0.0
    %5097 = vmatpush1.msra.mxu0 0.0
    %5098 = vmatprep.subr.mxu0 0.0
    %5099 = vmatpush1.msra.mxu0 %v5065
    %5100 = vmatprep.subr.mxu0 0.0
    %5101 = vmatpush1.msra.mxu0 %v5064
    %5102 = vmatprep.subr.mxu0 0.0
    %5103 = vmatpush1.msra.mxu0 %v5063
    %5104 = vmatprep.subr.mxu0 0.0
    %5105 = vmatpush1.msra.mxu0 %v5062
    %5106 = vmatprep.subr.mxu0 0.0
    %5107 = vmatpush2.msra.mxu0 0.0
    %5108 = vmatprep.subr.mxu0 0.0
    %5109 = vmatpush2.msra.mxu0 0.0
    %5110 = vmatprep.subr.mxu0 0.0
    %5111 = vmatpush2.msra.mxu0 0.0
    %5112 = vmatprep.subr.mxu0 0.0
    %5113 = vmatpush2.msra.mxu0 0.0
    %5114 = vmatprep.subr.mxu0 0.0
    %5115 = vmatpush2.msra.mxu0 0.0
    %5116 = vmatprep.subr.mxu0 0.0
    %5117 = vmatpush2.msra.mxu0 0.0
    %5118 = vmatprep.subr.mxu0 0.0
    %5119 = vmatpush2.msra.mxu0 0.0
    %5120 = vmatprep.subr.mxu0 0.0
    %5121 = vmatpush2.msra.mxu0 0.0
    %5122 = vmatprep.subr.mxu0 0.0
    %5123 = vmatpush2.msra.mxu0 0.0
    %5124 = vmatprep.subr.mxu0 0.0
    %5125 = vmatpush2.msra.mxu0 0.0
    %5126 = vmatprep.subr.mxu0 0.0
    %5127 = vmatpush2.msra.mxu0 0.0
    %5128 = vmatprep.subr.mxu0 0.0
    %5129 = vmatpush2.msra.mxu0 0.0
    %5130 = vmatprep.subr.mxu0 0.0
    %5131 = vmatpush2.msra.mxu0 0.0
    %5132 = vmatprep.subr.mxu0 0.0
    %5133 = vmatpush2.msra.mxu0 0.0
    %5134 = vmatprep.subr.mxu0 0.0
    %5135 = vmatpush2.msra.mxu0 0.0
    %5136 = vmatprep.subr.mxu0 0.0
    %5137 = vmatpush2.msra.mxu0 0.0
    %5138 = vmatprep.mubr.f32.mxu0 0.0
    %5139 = vmatmul.mubr.f32.gmra.mxu0 %v5066
    %v5140 = vpop.f32.mrf.mxu0
    %v5141 = vadd.f32 0.0, %v5140
    %v5142 = vpop.f32.mrf.mxu0
    %5143 = vmatprep.mubr.f32.mxu0 0.0
    %5144 = vmatmul.mubr.f32.gmra.mxu0 %v5068
    %v5145 = vpop.f32.mrf.mxu0
    %v5146 = vadd.f32 0.0, %v5145
    %v5147 = vpop.f32.mrf.mxu0
    %5148 = vmatprep.mubr.f32.mxu0 0.0
    %5149 = vmatmul.mubr.f32.gmra.mxu0 %v5070
    %v5150 = vpop.f32.mrf.mxu0
    %v5151 = vadd.f32 0.0, %v5150
    %v5152 = vpop.f32.mrf.mxu0
    %5153 = vmatprep.mubr.f32.mxu0 0.0
    %5154 = vmatmul.mubr.f32.gmra.mxu0 %v5072
    %v5155 = vpop.f32.mrf.mxu0
    %v5156 = vadd.f32 0.0, %v5155
    %v5157 = vpop.f32.mrf.mxu0
    %5158 = vdwg.mxu0
    %v5160 = vsel %vm633, %v5028, 0
    %v5163 = vsel %vm633, %v5029, 0
    %v5166 = vsel %vm633, %v5030, 0
    %v5169 = vsel %vm633, %v5031, 0
    %5171 = vmatprep.subr.mxu0 0.0
    %5172 = vmatpush1.msra.mxu0 0.0
    %5173 = vmatprep.subr.mxu0 0.0
    %5174 = vmatpush1.msra.mxu0 0.0
    %5175 = vmatprep.subr.mxu0 0.0
    %5176 = vmatpush1.msra.mxu0 0.0
    %5177 = vmatprep.subr.mxu0 0.0
    %5178 = vmatpush1.msra.mxu0 0.0
    %5179 = vmatprep.subr.mxu0 0.0
    %5180 = vmatpush1.msra.mxu0 0.0
    %5181 = vmatprep.subr.mxu0 0.0
    %5182 = vmatpush1.msra.mxu0 0.0
    %5183 = vmatprep.subr.mxu0 0.0
    %5184 = vmatpush1.msra.mxu0 0.0
    %5185 = vmatprep.subr.mxu0 0.0
    %5186 = vmatpush1.msra.mxu0 0.0
    %5187 = vmatprep.subr.mxu0 0.0
    %5188 = vmatpush1.msra.mxu0 0.0
    %5189 = vmatprep.subr.mxu0 0.0
    %5190 = vmatpush1.msra.mxu0 0.0
    %5191 = vmatprep.subr.mxu0 0.0
    %5192 = vmatpush1.msra.mxu0 0.0
    %5193 = vmatprep.subr.mxu0 0.0
    %5194 = vmatpush1.msra.mxu0 0.0
    %5195 = vmatprep.subr.mxu0 0.0
    %5196 = vmatpush1.msra.mxu0 %v5056
    %5197 = vmatprep.subr.mxu0 0.0
    %5198 = vmatpush1.msra.mxu0 %v5055
    %5199 = vmatprep.subr.mxu0 0.0
    %5200 = vmatpush1.msra.mxu0 %v5054
    %5201 = vmatprep.subr.mxu0 0.0
    %5202 = vmatpush1.msra.mxu0 %v5053
    %5203 = vmatprep.subr.mxu0 0.0
    %5204 = vmatpush2.msra.mxu0 0.0
    %5205 = vmatprep.subr.mxu0 0.0
    %5206 = vmatpush2.msra.mxu0 0.0
    %5207 = vmatprep.subr.mxu0 0.0
    %5208 = vmatpush2.msra.mxu0 0.0
    %5209 = vmatprep.subr.mxu0 0.0
    %5210 = vmatpush2.msra.mxu0 0.0
    %5211 = vmatprep.subr.mxu0 0.0
    %5212 = vmatpush2.msra.mxu0 0.0
    %5213 = vmatprep.subr.mxu0 0.0
    %5214 = vmatpush2.msra.mxu0 0.0
    %5215 = vmatprep.subr.mxu0 0.0
    %5216 = vmatpush2.msra.mxu0 0.0
    %5217 = vmatprep.subr.mxu0 0.0
    %5218 = vmatpush2.msra.mxu0 0.0
    %5219 = vmatprep.subr.mxu0 0.0
    %5220 = vmatpush2.msra.mxu0 0.0
    %5221 = vmatprep.subr.mxu0 0.0
    %5222 = vmatpush2.msra.mxu0 0.0
    %5223 = vmatprep.subr.mxu0 0.0
    %5224 = vmatpush2.msra.mxu0 0.0
    %5225 = vmatprep.subr.mxu0 0.0
    %5226 = vmatpush2.msra.mxu0 0.0
    %5227 = vmatprep.subr.mxu0 0.0
    %5228 = vmatpush2.msra.mxu0 0.0
    %5229 = vmatprep.subr.mxu0 0.0
    %5230 = vmatpush2.msra.mxu0 0.0
    %5231 = vmatprep.subr.mxu0 0.0
    %5232 = vmatpush2.msra.mxu0 0.0
    %5233 = vmatprep.subr.mxu0 0.0
    %5234 = vmatpush2.msra.mxu0 0.0
    %5235 = vmatprep.mubr.f32.mxu0 0.0
    %5236 = vmatmul.mubr.f32.gmra.mxu0 %v5160
    %v5237 = vpop.f32.mrf.mxu0
    %v5238 = vadd.f32 %v5141, %v5237
    %v5239 = vpop.f32.mrf.mxu0
    %5240 = vmatprep.mubr.f32.mxu0 0.0
    %5241 = vmatmul.mubr.f32.gmra.mxu0 %v5163
    %v5242 = vpop.f32.mrf.mxu0
    %v5243 = vadd.f32 %v5146, %v5242
    %v5244 = vpop.f32.mrf.mxu0
    %5245 = vmatprep.mubr.f32.mxu0 0.0
    %5246 = vmatmul.mubr.f32.gmra.mxu0 %v5166
    %v5247 = vpop.f32.mrf.mxu0
    %v5248 = vadd.f32 %v5151, %v5247
    %v5249 = vpop.f32.mrf.mxu0
    %5250 = vmatprep.mubr.f32.mxu0 0.0
    %5251 = vmatmul.mubr.f32.gmra.mxu0 %v5169
    %v5252 = vpop.f32.mrf.mxu0
    %v5253 = vadd.f32 %v5156, %v5252
    %v5254 = vpop.f32.mrf.mxu0
    %5255 = vdwg.mxu0
    %s5256 = scalar_lea.vmem [#allocation25], 32
    %v5257 = vld [vmem:[%s5256] sm:$0xf]
    %v5258 = vld [vmem:[%s5256 + $0x4] sm:$0xf]
    %v5259 = vld [vmem:[%s5256 + $0x8] sm:$0xf]
    %v5260 = vld [vmem:[%s5256 + $0xc] sm:$0xf]
    %v5261 = vunpack.c.l.bf16 %v5257
    %v5262 = vunpack.c.l.bf16 %v5258
    %v5263 = vunpack.c.l.bf16 %v5259
    %v5264 = vunpack.c.l.bf16 %v5260
    %v5266 = vsel %vm633, %v5045, 0
    %v5269 = vsel %vm633, %v5046, 0
    %v5272 = vsel %vm633, %v5047, 0
    %v5275 = vsel %vm633, %v5048, 0
    %5277 = vmatprep.subr.mxu0 0.0
    %5278 = vmatpush1.msra.mxu0 0.0
    %5279 = vmatprep.subr.mxu0 0.0
    %5280 = vmatpush1.msra.mxu0 0.0
    %5281 = vmatprep.subr.mxu0 0.0
    %5282 = vmatpush1.msra.mxu0 0.0
    %5283 = vmatprep.subr.mxu0 0.0
    %5284 = vmatpush1.msra.mxu0 0.0
    %5285 = vmatprep.subr.mxu0 0.0
    %5286 = vmatpush1.msra.mxu0 0.0
    %5287 = vmatprep.subr.mxu0 0.0
    %5288 = vmatpush1.msra.mxu0 0.0
    %5289 = vmatprep.subr.mxu0 0.0
    %5290 = vmatpush1.msra.mxu0 0.0
    %5291 = vmatprep.subr.mxu0 0.0
    %5292 = vmatpush1.msra.mxu0 0.0
    %5293 = vmatprep.subr.mxu0 0.0
    %5294 = vmatpush1.msra.mxu0 0.0
    %5295 = vmatprep.subr.mxu0 0.0
    %5296 = vmatpush1.msra.mxu0 0.0
    %5297 = vmatprep.subr.mxu0 0.0
    %5298 = vmatpush1.msra.mxu0 0.0
    %5299 = vmatprep.subr.mxu0 0.0
    %5300 = vmatpush1.msra.mxu0 0.0
    %5301 = vmatprep.subr.mxu0 0.0
    %5302 = vmatpush1.msra.mxu0 %v5264
    %5303 = vmatprep.subr.mxu0 0.0
    %5304 = vmatpush1.msra.mxu0 %v5263
    %5305 = vmatprep.subr.mxu0 0.0
    %5306 = vmatpush1.msra.mxu0 %v5262
    %5307 = vmatprep.subr.mxu0 0.0
    %5308 = vmatpush1.msra.mxu0 %v5261
    %5309 = vmatprep.subr.mxu0 0.0
    %5310 = vmatpush2.msra.mxu0 0.0
    %5311 = vmatprep.subr.mxu0 0.0
    %5312 = vmatpush2.msra.mxu0 0.0
    %5313 = vmatprep.subr.mxu0 0.0
    %5314 = vmatpush2.msra.mxu0 0.0
    %5315 = vmatprep.subr.mxu0 0.0
    %5316 = vmatpush2.msra.mxu0 0.0
    %5317 = vmatprep.subr.mxu0 0.0
    %5318 = vmatpush2.msra.mxu0 0.0
    %5319 = vmatprep.subr.mxu0 0.0
    %5320 = vmatpush2.msra.mxu0 0.0
    %5321 = vmatprep.subr.mxu0 0.0
    %5322 = vmatpush2.msra.mxu0 0.0
    %5323 = vmatprep.subr.mxu0 0.0
    %5324 = vmatpush2.msra.mxu0 0.0
    %5325 = vmatprep.subr.mxu0 0.0
    %5326 = vmatpush2.msra.mxu0 0.0
    %5327 = vmatprep.subr.mxu0 0.0
    %5328 = vmatpush2.msra.mxu0 0.0
    %5329 = vmatprep.subr.mxu0 0.0
    %5330 = vmatpush2.msra.mxu0 0.0
    %5331 = vmatprep.subr.mxu0 0.0
    %5332 = vmatpush2.msra.mxu0 0.0
    %5333 = vmatprep.subr.mxu0 0.0
    %5334 = vmatpush2.msra.mxu0 0.0
    %5335 = vmatprep.subr.mxu0 0.0
    %5336 = vmatpush2.msra.mxu0 0.0
    %5337 = vmatprep.subr.mxu0 0.0
    %5338 = vmatpush2.msra.mxu0 0.0
    %5339 = vmatprep.subr.mxu0 0.0
    %5340 = vmatpush2.msra.mxu0 0.0
    %5341 = vmatprep.mubr.f32.mxu0 0.0
    %5342 = vmatmul.mubr.f32.gmra.mxu0 %v5266
    %v5343 = vpop.f32.mrf.mxu0
    %v5344 = vadd.f32 0.0, %v5343
    %v5345 = vpop.f32.mrf.mxu0
    %5346 = vmatprep.mubr.f32.mxu0 0.0
    %5347 = vmatmul.mubr.f32.gmra.mxu0 %v5269
    %v5348 = vpop.f32.mrf.mxu0
    %v5349 = vadd.f32 0.0, %v5348
    %v5350 = vpop.f32.mrf.mxu0
    %5351 = vmatprep.mubr.f32.mxu0 0.0
    %5352 = vmatmul.mubr.f32.gmra.mxu0 %v5272
    %v5353 = vpop.f32.mrf.mxu0
    %v5354 = vadd.f32 0.0, %v5353
    %v5355 = vpop.f32.mrf.mxu0
    %5356 = vmatprep.mubr.f32.mxu0 0.0
    %5357 = vmatmul.mubr.f32.gmra.mxu0 %v5275
    %v5358 = vpop.f32.mrf.mxu0
    %v5359 = vadd.f32 0.0, %v5358
    %v5360 = vpop.f32.mrf.mxu0
    %5361 = vdwg.mxu0
    %v5362 = vadd.f32 %v5238, %v5344
    %v5363 = vadd.f32 %v5243, %v5349
    %v5364 = vadd.f32 %v5248, %v5354
    %v5365 = vadd.f32 %v5253, %v5359
    %v5366 = vld [vmem:[#allocation26] sm:$0x1]
    %v5368 = vlaneseq
    %v5369 = vshrl.u32 %v5368, 7
    %v5370 = vsub.s32 0, %v5369
    %v5371 = vrot.slane %v5366, %v5370
    %v5373 = vadd.f32 %v5362, %v5371
    %v5374 = vadd.f32 %v5363, %v5371
    %v5375 = vadd.f32 %v5364, %v5371
    %v5376 = vadd.f32 %v5365, %v5371
    %v5377 = vmax.f32 %v5373, 0.0
    %v5378 = vmax.f32 %v5374, 0.0
    %v5379 = vmax.f32 %v5375, 0.0
    %v5380 = vmax.f32 %v5376, 0.0
    %v5381 = vld [vmem:[%s26] sm:$0xff]
    %v5382 = vld [vmem:[%s26 + $0x8] sm:$0xff]
    %v5383 = vld [vmem:[%s26 + $0x10] sm:$0xff]
    %v5384 = vld [vmem:[%s26 + $0x18] sm:$0xff]
    %v5385 = vld [vmem:[#allocation2] sm:$0x1]
    %v5387 = vlaneseq
    %v5388 = vshrl.u32 %v5387, 7
    %v5389 = vsub.s32 0, %v5388
    %v5390 = vrot.slane %v5385, %v5389
    %v5393 = vsel %vm633, %v5377, 0
    %v5396 = vsel %vm633, %v5378, 0
    %v5399 = vsel %vm633, %v5379, 0
    %v5402 = vsel %vm633, %v5380, 0
    %5404 = vmatprep.subr.mxu0 0.0
    %5405 = vmatpush1.msra.mxu0 0.0
    %5406 = vmatprep.subr.mxu0 0.0
    %5407 = vmatpush1.msra.mxu0 0.0
    %5408 = vmatprep.subr.mxu0 0.0
    %5409 = vmatpush1.msra.mxu0 0.0
    %5410 = vmatprep.subr.mxu0 0.0
    %5411 = vmatpush1.msra.mxu0 0.0
    %5412 = vmatprep.subr.mxu0 0.0
    %5413 = vmatpush1.msra.mxu0 0.0
    %5414 = vmatprep.subr.mxu0 0.0
    %5415 = vmatpush1.msra.mxu0 0.0
    %5416 = vmatprep.subr.mxu0 0.0
    %5417 = vmatpush1.msra.mxu0 0.0
    %5418 = vmatprep.subr.mxu0 0.0
    %5419 = vmatpush1.msra.mxu0 0.0
    %5420 = vmatprep.subr.mxu0 0.0
    %5421 = vmatpush1.msra.mxu0 0.0
    %5422 = vmatprep.subr.mxu0 0.0
    %5423 = vmatpush1.msra.mxu0 0.0
    %5424 = vmatprep.subr.mxu0 0.0
    %5425 = vmatpush1.msra.mxu0 0.0
    %5426 = vmatprep.subr.mxu0 0.0
    %5427 = vmatpush1.msra.mxu0 0.0
    %5428 = vmatprep.subr.mxu0 0.0
    %5429 = vmatpush1.msra.mxu0 %v5384
    %5430 = vmatprep.subr.mxu0 0.0
    %5431 = vmatpush1.msra.mxu0 %v5383
    %5432 = vmatprep.subr.mxu0 0.0
    %5433 = vmatpush1.msra.mxu0 %v5382
    %5434 = vmatprep.subr.mxu0 0.0
    %5435 = vmatpush1.msra.mxu0 %v5381
    %5436 = vmatprep.subr.mxu0 0.0
    %5437 = vmatpush2.msra.mxu0 0.0
    %5438 = vmatprep.subr.mxu0 0.0
    %5439 = vmatpush2.msra.mxu0 0.0
    %5440 = vmatprep.subr.mxu0 0.0
    %5441 = vmatpush2.msra.mxu0 0.0
    %5442 = vmatprep.subr.mxu0 0.0
    %5443 = vmatpush2.msra.mxu0 0.0
    %5444 = vmatprep.subr.mxu0 0.0
    %5445 = vmatpush2.msra.mxu0 0.0
    %5446 = vmatprep.subr.mxu0 0.0
    %5447 = vmatpush2.msra.mxu0 0.0
    %5448 = vmatprep.subr.mxu0 0.0
    %5449 = vmatpush2.msra.mxu0 0.0
    %5450 = vmatprep.subr.mxu0 0.0
    %5451 = vmatpush2.msra.mxu0 0.0
    %5452 = vmatprep.subr.mxu0 0.0
    %5453 = vmatpush2.msra.mxu0 0.0
    %5454 = vmatprep.subr.mxu0 0.0
    %5455 = vmatpush2.msra.mxu0 0.0
    %5456 = vmatprep.subr.mxu0 0.0
    %5457 = vmatpush2.msra.mxu0 0.0
    %5458 = vmatprep.subr.mxu0 0.0
    %5459 = vmatpush2.msra.mxu0 0.0
    %5460 = vmatprep.subr.mxu0 0.0
    %5461 = vmatpush2.msra.mxu0 0.0
    %5462 = vmatprep.subr.mxu0 0.0
    %5463 = vmatpush2.msra.mxu0 0.0
    %5464 = vmatprep.subr.mxu0 0.0
    %5465 = vmatpush2.msra.mxu0 0.0
    %5466 = vmatprep.subr.mxu0 0.0
    %5467 = vmatpush2.msra.mxu0 0.0
    %5468 = vmatprep.mubr.f32.mxu0 0.0
    %5469 = vmatmul.mubr.f32.gmra.mxu0 %v5393
    %v5470 = vpop.f32.mrf.mxu0
    %v5471 = vadd.f32 %v5390, %v5470
    %v5472 = vpop.f32.mrf.mxu0
    %5473 = vmatprep.mubr.f32.mxu0 0.0
    %5474 = vmatmul.mubr.f32.gmra.mxu0 %v5396
    %v5475 = vpop.f32.mrf.mxu0
    %v5476 = vadd.f32 %v5390, %v5475
    %v5477 = vpop.f32.mrf.mxu0
    %5478 = vmatprep.mubr.f32.mxu0 0.0
    %5479 = vmatmul.mubr.f32.gmra.mxu0 %v5399
    %v5480 = vpop.f32.mrf.mxu0
    %v5481 = vadd.f32 %v5390, %v5480
    %v5482 = vpop.f32.mrf.mxu0
    %5483 = vmatprep.mubr.f32.mxu0 0.0
    %5484 = vmatmul.mubr.f32.gmra.mxu0 %v5402
    %v5485 = vpop.f32.mrf.mxu0
    %v5486 = vadd.f32 %v5390, %v5485
    %v5487 = vpop.f32.mrf.mxu0
    %5488 = vdwg.mxu0
    %5489 = vxpose.xlu0.b32.start [1/16] %v5471, 128
    %5490 = vxpose.xlu0.b32.cont [2/16] %v5476, 128
    %5491 = vxpose.xlu0.b32.cont [3/16] %v5481, 128
    %5492 = vxpose.xlu0.b32.cont [4/16] %v5486, 128
    %5493 = vxpose.xlu0.b32.cont [5/16] 0.0, 128
    %5494 = vxpose.xlu0.b32.cont [6/16] 0.0, 128
    %5495 = vxpose.xlu0.b32.cont [7/16] 0.0, 128
    %5496 = vxpose.xlu0.b32.cont [8/16] 0.0, 128
    %5497 = vxpose.xlu0.b32.cont [9/16] 0.0, 128
    %5498 = vxpose.xlu0.b32.cont [10/16] 0.0, 128
    %5499 = vxpose.xlu0.b32.cont [11/16] 0.0, 128
    %5500 = vxpose.xlu0.b32.cont [12/16] 0.0, 128
    %5501 = vxpose.xlu0.b32.cont [13/16] 0.0, 128
    %5502 = vxpose.xlu0.b32.cont [14/16] 0.0, 128
    %5503 = vxpose.xlu0.b32.cont [15/16] 0.0, 128
    %5504 = vxpose.xlu0.b32.end [16/16] 0.0, 128
    %v5505 = vpop.trf.xlu0
    %v5506 = vpop.trf.xlu0
    %v5507 = vpop.trf.xlu0
    %v5508 = vpop.trf.xlu0
    %v5509 = vpop.trf.xlu0
    %v5510 = vpop.trf.xlu0
    %v5511 = vpop.trf.xlu0
    %v5512 = vpop.trf.xlu0
    %v5513 = vpop.trf.xlu0
    %v5514 = vpop.trf.xlu0
    %v5515 = vpop.trf.xlu0
    %v5516 = vpop.trf.xlu0
    %v5517 = vpop.trf.xlu0
    %v5518 = vpop.trf.xlu0
    %v5519 = vpop.trf.xlu0
    %v5520 = vpop.trf.xlu0
    %vm5521 = vcmask 253952
    %5522 = vst.msk [vmem:[%s28] sm:$0x1] %vm5521, %v5505
    // Predicated region
    $region178: #{unet_forward.1} parent=1 // pred_check
      _
    $region179: #{unet_forward.1} parent=1 // pred_check_branch
      %5524 = sbr.rel (0) target = $region181
    $region180: #{unet_forward.1} parent=1 // pred_region
      _
    $region181: #{unet_forward.1} parent=1 // pred_fallthru
      _
    // Predicated region
    $region182: #{unet_forward.1} parent=1 // pred_check
      _
    $region183: #{unet_forward.1} parent=1 // pred_check_branch
      %5526 = sbr.rel (0) target = $region185
    $region184: #{unet_forward.1} parent=1 // pred_region
      _
    $region185: #{unet_forward.1} parent=1 // pred_fallthru
      _
    %5527 = vsyncpa [#allocation4], 1
    %5528 = vsyncpa [#allocation6], 1
    %5529 = vsyncpa [#allocation9], 1
    %5530 = vsyncpa [#allocation12], 1
    %5531 = vsyncpa [#allocation15], 1
    %5532 = vsyncpa [#allocation18], 1
    %5533 = vsyncpa [#allocation21], 1
    %5534 = vsyncpa [#allocation24], 1
    %5535 = vsyncpa [#allocation27], 1

</llo_original>
